<compile_context>
chip_gen: v6e
topology: v6e:2x2x1
jax: 0.10.0
libtpu: 0.0.40
codegen_flags: <defaults>
</compile_context>

<pallas_src>
import functools
import math

import jax
import jax.numpy as jnp
import numpy as np
from jax.experimental import pallas as pl
from jax.experimental.pallas import tpu as pltpu


# --------------------------- in-kernel helpers ----------------------------- #

def _layernorm(x, g, b, eps):
    mu = jnp.mean(x, axis=-1, keepdims=True)
    var = jnp.mean((x - mu) ** 2, axis=-1, keepdims=True)
    return (x - mu) * jax.lax.rsqrt(var + eps) * g + b


def _mha(q, k, v, wo, bo, mask, num_heads):
    """q: (B,Sq,D), k/v: (B,Sk,D), wo: (D,D) [in,out], bo: (1,D).
    Per-head scores/softmax/PV (static unroll over the small head count; keeps
    the known-good 'bqd,bkd->bqk' single-batch-dim einsum lowering), then one
    concat and a SINGLE lane-dense (B*Sq,D)@(D,D) output projection."""
    B, Sq, D = q.shape
    hd = D // num_heads
    scale = 1.0 / math.sqrt(hd)
    heads = []
    for h in range(num_heads):                       # static unroll, H is small
        sl = slice(h * hd, (h + 1) * hd)
        s = jnp.einsum('bqd,bkd->bqk', q[:, :, sl], k[:, :, sl],
                       preferred_element_type=jnp.float32) * scale
        if mask is not None:
            s = s + mask[None, :, :]
        s = s - jnp.max(s, axis=-1, keepdims=True)
        p = jnp.exp(s)
        p = p * pl.reciprocal(jnp.sum(p, axis=-1, keepdims=True), approx=True)
        heads.append(jnp.einsum('bqk,bkd->bqd', p, v[:, :, sl],
                                preferred_element_type=jnp.float32))
    o = jnp.concatenate(heads, axis=-1).reshape(B * Sq, D)
    return jnp.dot(o, wo, preferred_element_type=jnp.float32) + bo


def _embed_pe(x2, w, b, pe, B, S):
    """Linear token embedding + PositionalEncoding.forward:
    token_embedding + pos_encoding[:, :S, :]  (dropout = identity in eval)."""
    D = w.shape[1]
    e = jnp.dot(x2, w, preferred_element_type=jnp.float32) + b
    return (e.reshape(B, S, D) + pe[None, :, :]).reshape(B * S, D)


# ------------------------------ Pallas kernels ------------------------------ #

def _encoder_stack_kernel(x_ref, pe_ref, we_ref, be_ref,
                          wqkv_ref, bqkv_ref, wo_ref, bo_ref, g1_ref, bn1_ref,
                          w1_ref, bf1_ref, w2_ref, bf2_ref, g2_ref, bn2_ref,
                          w1m_ref, b1m_ref, w2m_ref, b2m_ref,
                          enc_ref, mode_ref, h_ref, *, num_heads, eps):
    l = pl.program_id(0)
    B, S, Din = x_ref.shape
    D = we_ref.shape[1]

    # ---- step 0: token embedding + PositionalEncoding into resident state ----
    @pl.when(l == 0)
    def _():
        x2 = x_ref[...].astype(jnp.float32).reshape(B * S, Din)
        h_ref[...] = _embed_pe(x2, we_ref[...], be_ref[...], pe_ref[...], B, S)

    x2 = h_ref[...]

    # ---- encoder layer l (weights DMA'd per grid step, double-buffered) ----
    qkv = jnp.dot(x2, wqkv_ref[0], preferred_element_type=jnp.float32) + bqkv_ref[0]
    q = qkv[:, 0:D].reshape(B, S, D)
    k = qkv[:, D:2 * D].reshape(B, S, D)
    v = qkv[:, 2 * D:3 * D].reshape(B, S, D)
    a = _mha(q, k, v, wo_ref[0], bo_ref[0], None, num_heads)
    x2 = _layernorm(x2 + a, g1_ref[0], bn1_ref[0], eps)

    h = jnp.maximum(jnp.dot(x2, w1_ref[0], preferred_element_type=jnp.float32)
                    + bf1_ref[0], 0.0)
    f = jnp.dot(h, w2_ref[0], preferred_element_type=jnp.float32) + bf2_ref[0]
    x2 = _layernorm(x2 + f, g2_ref[0], bn2_ref[0], eps)
    h_ref[...] = x2

    # ---- last step: emit encoder output + fused maneuver-probability head ----
    @pl.when(l == pl.num_programs(0) - 1)
    def _():
        x3 = x2.reshape(B, S, D)
        enc_ref[...] = x3.astype(enc_ref.dtype)
        # mode head on VMEM-resident data: flatten(B, S*D) @ W1 decomposed as a
        # sum over S (avoids a lane-merging reshape / HBM relayout).
        C = w1m_ref.shape[2]
        hm = jnp.zeros((B, C), jnp.float32) + b1m_ref[...]
        for s in range(S):                                   # static unroll
            hm = hm + jnp.dot(x3[:, s, :], w1m_ref[s],
                              preferred_element_type=jnp.float32)
        hm = jnp.maximum(hm, 0.0)
        mode_ref[...] = (jnp.dot(hm, w2m_ref[...], preferred_element_type=jnp.float32)
                         + b2m_ref[...]).astype(mode_ref.dtype)


def _decoder_stack_kernel(y_ref, pe_ref, we_ref, be_ref, mem_ref, mask_ref,
                          swqkv_ref, sbqkv_ref, swo_ref, sbo_ref, g1_ref, bn1_ref,
                          cwqkv_ref, cbqkv_ref, cwo_ref, cbo_ref, g2_ref, bn2_ref,
                          w1_ref, bf1_ref, w2_ref, bf2_ref, g3_ref, bn3_ref,
                          tw_ref, tb_ref,
                          traj_ref, y_scr, *, num_heads, eps):
    # grid = (NM, L): maneuver m = program_id(0) ("parallel"), layer l = id(1).
    l = pl.program_id(1)
    B, S, Dy = y_ref.shape
    D = we_ref.shape[1]
    Sm = mem_ref.shape[1]

    # ---- layer 0 of this maneuver: decoder embedding + PositionalEncoding ----
    @pl.when(l == 0)
    def _():
        y2 = y_ref[...].astype(jnp.float32).reshape(B * S, Dy)
        y_scr[...] = _embed_pe(y2, we_ref[...], be_ref[...], pe_ref[...], B, S)

    y2 = y_scr[...]
    mem2 = mem_ref[...].astype(jnp.float32).reshape(B * Sm, D)
    mask = mask_ref[...].astype(jnp.float32)

    # --- masked self-attention ---
    qkv = (jnp.dot(y2, swqkv_ref[0, 0], preferred_element_type=jnp.float32)
           + sbqkv_ref[0, 0])
    q = qkv[:, 0:D].reshape(B, S, D)
    k = qkv[:, D:2 * D].reshape(B, S, D)
    v = qkv[:, 2 * D:3 * D].reshape(B, S, D)
    a = _mha(q, k, v, swo_ref[0, 0], sbo_ref[0, 0], mask, num_heads)
    y2 = _layernorm(y2 + a, g1_ref[0, 0], bn1_ref[0, 0], eps)

    # --- cross-attention (q from tgt, k/v from encoder memory) ---
    # TODO(synk): the K/V projection of `mem` is identical across layers and
    # maneuvers and could be hoisted out of the (m,l) grid; skipped because at
    # D=32 / S=8 the FLOP saving is negligible and the lane-blocked layout it
    # needs conflicts with the (8,128) BlockSpec constraint at these dims.
    wc = cwqkv_ref[0, 0]
    bc = cbqkv_ref[0, 0]
    qc = (jnp.dot(y2, wc[:, 0:D], preferred_element_type=jnp.float32)
          + bc[:, 0:D]).reshape(B, S, D)
    kv = jnp.dot(mem2, wc[:, D:3 * D], preferred_element_type=jnp.float32) + bc[:, D:3 * D]
    kc = kv[:, 0:D].reshape(B, Sm, D)
    vc = kv[:, D:2 * D].reshape(B, Sm, D)
    c = _mha(qc, kc, vc, cwo_ref[0, 0], cbo_ref[0, 0], None, num_heads)
    y2 = _layernorm(y2 + c, g2_ref[0, 0], bn2_ref[0, 0], eps)

    # --- FFN ---
    h = jnp.maximum(jnp.dot(y2, w1_ref[0, 0], preferred_element_type=jnp.float32)
                    + bf1_ref[0, 0], 0.0)
    f = jnp.dot(h, w2_ref[0, 0], preferred_element_type=jnp.float32) + bf2_ref[0, 0]
    y2 = _layernorm(y2 + f, g3_ref[0, 0], bn3_ref[0, 0], eps)
    y_scr[...] = y2

    # ---- last layer of this maneuver: fused trajectory head ----
    @pl.when(l == pl.num_programs(1) - 1)
    def _():
        Dout = tw_ref.shape[2]
        t = jnp.dot(y2, tw_ref[0], preferred_element_type=jnp.float32) + tb_ref[0]
        traj_ref[...] = t.reshape(B, 1, S, Dout).astype(traj_ref.dtype)


# ------------------------------ kernel wrappers ----------------------------- #

def pallas_encoder_stack(x, prep, num_heads, eps=1e-5):
    B, S, Din = x.shape
    enc = prep["enc_stack"]
    D = prep["enc_embed"]["w"].shape[1]
    F = enc["w1"].shape[2]
    L = enc["wqkv"].shape[0]
    C = prep["mode_fc1"]["w"].shape[2]
    M = prep["mode_fc2"]["w"].shape[1]
    pe = prep["pos_encoding"][:S]

    def full(shape):
        nd = len(shape)
        return pl.BlockSpec(shape, lambda l, _n=nd: (0,) * _n)

    def per_layer(shape):
        nd = len(shape)
        return pl.BlockSpec((1,) + shape, lambda l, _n=nd: (l,) + (0,) * _n)

    kernel = functools.partial(_encoder_stack_kernel, num_heads=num_heads, eps=eps)
    return pl.pallas_call(
        kernel,
        out_shape=(jax.ShapeDtypeStruct((B, S, D), x.dtype),
                   jax.ShapeDtypeStruct((B, M), x.dtype)),
        grid=(L,),
        in_specs=[
            full((B, S, Din)), full((S, D)),
            full((Din, D)), full((1, D)),
            per_layer((D, 3 * D)), per_layer((1, 3 * D)),
            per_layer((D, D)), per_layer((1, D)),
            per_layer((1, D)), per_layer((1, D)),
            per_layer((D, F)), per_layer((1, F)),
            per_layer((F, D)), per_layer((1, D)),
            per_layer((1, D)), per_layer((1, D)),
            full((S, D, C)), full((1, C)), full((C, M)), full((1, M)),
        ],
        out_specs=(full((B, S, D)), full((B, M))),
        scratch_shapes=[pltpu.VMEM((B * S, D), jnp.float32)],
        compiler_params=pltpu.CompilerParams(dimension_semantics=("arbitrary",)),
    )(x, pe, prep["enc_embed"]["w"], prep["enc_embed"]["b"],
      enc["wqkv"], enc["bqkv"], enc["wo"], enc["bo"], enc["g1"], enc["bn1"],
      enc["w1"], enc["bf1"], enc["w2"], enc["bf2"], enc["g2"], enc["bn2"],
      prep["mode_fc1"]["w"], prep["mode_fc1"]["b"],
      prep["mode_fc2"]["w"], prep["mode_fc2"]["b"])


def pallas_decoder_stack(y, mem, mask, prep, num_heads, eps=1e-5):
    B, S, Dy = y.shape
    Sm = mem.shape[1]
    dec = prep["dec_stack"]
    D = prep["dec_embed"]["w"].shape[1]
    F = dec["w1"].shape[3]
    NM, L = dec["swqkv"].shape[0], dec["swqkv"].shape[1]
    Dout = prep["traj_fc"]["w"].shape[2]
    pe = prep["pos_encoding"][:S]

    def full(shape):
        nd = len(shape)
        return pl.BlockSpec(shape, lambda m, l, _n=nd: (0,) * _n)

    def per_ml(shape):
        nd = len(shape)
        return pl.BlockSpec((1, 1) + shape, lambda m, l, _n=nd: (m, l) + (0,) * _n)

    def per_m(shape):
        nd = len(shape)
        return pl.BlockSpec((1,) + shape, lambda m, l, _n=nd: (m,) + (0,) * _n)

    kernel = functools.partial(_decoder_stack_kernel, num_heads=num_heads, eps=eps)
    return pl.pallas_call(
        kernel,
        out_shape=jax.ShapeDtypeStruct((B, NM, S, Dout), y.dtype),
        grid=(NM, L),
        in_specs=[
            full((B, S, Dy)), full((S, D)),
            full((Dy, D)), full((1, D)),
            full((B, Sm, D)), full((S, S)),
            per_ml((D, 3 * D)), per_ml((1, 3 * D)), per_ml((D, D)), per_ml((1, D)),
            per_ml((1, D)), per_ml((1, D)),
            per_ml((D, 3 * D)), per_ml((1, 3 * D)), per_ml((D, D)), per_ml((1, D)),
            per_ml((1, D)), per_ml((1, D)),
            per_ml((D, F)), per_ml((1, F)), per_ml((F, D)), per_ml((1, D)),
            per_ml((1, D)), per_ml((1, D)),
            per_m((D, Dout)), per_m((1, Dout)),
        ],
        out_specs=pl.BlockSpec((B, 1, S, Dout), lambda m, l: (0, m, 0, 0)),
        scratch_shapes=[pltpu.VMEM((B * S, D), jnp.float32)],
        compiler_params=pltpu.CompilerParams(
            dimension_semantics=("parallel", "arbitrary")),
    )(y, pe, prep["dec_embed"]["w"], prep["dec_embed"]["b"], mem, mask,
      dec["swqkv"], dec["sbqkv"], dec["swo"], dec["sbo"], dec["g1"], dec["bn1"],
      dec["cwqkv"], dec["cbqkv"], dec["cwo"], dec["cbo"], dec["g2"], dec["bn2"],
      dec["w1"], dec["bf1"], dec["w2"], dec["bf2"], dec["g3"], dec["bn3"],
      prep["traj_fc"]["w"], prep["traj_fc"]["b"])


# ----------------------------- parameter init ------------------------------ #

def sinusoidal_pos_encoding(max_len, dim_model):
    pos = np.arange(max_len, dtype=np.float32)[:, None]
    div = np.exp(np.arange(0, dim_model, 2, dtype=np.float32)
                 * (-math.log(10000.0) / dim_model))
    pe = np.zeros((max_len, dim_model), np.float32)
    pe[:, 0::2] = np.sin(pos * div)
    pe[:, 1::2] = np.cos(pos * div)
    return jnp.asarray(pe)


def _init_linear(key, out_dim, in_dim, scale=0.05):
    k1, k2 = jax.random.split(key)
    return {"w": jax.random.normal(k1, (out_dim, in_dim), jnp.float32) * scale,
            "b": jax.random.normal(k2, (out_dim,), jnp.float32) * scale}


def _init_mha(key, D, scale=0.05):
    k1, k2, k3, k4 = jax.random.split(key, 4)
    return {"in_proj_w": jax.random.normal(k1, (3 * D, D), jnp.float32) * scale,
            "in_proj_b": jax.random.normal(k2, (3 * D,), jnp.float32) * scale,
            "out_w": jax.random.normal(k3, (D, D), jnp.float32) * scale,
            "out_b": jax.random.normal(k4, (D,), jnp.float32) * scale}


def _init_ln(D):
    return {"g": jnp.ones((D,), jnp.float32), "b": jnp.zeros((D,), jnp.float32)}


def _init_encoder_layer(key, D, F):
    k1, k2, k3 = jax.random.split(key, 3)
    return {"self_attn": _init_mha(k1, D),
            "ffn1": _init_linear(k2, F, D), "ffn2": _init_linear(k3, D, F),
            "norm1": _init_ln(D), "norm2": _init_ln(D)}


def _init_decoder_layer(key, D, F):
    k1, k2, k3, k4 = jax.random.split(key, 4)
    return {"self_attn": _init_mha(k1, D), "cross_attn": _init_mha(k2, D),
            "ffn1": _init_linear(k3, F, D), "ffn2": _init_linear(k4, D, F),
            "norm1": _init_ln(D), "norm2": _init_ln(D), "norm3": _init_ln(D)}


def init_smtp_params(key, cfg):
    D, F, L = cfg["model_dim"], cfg["ff_dim"], cfg["layers_num"]
    keys = jax.random.split(key, 16)
    return {
        "pos_encoding": sinusoidal_pos_encoding(100, D),
        "enc_embed": _init_linear(keys[0], D, cfg["input_dim"]),
        "dec_embed": _init_linear(keys[1], D, cfg["decoder_in_dim"]),
        "encoder_layers": [_init_encoder_layer(k, D, F)
                           for k in jax.random.split(keys[2], L)],
        "lk_decoder_layers": [_init_decoder_layer(k, D, F)
                              for k in jax.random.split(keys[3], L)],
        "rlc_decoder_layers": [_init_decoder_layer(k, D, F)
                               for k in jax.random.split(keys[4], L)],
        "llc_decoder_layers": [_init_decoder_layer(k, D, F)
                               for k in jax.random.split(keys[5], L)],
        "lk_fc": _init_linear(keys[6], cfg["output_dim"], D),
        "rlc_fc": _init_linear(keys[7], cfg["output_dim"], D),
        "llc_fc": _init_linear(keys[8], cfg["output_dim"], D),
        "mode_fc1": _init_linear(keys[9], cfg["classifier_dim"], cfg["in_seq_len"] * D),
        "mode_fc2": _init_linear(keys[10], cfg["n_mode"], cfg["classifier_dim"]),
    }


def prepare_params(params):
    """One-time prep: transpose PyTorch-layout weights to (in, out), reshape
    biases/LN params to (1, N), stack encoder-layer weights along a leading L
    axis and the three maneuver decoders along a leading (NM, L) axis, and
    reshape the mode-head fc1 to (S_in, D, C) so the flatten can be fused."""
    def lin_t(p):
        return {"w": jnp.transpose(p["w"]), "b": p["b"].reshape(1, -1)}

    enc_layers = params["encoder_layers"]
    L = len(enc_layers)

    def stack_enc(get):
        return jnp.stack([get(p) for p in enc_layers], axis=0)

    enc_stack = {
        "wqkv": stack_enc(lambda p: jnp.transpose(p["self_attn"]["in_proj_w"])),
        "bqkv": stack_enc(lambda p: p["self_attn"]["in_proj_b"].reshape(1, -1)),
        "wo":   stack_enc(lambda p: jnp.transpose(p["self_attn"]["out_w"])),
        "bo":   stack_enc(lambda p: p["self_attn"]["out_b"].reshape(1, -1)),
        "g1":   stack_enc(lambda p: p["norm1"]["g"].reshape(1, -1)),
        "bn1":  stack_enc(lambda p: p["norm1"]["b"].reshape(1, -1)),
        "w1":   stack_enc(lambda p: jnp.transpose(p["ffn1"]["w"])),
        "bf1":  stack_enc(lambda p: p["ffn1"]["b"].reshape(1, -1)),
        "w2":   stack_enc(lambda p: jnp.transpose(p["ffn2"]["w"])),
        "bf2":  stack_enc(lambda p: p["ffn2"]["b"].reshape(1, -1)),
        "g2":   stack_enc(lambda p: p["norm2"]["g"].reshape(1, -1)),
        "bn2":  stack_enc(lambda p: p["norm2"]["b"].reshape(1, -1)),
    }

    names = ("lk", "rlc", "llc")

    def stack_dec(get):
        return jnp.stack([
            jnp.stack([get(params[n + "_decoder_layers"][l]) for l in range(L)], axis=0)
            for n in names], axis=0)

    dec_stack = {
        "swqkv": stack_dec(lambda p: jnp.transpose(p["self_attn"]["in_proj_w"])),
        "sbqkv": stack_dec(lambda p: p["self_attn"]["in_proj_b"].reshape(1, -1)),
        "swo":   stack_dec(lambda p: jnp.transpose(p["self_attn"]["out_w"])),
        "sbo":   stack_dec(lambda p: p["self_attn"]["out_b"].reshape(1, -1)),
        "g1":    stack_dec(lambda p: p["norm1"]["g"].reshape(1, -1)),
        "bn1":   stack_dec(lambda p: p["norm1"]["b"].reshape(1, -1)),
        "cwqkv": stack_dec(lambda p: jnp.transpose(p["cross_attn"]["in_proj_w"])),
        "cbqkv": stack_dec(lambda p: p["cross_attn"]["in_proj_b"].reshape(1, -1)),
        "cwo":   stack_dec(lambda p: jnp.transpose(p["cross_attn"]["out_w"])),
        "cbo":   stack_dec(lambda p: p["cross_attn"]["out_b"].reshape(1, -1)),
        "g2":    stack_dec(lambda p: p["norm2"]["g"].reshape(1, -1)),
        "bn2":   stack_dec(lambda p: p["norm2"]["b"].reshape(1, -1)),
        "w1":    stack_dec(lambda p: jnp.transpose(p["ffn1"]["w"])),
        "bf1":   stack_dec(lambda p: p["ffn1"]["b"].reshape(1, -1)),
        "w2":    stack_dec(lambda p: jnp.transpose(p["ffn2"]["w"])),
        "bf2":   stack_dec(lambda p: p["ffn2"]["b"].reshape(1, -1)),
        "g3":    stack_dec(lambda p: p["norm3"]["g"].reshape(1, -1)),
        "bn3":   stack_dec(lambda p: p["norm3"]["b"].reshape(1, -1)),
    }

    traj_fc = {"w": jnp.stack([jnp.transpose(params[n + "_fc"]["w"]) for n in names]),
               "b": jnp.stack([params[n + "_fc"]["b"].reshape(1, -1) for n in names])}

    D = params["enc_embed"]["w"].shape[0]
    w1m = jnp.transpose(params["mode_fc1"]["w"])               # (S_in*D, C)
    S_in = w1m.shape[0] // D
    mode_fc1 = {"w": w1m.reshape(S_in, D, w1m.shape[1]),
                "b": params["mode_fc1"]["b"].reshape(1, -1)}

    return {"pos_encoding": params["pos_encoding"],
            "enc_embed": lin_t(params["enc_embed"]),
            "dec_embed": lin_t(params["dec_embed"]),
            "enc_stack": enc_stack,
            "dec_stack": dec_stack,
            "traj_fc": traj_fc,
            "mode_fc1": mode_fc1,
            "mode_fc2": lin_t(params["mode_fc2"])}


# -------------------------------- forward ---------------------------------- #

def smtp_forward(prep, x, y, y_mask, cfg):
    H = cfg["head_num"]
    # One fused pallas_call: embed + PE, L encoder layers, mode head.
    encoder_out, mode_prob_pred = pallas_encoder_stack(x, prep, H)
    # One fused pallas_call: embed + PE, 3 maneuver decoder stacks, traj heads.
    y_in = y[:, :, :cfg["decoder_in_dim"]]
    traj_pred = pallas_decoder_stack(y_in, encoder_out, y_mask, prep, H)
    # TODO(synk): utils.prob_activation_func not defined in reference; prob_output=False path used.
    return {"traj_pred": traj_pred, "mode_prob_pred": mode_prob_pred}


# ---------------------------------- main ------------------------------------ #

if __name__ == "__main__":
    cfg = {
        "model_dim": 32,
        "ff_dim": 64,
        "layers_num": 2,
        "classifier_dim": 32,
        "head_num": 4,
        "n_mode": 3,
        "in_seq_len": 8,
        "tgt_seq_len": 8,
        "input_dim": 4,          # FEATURE_SIZE, USE_MAP_FEATURES=False
        "decoder_in_dim": 2,
        "output_dim": 2,         # prob_output=False
    }
    batch_size = 2

    key = jax.random.PRNGKey(0)
    kp, kx, ky = jax.random.split(key, 3)
    params = init_smtp_params(kp, cfg)
    prep = prepare_params(params)    # one-time weight transpose / stacking

    x = jax.random.normal(kx, (batch_size, cfg["in_seq_len"], cfg["input_dim"]), jnp.float32)
    y = jax.random.normal(ky, (batch_size, cfg["tgt_seq_len"], cfg["decoder_in_dim"]), jnp.float32)

    S = cfg["tgt_seq_len"]
    y_mask = jnp.where(jnp.triu(jnp.ones((S, S), jnp.bool_), k=1), -1e9, 0.0).astype(jnp.float32)

    fwd = jax.jit(functools.partial(smtp_forward, cfg=cfg))
    out = fwd(prep, x, y, y_mask)
    out = jax.tree_util.tree_map(jax.block_until_ready, out)

    assert out["traj_pred"].shape == (batch_size, 3, cfg["tgt_seq_len"], cfg["output_dim"])
    assert out["mode_prob_pred"].shape == (batch_size, cfg["n_mode"])
    assert jnp.all(jnp.isfinite(out["traj_pred"])) and jnp.all(jnp.isfinite(out["mode_prob_pred"]))
    print("KERNEL_OK")
</pallas_src>

<mosaic_0001>
module attributes {stable_mosaic.version = 11 : i64} {
  func.func @_encoder_stack_kernel(%arg0: i32, %arg1: memref<2x8x4xf32, #tpu.memory_space<vmem>>, %arg2: memref<8x32xf32, #tpu.memory_space<vmem>>, %arg3: memref<4x32xf32, #tpu.memory_space<vmem>>, %arg4: memref<1x32xf32, #tpu.memory_space<vmem>>, %arg5: memref<1x32x96xf32, #tpu.memory_space<vmem>>, %arg6: memref<1x1x96xf32, #tpu.memory_space<vmem>>, %arg7: memref<1x32x32xf32, #tpu.memory_space<vmem>>, %arg8: memref<1x1x32xf32, #tpu.memory_space<vmem>>, %arg9: memref<1x1x32xf32, #tpu.memory_space<vmem>>, %arg10: memref<1x1x32xf32, #tpu.memory_space<vmem>>, %arg11: memref<1x32x64xf32, #tpu.memory_space<vmem>>, %arg12: memref<1x1x64xf32, #tpu.memory_space<vmem>>, %arg13: memref<1x64x32xf32, #tpu.memory_space<vmem>>, %arg14: memref<1x1x32xf32, #tpu.memory_space<vmem>>, %arg15: memref<1x1x32xf32, #tpu.memory_space<vmem>>, %arg16: memref<1x1x32xf32, #tpu.memory_space<vmem>>, %arg17: memref<8x32x32xf32, #tpu.memory_space<vmem>>, %arg18: memref<1x32xf32, #tpu.memory_space<vmem>>, %arg19: memref<32x3xf32, #tpu.memory_space<vmem>>, %arg20: memref<1x3xf32, #tpu.memory_space<vmem>>, %arg21: memref<2x8x32xf32, #tpu.memory_space<vmem>>, %arg22: memref<2x3xf32, #tpu.memory_space<vmem>>, %arg23: memref<16x32xf32, #tpu.memory_space<vmem>>) attributes {dimension_semantics = [#tpu.dimension_semantics<arbitrary>], iteration_bounds = array<i64: 2>, scalar_prefetch = 0 : i64, scratch_operands = 1 : i64, tpu.core_type = #tpu.core_type<tc>, window_params = [{pipeline_mode = #tpu.pipeline_mode<synchronous>, transform_indices = @transform_0, window_bounds = array<i64: 2, 8, 4>}, {pipeline_mode = #tpu.pipeline_mode<synchronous>, transform_indices = @transform_1, window_bounds = array<i64: 8, 32>}, {pipeline_mode = #tpu.pipeline_mode<synchronous>, transform_indices = @transform_2, window_bounds = array<i64: 4, 32>}, {pipeline_mode = #tpu.pipeline_mode<synchronous>, transform_indices = @transform_3, window_bounds = array<i64: 1, 32>}, {transform_indices = @transform_4, window_bounds = array<i64: 1, 32, 96>}, {transform_indices = @transform_5, window_bounds = array<i64: 1, 1, 96>}, {transform_indices = @transform_6, window_bounds = array<i64: 1, 32, 32>}, {transform_indices = @transform_7, window_bounds = array<i64: 1, 1, 32>}, {transform_indices = @transform_8, window_bounds = array<i64: 1, 1, 32>}, {transform_indices = @transform_9, window_bounds = array<i64: 1, 1, 32>}, {transform_indices = @transform_10, window_bounds = array<i64: 1, 32, 64>}, {transform_indices = @transform_11, window_bounds = array<i64: 1, 1, 64>}, {transform_indices = @transform_12, window_bounds = array<i64: 1, 64, 32>}, {transform_indices = @transform_13, window_bounds = array<i64: 1, 1, 32>}, {transform_indices = @transform_14, window_bounds = array<i64: 1, 1, 32>}, {transform_indices = @transform_15, window_bounds = array<i64: 1, 1, 32>}, {pipeline_mode = #tpu.pipeline_mode<synchronous>, transform_indices = @transform_16, window_bounds = array<i64: 8, 32, 32>}, {pipeline_mode = #tpu.pipeline_mode<synchronous>, transform_indices = @transform_17, window_bounds = array<i64: 1, 32>}, {pipeline_mode = #tpu.pipeline_mode<synchronous>, transform_indices = @transform_18, window_bounds = array<i64: 32, 3>}, {pipeline_mode = #tpu.pipeline_mode<synchronous>, transform_indices = @transform_19, window_bounds = array<i64: 1, 3>}, {pipeline_mode = #tpu.pipeline_mode<synchronous>, transform_indices = @transform_20, window_bounds = array<i64: 2, 8, 32>}, {pipeline_mode = #tpu.pipeline_mode<synchronous>, transform_indices = @transform_21, window_bounds = array<i64: 2, 3>}]} {
    %c0_i32 = arith.constant 0 : i32
    %0 = arith.cmpi eq, %arg0, %c0_i32 : i32
    %1 = arith.extui %0 : i1 to i32
    %c0_i32_0 = arith.constant 0 : i32
    %2 = arith.cmpi ne, %1, %c0_i32_0 : i32
    scf.if %2 {
      %c0_75 = arith.constant 0 : index
      %c0_76 = arith.constant 0 : index
      %c0_77 = arith.constant 0 : index
      %168 = vector.load %arg1[%c0_75, %c0_76, %c0_77] : memref<2x8x4xf32, #tpu.memory_space<vmem>>, vector<2x8x4xf32>
      %169 = vector.shape_cast %168 : vector<2x8x4xf32> to vector<16x4xf32>
      %c0_78 = arith.constant 0 : index
      %c0_79 = arith.constant 0 : index
      %170 = vector.load %arg3[%c0_78, %c0_79] : memref<4x32xf32, #tpu.memory_space<vmem>>, vector<4x32xf32>
      %c0_80 = arith.constant 0 : index
      %c0_81 = arith.constant 0 : index
      %171 = vector.load %arg4[%c0_80, %c0_81] : memref<1x32xf32, #tpu.memory_space<vmem>>, vector<1x32xf32>
      %c0_82 = arith.constant 0 : index
      %c0_83 = arith.constant 0 : index
      %172 = vector.load %arg2[%c0_82, %c0_83] : memref<8x32xf32, #tpu.memory_space<vmem>>, vector<8x32xf32>
      %cst_84 = arith.constant dense<0.000000e+00> : vector<16x32xf32>
      %173 = tpu.matmul %169, %170, %cst_84 {dimension_numbers = #tpu.dot_dimension_numbers<[1], [0], [0], [1], [0, 0, 1, 1], [], []>} : vector<16x4xf32>, vector<4x32xf32>, vector<16x32xf32> -> vector<16x32xf32>
      %174 = vector.broadcast %171 : vector<1x32xf32> to vector<16x32xf32>
      %175 = arith.addf %173, %174 : vector<16x32xf32>
      %176 = vector.shape_cast %175 : vector<16x32xf32> to vector<2x8x32xf32>
      %177 = vector.shape_cast %172 : vector<8x32xf32> to vector<1x8x32xf32>
      %178 = vector.broadcast %177 : vector<1x8x32xf32> to vector<2x8x32xf32>
      %179 = arith.addf %176, %178 : vector<2x8x32xf32>
      %180 = vector.shape_cast %179 : vector<2x8x32xf32> to vector<16x32xf32>
      %c0_85 = arith.constant 0 : index
      %c0_86 = arith.constant 0 : index
      %181 = vector.load %arg23[%c0_85, %c0_86] : memref<16x32xf32, #tpu.memory_space<vmem>>, vector<16x32xf32>
      tpu.vector_store %arg23[%c0_85, %c0_86], %180 {strides = array<i32>} : memref<16x32xf32, #tpu.memory_space<vmem>>, vector<16x32xf32>,
    } else {
    }
    %c0 = arith.constant 0 : index
    %c0_1 = arith.constant 0 : index
    %3 = vector.load %arg23[%c0, %c0_1] : memref<16x32xf32, #tpu.memory_space<vmem>>, vector<16x32xf32>
    %c0_2 = arith.constant 0 : index
    %c0_3 = arith.constant 0 : index
    %c0_4 = arith.constant 0 : index
    %4 = vector.load %arg5[%c0_2, %c0_3, %c0_4] : memref<1x32x96xf32, #tpu.memory_space<vmem>>, vector<1x32x96xf32>
    %5 = vector.shape_cast %4 : vector<1x32x96xf32> to vector<32x96xf32>
    %cst = arith.constant dense<0.000000e+00> : vector<16x96xf32>
    %6 = tpu.matmul %3, %5, %cst {dimension_numbers = #tpu.dot_dimension_numbers<[1], [0], [0], [1], [0, 0, 1, 1], [], []>} : vector<16x32xf32>, vector<32x96xf32>, vector<16x96xf32> -> vector<16x96xf32>
    %c0_5 = arith.constant 0 : index
    %c0_6 = arith.constant 0 : index
    %c0_7 = arith.constant 0 : index
    %7 = vector.load %arg6[%c0_5, %c0_6, %c0_7] : memref<1x1x96xf32, #tpu.memory_space<vmem>>, vector<1x1x96xf32>
    %8 = vector.shape_cast %7 : vector<1x1x96xf32> to vector<1x96xf32>
    %9 = vector.broadcast %8 : vector<1x96xf32> to vector<16x96xf32>
    %10 = arith.addf %6, %9 : vector<16x96xf32>
    %11 = vector.extract_strided_slice %10 {offsets = [0, 0], sizes = [16, 32], strides = [1, 1]} : vector<16x96xf32> to vector<16x32xf32>
    %12 = vector.shape_cast %11 : vector<16x32xf32> to vector<2x8x32xf32>
    %13 = vector.extract_strided_slice %10 {offsets = [0, 32], sizes = [16, 32], strides = [1, 1]} : vector<16x96xf32> to vector<16x32xf32>
    %14 = vector.shape_cast %13 : vector<16x32xf32> to vector<2x8x32xf32>
    %15 = vector.extract_strided_slice %10 {offsets = [0, 64], sizes = [16, 32], strides = [1, 1]} : vector<16x96xf32> to vector<16x32xf32>
    %16 = vector.shape_cast %15 : vector<16x32xf32> to vector<2x8x32xf32>
    %c0_8 = arith.constant 0 : index
    %c0_9 = arith.constant 0 : index
    %c0_10 = arith.constant 0 : index
    %17 = vector.load %arg7[%c0_8, %c0_9, %c0_10] : memref<1x32x32xf32, #tpu.memory_space<vmem>>, vector<1x32x32xf32>
    %18 = vector.shape_cast %17 : vector<1x32x32xf32> to vector<32x32xf32>
    %c0_11 = arith.constant 0 : index
    %c0_12 = arith.constant 0 : index
    %c0_13 = arith.constant 0 : index
    %19 = vector.load %arg8[%c0_11, %c0_12, %c0_13] : memref<1x1x32xf32, #tpu.memory_space<vmem>>, vector<1x1x32xf32>
    %20 = vector.shape_cast %19 : vector<1x1x32xf32> to vector<1x32xf32>
    %21 = vector.extract_strided_slice %12 {offsets = [0, 0, 0], sizes = [2, 8, 8], strides = [1, 1, 1]} : vector<2x8x32xf32> to vector<2x8x8xf32>
    %22 = vector.extract_strided_slice %14 {offsets = [0, 0, 0], sizes = [2, 8, 8], strides = [1, 1, 1]} : vector<2x8x32xf32> to vector<2x8x8xf32>
    "tpu.trace_start"() <{level = 10 : i32, message = "bqd,bkd->bqk"}> : () -> ()
    %cst_14 = arith.constant dense<0.000000e+00> : vector<2x8x8xf32>
    %23 = tpu.matmul %21, %22, %cst_14 {dimension_numbers = #tpu.dot_dimension_numbers<[2], [2], [1], [1], [0, 0, 0, 1, 1, 1], [0], [0]>} : vector<2x8x8xf32>, vector<2x8x8xf32>, vector<2x8x8xf32> -> vector<2x8x8xf32>
    "tpu.trace_stop"() : () -> ()
    %cst_15 = arith.constant 0.353553385 : f32
    %24 = vector.broadcast %cst_15 : f32 to vector<2x8x8xf32>
    %25 = arith.mulf %23, %24 : vector<2x8x8xf32>
    %cst_16 = arith.constant dense<0xFF800000> : vector<2x8xf32>
    %26 = vector.multi_reduction <maximumf>, %25, %cst_16 [2] : vector<2x8x8xf32> to vector<2x8xf32>
    %27 = vector.shape_cast %26 : vector<2x8xf32> to vector<2x8x1xf32>
    %28 = vector.broadcast %27 : vector<2x8x1xf32> to vector<2x8x8xf32>
    %29 = arith.subf %25, %28 : vector<2x8x8xf32>
    %30 = math.exp %29 : vector<2x8x8xf32>
    %cst_17 = arith.constant dense<0.000000e+00> : vector<2x8xf32>
    %31 = vector.multi_reduction <add>, %30, %cst_17 [2] : vector<2x8x8xf32> to vector<2x8xf32>
    %32 = vector.shape_cast %31 : vector<2x8xf32> to vector<2x8x1xf32>
    %33 = tpu.reciprocal %32 {approx = true} : vector<2x8x1xf32> -> vector<2x8x1xf32>
    %34 = vector.broadcast %33 : vector<2x8x1xf32> to vector<2x8x8xf32>
    %35 = arith.mulf %30, %34 : vector<2x8x8xf32>
    %36 = vector.extract_strided_slice %16 {offsets = [0, 0, 0], sizes = [2, 8, 8], strides = [1, 1, 1]} : vector<2x8x32xf32> to vector<2x8x8xf32>
    "tpu.trace_start"() <{level = 10 : i32, message = "bqk,bkd->bqd"}> : () -> ()
    %cst_18 = arith.constant dense<0.000000e+00> : vector<2x8x8xf32>
    %37 = tpu.matmul %35, %36, %cst_18 {dimension_numbers = #tpu.dot_dimension_numbers<[2], [1], [1], [2], [0, 0, 0, 1, 1, 2], [0], [0]>} : vector<2x8x8xf32>, vector<2x8x8xf32>, vector<2x8x8xf32> -> vector<2x8x8xf32>
    "tpu.trace_stop"() : () -> ()
    %38 = vector.extract_strided_slice %12 {offsets = [0, 0, 8], sizes = [2, 8, 8], strides = [1, 1, 1]} : vector<2x8x32xf32> to vector<2x8x8xf32>
    %39 = vector.extract_strided_slice %14 {offsets = [0, 0, 8], sizes = [2, 8, 8], strides = [1, 1, 1]} : vector<2x8x32xf32> to vector<2x8x8xf32>
    "tpu.trace_start"() <{level = 10 : i32, message = "bqd,bkd->bqk"}> : () -> ()
    %cst_19 = arith.constant dense<0.000000e+00> : vector<2x8x8xf32>
    %40 = tpu.matmul %38, %39, %cst_19 {dimension_numbers = #tpu.dot_dimension_numbers<[2], [2], [1], [1], [0, 0, 0, 1, 1, 1], [0], [0]>} : vector<2x8x8xf32>, vector<2x8x8xf32>, vector<2x8x8xf32> -> vector<2x8x8xf32>
    "tpu.trace_stop"() : () -> ()
    %cst_20 = arith.constant 0.353553385 : f32
    %41 = vector.broadcast %cst_20 : f32 to vector<2x8x8xf32>
    %42 = arith.mulf %40, %41 : vector<2x8x8xf32>
    %cst_21 = arith.constant dense<0xFF800000> : vector<2x8xf32>
    %43 = vector.multi_reduction <maximumf>, %42, %cst_21 [2] : vector<2x8x8xf32> to vector<2x8xf32>
    %44 = vector.shape_cast %43 : vector<2x8xf32> to vector<2x8x1xf32>
    %45 = vector.broadcast %44 : vector<2x8x1xf32> to vector<2x8x8xf32>
    %46 = arith.subf %42, %45 : vector<2x8x8xf32>
    %47 = math.exp %46 : vector<2x8x8xf32>
    %cst_22 = arith.constant dense<0.000000e+00> : vector<2x8xf32>
    %48 = vector.multi_reduction <add>, %47, %cst_22 [2] : vector<2x8x8xf32> to vector<2x8xf32>
    %49 = vector.shape_cast %48 : vector<2x8xf32> to vector<2x8x1xf32>
    %50 = tpu.reciprocal %49 {approx = true} : vector<2x8x1xf32> -> vector<2x8x1xf32>
    %51 = vector.broadcast %50 : vector<2x8x1xf32> to vector<2x8x8xf32>
    %52 = arith.mulf %47, %51 : vector<2x8x8xf32>
    %53 = vector.extract_strided_slice %16 {offsets = [0, 0, 8], sizes = [2, 8, 8], strides = [1, 1, 1]} : vector<2x8x32xf32> to vector<2x8x8xf32>
    "tpu.trace_start"() <{level = 10 : i32, message = "bqk,bkd->bqd"}> : () -> ()
    %cst_23 = arith.constant dense<0.000000e+00> : vector<2x8x8xf32>
    %54 = tpu.matmul %52, %53, %cst_23 {dimension_numbers = #tpu.dot_dimension_numbers<[2], [1], [1], [2], [0, 0, 0, 1, 1, 2], [0], [0]>} : vector<2x8x8xf32>, vector<2x8x8xf32>, vector<2x8x8xf32> -> vector<2x8x8xf32>
    "tpu.trace_stop"() : () -> ()
    %55 = vector.extract_strided_slice %12 {offsets = [0, 0, 16], sizes = [2, 8, 8], strides = [1, 1, 1]} : vector<2x8x32xf32> to vector<2x8x8xf32>
    %56 = vector.extract_strided_slice %14 {offsets = [0, 0, 16], sizes = [2, 8, 8], strides = [1, 1, 1]} : vector<2x8x32xf32> to vector<2x8x8xf32>
    "tpu.trace_start"() <{level = 10 : i32, message = "bqd,bkd->bqk"}> : () -> ()
    %cst_24 = arith.constant dense<0.000000e+00> : vector<2x8x8xf32>
    %57 = tpu.matmul %55, %56, %cst_24 {dimension_numbers = #tpu.dot_dimension_numbers<[2], [2], [1], [1], [0, 0, 0, 1, 1, 1], [0], [0]>} : vector<2x8x8xf32>, vector<2x8x8xf32>, vector<2x8x8xf32> -> vector<2x8x8xf32>
    "tpu.trace_stop"() : () -> ()
    %cst_25 = arith.constant 0.353553385 : f32
    %58 = vector.broadcast %cst_25 : f32 to vector<2x8x8xf32>
    %59 = arith.mulf %57, %58 : vector<2x8x8xf32>
    %cst_26 = arith.constant dense<0xFF800000> : vector<2x8xf32>
    %60 = vector.multi_reduction <maximumf>, %59, %cst_26 [2] : vector<2x8x8xf32> to vector<2x8xf32>
    %61 = vector.shape_cast %60 : vector<2x8xf32> to vector<2x8x1xf32>
    %62 = vector.broadcast %61 : vector<2x8x1xf32> to vector<2x8x8xf32>
    %63 = arith.subf %59, %62 : vector<2x8x8xf32>
    %64 = math.exp %63 : vector<2x8x8xf32>
    %cst_27 = arith.constant dense<0.000000e+00> : vector<2x8xf32>
    %65 = vector.multi_reduction <add>, %64, %cst_27 [2] : vector<2x8x8xf32> to vector<2x8xf32>
    %66 = vector.shape_cast %65 : vector<2x8xf32> to vector<2x8x1xf32>
    %67 = tpu.reciprocal %66 {approx = true} : vector<2x8x1xf32> -> vector<2x8x1xf32>
    %68 = vector.broadcast %67 : vector<2x8x1xf32> to vector<2x8x8xf32>
    %69 = arith.mulf %64, %68 : vector<2x8x8xf32>
    %70 = vector.extract_strided_slice %16 {offsets = [0, 0, 16], sizes = [2, 8, 8], strides = [1, 1, 1]} : vector<2x8x32xf32> to vector<2x8x8xf32>
    "tpu.trace_start"() <{level = 10 : i32, message = "bqk,bkd->bqd"}> : () -> ()
    %cst_28 = arith.constant dense<0.000000e+00> : vector<2x8x8xf32>
    %71 = tpu.matmul %69, %70, %cst_28 {dimension_numbers = #tpu.dot_dimension_numbers<[2], [1], [1], [2], [0, 0, 0, 1, 1, 2], [0], [0]>} : vector<2x8x8xf32>, vector<2x8x8xf32>, vector<2x8x8xf32> -> vector<2x8x8xf32>
    "tpu.trace_stop"() : () -> ()
    %72 = vector.extract_strided_slice %12 {offsets = [0, 0, 24], sizes = [2, 8, 8], strides = [1, 1, 1]} : vector<2x8x32xf32> to vector<2x8x8xf32>
    %73 = vector.extract_strided_slice %14 {offsets = [0, 0, 24], sizes = [2, 8, 8], strides = [1, 1, 1]} : vector<2x8x32xf32> to vector<2x8x8xf32>
    "tpu.trace_start"() <{level = 10 : i32, message = "bqd,bkd->bqk"}> : () -> ()
    %cst_29 = arith.constant dense<0.000000e+00> : vector<2x8x8xf32>
    %74 = tpu.matmul %72, %73, %cst_29 {dimension_numbers = #tpu.dot_dimension_numbers<[2], [2], [1], [1], [0, 0, 0, 1, 1, 1], [0], [0]>} : vector<2x8x8xf32>, vector<2x8x8xf32>, vector<2x8x8xf32> -> vector<2x8x8xf32>
    "tpu.trace_stop"() : () -> ()
    %cst_30 = arith.constant 0.353553385 : f32
    %75 = vector.broadcast %cst_30 : f32 to vector<2x8x8xf32>
    %76 = arith.mulf %74, %75 : vector<2x8x8xf32>
    %cst_31 = arith.constant dense<0xFF800000> : vector<2x8xf32>
    %77 = vector.multi_reduction <maximumf>, %76, %cst_31 [2] : vector<2x8x8xf32> to vector<2x8xf32>
    %78 = vector.shape_cast %77 : vector<2x8xf32> to vector<2x8x1xf32>
    %79 = vector.broadcast %78 : vector<2x8x1xf32> to vector<2x8x8xf32>
    %80 = arith.subf %76, %79 : vector<2x8x8xf32>
    %81 = math.exp %80 : vector<2x8x8xf32>
    %cst_32 = arith.constant dense<0.000000e+00> : vector<2x8xf32>
    %82 = vector.multi_reduction <add>, %81, %cst_32 [2] : vector<2x8x8xf32> to vector<2x8xf32>
    %83 = vector.shape_cast %82 : vector<2x8xf32> to vector<2x8x1xf32>
    %84 = tpu.reciprocal %83 {approx = true} : vector<2x8x1xf32> -> vector<2x8x1xf32>
    %85 = vector.broadcast %84 : vector<2x8x1xf32> to vector<2x8x8xf32>
    %86 = arith.mulf %81, %85 : vector<2x8x8xf32>
    %87 = vector.extract_strided_slice %16 {offsets = [0, 0, 24], sizes = [2, 8, 8], strides = [1, 1, 1]} : vector<2x8x32xf32> to vector<2x8x8xf32>
    "tpu.trace_start"() <{level = 10 : i32, message = "bqk,bkd->bqd"}> : () -> ()
    %cst_33 = arith.constant dense<0.000000e+00> : vector<2x8x8xf32>
    %88 = tpu.matmul %86, %87, %cst_33 {dimension_numbers = #tpu.dot_dimension_numbers<[2], [1], [1], [2], [0, 0, 0, 1, 1, 2], [0], [0]>} : vector<2x8x8xf32>, vector<2x8x8xf32>, vector<2x8x8xf32> -> vector<2x8x8xf32>
    "tpu.trace_stop"() : () -> ()
    %89 = tpu.concatenate %37, %54, %71, %88 in 2 : vector<2x8x8xf32>, vector<2x8x8xf32>, vector<2x8x8xf32>, vector<2x8x8xf32> -> vector<2x8x32xf32>
    %90 = vector.shape_cast %89 : vector<2x8x32xf32> to vector<16x32xf32>
    %cst_34 = arith.constant dense<0.000000e+00> : vector<16x32xf32>
    %91 = tpu.matmul %90, %18, %cst_34 {dimension_numbers = #tpu.dot_dimension_numbers<[1], [0], [0], [1], [0, 0, 1, 1], [], []>} : vector<16x32xf32>, vector<32x32xf32>, vector<16x32xf32> -> vector<16x32xf32>
    %92 = vector.broadcast %20 : vector<1x32xf32> to vector<16x32xf32>
    %93 = arith.addf %91, %92 : vector<16x32xf32>
    %94 = arith.addf %3, %93 : vector<16x32xf32>
    %c0_35 = arith.constant 0 : index
    %c0_36 = arith.constant 0 : index
    %c0_37 = arith.constant 0 : index
    %95 = vector.load %arg9[%c0_35, %c0_36, %c0_37] : memref<1x1x32xf32, #tpu.memory_space<vmem>>, vector<1x1x32xf32>
    %96 = vector.shape_cast %95 : vector<1x1x32xf32> to vector<1x32xf32>
    %c0_38 = arith.constant 0 : index
    %c0_39 = arith.constant 0 : index
    %c0_40 = arith.constant 0 : index
    %97 = vector.load %arg10[%c0_38, %c0_39, %c0_40] : memref<1x1x32xf32, #tpu.memory_space<vmem>>, vector<1x1x32xf32>
    %98 = vector.shape_cast %97 : vector<1x1x32xf32> to vector<1x32xf32>
    %cst_41 = arith.constant dense<0.000000e+00> : vector<16xf32>
    %99 = vector.multi_reduction <add>, %94, %cst_41 [1] : vector<16x32xf32> to vector<16xf32>
    %100 = vector.shape_cast %99 : vector<16xf32> to vector<16x1xf32>
    %cst_42 = arith.constant 3.200000e+01 : f32
    %101 = vector.broadcast %cst_42 : f32 to vector<16x1xf32>
    %102 = arith.divf %100, %101 : vector<16x1xf32>
    %103 = vector.broadcast %102 : vector<16x1xf32> to vector<16x32xf32>
    %104 = arith.subf %94, %103 : vector<16x32xf32>
    %105 = arith.mulf %104, %104 : vector<16x32xf32>
    %cst_43 = arith.constant dense<0.000000e+00> : vector<16xf32>
    %106 = vector.multi_reduction <add>, %105, %cst_43 [1] : vector<16x32xf32> to vector<16xf32>
    %107 = vector.shape_cast %106 : vector<16xf32> to vector<16x1xf32>
    %cst_44 = arith.constant 3.200000e+01 : f32
    %108 = vector.broadcast %cst_44 : f32 to vector<16x1xf32>
    %109 = arith.divf %107, %108 : vector<16x1xf32>
    %110 = vector.broadcast %102 : vector<16x1xf32> to vector<16x32xf32>
    %111 = arith.subf %94, %110 : vector<16x32xf32>
    %cst_45 = arith.constant 9.99999974E-6 : f32
    %112 = vector.broadcast %cst_45 : f32 to vector<16x1xf32>
    %113 = arith.addf %109, %112 : vector<16x1xf32>
    %114 = math.rsqrt %113 : vector<16x1xf32>
    %115 = vector.broadcast %114 : vector<16x1xf32> to vector<16x32xf32>
    %116 = arith.mulf %111, %115 : vector<16x32xf32>
    %117 = vector.broadcast %96 : vector<1x32xf32> to vector<16x32xf32>
    %118 = arith.mulf %116, %117 : vector<16x32xf32>
    %119 = vector.broadcast %98 : vector<1x32xf32> to vector<16x32xf32>
    %120 = arith.addf %118, %119 : vector<16x32xf32>
    %c0_46 = arith.constant 0 : index
    %c0_47 = arith.constant 0 : index
    %c0_48 = arith.constant 0 : index
    %121 = vector.load %arg11[%c0_46, %c0_47, %c0_48] : memref<1x32x64xf32, #tpu.memory_space<vmem>>, vector<1x32x64xf32>
    %122 = vector.shape_cast %121 : vector<1x32x64xf32> to vector<32x64xf32>
    %cst_49 = arith.constant dense<0.000000e+00> : vector<16x64xf32>
    %123 = tpu.matmul %120, %122, %cst_49 {dimension_numbers = #tpu.dot_dimension_numbers<[1], [0], [0], [1], [0, 0, 1, 1], [], []>} : vector<16x32xf32>, vector<32x64xf32>, vector<16x64xf32> -> vector<16x64xf32>
    %c0_50 = arith.constant 0 : index
    %c0_51 = arith.constant 0 : index
    %c0_52 = arith.constant 0 : index
    %124 = vector.load %arg12[%c0_50, %c0_51, %c0_52] : memref<1x1x64xf32, #tpu.memory_space<vmem>>, vector<1x1x64xf32>
    %125 = vector.shape_cast %124 : vector<1x1x64xf32> to vector<1x64xf32>
    %126 = vector.broadcast %125 : vector<1x64xf32> to vector<16x64xf32>
    %127 = arith.addf %123, %126 : vector<16x64xf32>
    %cst_53 = arith.constant 0.000000e+00 : f32
    %128 = vector.broadcast %cst_53 : f32 to vector<16x64xf32>
    %129 = arith.maximumf %127, %128 : vector<16x64xf32>
    %c0_54 = arith.constant 0 : index
    %c0_55 = arith.constant 0 : index
    %c0_56 = arith.constant 0 : index
    %130 = vector.load %arg13[%c0_54, %c0_55, %c0_56] : memref<1x64x32xf32, #tpu.memory_space<vmem>>, vector<1x64x32xf32>
    %131 = vector.shape_cast %130 : vector<1x64x32xf32> to vector<64x32xf32>
    %cst_57 = arith.constant dense<0.000000e+00> : vector<16x32xf32>
    %132 = tpu.matmul %129, %131, %cst_57 {dimension_numbers = #tpu.dot_dimension_numbers<[1], [0], [0], [1], [0, 0, 1, 1], [], []>} : vector<16x64xf32>, vector<64x32xf32>, vector<16x32xf32> -> vector<16x32xf32>
    %c0_58 = arith.constant 0 : index
    %c0_59 = arith.constant 0 : index
    %c0_60 = arith.constant 0 : index
    %133 = vector.load %arg14[%c0_58, %c0_59, %c0_60] : memref<1x1x32xf32, #tpu.memory_space<vmem>>, vector<1x1x32xf32>
    %134 = vector.shape_cast %133 : vector<1x1x32xf32> to vector<1x32xf32>
    %135 = vector.broadcast %134 : vector<1x32xf32> to vector<16x32xf32>
    %136 = arith.addf %132, %135 : vector<16x32xf32>
    %137 = arith.addf %120, %136 : vector<16x32xf32>
    %c0_61 = arith.constant 0 : index
    %c0_62 = arith.constant 0 : index
    %c0_63 = arith.constant 0 : index
    %138 = vector.load %arg15[%c0_61, %c0_62, %c0_63] : memref<1x1x32xf32, #tpu.memory_space<vmem>>, vector<1x1x32xf32>
    %139 = vector.shape_cast %138 : vector<1x1x32xf32> to vector<1x32xf32>
    %c0_64 = arith.constant 0 : index
    %c0_65 = arith.constant 0 : index
    %c0_66 = arith.constant 0 : index
    %140 = vector.load %arg16[%c0_64, %c0_65, %c0_66] : memref<1x1x32xf32, #tpu.memory_space<vmem>>, vector<1x1x32xf32>
    %141 = vector.shape_cast %140 : vector<1x1x32xf32> to vector<1x32xf32>
    %cst_67 = arith.constant dense<0.000000e+00> : vector<16xf32>
    %142 = vector.multi_reduction <add>, %137, %cst_67 [1] : vector<16x32xf32> to vector<16xf32>
    %143 = vector.shape_cast %142 : vector<16xf32> to vector<16x1xf32>
    %cst_68 = arith.constant 3.200000e+01 : f32
    %144 = vector.broadcast %cst_68 : f32 to vector<16x1xf32>
    %145 = arith.divf %143, %144 : vector<16x1xf32>
    %146 = vector.broadcast %145 : vector<16x1xf32> to vector<16x32xf32>
    %147 = arith.subf %137, %146 : vector<16x32xf32>
    %148 = arith.mulf %147, %147 : vector<16x32xf32>
    %cst_69 = arith.constant dense<0.000000e+00> : vector<16xf32>
    %149 = vector.multi_reduction <add>, %148, %cst_69 [1] : vector<16x32xf32> to vector<16xf32>
    %150 = vector.shape_cast %149 : vector<16xf32> to vector<16x1xf32>
    %cst_70 = arith.constant 3.200000e+01 : f32
    %151 = vector.broadcast %cst_70 : f32 to vector<16x1xf32>
    %152 = arith.divf %150, %151 : vector<16x1xf32>
    %153 = vector.broadcast %145 : vector<16x1xf32> to vector<16x32xf32>
    %154 = arith.subf %137, %153 : vector<16x32xf32>
    %cst_71 = arith.constant 9.99999974E-6 : f32
    %155 = vector.broadcast %cst_71 : f32 to vector<16x1xf32>
    %156 = arith.addf %152, %155 : vector<16x1xf32>
    %157 = math.rsqrt %156 : vector<16x1xf32>
    %158 = vector.broadcast %157 : vector<16x1xf32> to vector<16x32xf32>
    %159 = arith.mulf %154, %158 : vector<16x32xf32>
    %160 = vector.broadcast %139 : vector<1x32xf32> to vector<16x32xf32>
    %161 = arith.mulf %159, %160 : vector<16x32xf32>
    %162 = vector.broadcast %141 : vector<1x32xf32> to vector<16x32xf32>
    %163 = arith.addf %161, %162 : vector<16x32xf32>
    %c0_72 = arith.constant 0 : index
    %c0_73 = arith.constant 0 : index
    %164 = vector.load %arg23[%c0_72, %c0_73] : memref<16x32xf32, #tpu.memory_space<vmem>>, vector<16x32xf32>
    tpu.vector_store %arg23[%c0_72, %c0_73], %163 {strides = array<i32>} : memref<16x32xf32, #tpu.memory_space<vmem>>, vector<16x32xf32>,
    %c1_i32 = arith.constant 1 : i32
    %165 = arith.cmpi eq, %arg0, %c1_i32 : i32
    %166 = arith.extui %165 : i1 to i32
    %c0_i32_74 = arith.constant 0 : i32
    %167 = arith.cmpi ne, %166, %c0_i32_74 : i32
    scf.if %167 {
      %168 = vector.shape_cast %163 : vector<16x32xf32> to vector<2x8x32xf32>
      %c0_75 = arith.constant 0 : index
      %c0_76 = arith.constant 0 : index
      %c0_77 = arith.constant 0 : index
      %169 = vector.load %arg21[%c0_75, %c0_76, %c0_77] : memref<2x8x32xf32, #tpu.memory_space<vmem>>, vector<2x8x32xf32>
      tpu.vector_store %arg21[%c0_75, %c0_76, %c0_77], %168 {strides = array<i32>} : memref<2x8x32xf32, #tpu.memory_space<vmem>>, vector<2x8x32xf32>,
      %cst_78 = arith.constant 0.000000e+00 : f32
      %170 = vector.broadcast %cst_78 : f32 to vector<2x32xf32>
      %c0_79 = arith.constant 0 : index
      %c0_80 = arith.constant 0 : index
      %171 = vector.load %arg18[%c0_79, %c0_80] : memref<1x32xf32, #tpu.memory_space<vmem>>, vector<1x32xf32>
      %172 = vector.broadcast %171 : vector<1x32xf32> to vector<2x32xf32>
      %173 = arith.addf %170, %172 : vector<2x32xf32>
      %174 = vector.extract_strided_slice %168 {offsets = [0, 0, 0], sizes = [2, 1, 32], strides = [1, 1, 1]} : vector<2x8x32xf32> to vector<2x1x32xf32>
      %175 = vector.shape_cast %174 : vector<2x1x32xf32> to vector<2x32xf32>
      %c0_81 = arith.constant 0 : index
      %c0_82 = arith.constant 0 : index
      %c0_83 = arith.constant 0 : index
      %176 = vector.load %arg17[%c0_81, %c0_82, %c0_83] : memref<8x32x32xf32, #tpu.memory_space<vmem>>, vector<1x32x32xf32>
      %177 = vector.shape_cast %176 : vector<1x32x32xf32> to vector<32x32xf32>
      %cst_84 = arith.constant dense<0.000000e+00> : vector<2x32xf32>
      %178 = tpu.matmul %175, %177, %cst_84 {dimension_numbers = #tpu.dot_dimension_numbers<[1], [0], [0], [1], [0, 0, 1, 1], [], []>} : vector<2x32xf32>, vector<32x32xf32>, vector<2x32xf32> -> vector<2x32xf32>
      %179 = arith.addf %173, %178 : vector<2x32xf32>
      %180 = vector.extract_strided_slice %168 {offsets = [0, 1, 0], sizes = [2, 1, 32], strides = [1, 1, 1]} : vector<2x8x32xf32> to vector<2x1x32xf32>
      %181 = vector.shape_cast %180 : vector<2x1x32xf32> to vector<2x32xf32>
      %c1 = arith.constant 1 : index
      %c0_85 = arith.constant 0 : index
      %c0_86 = arith.constant 0 : index
      %182 = vector.load %arg17[%c1, %c0_85, %c0_86] : memref<8x32x32xf32, #tpu.memory_space<vmem>>, vector<1x32x32xf32>
      %183 = vector.shape_cast %182 : vector<1x32x32xf32> to vector<32x32xf32>
      %cst_87 = arith.constant dense<0.000000e+00> : vector<2x32xf32>
      %184 = tpu.matmul %181, %183, %cst_87 {dimension_numbers = #tpu.dot_dimension_numbers<[1], [0], [0], [1], [0, 0, 1, 1], [], []>} : vector<2x32xf32>, vector<32x32xf32>, vector<2x32xf32> -> vector<2x32xf32>
      %185 = arith.addf %179, %184 : vector<2x32xf32>
      %186 = vector.extract_strided_slice %168 {offsets = [0, 2, 0], sizes = [2, 1, 32], strides = [1, 1, 1]} : vector<2x8x32xf32> to vector<2x1x32xf32>
      %187 = vector.shape_cast %186 : vector<2x1x32xf32> to vector<2x32xf32>
      %c2 = arith.constant 2 : index
      %c0_88 = arith.constant 0 : index
      %c0_89 = arith.constant 0 : index
      %188 = vector.load %arg17[%c2, %c0_88, %c0_89] : memref<8x32x32xf32, #tpu.memory_space<vmem>>, vector<1x32x32xf32>
      %189 = vector.shape_cast %188 : vector<1x32x32xf32> to vector<32x32xf32>
      %cst_90 = arith.constant dense<0.000000e+00> : vector<2x32xf32>
      %190 = tpu.matmul %187, %189, %cst_90 {dimension_numbers = #tpu.dot_dimension_numbers<[1], [0], [0], [1], [0, 0, 1, 1], [], []>} : vector<2x32xf32>, vector<32x32xf32>, vector<2x32xf32> -> vector<2x32xf32>
      %191 = arith.addf %185, %190 : vector<2x32xf32>
      %192 = vector.extract_strided_slice %168 {offsets = [0, 3, 0], sizes = [2, 1, 32], strides = [1, 1, 1]} : vector<2x8x32xf32> to vector<2x1x32xf32>
      %193 = vector.shape_cast %192 : vector<2x1x32xf32> to vector<2x32xf32>
      %c3 = arith.constant 3 : index
      %c0_91 = arith.constant 0 : index
      %c0_92 = arith.constant 0 : index
      %194 = vector.load %arg17[%c3, %c0_91, %c0_92] : memref<8x32x32xf32, #tpu.memory_space<vmem>>, vector<1x32x32xf32>
      %195 = vector.shape_cast %194 : vector<1x32x32xf32> to vector<32x32xf32>
      %cst_93 = arith.constant dense<0.000000e+00> : vector<2x32xf32>
      %196 = tpu.matmul %193, %195, %cst_93 {dimension_numbers = #tpu.dot_dimension_numbers<[1], [0], [0], [1], [0, 0, 1, 1], [], []>} : vector<2x32xf32>, vector<32x32xf32>, vector<2x32xf32> -> vector<2x32xf32>
      %197 = arith.addf %191, %196 : vector<2x32xf32>
      %198 = vector.extract_strided_slice %168 {offsets = [0, 4, 0], sizes = [2, 1, 32], strides = [1, 1, 1]} : vector<2x8x32xf32> to vector<2x1x32xf32>
      %199 = vector.shape_cast %198 : vector<2x1x32xf32> to vector<2x32xf32>
      %c4 = arith.constant 4 : index
      %c0_94 = arith.constant 0 : index
      %c0_95 = arith.constant 0 : index
      %200 = vector.load %arg17[%c4, %c0_94, %c0_95] : memref<8x32x32xf32, #tpu.memory_space<vmem>>, vector<1x32x32xf32>
      %201 = vector.shape_cast %200 : vector<1x32x32xf32> to vector<32x32xf32>
      %cst_96 = arith.constant dense<0.000000e+00> : vector<2x32xf32>
      %202 = tpu.matmul %199, %201, %cst_96 {dimension_numbers = #tpu.dot_dimension_numbers<[1], [0], [0], [1], [0, 0, 1, 1], [], []>} : vector<2x32xf32>, vector<32x32xf32>, vector<2x32xf32> -> vector<2x32xf32>
      %203 = arith.addf %197, %202 : vector<2x32xf32>
      %204 = vector.extract_strided_slice %168 {offsets = [0, 5, 0], sizes = [2, 1, 32], strides = [1, 1, 1]} : vector<2x8x32xf32> to vector<2x1x32xf32>
      %205 = vector.shape_cast %204 : vector<2x1x32xf32> to vector<2x32xf32>
      %c5 = arith.constant 5 : index
      %c0_97 = arith.constant 0 : index
      %c0_98 = arith.constant 0 : index
      %206 = vector.load %arg17[%c5, %c0_97, %c0_98] : memref<8x32x32xf32, #tpu.memory_space<vmem>>, vector<1x32x32xf32>
      %207 = vector.shape_cast %206 : vector<1x32x32xf32> to vector<32x32xf32>
      %cst_99 = arith.constant dense<0.000000e+00> : vector<2x32xf32>
      %208 = tpu.matmul %205, %207, %cst_99 {dimension_numbers = #tpu.dot_dimension_numbers<[1], [0], [0], [1], [0, 0, 1, 1], [], []>} : vector<2x32xf32>, vector<32x32xf32>, vector<2x32xf32> -> vector<2x32xf32>
      %209 = arith.addf %203, %208 : vector<2x32xf32>
      %210 = vector.extract_strided_slice %168 {offsets = [0, 6, 0], sizes = [2, 1, 32], strides = [1, 1, 1]} : vector<2x8x32xf32> to vector<2x1x32xf32>
      %211 = vector.shape_cast %210 : vector<2x1x32xf32> to vector<2x32xf32>
      %c6 = arith.constant 6 : index
      %c0_100 = arith.constant 0 : index
      %c0_101 = arith.constant 0 : index
      %212 = vector.load %arg17[%c6, %c0_100, %c0_101] : memref<8x32x32xf32, #tpu.memory_space<vmem>>, vector<1x32x32xf32>
      %213 = vector.shape_cast %212 : vector<1x32x32xf32> to vector<32x32xf32>
      %cst_102 = arith.constant dense<0.000000e+00> : vector<2x32xf32>
      %214 = tpu.matmul %211, %213, %cst_102 {dimension_numbers = #tpu.dot_dimension_numbers<[1], [0], [0], [1], [0, 0, 1, 1], [], []>} : vector<2x32xf32>, vector<32x32xf32>, vector<2x32xf32> -> vector<2x32xf32>
      %215 = arith.addf %209, %214 : vector<2x32xf32>
      %216 = vector.extract_strided_slice %168 {offsets = [0, 7, 0], sizes = [2, 1, 32], strides = [1, 1, 1]} : vector<2x8x32xf32> to vector<2x1x32xf32>
      %217 = vector.shape_cast %216 : vector<2x1x32xf32> to vector<2x32xf32>
      %c7 = arith.constant 7 : index
      %c0_103 = arith.constant 0 : index
      %c0_104 = arith.constant 0 : index
      %218 = vector.load %arg17[%c7, %c0_103, %c0_104] : memref<8x32x32xf32, #tpu.memory_space<vmem>>, vector<1x32x32xf32>
      %219 = vector.shape_cast %218 : vector<1x32x32xf32> to vector<32x32xf32>
      %cst_105 = arith.constant dense<0.000000e+00> : vector<2x32xf32>
      %220 = tpu.matmul %217, %219, %cst_105 {dimension_numbers = #tpu.dot_dimension_numbers<[1], [0], [0], [1], [0, 0, 1, 1], [], []>} : vector<2x32xf32>, vector<32x32xf32>, vector<2x32xf32> -> vector<2x32xf32>
      %221 = arith.addf %215, %220 : vector<2x32xf32>
      %cst_106 = arith.constant 0.000000e+00 : f32
      %222 = vector.broadcast %cst_106 : f32 to vector<2x32xf32>
      %223 = arith.maximumf %221, %222 : vector<2x32xf32>
      %c0_107 = arith.constant 0 : index
      %c0_108 = arith.constant 0 : index
      %224 = vector.load %arg19[%c0_107, %c0_108] : memref<32x3xf32, #tpu.memory_space<vmem>>, vector<32x3xf32>
      %cst_109 = arith.constant dense<0.000000e+00> : vector<2x3xf32>
      %225 = tpu.matmul %223, %224, %cst_109 {dimension_numbers = #tpu.dot_dimension_numbers<[1], [0], [0], [1], [0, 0, 1, 1], [], []>} : vector<2x32xf32>, vector<32x3xf32>, vector<2x3xf32> -> vector<2x3xf32>
      %c0_110 = arith.constant 0 : index
      %c0_111 = arith.constant 0 : index
      %226 = vector.load %arg20[%c0_110, %c0_111] : memref<1x3xf32, #tpu.memory_space<vmem>>, vector<1x3xf32>
      %227 = vector.broadcast %226 : vector<1x3xf32> to vector<2x3xf32>
      %228 = arith.addf %225, %227 : vector<2x3xf32>
      %c0_112 = arith.constant 0 : index
      %c0_113 = arith.constant 0 : index
      %229 = vector.load %arg22[%c0_112, %c0_113] : memref<2x3xf32, #tpu.memory_space<vmem>>, vector<2x3xf32>
      tpu.vector_store %arg22[%c0_112, %c0_113], %228 {strides = array<i32>} : memref<2x3xf32, #tpu.memory_space<vmem>>, vector<2x3xf32>,
    } else {
    }
    return
  }
  func.func @transform_0(%arg0: i32) -> (i32, i32, i32) {
    %c0_i32 = arith.constant 0 : i32
    %c0_i32_0 = arith.constant 0 : i32
    %c0_i32_1 = arith.constant 0 : i32
    %c0_i32_2 = arith.constant 0 : i32
    return %c0_i32, %c0_i32_0, %c0_i32_1 : i32, i32, i32
  }
  func.func @transform_1(%arg0: i32) -> (i32, i32) {
    %c0_i32 = arith.constant 0 : i32
    %c0_i32_0 = arith.constant 0 : i32
    %c0_i32_1 = arith.constant 0 : i32
    return %c0_i32, %c0_i32_0 : i32, i32
  }
  func.func @transform_2(%arg0: i32) -> (i32, i32) {
    %c0_i32 = arith.constant 0 : i32
    %c0_i32_0 = arith.constant 0 : i32
    %c0_i32_1 = arith.constant 0 : i32
    return %c0_i32, %c0_i32_0 : i32, i32
  }
  func.func @transform_3(%arg0: i32) -> (i32, i32) {
    %c0_i32 = arith.constant 0 : i32
    %c0_i32_0 = arith.constant 0 : i32
    %c0_i32_1 = arith.constant 0 : i32
    return %c0_i32, %c0_i32_0 : i32, i32
  }
  func.func @transform_4(%arg0: i32) -> (i32, i32, i32) {
    %c0_i32 = arith.constant 0 : i32
    %c0_i32_0 = arith.constant 0 : i32
    %c0_i32_1 = arith.constant 0 : i32
    return %arg0, %c0_i32, %c0_i32_0 : i32, i32, i32
  }
  func.func @transform_5(%arg0: i32) -> (i32, i32, i32) {
    %c0_i32 = arith.constant 0 : i32
    %c0_i32_0 = arith.constant 0 : i32
    %c0_i32_1 = arith.constant 0 : i32
    return %arg0, %c0_i32, %c0_i32_0 : i32, i32, i32
  }
  func.func @transform_6(%arg0: i32) -> (i32, i32, i32) {
    %c0_i32 = arith.constant 0 : i32
    %c0_i32_0 = arith.constant 0 : i32
    %c0_i32_1 = arith.constant 0 : i32
    return %arg0, %c0_i32, %c0_i32_0 : i32, i32, i32
  }
  func.func @transform_7(%arg0: i32) -> (i32, i32, i32) {
    %c0_i32 = arith.constant 0 : i32
    %c0_i32_0 = arith.constant 0 : i32
    %c0_i32_1 = arith.constant 0 : i32
    return %arg0, %c0_i32, %c0_i32_0 : i32, i32, i32
  }
  func.func @transform_8(%arg0: i32) -> (i32, i32, i32) {
    %c0_i32 = arith.constant 0 : i32
    %c0_i32_0 = arith.constant 0 : i32
    %c0_i32_1 = arith.constant 0 : i32
    return %arg0, %c0_i32, %c0_i32_0 : i32, i32, i32
  }
  func.func @transform_9(%arg0: i32) -> (i32, i32, i32) {
    %c0_i32 = arith.constant 0 : i32
    %c0_i32_0 = arith.constant 0 : i32
    %c0_i32_1 = arith.constant 0 : i32
    return %arg0, %c0_i32, %c0_i32_0 : i32, i32, i32
  }
  func.func @transform_10(%arg0: i32) -> (i32, i32, i32) {
    %c0_i32 = arith.constant 0 : i32
    %c0_i32_0 = arith.constant 0 : i32
    %c0_i32_1 = arith.constant 0 : i32
    return %arg0, %c0_i32, %c0_i32_0 : i32, i32, i32
  }
  func.func @transform_11(%arg0: i32) -> (i32, i32, i32) {
    %c0_i32 = arith.constant 0 : i32
    %c0_i32_0 = arith.constant 0 : i32
    %c0_i32_1 = arith.constant 0 : i32
    return %arg0, %c0_i32, %c0_i32_0 : i32, i32, i32
  }
  func.func @transform_12(%arg0: i32) -> (i32, i32, i32) {
    %c0_i32 = arith.constant 0 : i32
    %c0_i32_0 = arith.constant 0 : i32
    %c0_i32_1 = arith.constant 0 : i32
    return %arg0, %c0_i32, %c0_i32_0 : i32, i32, i32
  }
  func.func @transform_13(%arg0: i32) -> (i32, i32, i32) {
    %c0_i32 = arith.constant 0 : i32
    %c0_i32_0 = arith.constant 0 : i32
    %c0_i32_1 = arith.constant 0 : i32
    return %arg0, %c0_i32, %c0_i32_0 : i32, i32, i32
  }
  func.func @transform_14(%arg0: i32) -> (i32, i32, i32) {
    %c0_i32 = arith.constant 0 : i32
    %c0_i32_0 = arith.constant 0 : i32
    %c0_i32_1 = arith.constant 0 : i32
    return %arg0, %c0_i32, %c0_i32_0 : i32, i32, i32
  }
  func.func @transform_15(%arg0: i32) -> (i32, i32, i32) {
    %c0_i32 = arith.constant 0 : i32
    %c0_i32_0 = arith.constant 0 : i32
    %c0_i32_1 = arith.constant 0 : i32
    return %arg0, %c0_i32, %c0_i32_0 : i32, i32, i32
  }
  func.func @transform_16(%arg0: i32) -> (i32, i32, i32) {
    %c0_i32 = arith.constant 0 : i32
    %c0_i32_0 = arith.constant 0 : i32
    %c0_i32_1 = arith.constant 0 : i32
    %c0_i32_2 = arith.constant 0 : i32
    return %c0_i32, %c0_i32_0, %c0_i32_1 : i32, i32, i32
  }
  func.func @transform_17(%arg0: i32) -> (i32, i32) {
    %c0_i32 = arith.constant 0 : i32
    %c0_i32_0 = arith.constant 0 : i32
    %c0_i32_1 = arith.constant 0 : i32
    return %c0_i32, %c0_i32_0 : i32, i32
  }
  func.func @transform_18(%arg0: i32) -> (i32, i32) {
    %c0_i32 = arith.constant 0 : i32
    %c0_i32_0 = arith.constant 0 : i32
    %c0_i32_1 = arith.constant 0 : i32
    return %c0_i32, %c0_i32_0 : i32, i32
  }
  func.func @transform_19(%arg0: i32) -> (i32, i32) {
    %c0_i32 = arith.constant 0 : i32
    %c0_i32_0 = arith.constant 0 : i32
    %c0_i32_1 = arith.constant 0 : i32
    return %c0_i32, %c0_i32_0 : i32, i32
  }
  func.func @transform_20(%arg0: i32) -> (i32, i32, i32) {
    %c0_i32 = arith.constant 0 : i32
    %c0_i32_0 = arith.constant 0 : i32
    %c0_i32_1 = arith.constant 0 : i32
    %c0_i32_2 = arith.constant 0 : i32
    return %c0_i32, %c0_i32_0, %c0_i32_1 : i32, i32, i32
  }
  func.func @transform_21(%arg0: i32) -> (i32, i32) {
    %c0_i32 = arith.constant 0 : i32
    %c0_i32_0 = arith.constant 0 : i32
    %c0_i32_1 = arith.constant 0 : i32
    return %c0_i32, %c0_i32_0 : i32, i32
  }
}

module attributes {stable_mosaic.version = 11 : i64} {
  func.func @_decoder_stack_kernel(%arg0: i32, %arg1: i32, %arg2: memref<2x8x2xf32, #tpu.memory_space<vmem>>, %arg3: memref<8x32xf32, #tpu.memory_space<vmem>>, %arg4: memref<2x32xf32, #tpu.memory_space<vmem>>, %arg5: memref<1x32xf32, #tpu.memory_space<vmem>>, %arg6: memref<2x8x32xf32, #tpu.memory_space<vmem>>, %arg7: memref<8x8xf32, #tpu.memory_space<vmem>>, %arg8: memref<1x1x32x96xf32, #tpu.memory_space<vmem>>, %arg9: memref<1x1x1x96xf32, #tpu.memory_space<vmem>>, %arg10: memref<1x1x32x32xf32, #tpu.memory_space<vmem>>, %arg11: memref<1x1x1x32xf32, #tpu.memory_space<vmem>>, %arg12: memref<1x1x1x32xf32, #tpu.memory_space<vmem>>, %arg13: memref<1x1x1x32xf32, #tpu.memory_space<vmem>>, %arg14: memref<1x1x32x96xf32, #tpu.memory_space<vmem>>, %arg15: memref<1x1x1x96xf32, #tpu.memory_space<vmem>>, %arg16: memref<1x1x32x32xf32, #tpu.memory_space<vmem>>, %arg17: memref<1x1x1x32xf32, #tpu.memory_space<vmem>>, %arg18: memref<1x1x1x32xf32, #tpu.memory_space<vmem>>, %arg19: memref<1x1x1x32xf32, #tpu.memory_space<vmem>>, %arg20: memref<1x1x32x64xf32, #tpu.memory_space<vmem>>, %arg21: memref<1x1x1x64xf32, #tpu.memory_space<vmem>>, %arg22: memref<1x1x64x32xf32, #tpu.memory_space<vmem>>, %arg23: memref<1x1x1x32xf32, #tpu.memory_space<vmem>>, %arg24: memref<1x1x1x32xf32, #tpu.memory_space<vmem>>, %arg25: memref<1x1x1x32xf32, #tpu.memory_space<vmem>>, %arg26: memref<1x32x2xf32, #tpu.memory_space<vmem>>, %arg27: memref<1x1x2xf32, #tpu.memory_space<vmem>>, %arg28: memref<2x1x8x2xf32, #tpu.memory_space<vmem>>, %arg29: memref<16x32xf32, #tpu.memory_space<vmem>>) attributes {dimension_semantics = [#tpu.dimension_semantics<parallel>, #tpu.dimension_semantics<arbitrary>], iteration_bounds = array<i64: 3, 2>, scalar_prefetch = 0 : i64, scratch_operands = 1 : i64, tpu.core_type = #tpu.core_type<tc>, window_params = [{pipeline_mode = #tpu.pipeline_mode<synchronous>, transform_indices = @transform_0, window_bounds = array<i64: 2, 8, 2>}, {pipeline_mode = #tpu.pipeline_mode<synchronous>, transform_indices = @transform_1, window_bounds = array<i64: 8, 32>}, {pipeline_mode = #tpu.pipeline_mode<synchronous>, transform_indices = @transform_2, window_bounds = array<i64: 2, 32>}, {pipeline_mode = #tpu.pipeline_mode<synchronous>, transform_indices = @transform_3, window_bounds = array<i64: 1, 32>}, {pipeline_mode = #tpu.pipeline_mode<synchronous>, transform_indices = @transform_4, window_bounds = array<i64: 2, 8, 32>}, {pipeline_mode = #tpu.pipeline_mode<synchronous>, transform_indices = @transform_5, window_bounds = array<i64: 8, 8>}, {transform_indices = @transform_6, window_bounds = array<i64: 1, 1, 32, 96>}, {transform_indices = @transform_7, window_bounds = array<i64: 1, 1, 1, 96>}, {transform_indices = @transform_8, window_bounds = array<i64: 1, 1, 32, 32>}, {transform_indices = @transform_9, window_bounds = array<i64: 1, 1, 1, 32>}, {transform_indices = @transform_10, window_bounds = array<i64: 1, 1, 1, 32>}, {transform_indices = @transform_11, window_bounds = array<i64: 1, 1, 1, 32>}, {transform_indices = @transform_12, window_bounds = array<i64: 1, 1, 32, 96>}, {transform_indices = @transform_13, window_bounds = array<i64: 1, 1, 1, 96>}, {transform_indices = @transform_14, window_bounds = array<i64: 1, 1, 32, 32>}, {transform_indices = @transform_15, window_bounds = array<i64: 1, 1, 1, 32>}, {transform_indices = @transform_16, window_bounds = array<i64: 1, 1, 1, 32>}, {transform_indices = @transform_17, window_bounds = array<i64: 1, 1, 1, 32>}, {transform_indices = @transform_18, window_bounds = array<i64: 1, 1, 32, 64>}, {transform_indices = @transform_19, window_bounds = array<i64: 1, 1, 1, 64>}, {transform_indices = @transform_20, window_bounds = array<i64: 1, 1, 64, 32>}, {transform_indices = @transform_21, window_bounds = array<i64: 1, 1, 1, 32>}, {transform_indices = @transform_22, window_bounds = array<i64: 1, 1, 1, 32>}, {transform_indices = @transform_23, window_bounds = array<i64: 1, 1, 1, 32>}, {transform_indices = @transform_24, window_bounds = array<i64: 1, 32, 2>}, {transform_indices = @transform_25, window_bounds = array<i64: 1, 1, 2>}, {transform_indices = @transform_26, window_bounds = array<i64: 2, 1, 8, 2>}]} {
    %c0_i32 = arith.constant 0 : i32
    %0 = arith.cmpi eq, %arg1, %c0_i32 : i32
    %1 = arith.extui %0 : i1 to i32
    %c0_i32_0 = arith.constant 0 : i32
    %2 = arith.cmpi ne, %1, %c0_i32_0 : i32
    scf.if %2 {
      %c0_144 = arith.constant 0 : index
      %c0_145 = arith.constant 0 : index
      %c0_146 = arith.constant 0 : index
      %306 = vector.load %arg2[%c0_144, %c0_145, %c0_146] : memref<2x8x2xf32, #tpu.memory_space<vmem>>, vector<2x8x2xf32>
      %307 = vector.shape_cast %306 : vector<2x8x2xf32> to vector<16x2xf32>
      %c0_147 = arith.constant 0 : index
      %c0_148 = arith.constant 0 : index
      %308 = vector.load %arg4[%c0_147, %c0_148] : memref<2x32xf32, #tpu.memory_space<vmem>>, vector<2x32xf32>
      %c0_149 = arith.constant 0 : index
      %c0_150 = arith.constant 0 : index
      %309 = vector.load %arg5[%c0_149, %c0_150] : memref<1x32xf32, #tpu.memory_space<vmem>>, vector<1x32xf32>
      %c0_151 = arith.constant 0 : index
      %c0_152 = arith.constant 0 : index
      %310 = vector.load %arg3[%c0_151, %c0_152] : memref<8x32xf32, #tpu.memory_space<vmem>>, vector<8x32xf32>
      %cst_153 = arith.constant dense<0.000000e+00> : vector<16x32xf32>
      %311 = tpu.matmul %307, %308, %cst_153 {dimension_numbers = #tpu.dot_dimension_numbers<[1], [0], [0], [1], [0, 0, 1, 1], [], []>} : vector<16x2xf32>, vector<2x32xf32>, vector<16x32xf32> -> vector<16x32xf32>
      %312 = vector.broadcast %309 : vector<1x32xf32> to vector<16x32xf32>
      %313 = arith.addf %311, %312 : vector<16x32xf32>
      %314 = vector.shape_cast %313 : vector<16x32xf32> to vector<2x8x32xf32>
      %315 = vector.shape_cast %310 : vector<8x32xf32> to vector<1x8x32xf32>
      %316 = vector.broadcast %315 : vector<1x8x32xf32> to vector<2x8x32xf32>
      %317 = arith.addf %314, %316 : vector<2x8x32xf32>
      %318 = vector.shape_cast %317 : vector<2x8x32xf32> to vector<16x32xf32>
      %c0_154 = arith.constant 0 : index
      %c0_155 = arith.constant 0 : index
      %319 = vector.load %arg29[%c0_154, %c0_155] : memref<16x32xf32, #tpu.memory_space<vmem>>, vector<16x32xf32>
      tpu.vector_store %arg29[%c0_154, %c0_155], %318 {strides = array<i32>} : memref<16x32xf32, #tpu.memory_space<vmem>>, vector<16x32xf32>,
    } else {
    }
    %c0 = arith.constant 0 : index
    %c0_1 = arith.constant 0 : index
    %3 = vector.load %arg29[%c0, %c0_1] : memref<16x32xf32, #tpu.memory_space<vmem>>, vector<16x32xf32>
    %c0_2 = arith.constant 0 : index
    %c0_3 = arith.constant 0 : index
    %c0_4 = arith.constant 0 : index
    %4 = vector.load %arg6[%c0_2, %c0_3, %c0_4] : memref<2x8x32xf32, #tpu.memory_space<vmem>>, vector<2x8x32xf32>
    %5 = vector.shape_cast %4 : vector<2x8x32xf32> to vector<16x32xf32>
    %c0_5 = arith.constant 0 : index
    %c0_6 = arith.constant 0 : index
    %6 = vector.load %arg7[%c0_5, %c0_6] : memref<8x8xf32, #tpu.memory_space<vmem>>, vector<8x8xf32>
    %c0_7 = arith.constant 0 : index
    %c0_8 = arith.constant 0 : index
    %c0_9 = arith.constant 0 : index
    %c0_10 = arith.constant 0 : index
    %7 = vector.load %arg8[%c0_7, %c0_8, %c0_9, %c0_10] : memref<1x1x32x96xf32, #tpu.memory_space<vmem>>, vector<1x1x32x96xf32>
    %8 = vector.shape_cast %7 : vector<1x1x32x96xf32> to vector<32x96xf32>
    %cst = arith.constant dense<0.000000e+00> : vector<16x96xf32>
    %9 = tpu.matmul %3, %8, %cst {dimension_numbers = #tpu.dot_dimension_numbers<[1], [0], [0], [1], [0, 0, 1, 1], [], []>} : vector<16x32xf32>, vector<32x96xf32>, vector<16x96xf32> -> vector<16x96xf32>
    %c0_11 = arith.constant 0 : index
    %c0_12 = arith.constant 0 : index
    %c0_13 = arith.constant 0 : index
    %c0_14 = arith.constant 0 : index
    %10 = vector.load %arg9[%c0_11, %c0_12, %c0_13, %c0_14] : memref<1x1x1x96xf32, #tpu.memory_space<vmem>>, vector<1x1x1x96xf32>
    %11 = vector.shape_cast %10 : vector<1x1x1x96xf32> to vector<1x96xf32>
    %12 = vector.broadcast %11 : vector<1x96xf32> to vector<16x96xf32>
    %13 = arith.addf %9, %12 : vector<16x96xf32>
    %14 = vector.extract_strided_slice %13 {offsets = [0, 0], sizes = [16, 32], strides = [1, 1]} : vector<16x96xf32> to vector<16x32xf32>
    %15 = vector.shape_cast %14 : vector<16x32xf32> to vector<2x8x32xf32>
    %16 = vector.extract_strided_slice %13 {offsets = [0, 32], sizes = [16, 32], strides = [1, 1]} : vector<16x96xf32> to vector<16x32xf32>
    %17 = vector.shape_cast %16 : vector<16x32xf32> to vector<2x8x32xf32>
    %18 = vector.extract_strided_slice %13 {offsets = [0, 64], sizes = [16, 32], strides = [1, 1]} : vector<16x96xf32> to vector<16x32xf32>
    %19 = vector.shape_cast %18 : vector<16x32xf32> to vector<2x8x32xf32>
    %c0_15 = arith.constant 0 : index
    %c0_16 = arith.constant 0 : index
    %c0_17 = arith.constant 0 : index
    %c0_18 = arith.constant 0 : index
    %20 = vector.load %arg10[%c0_15, %c0_16, %c0_17, %c0_18] : memref<1x1x32x32xf32, #tpu.memory_space<vmem>>, vector<1x1x32x32xf32>
    %21 = vector.shape_cast %20 : vector<1x1x32x32xf32> to vector<32x32xf32>
    %c0_19 = arith.constant 0 : index
    %c0_20 = arith.constant 0 : index
    %c0_21 = arith.constant 0 : index
    %c0_22 = arith.constant 0 : index
    %22 = vector.load %arg11[%c0_19, %c0_20, %c0_21, %c0_22] : memref<1x1x1x32xf32, #tpu.memory_space<vmem>>, vector<1x1x1x32xf32>
    %23 = vector.shape_cast %22 : vector<1x1x1x32xf32> to vector<1x32xf32>
    %24 = vector.extract_strided_slice %15 {offsets = [0, 0, 0], sizes = [2, 8, 8], strides = [1, 1, 1]} : vector<2x8x32xf32> to vector<2x8x8xf32>
    %25 = vector.extract_strided_slice %17 {offsets = [0, 0, 0], sizes = [2, 8, 8], strides = [1, 1, 1]} : vector<2x8x32xf32> to vector<2x8x8xf32>
    "tpu.trace_start"() <{level = 10 : i32, message = "bqd,bkd->bqk"}> : () -> ()
    %cst_23 = arith.constant dense<0.000000e+00> : vector<2x8x8xf32>
    %26 = tpu.matmul %24, %25, %cst_23 {dimension_numbers = #tpu.dot_dimension_numbers<[2], [2], [1], [1], [0, 0, 0, 1, 1, 1], [0], [0]>} : vector<2x8x8xf32>, vector<2x8x8xf32>, vector<2x8x8xf32> -> vector<2x8x8xf32>
    "tpu.trace_stop"() : () -> ()
    %cst_24 = arith.constant 0.353553385 : f32
    %27 = vector.broadcast %cst_24 : f32 to vector<2x8x8xf32>
    %28 = arith.mulf %26, %27 : vector<2x8x8xf32>
    %29 = vector.shape_cast %6 : vector<8x8xf32> to vector<1x8x8xf32>
    %30 = vector.broadcast %29 : vector<1x8x8xf32> to vector<2x8x8xf32>
    %31 = arith.addf %28, %30 : vector<2x8x8xf32>
    %cst_25 = arith.constant dense<0xFF800000> : vector<2x8xf32>
    %32 = vector.multi_reduction <maximumf>, %31, %cst_25 [2] : vector<2x8x8xf32> to vector<2x8xf32>
    %33 = vector.shape_cast %32 : vector<2x8xf32> to vector<2x8x1xf32>
    %34 = vector.broadcast %33 : vector<2x8x1xf32> to vector<2x8x8xf32>
    %35 = arith.subf %31, %34 : vector<2x8x8xf32>
    %36 = math.exp %35 : vector<2x8x8xf32>
    %cst_26 = arith.constant dense<0.000000e+00> : vector<2x8xf32>
    %37 = vector.multi_reduction <add>, %36, %cst_26 [2] : vector<2x8x8xf32> to vector<2x8xf32>
    %38 = vector.shape_cast %37 : vector<2x8xf32> to vector<2x8x1xf32>
    %39 = tpu.reciprocal %38 {approx = true} : vector<2x8x1xf32> -> vector<2x8x1xf32>
    %40 = vector.broadcast %39 : vector<2x8x1xf32> to vector<2x8x8xf32>
    %41 = arith.mulf %36, %40 : vector<2x8x8xf32>
    %42 = vector.extract_strided_slice %19 {offsets = [0, 0, 0], sizes = [2, 8, 8], strides = [1, 1, 1]} : vector<2x8x32xf32> to vector<2x8x8xf32>
    "tpu.trace_start"() <{level = 10 : i32, message = "bqk,bkd->bqd"}> : () -> ()
    %cst_27 = arith.constant dense<0.000000e+00> : vector<2x8x8xf32>
    %43 = tpu.matmul %41, %42, %cst_27 {dimension_numbers = #tpu.dot_dimension_numbers<[2], [1], [1], [2], [0, 0, 0, 1, 1, 2], [0], [0]>} : vector<2x8x8xf32>, vector<2x8x8xf32>, vector<2x8x8xf32> -> vector<2x8x8xf32>
    "tpu.trace_stop"() : () -> ()
    %44 = vector.extract_strided_slice %15 {offsets = [0, 0, 8], sizes = [2, 8, 8], strides = [1, 1, 1]} : vector<2x8x32xf32> to vector<2x8x8xf32>
    %45 = vector.extract_strided_slice %17 {offsets = [0, 0, 8], sizes = [2, 8, 8], strides = [1, 1, 1]} : vector<2x8x32xf32> to vector<2x8x8xf32>
    "tpu.trace_start"() <{level = 10 : i32, message = "bqd,bkd->bqk"}> : () -> ()
    %cst_28 = arith.constant dense<0.000000e+00> : vector<2x8x8xf32>
    %46 = tpu.matmul %44, %45, %cst_28 {dimension_numbers = #tpu.dot_dimension_numbers<[2], [2], [1], [1], [0, 0, 0, 1, 1, 1], [0], [0]>} : vector<2x8x8xf32>, vector<2x8x8xf32>, vector<2x8x8xf32> -> vector<2x8x8xf32>
    "tpu.trace_stop"() : () -> ()
    %cst_29 = arith.constant 0.353553385 : f32
    %47 = vector.broadcast %cst_29 : f32 to vector<2x8x8xf32>
    %48 = arith.mulf %46, %47 : vector<2x8x8xf32>
    %49 = vector.shape_cast %6 : vector<8x8xf32> to vector<1x8x8xf32>
    %50 = vector.broadcast %49 : vector<1x8x8xf32> to vector<2x8x8xf32>
    %51 = arith.addf %48, %50 : vector<2x8x8xf32>
    %cst_30 = arith.constant dense<0xFF800000> : vector<2x8xf32>
    %52 = vector.multi_reduction <maximumf>, %51, %cst_30 [2] : vector<2x8x8xf32> to vector<2x8xf32>
    %53 = vector.shape_cast %52 : vector<2x8xf32> to vector<2x8x1xf32>
    %54 = vector.broadcast %53 : vector<2x8x1xf32> to vector<2x8x8xf32>
    %55 = arith.subf %51, %54 : vector<2x8x8xf32>
    %56 = math.exp %55 : vector<2x8x8xf32>
    %cst_31 = arith.constant dense<0.000000e+00> : vector<2x8xf32>
    %57 = vector.multi_reduction <add>, %56, %cst_31 [2] : vector<2x8x8xf32> to vector<2x8xf32>
    %58 = vector.shape_cast %57 : vector<2x8xf32> to vector<2x8x1xf32>
    %59 = tpu.reciprocal %58 {approx = true} : vector<2x8x1xf32> -> vector<2x8x1xf32>
    %60 = vector.broadcast %59 : vector<2x8x1xf32> to vector<2x8x8xf32>
    %61 = arith.mulf %56, %60 : vector<2x8x8xf32>
    %62 = vector.extract_strided_slice %19 {offsets = [0, 0, 8], sizes = [2, 8, 8], strides = [1, 1, 1]} : vector<2x8x32xf32> to vector<2x8x8xf32>
    "tpu.trace_start"() <{level = 10 : i32, message = "bqk,bkd->bqd"}> : () -> ()
    %cst_32 = arith.constant dense<0.000000e+00> : vector<2x8x8xf32>
    %63 = tpu.matmul %61, %62, %cst_32 {dimension_numbers = #tpu.dot_dimension_numbers<[2], [1], [1], [2], [0, 0, 0, 1, 1, 2], [0], [0]>} : vector<2x8x8xf32>, vector<2x8x8xf32>, vector<2x8x8xf32> -> vector<2x8x8xf32>
    "tpu.trace_stop"() : () -> ()
    %64 = vector.extract_strided_slice %15 {offsets = [0, 0, 16], sizes = [2, 8, 8], strides = [1, 1, 1]} : vector<2x8x32xf32> to vector<2x8x8xf32>
    %65 = vector.extract_strided_slice %17 {offsets = [0, 0, 16], sizes = [2, 8, 8], strides = [1, 1, 1]} : vector<2x8x32xf32> to vector<2x8x8xf32>
    "tpu.trace_start"() <{level = 10 : i32, message = "bqd,bkd->bqk"}> : () -> ()
    %cst_33 = arith.constant dense<0.000000e+00> : vector<2x8x8xf32>
    %66 = tpu.matmul %64, %65, %cst_33 {dimension_numbers = #tpu.dot_dimension_numbers<[2], [2], [1], [1], [0, 0, 0, 1, 1, 1], [0], [0]>} : vector<2x8x8xf32>, vector<2x8x8xf32>, vector<2x8x8xf32> -> vector<2x8x8xf32>
    "tpu.trace_stop"() : () -> ()
    %cst_34 = arith.constant 0.353553385 : f32
    %67 = vector.broadcast %cst_34 : f32 to vector<2x8x8xf32>
    %68 = arith.mulf %66, %67 : vector<2x8x8xf32>
    %69 = vector.shape_cast %6 : vector<8x8xf32> to vector<1x8x8xf32>
    %70 = vector.broadcast %69 : vector<1x8x8xf32> to vector<2x8x8xf32>
    %71 = arith.addf %68, %70 : vector<2x8x8xf32>
    %cst_35 = arith.constant dense<0xFF800000> : vector<2x8xf32>
    %72 = vector.multi_reduction <maximumf>, %71, %cst_35 [2] : vector<2x8x8xf32> to vector<2x8xf32>
    %73 = vector.shape_cast %72 : vector<2x8xf32> to vector<2x8x1xf32>
    %74 = vector.broadcast %73 : vector<2x8x1xf32> to vector<2x8x8xf32>
    %75 = arith.subf %71, %74 : vector<2x8x8xf32>
    %76 = math.exp %75 : vector<2x8x8xf32>
    %cst_36 = arith.constant dense<0.000000e+00> : vector<2x8xf32>
    %77 = vector.multi_reduction <add>, %76, %cst_36 [2] : vector<2x8x8xf32> to vector<2x8xf32>
    %78 = vector.shape_cast %77 : vector<2x8xf32> to vector<2x8x1xf32>
    %79 = tpu.reciprocal %78 {approx = true} : vector<2x8x1xf32> -> vector<2x8x1xf32>
    %80 = vector.broadcast %79 : vector<2x8x1xf32> to vector<2x8x8xf32>
    %81 = arith.mulf %76, %80 : vector<2x8x8xf32>
    %82 = vector.extract_strided_slice %19 {offsets = [0, 0, 16], sizes = [2, 8, 8], strides = [1, 1, 1]} : vector<2x8x32xf32> to vector<2x8x8xf32>
    "tpu.trace_start"() <{level = 10 : i32, message = "bqk,bkd->bqd"}> : () -> ()
    %cst_37 = arith.constant dense<0.000000e+00> : vector<2x8x8xf32>
    %83 = tpu.matmul %81, %82, %cst_37 {dimension_numbers = #tpu.dot_dimension_numbers<[2], [1], [1], [2], [0, 0, 0, 1, 1, 2], [0], [0]>} : vector<2x8x8xf32>, vector<2x8x8xf32>, vector<2x8x8xf32> -> vector<2x8x8xf32>
    "tpu.trace_stop"() : () -> ()
    %84 = vector.extract_strided_slice %15 {offsets = [0, 0, 24], sizes = [2, 8, 8], strides = [1, 1, 1]} : vector<2x8x32xf32> to vector<2x8x8xf32>
    %85 = vector.extract_strided_slice %17 {offsets = [0, 0, 24], sizes = [2, 8, 8], strides = [1, 1, 1]} : vector<2x8x32xf32> to vector<2x8x8xf32>
    "tpu.trace_start"() <{level = 10 : i32, message = "bqd,bkd->bqk"}> : () -> ()
    %cst_38 = arith.constant dense<0.000000e+00> : vector<2x8x8xf32>
    %86 = tpu.matmul %84, %85, %cst_38 {dimension_numbers = #tpu.dot_dimension_numbers<[2], [2], [1], [1], [0, 0, 0, 1, 1, 1], [0], [0]>} : vector<2x8x8xf32>, vector<2x8x8xf32>, vector<2x8x8xf32> -> vector<2x8x8xf32>
    "tpu.trace_stop"() : () -> ()
    %cst_39 = arith.constant 0.353553385 : f32
    %87 = vector.broadcast %cst_39 : f32 to vector<2x8x8xf32>
    %88 = arith.mulf %86, %87 : vector<2x8x8xf32>
    %89 = vector.shape_cast %6 : vector<8x8xf32> to vector<1x8x8xf32>
    %90 = vector.broadcast %89 : vector<1x8x8xf32> to vector<2x8x8xf32>
    %91 = arith.addf %88, %90 : vector<2x8x8xf32>
    %cst_40 = arith.constant dense<0xFF800000> : vector<2x8xf32>
    %92 = vector.multi_reduction <maximumf>, %91, %cst_40 [2] : vector<2x8x8xf32> to vector<2x8xf32>
    %93 = vector.shape_cast %92 : vector<2x8xf32> to vector<2x8x1xf32>
    %94 = vector.broadcast %93 : vector<2x8x1xf32> to vector<2x8x8xf32>
    %95 = arith.subf %91, %94 : vector<2x8x8xf32>
    %96 = math.exp %95 : vector<2x8x8xf32>
    %cst_41 = arith.constant dense<0.000000e+00> : vector<2x8xf32>
    %97 = vector.multi_reduction <add>, %96, %cst_41 [2] : vector<2x8x8xf32> to vector<2x8xf32>
    %98 = vector.shape_cast %97 : vector<2x8xf32> to vector<2x8x1xf32>
    %99 = tpu.reciprocal %98 {approx = true} : vector<2x8x1xf32> -> vector<2x8x1xf32>
    %100 = vector.broadcast %99 : vector<2x8x1xf32> to vector<2x8x8xf32>
    %101 = arith.mulf %96, %100 : vector<2x8x8xf32>
    %102 = vector.extract_strided_slice %19 {offsets = [0, 0, 24], sizes = [2, 8, 8], strides = [1, 1, 1]} : vector<2x8x32xf32> to vector<2x8x8xf32>
    "tpu.trace_start"() <{level = 10 : i32, message = "bqk,bkd->bqd"}> : () -> ()
    %cst_42 = arith.constant dense<0.000000e+00> : vector<2x8x8xf32>
    %103 = tpu.matmul %101, %102, %cst_42 {dimension_numbers = #tpu.dot_dimension_numbers<[2], [1], [1], [2], [0, 0, 0, 1, 1, 2], [0], [0]>} : vector<2x8x8xf32>, vector<2x8x8xf32>, vector<2x8x8xf32> -> vector<2x8x8xf32>
    "tpu.trace_stop"() : () -> ()
    %104 = tpu.concatenate %43, %63, %83, %103 in 2 : vector<2x8x8xf32>, vector<2x8x8xf32>, vector<2x8x8xf32>, vector<2x8x8xf32> -> vector<2x8x32xf32>
    %105 = vector.shape_cast %104 : vector<2x8x32xf32> to vector<16x32xf32>
    %cst_43 = arith.constant dense<0.000000e+00> : vector<16x32xf32>
    %106 = tpu.matmul %105, %21, %cst_43 {dimension_numbers = #tpu.dot_dimension_numbers<[1], [0], [0], [1], [0, 0, 1, 1], [], []>} : vector<16x32xf32>, vector<32x32xf32>, vector<16x32xf32> -> vector<16x32xf32>
    %107 = vector.broadcast %23 : vector<1x32xf32> to vector<16x32xf32>
    %108 = arith.addf %106, %107 : vector<16x32xf32>
    %109 = arith.addf %3, %108 : vector<16x32xf32>
    %c0_44 = arith.constant 0 : index
    %c0_45 = arith.constant 0 : index
    %c0_46 = arith.constant 0 : index
    %c0_47 = arith.constant 0 : index
    %110 = vector.load %arg12[%c0_44, %c0_45, %c0_46, %c0_47] : memref<1x1x1x32xf32, #tpu.memory_space<vmem>>, vector<1x1x1x32xf32>
    %111 = vector.shape_cast %110 : vector<1x1x1x32xf32> to vector<1x32xf32>
    %c0_48 = arith.constant 0 : index
    %c0_49 = arith.constant 0 : index
    %c0_50 = arith.constant 0 : index
    %c0_51 = arith.constant 0 : index
    %112 = vector.load %arg13[%c0_48, %c0_49, %c0_50, %c0_51] : memref<1x1x1x32xf32, #tpu.memory_space<vmem>>, vector<1x1x1x32xf32>
    %113 = vector.shape_cast %112 : vector<1x1x1x32xf32> to vector<1x32xf32>
    %cst_52 = arith.constant dense<0.000000e+00> : vector<16xf32>
    %114 = vector.multi_reduction <add>, %109, %cst_52 [1] : vector<16x32xf32> to vector<16xf32>
    %115 = vector.shape_cast %114 : vector<16xf32> to vector<16x1xf32>
    %cst_53 = arith.constant 3.200000e+01 : f32
    %116 = vector.broadcast %cst_53 : f32 to vector<16x1xf32>
    %117 = arith.divf %115, %116 : vector<16x1xf32>
    %118 = vector.broadcast %117 : vector<16x1xf32> to vector<16x32xf32>
    %119 = arith.subf %109, %118 : vector<16x32xf32>
    %120 = arith.mulf %119, %119 : vector<16x32xf32>
    %cst_54 = arith.constant dense<0.000000e+00> : vector<16xf32>
    %121 = vector.multi_reduction <add>, %120, %cst_54 [1] : vector<16x32xf32> to vector<16xf32>
    %122 = vector.shape_cast %121 : vector<16xf32> to vector<16x1xf32>
    %cst_55 = arith.constant 3.200000e+01 : f32
    %123 = vector.broadcast %cst_55 : f32 to vector<16x1xf32>
    %124 = arith.divf %122, %123 : vector<16x1xf32>
    %125 = vector.broadcast %117 : vector<16x1xf32> to vector<16x32xf32>
    %126 = arith.subf %109, %125 : vector<16x32xf32>
    %cst_56 = arith.constant 9.99999974E-6 : f32
    %127 = vector.broadcast %cst_56 : f32 to vector<16x1xf32>
    %128 = arith.addf %124, %127 : vector<16x1xf32>
    %129 = math.rsqrt %128 : vector<16x1xf32>
    %130 = vector.broadcast %129 : vector<16x1xf32> to vector<16x32xf32>
    %131 = arith.mulf %126, %130 : vector<16x32xf32>
    %132 = vector.broadcast %111 : vector<1x32xf32> to vector<16x32xf32>
    %133 = arith.mulf %131, %132 : vector<16x32xf32>
    %134 = vector.broadcast %113 : vector<1x32xf32> to vector<16x32xf32>
    %135 = arith.addf %133, %134 : vector<16x32xf32>
    %c0_57 = arith.constant 0 : index
    %c0_58 = arith.constant 0 : index
    %c0_59 = arith.constant 0 : index
    %c0_60 = arith.constant 0 : index
    %136 = vector.load %arg14[%c0_57, %c0_58, %c0_59, %c0_60] : memref<1x1x32x96xf32, #tpu.memory_space<vmem>>, vector<1x1x32x96xf32>
    %137 = vector.shape_cast %136 : vector<1x1x32x96xf32> to vector<32x96xf32>
    %c0_61 = arith.constant 0 : index
    %c0_62 = arith.constant 0 : index
    %c0_63 = arith.constant 0 : index
    %c0_64 = arith.constant 0 : index
    %138 = vector.load %arg15[%c0_61, %c0_62, %c0_63, %c0_64] : memref<1x1x1x96xf32, #tpu.memory_space<vmem>>, vector<1x1x1x96xf32>
    %139 = vector.shape_cast %138 : vector<1x1x1x96xf32> to vector<1x96xf32>
    %140 = vector.extract_strided_slice %137 {offsets = [0, 0], sizes = [32, 32], strides = [1, 1]} : vector<32x96xf32> to vector<32x32xf32>
    %cst_65 = arith.constant dense<0.000000e+00> : vector<16x32xf32>
    %141 = tpu.matmul %135, %140, %cst_65 {dimension_numbers = #tpu.dot_dimension_numbers<[1], [0], [0], [1], [0, 0, 1, 1], [], []>} : vector<16x32xf32>, vector<32x32xf32>, vector<16x32xf32> -> vector<16x32xf32>
    %142 = vector.extract_strided_slice %139 {offsets = [0, 0], sizes = [1, 32], strides = [1, 1]} : vector<1x96xf32> to vector<1x32xf32>
    %143 = vector.broadcast %142 : vector<1x32xf32> to vector<16x32xf32>
    %144 = arith.addf %141, %143 : vector<16x32xf32>
    %145 = vector.shape_cast %144 : vector<16x32xf32> to vector<2x8x32xf32>
    %146 = vector.extract_strided_slice %137 {offsets = [0, 32], sizes = [32, 64], strides = [1, 1]} : vector<32x96xf32> to vector<32x64xf32>
    %cst_66 = arith.constant dense<0.000000e+00> : vector<16x64xf32>
    %147 = tpu.matmul %5, %146, %cst_66 {dimension_numbers = #tpu.dot_dimension_numbers<[1], [0], [0], [1], [0, 0, 1, 1], [], []>} : vector<16x32xf32>, vector<32x64xf32>, vector<16x64xf32> -> vector<16x64xf32>
    %148 = vector.extract_strided_slice %139 {offsets = [0, 32], sizes = [1, 64], strides = [1, 1]} : vector<1x96xf32> to vector<1x64xf32>
    %149 = vector.broadcast %148 : vector<1x64xf32> to vector<16x64xf32>
    %150 = arith.addf %147, %149 : vector<16x64xf32>
    %151 = vector.extract_strided_slice %150 {offsets = [0, 0], sizes = [16, 32], strides = [1, 1]} : vector<16x64xf32> to vector<16x32xf32>
    %152 = vector.shape_cast %151 : vector<16x32xf32> to vector<2x8x32xf32>
    %153 = vector.extract_strided_slice %150 {offsets = [0, 32], sizes = [16, 32], strides = [1, 1]} : vector<16x64xf32> to vector<16x32xf32>
    %154 = vector.shape_cast %153 : vector<16x32xf32> to vector<2x8x32xf32>
    %c0_67 = arith.constant 0 : index
    %c0_68 = arith.constant 0 : index
    %c0_69 = arith.constant 0 : index
    %c0_70 = arith.constant 0 : index
    %155 = vector.load %arg16[%c0_67, %c0_68, %c0_69, %c0_70] : memref<1x1x32x32xf32, #tpu.memory_space<vmem>>, vector<1x1x32x32xf32>
    %156 = vector.shape_cast %155 : vector<1x1x32x32xf32> to vector<32x32xf32>
    %c0_71 = arith.constant 0 : index
    %c0_72 = arith.constant 0 : index
    %c0_73 = arith.constant 0 : index
    %c0_74 = arith.constant 0 : index
    %157 = vector.load %arg17[%c0_71, %c0_72, %c0_73, %c0_74] : memref<1x1x1x32xf32, #tpu.memory_space<vmem>>, vector<1x1x1x32xf32>
    %158 = vector.shape_cast %157 : vector<1x1x1x32xf32> to vector<1x32xf32>
    %159 = vector.extract_strided_slice %145 {offsets = [0, 0, 0], sizes = [2, 8, 8], strides = [1, 1, 1]} : vector<2x8x32xf32> to vector<2x8x8xf32>
    %160 = vector.extract_strided_slice %152 {offsets = [0, 0, 0], sizes = [2, 8, 8], strides = [1, 1, 1]} : vector<2x8x32xf32> to vector<2x8x8xf32>
    "tpu.trace_start"() <{level = 10 : i32, message = "bqd,bkd->bqk"}> : () -> ()
    %cst_75 = arith.constant dense<0.000000e+00> : vector<2x8x8xf32>
    %161 = tpu.matmul %159, %160, %cst_75 {dimension_numbers = #tpu.dot_dimension_numbers<[2], [2], [1], [1], [0, 0, 0, 1, 1, 1], [0], [0]>} : vector<2x8x8xf32>, vector<2x8x8xf32>, vector<2x8x8xf32> -> vector<2x8x8xf32>
    "tpu.trace_stop"() : () -> ()
    %cst_76 = arith.constant 0.353553385 : f32
    %162 = vector.broadcast %cst_76 : f32 to vector<2x8x8xf32>
    %163 = arith.mulf %161, %162 : vector<2x8x8xf32>
    %cst_77 = arith.constant dense<0xFF800000> : vector<2x8xf32>
    %164 = vector.multi_reduction <maximumf>, %163, %cst_77 [2] : vector<2x8x8xf32> to vector<2x8xf32>
    %165 = vector.shape_cast %164 : vector<2x8xf32> to vector<2x8x1xf32>
    %166 = vector.broadcast %165 : vector<2x8x1xf32> to vector<2x8x8xf32>
    %167 = arith.subf %163, %166 : vector<2x8x8xf32>
    %168 = math.exp %167 : vector<2x8x8xf32>
    %cst_78 = arith.constant dense<0.000000e+00> : vector<2x8xf32>
    %169 = vector.multi_reduction <add>, %168, %cst_78 [2] : vector<2x8x8xf32> to vector<2x8xf32>
    %170 = vector.shape_cast %169 : vector<2x8xf32> to vector<2x8x1xf32>
    %171 = tpu.reciprocal %170 {approx = true} : vector<2x8x1xf32> -> vector<2x8x1xf32>
    %172 = vector.broadcast %171 : vector<2x8x1xf32> to vector<2x8x8xf32>
    %173 = arith.mulf %168, %172 : vector<2x8x8xf32>
    %174 = vector.extract_strided_slice %154 {offsets = [0, 0, 0], sizes = [2, 8, 8], strides = [1, 1, 1]} : vector<2x8x32xf32> to vector<2x8x8xf32>
    "tpu.trace_start"() <{level = 10 : i32, message = "bqk,bkd->bqd"}> : () -> ()
    %cst_79 = arith.constant dense<0.000000e+00> : vector<2x8x8xf32>
    %175 = tpu.matmul %173, %174, %cst_79 {dimension_numbers = #tpu.dot_dimension_numbers<[2], [1], [1], [2], [0, 0, 0, 1, 1, 2], [0], [0]>} : vector<2x8x8xf32>, vector<2x8x8xf32>, vector<2x8x8xf32> -> vector<2x8x8xf32>
    "tpu.trace_stop"() : () -> ()
    %176 = vector.extract_strided_slice %145 {offsets = [0, 0, 8], sizes = [2, 8, 8], strides = [1, 1, 1]} : vector<2x8x32xf32> to vector<2x8x8xf32>
    %177 = vector.extract_strided_slice %152 {offsets = [0, 0, 8], sizes = [2, 8, 8], strides = [1, 1, 1]} : vector<2x8x32xf32> to vector<2x8x8xf32>
    "tpu.trace_start"() <{level = 10 : i32, message = "bqd,bkd->bqk"}> : () -> ()
    %cst_80 = arith.constant dense<0.000000e+00> : vector<2x8x8xf32>
    %178 = tpu.matmul %176, %177, %cst_80 {dimension_numbers = #tpu.dot_dimension_numbers<[2], [2], [1], [1], [0, 0, 0, 1, 1, 1], [0], [0]>} : vector<2x8x8xf32>, vector<2x8x8xf32>, vector<2x8x8xf32> -> vector<2x8x8xf32>
    "tpu.trace_stop"() : () -> ()
    %cst_81 = arith.constant 0.353553385 : f32
    %179 = vector.broadcast %cst_81 : f32 to vector<2x8x8xf32>
    %180 = arith.mulf %178, %179 : vector<2x8x8xf32>
    %cst_82 = arith.constant dense<0xFF800000> : vector<2x8xf32>
    %181 = vector.multi_reduction <maximumf>, %180, %cst_82 [2] : vector<2x8x8xf32> to vector<2x8xf32>
    %182 = vector.shape_cast %181 : vector<2x8xf32> to vector<2x8x1xf32>
    %183 = vector.broadcast %182 : vector<2x8x1xf32> to vector<2x8x8xf32>
    %184 = arith.subf %180, %183 : vector<2x8x8xf32>
    %185 = math.exp %184 : vector<2x8x8xf32>
    %cst_83 = arith.constant dense<0.000000e+00> : vector<2x8xf32>
    %186 = vector.multi_reduction <add>, %185, %cst_83 [2] : vector<2x8x8xf32> to vector<2x8xf32>
    %187 = vector.shape_cast %186 : vector<2x8xf32> to vector<2x8x1xf32>
    %188 = tpu.reciprocal %187 {approx = true} : vector<2x8x1xf32> -> vector<2x8x1xf32>
    %189 = vector.broadcast %188 : vector<2x8x1xf32> to vector<2x8x8xf32>
    %190 = arith.mulf %185, %189 : vector<2x8x8xf32>
    %191 = vector.extract_strided_slice %154 {offsets = [0, 0, 8], sizes = [2, 8, 8], strides = [1, 1, 1]} : vector<2x8x32xf32> to vector<2x8x8xf32>
    "tpu.trace_start"() <{level = 10 : i32, message = "bqk,bkd->bqd"}> : () -> ()
    %cst_84 = arith.constant dense<0.000000e+00> : vector<2x8x8xf32>
    %192 = tpu.matmul %190, %191, %cst_84 {dimension_numbers = #tpu.dot_dimension_numbers<[2], [1], [1], [2], [0, 0, 0, 1, 1, 2], [0], [0]>} : vector<2x8x8xf32>, vector<2x8x8xf32>, vector<2x8x8xf32> -> vector<2x8x8xf32>
    "tpu.trace_stop"() : () -> ()
    %193 = vector.extract_strided_slice %145 {offsets = [0, 0, 16], sizes = [2, 8, 8], strides = [1, 1, 1]} : vector<2x8x32xf32> to vector<2x8x8xf32>
    %194 = vector.extract_strided_slice %152 {offsets = [0, 0, 16], sizes = [2, 8, 8], strides = [1, 1, 1]} : vector<2x8x32xf32> to vector<2x8x8xf32>
    "tpu.trace_start"() <{level = 10 : i32, message = "bqd,bkd->bqk"}> : () -> ()
    %cst_85 = arith.constant dense<0.000000e+00> : vector<2x8x8xf32>
    %195 = tpu.matmul %193, %194, %cst_85 {dimension_numbers = #tpu.dot_dimension_numbers<[2], [2], [1], [1], [0, 0, 0, 1, 1, 1], [0], [0]>} : vector<2x8x8xf32>, vector<2x8x8xf32>, vector<2x8x8xf32> -> vector<2x8x8xf32>
    "tpu.trace_stop"() : () -> ()
    %cst_86 = arith.constant 0.353553385 : f32
    %196 = vector.broadcast %cst_86 : f32 to vector<2x8x8xf32>
    %197 = arith.mulf %195, %196 : vector<2x8x8xf32>
    %cst_87 = arith.constant dense<0xFF800000> : vector<2x8xf32>
    %198 = vector.multi_reduction <maximumf>, %197, %cst_87 [2] : vector<2x8x8xf32> to vector<2x8xf32>
    %199 = vector.shape_cast %198 : vector<2x8xf32> to vector<2x8x1xf32>
    %200 = vector.broadcast %199 : vector<2x8x1xf32> to vector<2x8x8xf32>
    %201 = arith.subf %197, %200 : vector<2x8x8xf32>
    %202 = math.exp %201 : vector<2x8x8xf32>
    %cst_88 = arith.constant dense<0.000000e+00> : vector<2x8xf32>
    %203 = vector.multi_reduction <add>, %202, %cst_88 [2] : vector<2x8x8xf32> to vector<2x8xf32>
    %204 = vector.shape_cast %203 : vector<2x8xf32> to vector<2x8x1xf32>
    %205 = tpu.reciprocal %204 {approx = true} : vector<2x8x1xf32> -> vector<2x8x1xf32>
    %206 = vector.broadcast %205 : vector<2x8x1xf32> to vector<2x8x8xf32>
    %207 = arith.mulf %202, %206 : vector<2x8x8xf32>
    %208 = vector.extract_strided_slice %154 {offsets = [0, 0, 16], sizes = [2, 8, 8], strides = [1, 1, 1]} : vector<2x8x32xf32> to vector<2x8x8xf32>
    "tpu.trace_start"() <{level = 10 : i32, message = "bqk,bkd->bqd"}> : () -> ()
    %cst_89 = arith.constant dense<0.000000e+00> : vector<2x8x8xf32>
    %209 = tpu.matmul %207, %208, %cst_89 {dimension_numbers = #tpu.dot_dimension_numbers<[2], [1], [1], [2], [0, 0, 0, 1, 1, 2], [0], [0]>} : vector<2x8x8xf32>, vector<2x8x8xf32>, vector<2x8x8xf32> -> vector<2x8x8xf32>
    "tpu.trace_stop"() : () -> ()
    %210 = vector.extract_strided_slice %145 {offsets = [0, 0, 24], sizes = [2, 8, 8], strides = [1, 1, 1]} : vector<2x8x32xf32> to vector<2x8x8xf32>
    %211 = vector.extract_strided_slice %152 {offsets = [0, 0, 24], sizes = [2, 8, 8], strides = [1, 1, 1]} : vector<2x8x32xf32> to vector<2x8x8xf32>
    "tpu.trace_start"() <{level = 10 : i32, message = "bqd,bkd->bqk"}> : () -> ()
    %cst_90 = arith.constant dense<0.000000e+00> : vector<2x8x8xf32>
    %212 = tpu.matmul %210, %211, %cst_90 {dimension_numbers = #tpu.dot_dimension_numbers<[2], [2], [1], [1], [0, 0, 0, 1, 1, 1], [0], [0]>} : vector<2x8x8xf32>, vector<2x8x8xf32>, vector<2x8x8xf32> -> vector<2x8x8xf32>
    "tpu.trace_stop"() : () -> ()
    %cst_91 = arith.constant 0.353553385 : f32
    %213 = vector.broadcast %cst_91 : f32 to vector<2x8x8xf32>
    %214 = arith.mulf %212, %213 : vector<2x8x8xf32>
    %cst_92 = arith.constant dense<0xFF800000> : vector<2x8xf32>
    %215 = vector.multi_reduction <maximumf>, %214, %cst_92 [2] : vector<2x8x8xf32> to vector<2x8xf32>
    %216 = vector.shape_cast %215 : vector<2x8xf32> to vector<2x8x1xf32>
    %217 = vector.broadcast %216 : vector<2x8x1xf32> to vector<2x8x8xf32>
    %218 = arith.subf %214, %217 : vector<2x8x8xf32>
    %219 = math.exp %218 : vector<2x8x8xf32>
    %cst_93 = arith.constant dense<0.000000e+00> : vector<2x8xf32>
    %220 = vector.multi_reduction <add>, %219, %cst_93 [2] : vector<2x8x8xf32> to vector<2x8xf32>
    %221 = vector.shape_cast %220 : vector<2x8xf32> to vector<2x8x1xf32>
    %222 = tpu.reciprocal %221 {approx = true} : vector<2x8x1xf32> -> vector<2x8x1xf32>
    %223 = vector.broadcast %222 : vector<2x8x1xf32> to vector<2x8x8xf32>
    %224 = arith.mulf %219, %223 : vector<2x8x8xf32>
    %225 = vector.extract_strided_slice %154 {offsets = [0, 0, 24], sizes = [2, 8, 8], strides = [1, 1, 1]} : vector<2x8x32xf32> to vector<2x8x8xf32>
    "tpu.trace_start"() <{level = 10 : i32, message = "bqk,bkd->bqd"}> : () -> ()
    %cst_94 = arith.constant dense<0.000000e+00> : vector<2x8x8xf32>
    %226 = tpu.matmul %224, %225, %cst_94 {dimension_numbers = #tpu.dot_dimension_numbers<[2], [1], [1], [2], [0, 0, 0, 1, 1, 2], [0], [0]>} : vector<2x8x8xf32>, vector<2x8x8xf32>, vector<2x8x8xf32> -> vector<2x8x8xf32>
    "tpu.trace_stop"() : () -> ()
    %227 = tpu.concatenate %175, %192, %209, %226 in 2 : vector<2x8x8xf32>, vector<2x8x8xf32>, vector<2x8x8xf32>, vector<2x8x8xf32> -> vector<2x8x32xf32>
    %228 = vector.shape_cast %227 : vector<2x8x32xf32> to vector<16x32xf32>
    %cst_95 = arith.constant dense<0.000000e+00> : vector<16x32xf32>
    %229 = tpu.matmul %228, %156, %cst_95 {dimension_numbers = #tpu.dot_dimension_numbers<[1], [0], [0], [1], [0, 0, 1, 1], [], []>} : vector<16x32xf32>, vector<32x32xf32>, vector<16x32xf32> -> vector<16x32xf32>
    %230 = vector.broadcast %158 : vector<1x32xf32> to vector<16x32xf32>
    %231 = arith.addf %229, %230 : vector<16x32xf32>
    %232 = arith.addf %135, %231 : vector<16x32xf32>
    %c0_96 = arith.constant 0 : index
    %c0_97 = arith.constant 0 : index
    %c0_98 = arith.constant 0 : index
    %c0_99 = arith.constant 0 : index
    %233 = vector.load %arg18[%c0_96, %c0_97, %c0_98, %c0_99] : memref<1x1x1x32xf32, #tpu.memory_space<vmem>>, vector<1x1x1x32xf32>
    %234 = vector.shape_cast %233 : vector<1x1x1x32xf32> to vector<1x32xf32>
    %c0_100 = arith.constant 0 : index
    %c0_101 = arith.constant 0 : index
    %c0_102 = arith.constant 0 : index
    %c0_103 = arith.constant 0 : index
    %235 = vector.load %arg19[%c0_100, %c0_101, %c0_102, %c0_103] : memref<1x1x1x32xf32, #tpu.memory_space<vmem>>, vector<1x1x1x32xf32>
    %236 = vector.shape_cast %235 : vector<1x1x1x32xf32> to vector<1x32xf32>
    %cst_104 = arith.constant dense<0.000000e+00> : vector<16xf32>
    %237 = vector.multi_reduction <add>, %232, %cst_104 [1] : vector<16x32xf32> to vector<16xf32>
    %238 = vector.shape_cast %237 : vector<16xf32> to vector<16x1xf32>
    %cst_105 = arith.constant 3.200000e+01 : f32
    %239 = vector.broadcast %cst_105 : f32 to vector<16x1xf32>
    %240 = arith.divf %238, %239 : vector<16x1xf32>
    %241 = vector.broadcast %240 : vector<16x1xf32> to vector<16x32xf32>
    %242 = arith.subf %232, %241 : vector<16x32xf32>
    %243 = arith.mulf %242, %242 : vector<16x32xf32>
    %cst_106 = arith.constant dense<0.000000e+00> : vector<16xf32>
    %244 = vector.multi_reduction <add>, %243, %cst_106 [1] : vector<16x32xf32> to vector<16xf32>
    %245 = vector.shape_cast %244 : vector<16xf32> to vector<16x1xf32>
    %cst_107 = arith.constant 3.200000e+01 : f32
    %246 = vector.broadcast %cst_107 : f32 to vector<16x1xf32>
    %247 = arith.divf %245, %246 : vector<16x1xf32>
    %248 = vector.broadcast %240 : vector<16x1xf32> to vector<16x32xf32>
    %249 = arith.subf %232, %248 : vector<16x32xf32>
    %cst_108 = arith.constant 9.99999974E-6 : f32
    %250 = vector.broadcast %cst_108 : f32 to vector<16x1xf32>
    %251 = arith.addf %247, %250 : vector<16x1xf32>
    %252 = math.rsqrt %251 : vector<16x1xf32>
    %253 = vector.broadcast %252 : vector<16x1xf32> to vector<16x32xf32>
    %254 = arith.mulf %249, %253 : vector<16x32xf32>
    %255 = vector.broadcast %234 : vector<1x32xf32> to vector<16x32xf32>
    %256 = arith.mulf %254, %255 : vector<16x32xf32>
    %257 = vector.broadcast %236 : vector<1x32xf32> to vector<16x32xf32>
    %258 = arith.addf %256, %257 : vector<16x32xf32>
    %c0_109 = arith.constant 0 : index
    %c0_110 = arith.constant 0 : index
    %c0_111 = arith.constant 0 : index
    %c0_112 = arith.constant 0 : index
    %259 = vector.load %arg20[%c0_109, %c0_110, %c0_111, %c0_112] : memref<1x1x32x64xf32, #tpu.memory_space<vmem>>, vector<1x1x32x64xf32>
    %260 = vector.shape_cast %259 : vector<1x1x32x64xf32> to vector<32x64xf32>
    %cst_113 = arith.constant dense<0.000000e+00> : vector<16x64xf32>
    %261 = tpu.matmul %258, %260, %cst_113 {dimension_numbers = #tpu.dot_dimension_numbers<[1], [0], [0], [1], [0, 0, 1, 1], [], []>} : vector<16x32xf32>, vector<32x64xf32>, vector<16x64xf32> -> vector<16x64xf32>
    %c0_114 = arith.constant 0 : index
    %c0_115 = arith.constant 0 : index
    %c0_116 = arith.constant 0 : index
    %c0_117 = arith.constant 0 : index
    %262 = vector.load %arg21[%c0_114, %c0_115, %c0_116, %c0_117] : memref<1x1x1x64xf32, #tpu.memory_space<vmem>>, vector<1x1x1x64xf32>
    %263 = vector.shape_cast %262 : vector<1x1x1x64xf32> to vector<1x64xf32>
    %264 = vector.broadcast %263 : vector<1x64xf32> to vector<16x64xf32>
    %265 = arith.addf %261, %264 : vector<16x64xf32>
    %cst_118 = arith.constant 0.000000e+00 : f32
    %266 = vector.broadcast %cst_118 : f32 to vector<16x64xf32>
    %267 = arith.maximumf %265, %266 : vector<16x64xf32>
    %c0_119 = arith.constant 0 : index
    %c0_120 = arith.constant 0 : index
    %c0_121 = arith.constant 0 : index
    %c0_122 = arith.constant 0 : index
    %268 = vector.load %arg22[%c0_119, %c0_120, %c0_121, %c0_122] : memref<1x1x64x32xf32, #tpu.memory_space<vmem>>, vector<1x1x64x32xf32>
    %269 = vector.shape_cast %268 : vector<1x1x64x32xf32> to vector<64x32xf32>
    %cst_123 = arith.constant dense<0.000000e+00> : vector<16x32xf32>
    %270 = tpu.matmul %267, %269, %cst_123 {dimension_numbers = #tpu.dot_dimension_numbers<[1], [0], [0], [1], [0, 0, 1, 1], [], []>} : vector<16x64xf32>, vector<64x32xf32>, vector<16x32xf32> -> vector<16x32xf32>
    %c0_124 = arith.constant 0 : index
    %c0_125 = arith.constant 0 : index
    %c0_126 = arith.constant 0 : index
    %c0_127 = arith.constant 0 : index
    %271 = vector.load %arg23[%c0_124, %c0_125, %c0_126, %c0_127] : memref<1x1x1x32xf32, #tpu.memory_space<vmem>>, vector<1x1x1x32xf32>
    %272 = vector.shape_cast %271 : vector<1x1x1x32xf32> to vector<1x32xf32>
    %273 = vector.broadcast %272 : vector<1x32xf32> to vector<16x32xf32>
    %274 = arith.addf %270, %273 : vector<16x32xf32>
    %275 = arith.addf %258, %274 : vector<16x32xf32>
    %c0_128 = arith.constant 0 : index
    %c0_129 = arith.constant 0 : index
    %c0_130 = arith.constant 0 : index
    %c0_131 = arith.constant 0 : index
    %276 = vector.load %arg24[%c0_128, %c0_129, %c0_130, %c0_131] : memref<1x1x1x32xf32, #tpu.memory_space<vmem>>, vector<1x1x1x32xf32>
    %277 = vector.shape_cast %276 : vector<1x1x1x32xf32> to vector<1x32xf32>
    %c0_132 = arith.constant 0 : index
    %c0_133 = arith.constant 0 : index
    %c0_134 = arith.constant 0 : index
    %c0_135 = arith.constant 0 : index
    %278 = vector.load %arg25[%c0_132, %c0_133, %c0_134, %c0_135] : memref<1x1x1x32xf32, #tpu.memory_space<vmem>>, vector<1x1x1x32xf32>
    %279 = vector.shape_cast %278 : vector<1x1x1x32xf32> to vector<1x32xf32>
    %cst_136 = arith.constant dense<0.000000e+00> : vector<16xf32>
    %280 = vector.multi_reduction <add>, %275, %cst_136 [1] : vector<16x32xf32> to vector<16xf32>
    %281 = vector.shape_cast %280 : vector<16xf32> to vector<16x1xf32>
    %cst_137 = arith.constant 3.200000e+01 : f32
    %282 = vector.broadcast %cst_137 : f32 to vector<16x1xf32>
    %283 = arith.divf %281, %282 : vector<16x1xf32>
    %284 = vector.broadcast %283 : vector<16x1xf32> to vector<16x32xf32>
    %285 = arith.subf %275, %284 : vector<16x32xf32>
    %286 = arith.mulf %285, %285 : vector<16x32xf32>
    %cst_138 = arith.constant dense<0.000000e+00> : vector<16xf32>
    %287 = vector.multi_reduction <add>, %286, %cst_138 [1] : vector<16x32xf32> to vector<16xf32>
    %288 = vector.shape_cast %287 : vector<16xf32> to vector<16x1xf32>
    %cst_139 = arith.constant 3.200000e+01 : f32
    %289 = vector.broadcast %cst_139 : f32 to vector<16x1xf32>
    %290 = arith.divf %288, %289 : vector<16x1xf32>
    %291 = vector.broadcast %283 : vector<16x1xf32> to vector<16x32xf32>
    %292 = arith.subf %275, %291 : vector<16x32xf32>
    %cst_140 = arith.constant 9.99999974E-6 : f32
    %293 = vector.broadcast %cst_140 : f32 to vector<16x1xf32>
    %294 = arith.addf %290, %293 : vector<16x1xf32>
    %295 = math.rsqrt %294 : vector<16x1xf32>
    %296 = vector.broadcast %295 : vector<16x1xf32> to vector<16x32xf32>
    %297 = arith.mulf %292, %296 : vector<16x32xf32>
    %298 = vector.broadcast %277 : vector<1x32xf32> to vector<16x32xf32>
    %299 = arith.mulf %297, %298 : vector<16x32xf32>
    %300 = vector.broadcast %279 : vector<1x32xf32> to vector<16x32xf32>
    %301 = arith.addf %299, %300 : vector<16x32xf32>
    %c0_141 = arith.constant 0 : index
    %c0_142 = arith.constant 0 : index
    %302 = vector.load %arg29[%c0_141, %c0_142] : memref<16x32xf32, #tpu.memory_space<vmem>>, vector<16x32xf32>
    tpu.vector_store %arg29[%c0_141, %c0_142], %301 {strides = array<i32>} : memref<16x32xf32, #tpu.memory_space<vmem>>, vector<16x32xf32>,
    %c1_i32 = arith.constant 1 : i32
    %303 = arith.cmpi eq, %arg1, %c1_i32 : i32
    %304 = arith.extui %303 : i1 to i32
    %c0_i32_143 = arith.constant 0 : i32
    %305 = arith.cmpi ne, %304, %c0_i32_143 : i32
    scf.if %305 {
      %c0_144 = arith.constant 0 : index
      %c0_145 = arith.constant 0 : index
      %c0_146 = arith.constant 0 : index
      %306 = vector.load %arg26[%c0_144, %c0_145, %c0_146] : memref<1x32x2xf32, #tpu.memory_space<vmem>>, vector<1x32x2xf32>
      %307 = vector.shape_cast %306 : vector<1x32x2xf32> to vector<32x2xf32>
      %cst_147 = arith.constant dense<0.000000e+00> : vector<16x2xf32>
      %308 = tpu.matmul %301, %307, %cst_147 {dimension_numbers = #tpu.dot_dimension_numbers<[1], [0], [0], [1], [0, 0, 1, 1], [], []>} : vector<16x32xf32>, vector<32x2xf32>, vector<16x2xf32> -> vector<16x2xf32>
      %c0_148 = arith.constant 0 : index
      %c0_149 = arith.constant 0 : index
      %c0_150 = arith.constant 0 : index
      %309 = vector.load %arg27[%c0_148, %c0_149, %c0_150] : memref<1x1x2xf32, #tpu.memory_space<vmem>>, vector<1x1x2xf32>
      %310 = vector.shape_cast %309 : vector<1x1x2xf32> to vector<1x2xf32>
      %311 = vector.broadcast %310 : vector<1x2xf32> to vector<16x2xf32>
      %312 = arith.addf %308, %311 : vector<16x2xf32>
      %313 = vector.shape_cast %312 : vector<16x2xf32> to vector<2x1x8x2xf32>
      %c0_151 = arith.constant 0 : index
      %c0_152 = arith.constant 0 : index
      %c0_153 = arith.constant 0 : index
      %c0_154 = arith.constant 0 : index
      %314 = vector.load %arg28[%c0_151, %c0_152, %c0_153, %c0_154] : memref<2x1x8x2xf32, #tpu.memory_space<vmem>>, vector<2x1x8x2xf32>
      tpu.vector_store %arg28[%c0_151, %c0_152, %c0_153, %c0_154], %313 {strides = array<i32>} : memref<2x1x8x2xf32, #tpu.memory_space<vmem>>, vector<2x1x8x2xf32>,
    } else {
    }
    return
  }
  func.func @transform_0(%arg0: i32, %arg1: i32) -> (i32, i32, i32) {
    %c0_i32 = arith.constant 0 : i32
    %c0_i32_0 = arith.constant 0 : i32
    %c0_i32_1 = arith.constant 0 : i32
    %c0_i32_2 = arith.constant 0 : i32
    return %c0_i32, %c0_i32_0, %c0_i32_1 : i32, i32, i32
  }
  func.func @transform_1(%arg0: i32, %arg1: i32) -> (i32, i32) {
    %c0_i32 = arith.constant 0 : i32
    %c0_i32_0 = arith.constant 0 : i32
    %c0_i32_1 = arith.constant 0 : i32
    return %c0_i32, %c0_i32_0 : i32, i32
  }
  func.func @transform_2(%arg0: i32, %arg1: i32) -> (i32, i32) {
    %c0_i32 = arith.constant 0 : i32
    %c0_i32_0 = arith.constant 0 : i32
    %c0_i32_1 = arith.constant 0 : i32
    return %c0_i32, %c0_i32_0 : i32, i32
  }
  func.func @transform_3(%arg0: i32, %arg1: i32) -> (i32, i32) {
    %c0_i32 = arith.constant 0 : i32
    %c0_i32_0 = arith.constant 0 : i32
    %c0_i32_1 = arith.constant 0 : i32
    return %c0_i32, %c0_i32_0 : i32, i32
  }
  func.func @transform_4(%arg0: i32, %arg1: i32) -> (i32, i32, i32) {
    %c0_i32 = arith.constant 0 : i32
    %c0_i32_0 = arith.constant 0 : i32
    %c0_i32_1 = arith.constant 0 : i32
    %c0_i32_2 = arith.constant 0 : i32
    return %c0_i32, %c0_i32_0, %c0_i32_1 : i32, i32, i32
  }
  func.func @transform_5(%arg0: i32, %arg1: i32) -> (i32, i32) {
    %c0_i32 = arith.constant 0 : i32
    %c0_i32_0 = arith.constant 0 : i32
    %c0_i32_1 = arith.constant 0 : i32
    return %c0_i32, %c0_i32_0 : i32, i32
  }
  func.func @transform_6(%arg0: i32, %arg1: i32) -> (i32, i32, i32, i32) {
    %c0_i32 = arith.constant 0 : i32
    %c0_i32_0 = arith.constant 0 : i32
    %c0_i32_1 = arith.constant 0 : i32
    return %arg0, %arg1, %c0_i32, %c0_i32_0 : i32, i32, i32, i32
  }
  func.func @transform_7(%arg0: i32, %arg1: i32) -> (i32, i32, i32, i32) {
    %c0_i32 = arith.constant 0 : i32
    %c0_i32_0 = arith.constant 0 : i32
    %c0_i32_1 = arith.constant 0 : i32
    return %arg0, %arg1, %c0_i32, %c0_i32_0 : i32, i32, i32, i32
  }
  func.func @transform_8(%arg0: i32, %arg1: i32) -> (i32, i32, i32, i32) {
    %c0_i32 = arith.constant 0 : i32
    %c0_i32_0 = arith.constant 0 : i32
    %c0_i32_1 = arith.constant 0 : i32
    return %arg0, %arg1, %c0_i32, %c0_i32_0 : i32, i32, i32, i32
  }
  func.func @transform_9(%arg0: i32, %arg1: i32) -> (i32, i32, i32, i32) {
    %c0_i32 = arith.constant 0 : i32
    %c0_i32_0 = arith.constant 0 : i32
    %c0_i32_1 = arith.constant 0 : i32
    return %arg0, %arg1, %c0_i32, %c0_i32_0 : i32, i32, i32, i32
  }
  func.func @transform_10(%arg0: i32, %arg1: i32) -> (i32, i32, i32, i32) {
    %c0_i32 = arith.constant 0 : i32
    %c0_i32_0 = arith.constant 0 : i32
    %c0_i32_1 = arith.constant 0 : i32
    return %arg0, %arg1, %c0_i32, %c0_i32_0 : i32, i32, i32, i32
  }
  func.func @transform_11(%arg0: i32, %arg1: i32) -> (i32, i32, i32, i32) {
    %c0_i32 = arith.constant 0 : i32
    %c0_i32_0 = arith.constant 0 : i32
    %c0_i32_1 = arith.constant 0 : i32
    return %arg0, %arg1, %c0_i32, %c0_i32_0 : i32, i32, i32, i32
  }
  func.func @transform_12(%arg0: i32, %arg1: i32) -> (i32, i32, i32, i32) {
    %c0_i32 = arith.constant 0 : i32
    %c0_i32_0 = arith.constant 0 : i32
    %c0_i32_1 = arith.constant 0 : i32
    return %arg0, %arg1, %c0_i32, %c0_i32_0 : i32, i32, i32, i32
  }
  func.func @transform_13(%arg0: i32, %arg1: i32) -> (i32, i32, i32, i32) {
    %c0_i32 = arith.constant 0 : i32
    %c0_i32_0 = arith.constant 0 : i32
    %c0_i32_1 = arith.constant 0 : i32
    return %arg0, %arg1, %c0_i32, %c0_i32_0 : i32, i32, i32, i32
  }
  func.func @transform_14(%arg0: i32, %arg1: i32) -> (i32, i32, i32, i32) {
    %c0_i32 = arith.constant 0 : i32
    %c0_i32_0 = arith.constant 0 : i32
    %c0_i32_1 = arith.constant 0 : i32
    return %arg0, %arg1, %c0_i32, %c0_i32_0 : i32, i32, i32, i32
  }
  func.func @transform_15(%arg0: i32, %arg1: i32) -> (i32, i32, i32, i32) {
    %c0_i32 = arith.constant 0 : i32
    %c0_i32_0 = arith.constant 0 : i32
    %c0_i32_1 = arith.constant 0 : i32
    return %arg0, %arg1, %c0_i32, %c0_i32_0 : i32, i32, i32, i32
  }
  func.func @transform_16(%arg0: i32, %arg1: i32) -> (i32, i32, i32, i32) {
    %c0_i32 = arith.constant 0 : i32
    %c0_i32_0 = arith.constant 0 : i32
    %c0_i32_1 = arith.constant 0 : i32
    return %arg0, %arg1, %c0_i32, %c0_i32_0 : i32, i32, i32, i32
  }
  func.func @transform_17(%arg0: i32, %arg1: i32) -> (i32, i32, i32, i32) {
    %c0_i32 = arith.constant 0 : i32
    %c0_i32_0 = arith.constant 0 : i32
    %c0_i32_1 = arith.constant 0 : i32
    return %arg0, %arg1, %c0_i32, %c0_i32_0 : i32, i32, i32, i32
  }
  func.func @transform_18(%arg0: i32, %arg1: i32) -> (i32, i32, i32, i32) {
    %c0_i32 = arith.constant 0 : i32
    %c0_i32_0 = arith.constant 0 : i32
    %c0_i32_1 = arith.constant 0 : i32
    return %arg0, %arg1, %c0_i32, %c0_i32_0 : i32, i32, i32, i32
  }
  func.func @transform_19(%arg0: i32, %arg1: i32) -> (i32, i32, i32, i32) {
    %c0_i32 = arith.constant 0 : i32
    %c0_i32_0 = arith.constant 0 : i32
    %c0_i32_1 = arith.constant 0 : i32
    return %arg0, %arg1, %c0_i32, %c0_i32_0 : i32, i32, i32, i32
  }
  func.func @transform_20(%arg0: i32, %arg1: i32) -> (i32, i32, i32, i32) {
    %c0_i32 = arith.constant 0 : i32
    %c0_i32_0 = arith.constant 0 : i32
    %c0_i32_1 = arith.constant 0 : i32
    return %arg0, %arg1, %c0_i32, %c0_i32_0 : i32, i32, i32, i32
  }
  func.func @transform_21(%arg0: i32, %arg1: i32) -> (i32, i32, i32, i32) {
    %c0_i32 = arith.constant 0 : i32
    %c0_i32_0 = arith.constant 0 : i32
    %c0_i32_1 = arith.constant 0 : i32
    return %arg0, %arg1, %c0_i32, %c0_i32_0 : i32, i32, i32, i32
  }
  func.func @transform_22(%arg0: i32, %arg1: i32) -> (i32, i32, i32, i32) {
    %c0_i32 = arith.constant 0 : i32
    %c0_i32_0 = arith.constant 0 : i32
    %c0_i32_1 = arith.constant 0 : i32
    return %arg0, %arg1, %c0_i32, %c0_i32_0 : i32, i32, i32, i32
  }
  func.func @transform_23(%arg0: i32, %arg1: i32) -> (i32, i32, i32, i32) {
    %c0_i32 = arith.constant 0 : i32
    %c0_i32_0 = arith.constant 0 : i32
    %c0_i32_1 = arith.constant 0 : i32
    return %arg0, %arg1, %c0_i32, %c0_i32_0 : i32, i32, i32, i32
  }
  func.func @transform_24(%arg0: i32, %arg1: i32) -> (i32, i32, i32) {
    %c0_i32 = arith.constant 0 : i32
    %c0_i32_0 = arith.constant 0 : i32
    %c0_i32_1 = arith.constant 0 : i32
    return %arg0, %c0_i32, %c0_i32_0 : i32, i32, i32
  }
  func.func @transform_25(%arg0: i32, %arg1: i32) -> (i32, i32, i32) {
    %c0_i32 = arith.constant 0 : i32
    %c0_i32_0 = arith.constant 0 : i32
    %c0_i32_1 = arith.constant 0 : i32
    return %arg0, %c0_i32, %c0_i32_0 : i32, i32, i32
  }
  func.func @transform_26(%arg0: i32, %arg1: i32) -> (i32, i32, i32, i32) {
    %c0_i32 = arith.constant 0 : i32
    %c0_i32_0 = arith.constant 0 : i32
    %c0_i32_1 = arith.constant 0 : i32
    %c0_i32_2 = arith.constant 0 : i32
    return %c0_i32, %arg0, %c0_i32_0, %c0_i32_1 : i32, i32, i32, i32
  }
}

</mosaic_0001>

<llo_original>
// kernel: smtp_forward.2
$region0: #{smtp_forward.2}
  #allocation0 [shape = 'u32[]', space=smem, size = 0x4, offset = 0x4, fixed_abs, tag = 'smem constant byte address 0x4 - core index']
  #allocation1 [shape = 'u32[144,128]{1,0:T(1,128)}', space=vmem, size = 0x12000, scoped, tag = 'internal scratch']
  #allocation2 [shape = 'f32[16,32]{1,0:T(8,128)}', space=vmem, size = 0x2000, scoped, tag = 'scratch operand']
  %s0 = inlined_call_operand.vmem [shape: f32[2,8,4], index: 0, kind: input, shape index: {}]
  %s1 = inlined_call_operand.vmem [shape: f32[8,32], index: 1, kind: input, shape index: {}]
  %s2 = inlined_call_operand.hbm [shape: f32[4,32], index: 2, kind: input, shape index: {}]
  %s3 = inlined_call_operand.hbm [shape: f32[1,32], index: 3, kind: input, shape index: {}]
  %s4 = inlined_call_operand.vmem [shape: f32[2,32,96], index: 4, kind: input, shape index: {}]
  %s5 = inlined_call_operand.hbm [shape: f32[2,1,96], index: 5, kind: input, shape index: {}]
  %s6 = inlined_call_operand.vmem [shape: f32[2,32,32], index: 6, kind: input, shape index: {}]
  %s7 = inlined_call_operand.hbm [shape: f32[2,1,32], index: 7, kind: input, shape index: {}]
  %s8 = inlined_call_operand.hbm [shape: f32[2,1,32], index: 8, kind: input, shape index: {}]
  %s9 = inlined_call_operand.hbm [shape: f32[2,1,32], index: 9, kind: input, shape index: {}]
  %s10 = inlined_call_operand.vmem [shape: f32[2,32,64], index: 10, kind: input, shape index: {}]
  %s11 = inlined_call_operand.hbm [shape: f32[2,1,64], index: 11, kind: input, shape index: {}]
  %s12 = inlined_call_operand.vmem [shape: f32[2,64,32], index: 12, kind: input, shape index: {}]
  %s13 = inlined_call_operand.hbm [shape: f32[2,1,32], index: 13, kind: input, shape index: {}]
  %s14 = inlined_call_operand.hbm [shape: f32[2,1,32], index: 14, kind: input, shape index: {}]
  %s15 = inlined_call_operand.hbm [shape: f32[2,1,32], index: 15, kind: input, shape index: {}]
  %s16 = inlined_call_operand.vmem [shape: f32[8,32,32], index: 16, kind: input, shape index: {}]
  %s17 = inlined_call_operand.hbm [shape: f32[1,32], index: 17, kind: input, shape index: {}]
  %s18 = inlined_call_operand.vmem [shape: f32[32,3], index: 18, kind: input, shape index: {}]
  %s19 = inlined_call_operand.hbm [shape: f32[1,3], index: 19, kind: input, shape index: {}]
  %s20 = inlined_call_operand.vmem [shape: f32[2,8,32], index: 20, kind: output, shape index: {0}]
  %s21 = inlined_call_operand.hbm [shape: f32[2,3], index: 21, kind: output, shape index: {1}]
  %22 = xla_tuple %s20, %s21
  %s23 = sld [smem:[#allocation0]]
  $region177: #{smtp_forward.2} parent=0
    _
  %s25 = ssub.s32 1, %s23
  %s26 = scalar_select 0, %s25, %s23
  $region1: #{smtp_forward.2} parent=0
    #allocation3 [shape = 'u8[2048]{0}', space=vmem, size = 0x800, scoped, tag = 'input window, operand 2, single buffered']
    #allocation4 [shape = 's32[2]{0}', space=sflag, size = 0x8, scoped, tag = 'scoped memory for smtp_forward.2']
    #allocation5 [shape = 's32[2]{0}', space=sflag, size = 0x8, scoped, tag = 'scoped memory for smtp_forward.2']
    #allocation6 [shape = 'u8[512]{0}', space=vmem, size = 0x400, scoped, tag = 'input window, operand 3, single buffered']
    #allocation7 [shape = 's32[1]{0}', space=sflag, size = 0x4, scoped, tag = 'scoped memory for smtp_forward.2']
    #allocation8 [shape = 'u8[1024]{0}', space=vmem, size = 0x400, scoped, tag = 'input window, operand 5']
    #allocation9 [shape = 'u8[1024]{0}', space=vmem, size = 0x400, scoped, tag = 'input window, operand 7']
    #allocation10 [shape = 'u8[1024]{0}', space=vmem, size = 0x400, scoped, tag = 'input window, operand 8']
    #allocation11 [shape = 'u8[1024]{0}', space=vmem, size = 0x400, scoped, tag = 'input window, operand 9']
    #allocation12 [shape = 'u8[1024]{0}', space=vmem, size = 0x400, scoped, tag = 'input window, operand 11']
    #allocation13 [shape = 'u8[1024]{0}', space=vmem, size = 0x400, scoped, tag = 'input window, operand 13']
    #allocation14 [shape = 'u8[1024]{0}', space=vmem, size = 0x400, scoped, tag = 'input window, operand 14']
    #allocation15 [shape = 'u8[1024]{0}', space=vmem, size = 0x400, scoped, tag = 'input window, operand 15']
    #allocation16 [shape = 'u8[512]{0}', space=vmem, size = 0x400, scoped, tag = 'input window, operand 17, single buffered']
    #allocation17 [shape = 'u8[512]{0}', space=vmem, size = 0x400, scoped, tag = 'input window, operand 19, single buffered']
    #allocation18 [shape = 's32[1]{0}', space=sflag, size = 0x4, scoped, tag = 'scoped memory for smtp_forward.2']
    #allocation19 [shape = 'u8[1024]{0}', space=vmem, size = 0x400, scoped, tag = 'output window, operand 1, single buffered']
    %27 = vsyncpa [#allocation4], 0
    %28 = vsyncpa [#allocation7], 0
    %29 = vsyncpa [#allocation18], 0
    %30 = vsyncpa [#allocation5], 0
    loop: start=0, step=1, limit=4
    $region2: #{smtp_forward.2} parent=1 // loop_pre_header
      _
    $region3: #{smtp_forward.2} parent=1 // loop_header
      %s32 = sphi 0, %s36
      %p33 = scmp.ge.s32.totalorder %s32, 4
      %s40 = sphi 0, %s40
      %s42 = sphi 0, %s40
      %s43 = sphi 0, %s42
      %s57 = sphi 0, %s43
      %s61 = sphi 0, %s61
      %s63 = sphi 0, %s61
      %s64 = sphi 0, %s63
      %s78 = sphi 0, %s64
      %s82 = sphi 0, %s82
      %s84 = sphi 0, %s82
      %s85 = sphi 0, %s84
      %s99 = sphi 0, %s85
      %s103 = sphi 0, %s103
      %s105 = sphi 0, %s103
      %s106 = sphi 0, %s105
      %s120 = sphi 0, %s106
      %s126 = sphi 0, %s128
      %s129 = sphi 0, %s126
      %s130 = sphi 0, %s129
      %s146 = sphi 0, %s130
      %s152 = sphi 0, %s154
      %s155 = sphi 0, %s152
      %s156 = sphi 0, %s155
      %s172 = sphi 0, %s156
      %s178 = sphi 0, %s180
      %s181 = sphi 0, %s178
      %s182 = sphi 0, %s181
      %s198 = sphi 0, %s182
      %s204 = sphi 0, %s206
      %s207 = sphi 0, %s204
      %s208 = sphi 0, %s207
      %s224 = sphi 0, %s208
      %s230 = sphi 0, %s232
      %s233 = sphi 0, %s230
      %s234 = sphi 0, %s233
      %s250 = sphi 0, %s234
      %s256 = sphi 0, %s258
      %s259 = sphi 0, %s256
      %s260 = sphi 0, %s259
      %s276 = sphi 0, %s260
      %s282 = sphi 0, %s284
      %s285 = sphi 0, %s282
      %s286 = sphi 0, %s285
      %s302 = sphi 0, %s286
      %s308 = sphi 0, %s310
      %s311 = sphi 0, %s308
      %s312 = sphi 0, %s311
      %s328 = sphi 0, %s312
      %s334 = sphi 0, %s336
      %s337 = sphi 0, %s334
      %s338 = sphi 0, %s337
      %s354 = sphi 0, %s338
      %s360 = sphi 0, %s362
      %s363 = sphi 0, %s360
      %s364 = sphi 0, %s363
      %s380 = sphi 0, %s364
      %s386 = sphi 0, %s388
      %s389 = sphi 0, %s386
      %s390 = sphi 0, %s389
      %s406 = sphi 0, %s390
      %s412 = sphi 0, %s414
      %s415 = sphi 0, %s412
      %s416 = sphi 0, %s415
      %s432 = sphi 0, %s416
      %s436 = sphi 0, %s436
      %s438 = sphi 0, %s436
      %s439 = sphi 0, %s438
      %s453 = sphi 0, %s439
      %s457 = sphi 0, %s457
      %s459 = sphi 0, %s457
      %s460 = sphi 0, %s459
      %s474 = sphi 0, %s460
      %s478 = sphi 0, %s478
      %s480 = sphi 0, %s478
      %s481 = sphi 0, %s480
      %s495 = sphi 0, %s481
      %s499 = sphi 0, %s499
      %s501 = sphi 0, %s499
      %s502 = sphi 0, %s501
      %s516 = sphi 0, %s502
      %s520 = sphi 0, %s520
      %s522 = sphi 0, %s520
      %s523 = sphi 0, %s522
      %s537 = sphi 0, %s523
      %s541 = sphi 0, %s541
      %s543 = sphi 0, %s541
      %s544 = sphi 0, %s543
      %s558 = sphi 0, %s544
    $region4: #{smtp_forward.2} parent=1 // loop_header_branch
      %35 = sbr.rel (%p33) target = $region8
    $region5: #{smtp_forward.2} parent=1 // loop_body
      %s37 = ssub.s32 %s32, 1
      %s38 = ssub.s32 %s32, 2
      %s39 = sadd.s32 %s32, 1
      %s41 = sadd.s32 %s40, 1
      %p44 = scmp.eq.s32.totalorder %s32, 1
      %p45 = scmp.ne.s32.totalorder %s40, %s42
      %p46 = scmp.eq.s32.totalorder %s32, 0
      %p47 = por %p45, %p46
      %p48 = scmp.ne.s32.totalorder %s40, %s42
      %p49 = scmp.eq.s32.totalorder %s37, 1
      %p50 = por %p48, %p49
      %p51 = scmp.ne.s32.totalorder %s42, %s43
      %p52 = scmp.eq.s32.totalorder %s37, 0
      %p53 = por %p51, %p52
      %p54 = scmp.ne.s32.totalorder %s42, %s43
      %p55 = scmp.eq.s32.totalorder %s38, 1
      %p56 = por %p54, %p55
      %p58 = scmp.ne.s32.totalorder %s43, %s57
      %p59 = scmp.eq.s32.totalorder %s38, 0
      %p60 = por %p58, %p59
      %s62 = sadd.s32 %s61, 1
      %p65 = scmp.eq.s32.totalorder %s32, 1
      %p66 = scmp.ne.s32.totalorder %s61, %s63
      %p67 = scmp.eq.s32.totalorder %s32, 0
      %p68 = por %p66, %p67
      %p69 = scmp.ne.s32.totalorder %s61, %s63
      %p70 = scmp.eq.s32.totalorder %s37, 1
      %p71 = por %p69, %p70
      %p72 = scmp.ne.s32.totalorder %s63, %s64
      %p73 = scmp.eq.s32.totalorder %s37, 0
      %p74 = por %p72, %p73
      %p75 = scmp.ne.s32.totalorder %s63, %s64
      %p76 = scmp.eq.s32.totalorder %s38, 1
      %p77 = por %p75, %p76
      %p79 = scmp.ne.s32.totalorder %s64, %s78
      %p80 = scmp.eq.s32.totalorder %s38, 0
      %p81 = por %p79, %p80
      %s83 = sadd.s32 %s82, 1
      %p86 = scmp.eq.s32.totalorder %s32, 1
      %p87 = scmp.ne.s32.totalorder %s82, %s84
      %p88 = scmp.eq.s32.totalorder %s32, 0
      %p89 = por %p87, %p88
      %p90 = scmp.ne.s32.totalorder %s82, %s84
      %p91 = scmp.eq.s32.totalorder %s37, 1
      %p92 = por %p90, %p91
      %p93 = scmp.ne.s32.totalorder %s84, %s85
      %p94 = scmp.eq.s32.totalorder %s37, 0
      %p95 = por %p93, %p94
      %p96 = scmp.ne.s32.totalorder %s84, %s85
      %p97 = scmp.eq.s32.totalorder %s38, 1
      %p98 = por %p96, %p97
      %p100 = scmp.ne.s32.totalorder %s85, %s99
      %p101 = scmp.eq.s32.totalorder %s38, 0
      %p102 = por %p100, %p101
      %s104 = sadd.s32 %s103, 1
      %p107 = scmp.eq.s32.totalorder %s32, 1
      %p108 = scmp.ne.s32.totalorder %s103, %s105
      %p109 = scmp.eq.s32.totalorder %s32, 0
      %p110 = por %p108, %p109
      %p111 = scmp.ne.s32.totalorder %s103, %s105
      %p112 = scmp.eq.s32.totalorder %s37, 1
      %p113 = por %p111, %p112
      %p114 = scmp.ne.s32.totalorder %s105, %s106
      %p115 = scmp.eq.s32.totalorder %s37, 0
      %p116 = por %p114, %p115
      %p117 = scmp.ne.s32.totalorder %s105, %s106
      %p118 = scmp.eq.s32.totalorder %s38, 1
      %p119 = por %p117, %p118
      %p121 = scmp.ne.s32.totalorder %s106, %s120
      %p122 = scmp.eq.s32.totalorder %s38, 0
      %p123 = por %p121, %p122
      %s124 = ssub.s32 %s32, %s39
      %p125 = scmp.eq.s32.totalorder %s124, 0
      %s127 = sadd.s32 %s126, 1
      %s128 = scalar_select %p125, %s126, %s127
      %p131 = pneg %p125
      %p132 = scmp.eq.s32.totalorder %s32, 1
      %p133 = por %p131, %p132
      %p134 = scmp.ne.s32.totalorder %s126, %s129
      %p135 = scmp.eq.s32.totalorder %s32, 0
      %p136 = por %p134, %p135
      %p137 = scmp.ne.s32.totalorder %s126, %s129
      %p138 = scmp.eq.s32.totalorder %s37, 1
      %p139 = por %p137, %p138
      %p140 = scmp.ne.s32.totalorder %s129, %s130
      %p141 = scmp.eq.s32.totalorder %s37, 0
      %p142 = por %p140, %p141
      %p143 = scmp.ne.s32.totalorder %s129, %s130
      %p144 = scmp.eq.s32.totalorder %s38, 1
      %p145 = por %p143, %p144
      %p147 = scmp.ne.s32.totalorder %s130, %s146
      %p148 = scmp.eq.s32.totalorder %s38, 0
      %p149 = por %p147, %p148
      %s150 = ssub.s32 %s32, %s39
      %p151 = scmp.eq.s32.totalorder %s150, 0
      %s153 = sadd.s32 %s152, 1
      %s154 = scalar_select %p151, %s152, %s153
      %p157 = pneg %p151
      %p158 = scmp.eq.s32.totalorder %s32, 1
      %p159 = por %p157, %p158
      %p160 = scmp.ne.s32.totalorder %s152, %s155
      %p161 = scmp.eq.s32.totalorder %s32, 0
      %p162 = por %p160, %p161
      %p163 = scmp.ne.s32.totalorder %s152, %s155
      %p164 = scmp.eq.s32.totalorder %s37, 1
      %p165 = por %p163, %p164
      %p166 = scmp.ne.s32.totalorder %s155, %s156
      %p167 = scmp.eq.s32.totalorder %s37, 0
      %p168 = por %p166, %p167
      %p169 = scmp.ne.s32.totalorder %s155, %s156
      %p170 = scmp.eq.s32.totalorder %s38, 1
      %p171 = por %p169, %p170
      %p173 = scmp.ne.s32.totalorder %s156, %s172
      %p174 = scmp.eq.s32.totalorder %s38, 0
      %p175 = por %p173, %p174
      %s176 = ssub.s32 %s32, %s39
      %p177 = scmp.eq.s32.totalorder %s176, 0
      %s179 = sadd.s32 %s178, 1
      %s180 = scalar_select %p177, %s178, %s179
      %p183 = pneg %p177
      %p184 = scmp.eq.s32.totalorder %s32, 1
      %p185 = por %p183, %p184
      %p186 = scmp.ne.s32.totalorder %s178, %s181
      %p187 = scmp.eq.s32.totalorder %s32, 0
      %p188 = por %p186, %p187
      %p189 = scmp.ne.s32.totalorder %s178, %s181
      %p190 = scmp.eq.s32.totalorder %s37, 1
      %p191 = por %p189, %p190
      %p192 = scmp.ne.s32.totalorder %s181, %s182
      %p193 = scmp.eq.s32.totalorder %s37, 0
      %p194 = por %p192, %p193
      %p195 = scmp.ne.s32.totalorder %s181, %s182
      %p196 = scmp.eq.s32.totalorder %s38, 1
      %p197 = por %p195, %p196
      %p199 = scmp.ne.s32.totalorder %s182, %s198
      %p200 = scmp.eq.s32.totalorder %s38, 0
      %p201 = por %p199, %p200
      %s202 = ssub.s32 %s32, %s39
      %p203 = scmp.eq.s32.totalorder %s202, 0
      %s205 = sadd.s32 %s204, 1
      %s206 = scalar_select %p203, %s204, %s205
      %p209 = pneg %p203
      %p210 = scmp.eq.s32.totalorder %s32, 1
      %p211 = por %p209, %p210
      %p212 = scmp.ne.s32.totalorder %s204, %s207
      %p213 = scmp.eq.s32.totalorder %s32, 0
      %p214 = por %p212, %p213
      %p215 = scmp.ne.s32.totalorder %s204, %s207
      %p216 = scmp.eq.s32.totalorder %s37, 1
      %p217 = por %p215, %p216
      %p218 = scmp.ne.s32.totalorder %s207, %s208
      %p219 = scmp.eq.s32.totalorder %s37, 0
      %p220 = por %p218, %p219
      %p221 = scmp.ne.s32.totalorder %s207, %s208
      %p222 = scmp.eq.s32.totalorder %s38, 1
      %p223 = por %p221, %p222
      %p225 = scmp.ne.s32.totalorder %s208, %s224
      %p226 = scmp.eq.s32.totalorder %s38, 0
      %p227 = por %p225, %p226
      %s228 = ssub.s32 %s32, %s39
      %p229 = scmp.eq.s32.totalorder %s228, 0
      %s231 = sadd.s32 %s230, 1
      %s232 = scalar_select %p229, %s230, %s231
      %p235 = pneg %p229
      %p236 = scmp.eq.s32.totalorder %s32, 1
      %p237 = por %p235, %p236
      %p238 = scmp.ne.s32.totalorder %s230, %s233
      %p239 = scmp.eq.s32.totalorder %s32, 0
      %p240 = por %p238, %p239
      %p241 = scmp.ne.s32.totalorder %s230, %s233
      %p242 = scmp.eq.s32.totalorder %s37, 1
      %p243 = por %p241, %p242
      %p244 = scmp.ne.s32.totalorder %s233, %s234
      %p245 = scmp.eq.s32.totalorder %s37, 0
      %p246 = por %p244, %p245
      %p247 = scmp.ne.s32.totalorder %s233, %s234
      %p248 = scmp.eq.s32.totalorder %s38, 1
      %p249 = por %p247, %p248
      %p251 = scmp.ne.s32.totalorder %s234, %s250
      %p252 = scmp.eq.s32.totalorder %s38, 0
      %p253 = por %p251, %p252
      %s254 = ssub.s32 %s32, %s39
      %p255 = scmp.eq.s32.totalorder %s254, 0
      %s257 = sadd.s32 %s256, 1
      %s258 = scalar_select %p255, %s256, %s257
      %p261 = pneg %p255
      %p262 = scmp.eq.s32.totalorder %s32, 1
      %p263 = por %p261, %p262
      %p264 = scmp.ne.s32.totalorder %s256, %s259
      %p265 = scmp.eq.s32.totalorder %s32, 0
      %p266 = por %p264, %p265
      %p267 = scmp.ne.s32.totalorder %s256, %s259
      %p268 = scmp.eq.s32.totalorder %s37, 1
      %p269 = por %p267, %p268
      %p270 = scmp.ne.s32.totalorder %s259, %s260
      %p271 = scmp.eq.s32.totalorder %s37, 0
      %p272 = por %p270, %p271
      %p273 = scmp.ne.s32.totalorder %s259, %s260
      %p274 = scmp.eq.s32.totalorder %s38, 1
      %p275 = por %p273, %p274
      %p277 = scmp.ne.s32.totalorder %s260, %s276
      %p278 = scmp.eq.s32.totalorder %s38, 0
      %p279 = por %p277, %p278
      %s280 = ssub.s32 %s32, %s39
      %p281 = scmp.eq.s32.totalorder %s280, 0
      %s283 = sadd.s32 %s282, 1
      %s284 = scalar_select %p281, %s282, %s283
      %p287 = pneg %p281
      %p288 = scmp.eq.s32.totalorder %s32, 1
      %p289 = por %p287, %p288
      %p290 = scmp.ne.s32.totalorder %s282, %s285
      %p291 = scmp.eq.s32.totalorder %s32, 0
      %p292 = por %p290, %p291
      %p293 = scmp.ne.s32.totalorder %s282, %s285
      %p294 = scmp.eq.s32.totalorder %s37, 1
      %p295 = por %p293, %p294
      %p296 = scmp.ne.s32.totalorder %s285, %s286
      %p297 = scmp.eq.s32.totalorder %s37, 0
      %p298 = por %p296, %p297
      %p299 = scmp.ne.s32.totalorder %s285, %s286
      %p300 = scmp.eq.s32.totalorder %s38, 1
      %p301 = por %p299, %p300
      %p303 = scmp.ne.s32.totalorder %s286, %s302
      %p304 = scmp.eq.s32.totalorder %s38, 0
      %p305 = por %p303, %p304
      %s306 = ssub.s32 %s32, %s39
      %p307 = scmp.eq.s32.totalorder %s306, 0
      %s309 = sadd.s32 %s308, 1
      %s310 = scalar_select %p307, %s308, %s309
      %p313 = pneg %p307
      %p314 = scmp.eq.s32.totalorder %s32, 1
      %p315 = por %p313, %p314
      %p316 = scmp.ne.s32.totalorder %s308, %s311
      %p317 = scmp.eq.s32.totalorder %s32, 0
      %p318 = por %p316, %p317
      %p319 = scmp.ne.s32.totalorder %s308, %s311
      %p320 = scmp.eq.s32.totalorder %s37, 1
      %p321 = por %p319, %p320
      %p322 = scmp.ne.s32.totalorder %s311, %s312
      %p323 = scmp.eq.s32.totalorder %s37, 0
      %p324 = por %p322, %p323
      %p325 = scmp.ne.s32.totalorder %s311, %s312
      %p326 = scmp.eq.s32.totalorder %s38, 1
      %p327 = por %p325, %p326
      %p329 = scmp.ne.s32.totalorder %s312, %s328
      %p330 = scmp.eq.s32.totalorder %s38, 0
      %p331 = por %p329, %p330
      %s332 = ssub.s32 %s32, %s39
      %p333 = scmp.eq.s32.totalorder %s332, 0
      %s335 = sadd.s32 %s334, 1
      %s336 = scalar_select %p333, %s334, %s335
      %p339 = pneg %p333
      %p340 = scmp.eq.s32.totalorder %s32, 1
      %p341 = por %p339, %p340
      %p342 = scmp.ne.s32.totalorder %s334, %s337
      %p343 = scmp.eq.s32.totalorder %s32, 0
      %p344 = por %p342, %p343
      %p345 = scmp.ne.s32.totalorder %s334, %s337
      %p346 = scmp.eq.s32.totalorder %s37, 1
      %p347 = por %p345, %p346
      %p348 = scmp.ne.s32.totalorder %s337, %s338
      %p349 = scmp.eq.s32.totalorder %s37, 0
      %p350 = por %p348, %p349
      %p351 = scmp.ne.s32.totalorder %s337, %s338
      %p352 = scmp.eq.s32.totalorder %s38, 1
      %p353 = por %p351, %p352
      %p355 = scmp.ne.s32.totalorder %s338, %s354
      %p356 = scmp.eq.s32.totalorder %s38, 0
      %p357 = por %p355, %p356
      %s358 = ssub.s32 %s32, %s39
      %p359 = scmp.eq.s32.totalorder %s358, 0
      %s361 = sadd.s32 %s360, 1
      %s362 = scalar_select %p359, %s360, %s361
      %p365 = pneg %p359
      %p366 = scmp.eq.s32.totalorder %s32, 1
      %p367 = por %p365, %p366
      %p368 = scmp.ne.s32.totalorder %s360, %s363
      %p369 = scmp.eq.s32.totalorder %s32, 0
      %p370 = por %p368, %p369
      %p371 = scmp.ne.s32.totalorder %s360, %s363
      %p372 = scmp.eq.s32.totalorder %s37, 1
      %p373 = por %p371, %p372
      %p374 = scmp.ne.s32.totalorder %s363, %s364
      %p375 = scmp.eq.s32.totalorder %s37, 0
      %p376 = por %p374, %p375
      %p377 = scmp.ne.s32.totalorder %s363, %s364
      %p378 = scmp.eq.s32.totalorder %s38, 1
      %p379 = por %p377, %p378
      %p381 = scmp.ne.s32.totalorder %s364, %s380
      %p382 = scmp.eq.s32.totalorder %s38, 0
      %p383 = por %p381, %p382
      %s384 = ssub.s32 %s32, %s39
      %p385 = scmp.eq.s32.totalorder %s384, 0
      %s387 = sadd.s32 %s386, 1
      %s388 = scalar_select %p385, %s386, %s387
      %p391 = pneg %p385
      %p392 = scmp.eq.s32.totalorder %s32, 1
      %p393 = por %p391, %p392
      %p394 = scmp.ne.s32.totalorder %s386, %s389
      %p395 = scmp.eq.s32.totalorder %s32, 0
      %p396 = por %p394, %p395
      %p397 = scmp.ne.s32.totalorder %s386, %s389
      %p398 = scmp.eq.s32.totalorder %s37, 1
      %p399 = por %p397, %p398
      %p400 = scmp.ne.s32.totalorder %s389, %s390
      %p401 = scmp.eq.s32.totalorder %s37, 0
      %p402 = por %p400, %p401
      %p403 = scmp.ne.s32.totalorder %s389, %s390
      %p404 = scmp.eq.s32.totalorder %s38, 1
      %p405 = por %p403, %p404
      %p407 = scmp.ne.s32.totalorder %s390, %s406
      %p408 = scmp.eq.s32.totalorder %s38, 0
      %p409 = por %p407, %p408
      %s410 = ssub.s32 %s32, %s39
      %p411 = scmp.eq.s32.totalorder %s410, 0
      %s413 = sadd.s32 %s412, 1
      %s414 = scalar_select %p411, %s412, %s413
      %p417 = pneg %p411
      %p418 = scmp.eq.s32.totalorder %s32, 1
      %p419 = por %p417, %p418
      %p420 = scmp.ne.s32.totalorder %s412, %s415
      %p421 = scmp.eq.s32.totalorder %s32, 0
      %p422 = por %p420, %p421
      %p423 = scmp.ne.s32.totalorder %s412, %s415
      %p424 = scmp.eq.s32.totalorder %s37, 1
      %p425 = por %p423, %p424
      %p426 = scmp.ne.s32.totalorder %s415, %s416
      %p427 = scmp.eq.s32.totalorder %s37, 0
      %p428 = por %p426, %p427
      %p429 = scmp.ne.s32.totalorder %s415, %s416
      %p430 = scmp.eq.s32.totalorder %s38, 1
      %p431 = por %p429, %p430
      %p433 = scmp.ne.s32.totalorder %s416, %s432
      %p434 = scmp.eq.s32.totalorder %s38, 0
      %p435 = por %p433, %p434
      %s437 = sadd.s32 %s436, 1
      %p440 = scmp.eq.s32.totalorder %s32, 1
      %p441 = scmp.ne.s32.totalorder %s436, %s438
      %p442 = scmp.eq.s32.totalorder %s32, 0
      %p443 = por %p441, %p442
      %p444 = scmp.ne.s32.totalorder %s436, %s438
      %p445 = scmp.eq.s32.totalorder %s37, 1
      %p446 = por %p444, %p445
      %p447 = scmp.ne.s32.totalorder %s438, %s439
      %p448 = scmp.eq.s32.totalorder %s37, 0
      %p449 = por %p447, %p448
      %p450 = scmp.ne.s32.totalorder %s438, %s439
      %p451 = scmp.eq.s32.totalorder %s38, 1
      %p452 = por %p450, %p451
      %p454 = scmp.ne.s32.totalorder %s439, %s453
      %p455 = scmp.eq.s32.totalorder %s38, 0
      %p456 = por %p454, %p455
      %s458 = sadd.s32 %s457, 1
      %p461 = scmp.eq.s32.totalorder %s32, 1
      %p462 = scmp.ne.s32.totalorder %s457, %s459
      %p463 = scmp.eq.s32.totalorder %s32, 0
      %p464 = por %p462, %p463
      %p465 = scmp.ne.s32.totalorder %s457, %s459
      %p466 = scmp.eq.s32.totalorder %s37, 1
      %p467 = por %p465, %p466
      %p468 = scmp.ne.s32.totalorder %s459, %s460
      %p469 = scmp.eq.s32.totalorder %s37, 0
      %p470 = por %p468, %p469
      %p471 = scmp.ne.s32.totalorder %s459, %s460
      %p472 = scmp.eq.s32.totalorder %s38, 1
      %p473 = por %p471, %p472
      %p475 = scmp.ne.s32.totalorder %s460, %s474
      %p476 = scmp.eq.s32.totalorder %s38, 0
      %p477 = por %p475, %p476
      %s479 = sadd.s32 %s478, 1
      %p482 = scmp.eq.s32.totalorder %s32, 1
      %p483 = scmp.ne.s32.totalorder %s478, %s480
      %p484 = scmp.eq.s32.totalorder %s32, 0
      %p485 = por %p483, %p484
      %p486 = scmp.ne.s32.totalorder %s478, %s480
      %p487 = scmp.eq.s32.totalorder %s37, 1
      %p488 = por %p486, %p487
      %p489 = scmp.ne.s32.totalorder %s480, %s481
      %p490 = scmp.eq.s32.totalorder %s37, 0
      %p491 = por %p489, %p490
      %p492 = scmp.ne.s32.totalorder %s480, %s481
      %p493 = scmp.eq.s32.totalorder %s38, 1
      %p494 = por %p492, %p493
      %p496 = scmp.ne.s32.totalorder %s481, %s495
      %p497 = scmp.eq.s32.totalorder %s38, 0
      %p498 = por %p496, %p497
      %s500 = sadd.s32 %s499, 1
      %p503 = scmp.eq.s32.totalorder %s32, 1
      %p504 = scmp.ne.s32.totalorder %s499, %s501
      %p505 = scmp.eq.s32.totalorder %s32, 0
      %p506 = por %p504, %p505
      %p507 = scmp.ne.s32.totalorder %s499, %s501
      %p508 = scmp.eq.s32.totalorder %s37, 1
      %p509 = por %p507, %p508
      %p510 = scmp.ne.s32.totalorder %s501, %s502
      %p511 = scmp.eq.s32.totalorder %s37, 0
      %p512 = por %p510, %p511
      %p513 = scmp.ne.s32.totalorder %s501, %s502
      %p514 = scmp.eq.s32.totalorder %s38, 1
      %p515 = por %p513, %p514
      %p517 = scmp.ne.s32.totalorder %s502, %s516
      %p518 = scmp.eq.s32.totalorder %s38, 0
      %p519 = por %p517, %p518
      %s521 = sadd.s32 %s520, 1
      %p524 = scmp.eq.s32.totalorder %s32, 1
      %p525 = scmp.ne.s32.totalorder %s520, %s522
      %p526 = scmp.eq.s32.totalorder %s32, 0
      %p527 = por %p525, %p526
      %p528 = scmp.ne.s32.totalorder %s520, %s522
      %p529 = scmp.eq.s32.totalorder %s37, 1
      %p530 = por %p528, %p529
      %p531 = scmp.ne.s32.totalorder %s522, %s523
      %p532 = scmp.eq.s32.totalorder %s37, 0
      %p533 = por %p531, %p532
      %p534 = scmp.ne.s32.totalorder %s522, %s523
      %p535 = scmp.eq.s32.totalorder %s38, 1
      %p536 = por %p534, %p535
      %p538 = scmp.ne.s32.totalorder %s523, %s537
      %p539 = scmp.eq.s32.totalorder %s38, 0
      %p540 = por %p538, %p539
      %s542 = sadd.s32 %s541, 1
      %p545 = scmp.eq.s32.totalorder %s32, 1
      %p546 = scmp.ne.s32.totalorder %s541, %s543
      %p547 = scmp.eq.s32.totalorder %s32, 0
      %p548 = por %p546, %p547
      %p549 = scmp.ne.s32.totalorder %s541, %s543
      %p550 = scmp.eq.s32.totalorder %s37, 1
      %p551 = por %p549, %p550
      %p552 = scmp.ne.s32.totalorder %s543, %s544
      %p553 = scmp.eq.s32.totalorder %s37, 0
      %p554 = por %p552, %p553
      %p555 = scmp.ne.s32.totalorder %s543, %s544
      %p556 = scmp.eq.s32.totalorder %s38, 1
      %p557 = por %p555, %p556
      %p559 = scmp.ne.s32.totalorder %s544, %s558
      %p560 = scmp.eq.s32.totalorder %s38, 0
      %p561 = por %p559, %p560
      %p562 = scmp.le.s32.totalorder 1, %s32
      %p563 = scmp.lt.s32.totalorder %s32, 3
      %p564 = pnand %p562, %p563
      %p565 = pneg %p564
      // Predicated region
      $region9: #{smtp_forward.2} parent=5 // pred_check
        _
      $region10: #{smtp_forward.2} parent=5 // pred_check_branch
        %567 = sbr.rel (%p564) target = $region12
      $region11: #{smtp_forward.2} parent=5 // pred_region
        %s568 = ssub.s32 %s32, 1
        // Predicated region
        $region13: #{smtp_forward.2} parent=11 // pred_check
          %p569 = pneg %p53
        $region14: #{smtp_forward.2} parent=11 // pred_check_branch
          %571 = sbr.rel (%p569) target = $region16
        $region15: #{smtp_forward.2} parent=11 // pred_region
          _
        $region16: #{smtp_forward.2} parent=11 // pred_fallthru
          _
        // Predicated region
        $region17: #{smtp_forward.2} parent=11 // pred_check
          %p572 = pneg %p74
        $region18: #{smtp_forward.2} parent=11 // pred_check_branch
          %574 = sbr.rel (%p572) target = $region20
        $region19: #{smtp_forward.2} parent=11 // pred_region
          _
        $region20: #{smtp_forward.2} parent=11 // pred_fallthru
          _
        // Predicated region
        $region21: #{smtp_forward.2} parent=11 // pred_check
          %p575 = pneg %p95
        $region22: #{smtp_forward.2} parent=11 // pred_check_branch
          %577 = sbr.rel (%p575) target = $region24
        $region23: #{smtp_forward.2} parent=11 // pred_region
          %s579 = ssub.s32 64, 64
          %580 = vsyncadd [#allocation4], %s579
          %s582 = sshll.u32 [#allocation3], 4
          %s583 = int_to_ptr.vmem [resolvable:$true] %s582
          %585 = dma.hbm_to_vmem [thread:$0]  %s2, 64, %s583, [#allocation4]
        $region24: #{smtp_forward.2} parent=11 // pred_fallthru
          _
        // Predicated region
        $region25: #{smtp_forward.2} parent=11 // pred_check
          %p586 = pneg %p116
        $region26: #{smtp_forward.2} parent=11 // pred_check_branch
          %588 = sbr.rel (%p586) target = $region28
        $region27: #{smtp_forward.2} parent=11 // pred_region
          %s590 = ssub.s32 16, 16
          %591 = vsyncadd [#allocation7], %s590
          %s593 = sshll.u32 [#allocation6], 4
          %s594 = int_to_ptr.vmem [resolvable:$true] %s593
          %596 = dma.hbm_to_vmem [thread:$0]  %s3, 16, %s594, [#allocation7]
        $region28: #{smtp_forward.2} parent=11 // pred_fallthru
          _
        // Predicated region
        $region29: #{smtp_forward.2} parent=11 // pred_check
          %p597 = pneg %p449
        $region30: #{smtp_forward.2} parent=11 // pred_check_branch
          %599 = sbr.rel (%p597) target = $region32
        $region31: #{smtp_forward.2} parent=11 // pred_region
          _
        $region32: #{smtp_forward.2} parent=11 // pred_fallthru
          _
        // Predicated region
        $region33: #{smtp_forward.2} parent=11 // pred_check
          %p600 = pneg %p470
        $region34: #{smtp_forward.2} parent=11 // pred_check_branch
          %602 = sbr.rel (%p600) target = $region36
        $region35: #{smtp_forward.2} parent=11 // pred_region
          %s604 = ssub.s32 16, 16
          %605 = vsyncadd [#allocation7], %s604
          %s607 = sshll.u32 [#allocation16], 4
          %s608 = int_to_ptr.vmem [resolvable:$true] %s607
          %610 = dma.hbm_to_vmem [thread:$0]  %s17, 16, %s608, [#allocation7]
        $region36: #{smtp_forward.2} parent=11 // pred_fallthru
          _
        // Predicated region
        $region37: #{smtp_forward.2} parent=11 // pred_check
          %p611 = pneg %p491
        $region38: #{smtp_forward.2} parent=11 // pred_check_branch
          %613 = sbr.rel (%p611) target = $region40
        $region39: #{smtp_forward.2} parent=11 // pred_region
          _
        $region40: #{smtp_forward.2} parent=11 // pred_fallthru
          _
        // Predicated region
        $region41: #{smtp_forward.2} parent=11 // pred_check
          %p614 = pneg %p512
        $region42: #{smtp_forward.2} parent=11 // pred_check_branch
          %616 = sbr.rel (%p614) target = $region44
        $region43: #{smtp_forward.2} parent=11 // pred_region
          %s618 = ssub.s32 16, 16
          %619 = vsyncadd [#allocation18], %s618
          %s621 = sshll.u32 [#allocation17], 4
          %s622 = int_to_ptr.vmem [resolvable:$true] %s621
          %624 = dma.hbm_to_vmem [thread:$0]  %s19, 16, %s622, [#allocation18]
        $region44: #{smtp_forward.2} parent=11 // pred_fallthru
          _
      $region12: #{smtp_forward.2} parent=5 // pred_fallthru
        _
      %p625 = scmp.lt.s32.totalorder %s32, 2
      // Predicated region
      $region45: #{smtp_forward.2} parent=5 // pred_check
        %p626 = pneg %p625
      $region46: #{smtp_forward.2} parent=5 // pred_check_branch
        %628 = sbr.rel (%p626) target = $region48
      $region47: #{smtp_forward.2} parent=5 // pred_region
        // Predicated region
        $region49: #{smtp_forward.2} parent=47 // pred_check
          %p629 = pneg %p136
        $region50: #{smtp_forward.2} parent=47 // pred_check_branch
          %631 = sbr.rel (%p629) target = $region52
        $region51: #{smtp_forward.2} parent=47 // pred_region
          %p632 = scmp.lt.s32.totalorder %s32, 1
          %s633 = scalar_select %p632, %s32, 1
          %s634 = smul.addr %s633, 4
          %s635 = smul.addr %s634, 8
          %s636 = scalar_lea.vmem %s4, %s635
        $region52: #{smtp_forward.2} parent=47 // pred_fallthru
          _
        // Predicated region
        $region53: #{smtp_forward.2} parent=47 // pred_check
          %p637 = pneg %p162
        $region54: #{smtp_forward.2} parent=47 // pred_check_branch
          %639 = sbr.rel (%p637) target = $region56
        $region55: #{smtp_forward.2} parent=47 // pred_region
          %s640 = sand.u32 %s32, 1
          %s641 = scalar_lea.sflag [#allocation4], %s640
          %s642 = sand.u32 %s152, 1
          %s643 = scalar_lea.vmem [#allocation8], %s642
          %s645 = ssub.s32 16, 16
          %646 = vsyncadd %s641, %s645
          %s647 = smul.addr %s32, 16
          %s648 = scalar_lea.hbm %s5, %s647
          %s650 = sshll.u32 %s643, 4
          %s651 = int_to_ptr.vmem [resolvable:$true] %s650
          %653 = dma.hbm_to_vmem [thread:$0]  %s648, 16, %s651, %s641
        $region56: #{smtp_forward.2} parent=47 // pred_fallthru
          _
        // Predicated region
        $region57: #{smtp_forward.2} parent=47 // pred_check
          %p654 = pneg %p188
        $region58: #{smtp_forward.2} parent=47 // pred_check_branch
          %656 = sbr.rel (%p654) target = $region60
        $region59: #{smtp_forward.2} parent=47 // pred_region
          %p657 = scmp.lt.s32.totalorder %s32, 1
          %s658 = scalar_select %p657, %s32, 1
          %s659 = smul.addr %s658, 4
          %s660 = smul.addr %s659, 8
          %s661 = scalar_lea.vmem %s6, %s660
        $region60: #{smtp_forward.2} parent=47 // pred_fallthru
          _
        // Predicated region
        $region61: #{smtp_forward.2} parent=47 // pred_check
          %p662 = pneg %p214
        $region62: #{smtp_forward.2} parent=47 // pred_check_branch
          %664 = sbr.rel (%p662) target = $region64
        $region63: #{smtp_forward.2} parent=47 // pred_region
          %s665 = sand.u32 %s32, 1
          %s666 = scalar_lea.sflag [#allocation4], %s665
          %s667 = sand.u32 %s204, 1
          %s668 = scalar_lea.vmem [#allocation9], %s667
          %s670 = ssub.s32 16, 16
          %671 = vsyncadd %s666, %s670
          %s672 = smul.addr %s32, 16
          %s673 = scalar_lea.hbm %s7, %s672
          %s675 = sshll.u32 %s668, 4
          %s676 = int_to_ptr.vmem [resolvable:$true] %s675
          %678 = dma.hbm_to_vmem [thread:$0]  %s673, 16, %s676, %s666
        $region64: #{smtp_forward.2} parent=47 // pred_fallthru
          _
        // Predicated region
        $region65: #{smtp_forward.2} parent=47 // pred_check
          %p679 = pneg %p240
        $region66: #{smtp_forward.2} parent=47 // pred_check_branch
          %681 = sbr.rel (%p679) target = $region68
        $region67: #{smtp_forward.2} parent=47 // pred_region
          %s682 = sand.u32 %s32, 1
          %s683 = scalar_lea.sflag [#allocation4], %s682
          %s684 = sand.u32 %s230, 1
          %s685 = scalar_lea.vmem [#allocation10], %s684
          %s687 = ssub.s32 16, 16
          %688 = vsyncadd %s683, %s687
          %s689 = smul.addr %s32, 16
          %s690 = scalar_lea.hbm %s8, %s689
          %s692 = sshll.u32 %s685, 4
          %s693 = int_to_ptr.vmem [resolvable:$true] %s692
          %695 = dma.hbm_to_vmem [thread:$0]  %s690, 16, %s693, %s683
        $region68: #{smtp_forward.2} parent=47 // pred_fallthru
          _
        // Predicated region
        $region69: #{smtp_forward.2} parent=47 // pred_check
          %p696 = pneg %p266
        $region70: #{smtp_forward.2} parent=47 // pred_check_branch
          %698 = sbr.rel (%p696) target = $region72
        $region71: #{smtp_forward.2} parent=47 // pred_region
          %s699 = sand.u32 %s32, 1
          %s700 = scalar_lea.sflag [#allocation4], %s699
          %s701 = sand.u32 %s256, 1
          %s702 = scalar_lea.vmem [#allocation11], %s701
          %s704 = ssub.s32 16, 16
          %705 = vsyncadd %s700, %s704
          %s706 = smul.addr %s32, 16
          %s707 = scalar_lea.hbm %s9, %s706
          %s709 = sshll.u32 %s702, 4
          %s710 = int_to_ptr.vmem [resolvable:$true] %s709
          %712 = dma.hbm_to_vmem [thread:$0]  %s707, 16, %s710, %s700
        $region72: #{smtp_forward.2} parent=47 // pred_fallthru
          _
        // Predicated region
        $region73: #{smtp_forward.2} parent=47 // pred_check
          %p713 = pneg %p292
        $region74: #{smtp_forward.2} parent=47 // pred_check_branch
          %715 = sbr.rel (%p713) target = $region76
        $region75: #{smtp_forward.2} parent=47 // pred_region
          %p716 = scmp.lt.s32.totalorder %s32, 1
          %s717 = scalar_select %p716, %s32, 1
          %s718 = smul.addr %s717, 4
          %s719 = smul.addr %s718, 8
          %s720 = scalar_lea.vmem %s10, %s719
        $region76: #{smtp_forward.2} parent=47 // pred_fallthru
          _
        // Predicated region
        $region77: #{smtp_forward.2} parent=47 // pred_check
          %p721 = pneg %p318
        $region78: #{smtp_forward.2} parent=47 // pred_check_branch
          %723 = sbr.rel (%p721) target = $region80
        $region79: #{smtp_forward.2} parent=47 // pred_region
          %s724 = sand.u32 %s32, 1
          %s725 = scalar_lea.sflag [#allocation4], %s724
          %s726 = sand.u32 %s308, 1
          %s727 = scalar_lea.vmem [#allocation12], %s726
          %s729 = ssub.s32 16, 16
          %730 = vsyncadd %s725, %s729
          %s731 = smul.addr %s32, 16
          %s732 = scalar_lea.hbm %s11, %s731
          %s734 = sshll.u32 %s727, 4
          %s735 = int_to_ptr.vmem [resolvable:$true] %s734
          %737 = dma.hbm_to_vmem [thread:$0]  %s732, 16, %s735, %s725
        $region80: #{smtp_forward.2} parent=47 // pred_fallthru
          _
        // Predicated region
        $region81: #{smtp_forward.2} parent=47 // pred_check
          %p738 = pneg %p344
        $region82: #{smtp_forward.2} parent=47 // pred_check_branch
          %740 = sbr.rel (%p738) target = $region84
        $region83: #{smtp_forward.2} parent=47 // pred_region
          %p741 = scmp.lt.s32.totalorder %s32, 1
          %s742 = scalar_select %p741, %s32, 1
          %s743 = smul.addr %s742, 8
          %s744 = smul.addr %s743, 8
          %s745 = scalar_lea.vmem %s12, %s744
        $region84: #{smtp_forward.2} parent=47 // pred_fallthru
          _
        // Predicated region
        $region85: #{smtp_forward.2} parent=47 // pred_check
          %p746 = pneg %p370
        $region86: #{smtp_forward.2} parent=47 // pred_check_branch
          %748 = sbr.rel (%p746) target = $region88
        $region87: #{smtp_forward.2} parent=47 // pred_region
          %s749 = sand.u32 %s32, 1
          %s750 = scalar_lea.sflag [#allocation4], %s749
          %s751 = sand.u32 %s360, 1
          %s752 = scalar_lea.vmem [#allocation13], %s751
          %s754 = ssub.s32 16, 16
          %755 = vsyncadd %s750, %s754
          %s756 = smul.addr %s32, 16
          %s757 = scalar_lea.hbm %s13, %s756
          %s759 = sshll.u32 %s752, 4
          %s760 = int_to_ptr.vmem [resolvable:$true] %s759
          %762 = dma.hbm_to_vmem [thread:$0]  %s757, 16, %s760, %s750
        $region88: #{smtp_forward.2} parent=47 // pred_fallthru
          _
        // Predicated region
        $region89: #{smtp_forward.2} parent=47 // pred_check
          %p763 = pneg %p396
        $region90: #{smtp_forward.2} parent=47 // pred_check_branch
          %765 = sbr.rel (%p763) target = $region92
        $region91: #{smtp_forward.2} parent=47 // pred_region
          %s766 = sand.u32 %s32, 1
          %s767 = scalar_lea.sflag [#allocation4], %s766
          %s768 = sand.u32 %s386, 1
          %s769 = scalar_lea.vmem [#allocation14], %s768
          %s771 = ssub.s32 16, 16
          %772 = vsyncadd %s767, %s771
          %s773 = smul.addr %s32, 16
          %s774 = scalar_lea.hbm %s14, %s773
          %s776 = sshll.u32 %s769, 4
          %s777 = int_to_ptr.vmem [resolvable:$true] %s776
          %779 = dma.hbm_to_vmem [thread:$0]  %s774, 16, %s777, %s767
        $region92: #{smtp_forward.2} parent=47 // pred_fallthru
          _
        // Predicated region
        $region93: #{smtp_forward.2} parent=47 // pred_check
          %p780 = pneg %p422
        $region94: #{smtp_forward.2} parent=47 // pred_check_branch
          %782 = sbr.rel (%p780) target = $region96
        $region95: #{smtp_forward.2} parent=47 // pred_region
          %s783 = sand.u32 %s32, 1
          %s784 = scalar_lea.sflag [#allocation4], %s783
          %s785 = sand.u32 %s412, 1
          %s786 = scalar_lea.vmem [#allocation15], %s785
          %s788 = ssub.s32 16, 16
          %789 = vsyncadd %s784, %s788
          %s790 = smul.addr %s32, 16
          %s791 = scalar_lea.hbm %s15, %s790
          %s793 = sshll.u32 %s786, 4
          %s794 = int_to_ptr.vmem [resolvable:$true] %s793
          %796 = dma.hbm_to_vmem [thread:$0]  %s791, 16, %s794, %s784
        $region96: #{smtp_forward.2} parent=47 // pred_fallthru
          _
      $region48: #{smtp_forward.2} parent=5 // pred_fallthru
        _
      %p797 = scmp.le.s32.totalorder 1, %s32
      %p798 = scmp.lt.s32.totalorder %s32, 3
      %p799 = pnand %p797, %p798
      %p800 = pneg %p799
      // Predicated region
      $region97: #{smtp_forward.2} parent=5 // pred_check
        _
      $region98: #{smtp_forward.2} parent=5 // pred_check_branch
        %802 = sbr.rel (%p799) target = $region100
      $region99: #{smtp_forward.2} parent=5 // pred_region
        %s803 = ssub.s32 %s32, 1
        // Predicated region
        $region101: #{smtp_forward.2} parent=99 // pred_check
          %p804 = pneg %p95
        $region102: #{smtp_forward.2} parent=99 // pred_check_branch
          %806 = sbr.rel (%p804) target = $region104
        $region103: #{smtp_forward.2} parent=99 // pred_region
          %807 = dma.done [#allocation4], 64
        $region104: #{smtp_forward.2} parent=99 // pred_fallthru
          _
        // Predicated region
        $region105: #{smtp_forward.2} parent=99 // pred_check
          %p808 = pneg %p116
        $region106: #{smtp_forward.2} parent=99 // pred_check_branch
          %810 = sbr.rel (%p808) target = $region108
        $region107: #{smtp_forward.2} parent=99 // pred_region
          %811 = dma.done [#allocation7], 16
        $region108: #{smtp_forward.2} parent=99 // pred_fallthru
          _
        %s812 = sand.u32 %s37, 1
        %s813 = scalar_lea.sflag [#allocation4], %s812
        %s814 = sand.u32 %s155, 1
        %s815 = scalar_lea.vmem [#allocation8], %s814
        // Predicated region
        $region109: #{smtp_forward.2} parent=99 // pred_check
          %p816 = pneg %p168
        $region110: #{smtp_forward.2} parent=99 // pred_check_branch
          %818 = sbr.rel (%p816) target = $region112
        $region111: #{smtp_forward.2} parent=99 // pred_region
          %819 = dma.done %s813, 16
        $region112: #{smtp_forward.2} parent=99 // pred_fallthru
          _
        %s820 = sand.u32 %s37, 1
        %s821 = scalar_lea.sflag [#allocation4], %s820
        %s822 = sand.u32 %s207, 1
        %s823 = scalar_lea.vmem [#allocation9], %s822
        // Predicated region
        $region113: #{smtp_forward.2} parent=99 // pred_check
          %p824 = pneg %p220
        $region114: #{smtp_forward.2} parent=99 // pred_check_branch
          %826 = sbr.rel (%p824) target = $region116
        $region115: #{smtp_forward.2} parent=99 // pred_region
          %827 = dma.done %s821, 16
        $region116: #{smtp_forward.2} parent=99 // pred_fallthru
          _
        %s828 = sand.u32 %s37, 1
        %s829 = scalar_lea.sflag [#allocation4], %s828
        %s830 = sand.u32 %s233, 1
        %s831 = scalar_lea.vmem [#allocation10], %s830
        // Predicated region
        $region117: #{smtp_forward.2} parent=99 // pred_check
          %p832 = pneg %p246
        $region118: #{smtp_forward.2} parent=99 // pred_check_branch
          %834 = sbr.rel (%p832) target = $region120
        $region119: #{smtp_forward.2} parent=99 // pred_region
          %835 = dma.done %s829, 16
        $region120: #{smtp_forward.2} parent=99 // pred_fallthru
          _
        %s836 = sand.u32 %s37, 1
        %s837 = scalar_lea.sflag [#allocation4], %s836
        %s838 = sand.u32 %s259, 1
        %s839 = scalar_lea.vmem [#allocation11], %s838
        // Predicated region
        $region121: #{smtp_forward.2} parent=99 // pred_check
          %p840 = pneg %p272
        $region122: #{smtp_forward.2} parent=99 // pred_check_branch
          %842 = sbr.rel (%p840) target = $region124
        $region123: #{smtp_forward.2} parent=99 // pred_region
          %843 = dma.done %s837, 16
        $region124: #{smtp_forward.2} parent=99 // pred_fallthru
          _
        %s844 = sand.u32 %s37, 1
        %s845 = scalar_lea.sflag [#allocation4], %s844
        %s846 = sand.u32 %s311, 1
        %s847 = scalar_lea.vmem [#allocation12], %s846
        // Predicated region
        $region125: #{smtp_forward.2} parent=99 // pred_check
          %p848 = pneg %p324
        $region126: #{smtp_forward.2} parent=99 // pred_check_branch
          %850 = sbr.rel (%p848) target = $region128
        $region127: #{smtp_forward.2} parent=99 // pred_region
          %851 = dma.done %s845, 16
        $region128: #{smtp_forward.2} parent=99 // pred_fallthru
          _
        %s852 = sand.u32 %s37, 1
        %s853 = scalar_lea.sflag [#allocation4], %s852
        %s854 = sand.u32 %s363, 1
        %s855 = scalar_lea.vmem [#allocation13], %s854
        // Predicated region
        $region129: #{smtp_forward.2} parent=99 // pred_check
          %p856 = pneg %p376
        $region130: #{smtp_forward.2} parent=99 // pred_check_branch
          %858 = sbr.rel (%p856) target = $region132
        $region131: #{smtp_forward.2} parent=99 // pred_region
          %859 = dma.done %s853, 16
        $region132: #{smtp_forward.2} parent=99 // pred_fallthru
          _
        %s860 = sand.u32 %s37, 1
        %s861 = scalar_lea.sflag [#allocation4], %s860
        %s862 = sand.u32 %s389, 1
        %s863 = scalar_lea.vmem [#allocation14], %s862
        // Predicated region
        $region133: #{smtp_forward.2} parent=99 // pred_check
          %p864 = pneg %p402
        $region134: #{smtp_forward.2} parent=99 // pred_check_branch
          %866 = sbr.rel (%p864) target = $region136
        $region135: #{smtp_forward.2} parent=99 // pred_region
          %867 = dma.done %s861, 16
        $region136: #{smtp_forward.2} parent=99 // pred_fallthru
          _
        %s868 = sand.u32 %s37, 1
        %s869 = scalar_lea.sflag [#allocation4], %s868
        %s870 = sand.u32 %s415, 1
        %s871 = scalar_lea.vmem [#allocation15], %s870
        // Predicated region
        $region137: #{smtp_forward.2} parent=99 // pred_check
          %p872 = pneg %p428
        $region138: #{smtp_forward.2} parent=99 // pred_check_branch
          %874 = sbr.rel (%p872) target = $region140
        $region139: #{smtp_forward.2} parent=99 // pred_region
          %875 = dma.done %s869, 16
        $region140: #{smtp_forward.2} parent=99 // pred_fallthru
          _
        // Predicated region
        $region141: #{smtp_forward.2} parent=99 // pred_check
          %p876 = pneg %p470
        $region142: #{smtp_forward.2} parent=99 // pred_check_branch
          %878 = sbr.rel (%p876) target = $region144
        $region143: #{smtp_forward.2} parent=99 // pred_region
          %879 = dma.done [#allocation7], 16
        $region144: #{smtp_forward.2} parent=99 // pred_fallthru
          _
        // Predicated region
        $region145: #{smtp_forward.2} parent=99 // pred_check
          %p880 = pneg %p512
        $region146: #{smtp_forward.2} parent=99 // pred_check_branch
          %882 = sbr.rel (%p880) target = $region148
        $region147: #{smtp_forward.2} parent=99 // pred_region
          %883 = dma.done [#allocation18], 16
        $region148: #{smtp_forward.2} parent=99 // pred_fallthru
          _
        %p884 = pneg %p53
        %p885 = pneg %p50
        %p886 = pneg %p74
        %p887 = pneg %p71
        %p888 = pneg %p95
        %p889 = pneg %p92
        %p890 = pneg %p116
        %p891 = pneg %p113
        %p892 = scmp.lt.s32.totalorder %s37, 1
        %s893 = scalar_select %p892, %s37, 1
        %s894 = smul.addr %s893, 4
        %s895 = smul.addr %s894, 8
        %s896 = scalar_lea.vmem %s4, %s895
        %p897 = pneg %p142
        %p898 = pneg %p139
        %s899 = sand.u32 %s37, 1
        %s900 = scalar_lea.sflag [#allocation4], %s899
        %s901 = sand.u32 %s155, 1
        %s902 = scalar_lea.vmem [#allocation8], %s901
        %p903 = pneg %p168
        %p904 = pneg %p165
        %p905 = scmp.lt.s32.totalorder %s37, 1
        %s906 = scalar_select %p905, %s37, 1
        %s907 = smul.addr %s906, 4
        %s908 = smul.addr %s907, 8
        %s909 = scalar_lea.vmem %s6, %s908
        %p910 = pneg %p194
        %p911 = pneg %p191
        %s912 = sand.u32 %s37, 1
        %s913 = scalar_lea.sflag [#allocation4], %s912
        %s914 = sand.u32 %s207, 1
        %s915 = scalar_lea.vmem [#allocation9], %s914
        %p916 = pneg %p220
        %p917 = pneg %p217
        %s918 = sand.u32 %s37, 1
        %s919 = scalar_lea.sflag [#allocation4], %s918
        %s920 = sand.u32 %s233, 1
        %s921 = scalar_lea.vmem [#allocation10], %s920
        %p922 = pneg %p246
        %p923 = pneg %p243
        %s924 = sand.u32 %s37, 1
        %s925 = scalar_lea.sflag [#allocation4], %s924
        %s926 = sand.u32 %s259, 1
        %s927 = scalar_lea.vmem [#allocation11], %s926
        %p928 = pneg %p272
        %p929 = pneg %p269
        %p930 = scmp.lt.s32.totalorder %s37, 1
        %s931 = scalar_select %p930, %s37, 1
        %s932 = smul.addr %s931, 4
        %s933 = smul.addr %s932, 8
        %s934 = scalar_lea.vmem %s10, %s933
        %p935 = pneg %p298
        %p936 = pneg %p295
        %s937 = sand.u32 %s37, 1
        %s938 = scalar_lea.sflag [#allocation4], %s937
        %s939 = sand.u32 %s311, 1
        %s940 = scalar_lea.vmem [#allocation12], %s939
        %p941 = pneg %p324
        %p942 = pneg %p321
        %p943 = scmp.lt.s32.totalorder %s37, 1
        %s944 = scalar_select %p943, %s37, 1
        %s945 = smul.addr %s944, 8
        %s946 = smul.addr %s945, 8
        %s947 = scalar_lea.vmem %s12, %s946
        %p948 = pneg %p350
        %p949 = pneg %p347
        %s950 = sand.u32 %s37, 1
        %s951 = scalar_lea.sflag [#allocation4], %s950
        %s952 = sand.u32 %s363, 1
        %s953 = scalar_lea.vmem [#allocation13], %s952
        %p954 = pneg %p376
        %p955 = pneg %p373
        %s956 = sand.u32 %s37, 1
        %s957 = scalar_lea.sflag [#allocation4], %s956
        %s958 = sand.u32 %s389, 1
        %s959 = scalar_lea.vmem [#allocation14], %s958
        %p960 = pneg %p402
        %p961 = pneg %p399
        %s962 = sand.u32 %s37, 1
        %s963 = scalar_lea.sflag [#allocation4], %s962
        %s964 = sand.u32 %s415, 1
        %s965 = scalar_lea.vmem [#allocation15], %s964
        %p966 = pneg %p428
        %p967 = pneg %p425
        %p968 = pneg %p449
        %p969 = pneg %p446
        %p970 = pneg %p470
        %p971 = pneg %p467
        %p972 = pneg %p491
        %p973 = pneg %p488
        %p974 = pneg %p512
        %p975 = pneg %p509
        %p976 = pneg %p533
        %p977 = pneg %p530
        %p978 = pneg %p554
        %p979 = pneg %p551
        %p980 = scmp.lt.s32.totalorder %s37, 1
        %s981 = scalar_select %p980, %s37, 1
        %s982 = smul.addr %s981, 4
        %s983 = smul.addr %s982, 8
        %s984 = scalar_lea.vmem %s4, %s983
        %p985 = scmp.lt.s32.totalorder %s37, 1
        %s986 = scalar_select %p985, %s37, 1
        %s987 = smul.addr %s986, 4
        %s988 = smul.addr %s987, 8
        %s989 = scalar_lea.vmem %s6, %s988
        %p990 = scmp.lt.s32.totalorder %s37, 1
        %s991 = scalar_select %p990, %s37, 1
        %s992 = smul.addr %s991, 4
        %s993 = smul.addr %s992, 8
        %s994 = scalar_lea.vmem %s10, %s993
        %p995 = scmp.lt.s32.totalorder %s37, 1
        %s996 = scalar_select %p995, %s37, 1
        %s997 = smul.addr %s996, 8
        %s998 = smul.addr %s997, 8
        %s999 = scalar_lea.vmem %s12, %s998
        %p1000 = scmp.eq.s32.totalorder %s37, 0
        // Predicated region
        $region149: #{smtp_forward.2} parent=99 // pred_check
          %p1001 = pneg %p1000
        $region150: #{smtp_forward.2} parent=99 // pred_check_branch
          %1003 = sbr.rel (%p1001) target = $region152
        $region151: #{smtp_forward.2} parent=99 // pred_region
          %v1004 = vld [vmem:[%s0] sm:$0xff]
          %v1005 = vld [vmem:[%s0 + $0x8] sm:$0xff]
          %v1006 = vld [vmem:[#allocation3] sm:$0xf]
          %v1007 = vld [vmem:[#allocation6] sm:$0x1]
          %v1008 = vld [vmem:[%s1] sm:$0xff]
          %v1010 = vlaneseq
          %v1011 = vshrl.u32 %v1010, 7
          %v1012 = vsub.s32 0, %v1011
          %v1013 = vrot.slane %v1007, %v1012
          %vm1015 = vcmask 31744
          %v1017 = vsel %vm1015, %v1004, 0
          %v1020 = vsel %vm1015, %v1005, 0
          %vm1022 = vcmask 1043456
          %v1024 = vsel %vm1022, %v1006, 0
          %1026 = vmatprep.subr.mxu0 0.0
          %1027 = vmatpush1.msra.mxu0 0.0
          %1028 = vmatprep.subr.mxu0 0.0
          %1029 = vmatpush1.msra.mxu0 0.0
          %1030 = vmatprep.subr.mxu0 0.0
          %1031 = vmatpush1.msra.mxu0 0.0
          %1032 = vmatprep.subr.mxu0 0.0
          %1033 = vmatpush1.msra.mxu0 0.0
          %1034 = vmatprep.subr.mxu0 0.0
          %1035 = vmatpush1.msra.mxu0 0.0
          %1036 = vmatprep.subr.mxu0 0.0
          %1037 = vmatpush1.msra.mxu0 0.0
          %1038 = vmatprep.subr.mxu0 0.0
          %1039 = vmatpush1.msra.mxu0 0.0
          %1040 = vmatprep.subr.mxu0 0.0
          %1041 = vmatpush1.msra.mxu0 0.0
          %1042 = vmatprep.subr.mxu0 0.0
          %1043 = vmatpush1.msra.mxu0 0.0
          %1044 = vmatprep.subr.mxu0 0.0
          %1045 = vmatpush1.msra.mxu0 0.0
          %1046 = vmatprep.subr.mxu0 0.0
          %1047 = vmatpush1.msra.mxu0 0.0
          %1048 = vmatprep.subr.mxu0 0.0
          %1049 = vmatpush1.msra.mxu0 0.0
          %1050 = vmatprep.subr.mxu0 0.0
          %1051 = vmatpush1.msra.mxu0 0.0
          %1052 = vmatprep.subr.mxu0 0.0
          %1053 = vmatpush1.msra.mxu0 0.0
          %1054 = vmatprep.subr.mxu0 0.0
          %1055 = vmatpush1.msra.mxu0 0.0
          %1056 = vmatprep.subr.mxu0 0.0
          %1057 = vmatpush1.msra.mxu0 %v1024
          %1058 = vmatprep.subr.mxu0 0.0
          %1059 = vmatpush2.msra.mxu0 0.0
          %1060 = vmatprep.subr.mxu0 0.0
          %1061 = vmatpush2.msra.mxu0 0.0
          %1062 = vmatprep.subr.mxu0 0.0
          %1063 = vmatpush2.msra.mxu0 0.0
          %1064 = vmatprep.subr.mxu0 0.0
          %1065 = vmatpush2.msra.mxu0 0.0
          %1066 = vmatprep.subr.mxu0 0.0
          %1067 = vmatpush2.msra.mxu0 0.0
          %1068 = vmatprep.subr.mxu0 0.0
          %1069 = vmatpush2.msra.mxu0 0.0
          %1070 = vmatprep.subr.mxu0 0.0
          %1071 = vmatpush2.msra.mxu0 0.0
          %1072 = vmatprep.subr.mxu0 0.0
          %1073 = vmatpush2.msra.mxu0 0.0
          %1074 = vmatprep.subr.mxu0 0.0
          %1075 = vmatpush2.msra.mxu0 0.0
          %1076 = vmatprep.subr.mxu0 0.0
          %1077 = vmatpush2.msra.mxu0 0.0
          %1078 = vmatprep.subr.mxu0 0.0
          %1079 = vmatpush2.msra.mxu0 0.0
          %1080 = vmatprep.subr.mxu0 0.0
          %1081 = vmatpush2.msra.mxu0 0.0
          %1082 = vmatprep.subr.mxu0 0.0
          %1083 = vmatpush2.msra.mxu0 0.0
          %1084 = vmatprep.subr.mxu0 0.0
          %1085 = vmatpush2.msra.mxu0 0.0
          %1086 = vmatprep.subr.mxu0 0.0
          %1087 = vmatpush2.msra.mxu0 0.0
          %1088 = vmatprep.subr.mxu0 0.0
          %1089 = vmatpush2.msra.mxu0 0.0
          %1090 = vmatprep.mubr.f32.mxu0 0.0
          %1091 = vmatmul.mubr.f32.gmra.mxu0 %v1017
          %v1092 = vpop.f32.mrf.mxu0
          %v1093 = vadd.f32 %v1013, %v1092
          %v1094 = vpop.f32.mrf.mxu0
          %1095 = vmatprep.mubr.f32.mxu0 0.0
          %1096 = vmatmul.mubr.f32.gmra.mxu0 %v1020
          %v1097 = vpop.f32.mrf.mxu0
          %v1098 = vadd.f32 %v1013, %v1097
          %v1099 = vpop.f32.mrf.mxu0
          %1100 = vdwg.mxu0
          %v1101 = vadd.f32 %v1093, %v1008
          %v1102 = vadd.f32 %v1098, %v1008
          %vm1103 = vcmask 261120
          %1104 = vst.msk [vmem:[#allocation2] sm:$0xff] %vm1103, %v1101
          %1105 = vst.msk [vmem:[#allocation2 + $0x8] sm:$0xff] %vm1103, %v1102
        $region152: #{smtp_forward.2} parent=99 // pred_fallthru
          _
        %v1106 = vld [vmem:[#allocation2] sm:$0xff]
        %v1107 = vld [vmem:[#allocation2 + $0x8] sm:$0xff]
        %v1108 = vld [vmem:[%s984] sm:$0xff]
        %v1109 = vld [vmem:[%s984 + $0x8] sm:$0xff]
        %v1110 = vld [vmem:[%s984 + $0x10] sm:$0xff]
        %v1111 = vld [vmem:[%s984 + $0x18] sm:$0xff]
        %v1112 = vld [vmem:[%s815] sm:$0x1]
        %v1114 = vlaneseq
        %v1115 = vshrl.u32 %v1114, 7
        %v1116 = vsub.s32 0, %v1115
        %v1117 = vrot.slane %v1112, %v1116
        %vm1119 = vcmask 261120
        %v1121 = vsel %vm1119, %v1106, 0
        %v1124 = vsel %vm1119, %v1107, 0
        %1126 = vmatprep.subr.mxu0 0.0
        %1127 = vmatpush1.msra.mxu0 0.0
        %1128 = vmatprep.subr.mxu0 0.0
        %1129 = vmatpush1.msra.mxu0 0.0
        %1130 = vmatprep.subr.mxu0 0.0
        %1131 = vmatpush1.msra.mxu0 0.0
        %1132 = vmatprep.subr.mxu0 0.0
        %1133 = vmatpush1.msra.mxu0 0.0
        %1134 = vmatprep.subr.mxu0 0.0
        %1135 = vmatpush1.msra.mxu0 0.0
        %1136 = vmatprep.subr.mxu0 0.0
        %1137 = vmatpush1.msra.mxu0 0.0
        %1138 = vmatprep.subr.mxu0 0.0
        %1139 = vmatpush1.msra.mxu0 0.0
        %1140 = vmatprep.subr.mxu0 0.0
        %1141 = vmatpush1.msra.mxu0 0.0
        %1142 = vmatprep.subr.mxu0 0.0
        %1143 = vmatpush1.msra.mxu0 0.0
        %1144 = vmatprep.subr.mxu0 0.0
        %1145 = vmatpush1.msra.mxu0 0.0
        %1146 = vmatprep.subr.mxu0 0.0
        %1147 = vmatpush1.msra.mxu0 0.0
        %1148 = vmatprep.subr.mxu0 0.0
        %1149 = vmatpush1.msra.mxu0 0.0
        %1150 = vmatprep.subr.mxu0 0.0
        %1151 = vmatpush1.msra.mxu0 %v1111
        %1152 = vmatprep.subr.mxu0 0.0
        %1153 = vmatpush1.msra.mxu0 %v1110
        %1154 = vmatprep.subr.mxu0 0.0
        %1155 = vmatpush1.msra.mxu0 %v1109
        %1156 = vmatprep.subr.mxu0 0.0
        %1157 = vmatpush1.msra.mxu0 %v1108
        %1158 = vmatprep.subr.mxu0 0.0
        %1159 = vmatpush2.msra.mxu0 0.0
        %1160 = vmatprep.subr.mxu0 0.0
        %1161 = vmatpush2.msra.mxu0 0.0
        %1162 = vmatprep.subr.mxu0 0.0
        %1163 = vmatpush2.msra.mxu0 0.0
        %1164 = vmatprep.subr.mxu0 0.0
        %1165 = vmatpush2.msra.mxu0 0.0
        %1166 = vmatprep.subr.mxu0 0.0
        %1167 = vmatpush2.msra.mxu0 0.0
        %1168 = vmatprep.subr.mxu0 0.0
        %1169 = vmatpush2.msra.mxu0 0.0
        %1170 = vmatprep.subr.mxu0 0.0
        %1171 = vmatpush2.msra.mxu0 0.0
        %1172 = vmatprep.subr.mxu0 0.0
        %1173 = vmatpush2.msra.mxu0 0.0
        %1174 = vmatprep.subr.mxu0 0.0
        %1175 = vmatpush2.msra.mxu0 0.0
        %1176 = vmatprep.subr.mxu0 0.0
        %1177 = vmatpush2.msra.mxu0 0.0
        %1178 = vmatprep.subr.mxu0 0.0
        %1179 = vmatpush2.msra.mxu0 0.0
        %1180 = vmatprep.subr.mxu0 0.0
        %1181 = vmatpush2.msra.mxu0 0.0
        %1182 = vmatprep.subr.mxu0 0.0
        %1183 = vmatpush2.msra.mxu0 0.0
        %1184 = vmatprep.subr.mxu0 0.0
        %1185 = vmatpush2.msra.mxu0 0.0
        %1186 = vmatprep.subr.mxu0 0.0
        %1187 = vmatpush2.msra.mxu0 0.0
        %1188 = vmatprep.subr.mxu0 0.0
        %1189 = vmatpush2.msra.mxu0 0.0
        %1190 = vmatprep.mubr.f32.mxu0 0.0
        %1191 = vmatmul.mubr.f32.gmra.mxu0 %v1121
        %v1192 = vpop.f32.mrf.mxu0
        %v1193 = vadd.f32 %v1117, %v1192
        %v1194 = vpop.f32.mrf.mxu0
        %1195 = vmatprep.mubr.f32.mxu0 0.0
        %1196 = vmatmul.mubr.f32.gmra.mxu0 %v1124
        %v1197 = vpop.f32.mrf.mxu0
        %v1198 = vadd.f32 %v1117, %v1197
        %v1199 = vpop.f32.mrf.mxu0
        %1200 = vdwg.mxu0
        %v1201 = vld [vmem:[%s989] sm:$0xff]
        %v1202 = vld [vmem:[%s989 + $0x8] sm:$0xff]
        %v1203 = vld [vmem:[%s989 + $0x10] sm:$0xff]
        %v1204 = vld [vmem:[%s989 + $0x18] sm:$0xff]
        %v1205 = vld [vmem:[%s823] sm:$0x1]
        %1207 = vrot.lane.b32.xlu0 %v1193, 96
        %v1208 = vpop.permute.xlu0 %1207
        %vm1209 = vcmask 64512
        %v1210 = vsel %vm1209, %v1193, 0
        %v1212 = vsel %vm1209, %v1208, 0
        %1214 = vmatprep.subr.mxu0 0.0
        %1215 = vmatpush1.xpose.msra.mxu0 0.0
        %1216 = vmatprep.subr.mxu0 0.0
        %1217 = vmatpush1.xpose.msra.mxu0 0.0
        %1218 = vmatprep.subr.mxu0 0.0
        %1219 = vmatpush1.xpose.msra.mxu0 0.0
        %1220 = vmatprep.subr.mxu0 0.0
        %1221 = vmatpush1.xpose.msra.mxu0 0.0
        %1222 = vmatprep.subr.mxu0 0.0
        %1223 = vmatpush1.xpose.msra.mxu0 0.0
        %1224 = vmatprep.subr.mxu0 0.0
        %1225 = vmatpush1.xpose.msra.mxu0 0.0
        %1226 = vmatprep.subr.mxu0 0.0
        %1227 = vmatpush1.xpose.msra.mxu0 0.0
        %1228 = vmatprep.subr.mxu0 0.0
        %1229 = vmatpush1.xpose.msra.mxu0 0.0
        %1230 = vmatprep.subr.mxu0 0.0
        %1231 = vmatpush1.xpose.msra.mxu0 0.0
        %1232 = vmatprep.subr.mxu0 0.0
        %1233 = vmatpush1.xpose.msra.mxu0 0.0
        %1234 = vmatprep.subr.mxu0 0.0
        %1235 = vmatpush1.xpose.msra.mxu0 0.0
        %1236 = vmatprep.subr.mxu0 0.0
        %1237 = vmatpush1.xpose.msra.mxu0 0.0
        %1238 = vmatprep.subr.mxu0 0.0
        %1239 = vmatpush1.xpose.msra.mxu0 0.0
        %1240 = vmatprep.subr.mxu0 0.0
        %1241 = vmatpush1.xpose.msra.mxu0 0.0
        %1242 = vmatprep.subr.mxu0 0.0
        %1243 = vmatpush1.xpose.msra.mxu0 0.0
        %1244 = vmatprep.subr.mxu0 0.0
        %1245 = vmatpush1.xpose.msra.mxu0 %v1212
        %1246 = vmatprep.subr.mxu0 0.0
        %1247 = vmatpush2.xpose.msra.mxu0 0.0
        %1248 = vmatprep.subr.mxu0 0.0
        %1249 = vmatpush2.xpose.msra.mxu0 0.0
        %1250 = vmatprep.subr.mxu0 0.0
        %1251 = vmatpush2.xpose.msra.mxu0 0.0
        %1252 = vmatprep.subr.mxu0 0.0
        %1253 = vmatpush2.xpose.msra.mxu0 0.0
        %1254 = vmatprep.subr.mxu0 0.0
        %1255 = vmatpush2.xpose.msra.mxu0 0.0
        %1256 = vmatprep.subr.mxu0 0.0
        %1257 = vmatpush2.xpose.msra.mxu0 0.0
        %1258 = vmatprep.subr.mxu0 0.0
        %1259 = vmatpush2.xpose.msra.mxu0 0.0
        %1260 = vmatprep.subr.mxu0 0.0
        %1261 = vmatpush2.xpose.msra.mxu0 0.0
        %1262 = vmatprep.subr.mxu0 0.0
        %1263 = vmatpush2.xpose.msra.mxu0 0.0
        %1264 = vmatprep.subr.mxu0 0.0
        %1265 = vmatpush2.xpose.msra.mxu0 0.0
        %1266 = vmatprep.subr.mxu0 0.0
        %1267 = vmatpush2.xpose.msra.mxu0 0.0
        %1268 = vmatprep.subr.mxu0 0.0
        %1269 = vmatpush2.xpose.msra.mxu0 0.0
        %1270 = vmatprep.subr.mxu0 0.0
        %1271 = vmatpush2.xpose.msra.mxu0 0.0
        %1272 = vmatprep.subr.mxu0 0.0
        %1273 = vmatpush2.xpose.msra.mxu0 0.0
        %1274 = vmatprep.subr.mxu0 0.0
        %1275 = vmatpush2.xpose.msra.mxu0 0.0
        %1276 = vmatprep.subr.mxu0 0.0
        %1277 = vmatpush2.xpose.msra.mxu0 0.0
        %1278 = vmatprep.mubr.f32.mxu0 0.0
        %1279 = vmatmul.mubr.f32.gmra.mxu0 %v1210
        %v1280 = vpop.f32.mrf.mxu0
        %v1281 = vadd.f32 0.0, %v1280
        %v1282 = vpop.f32.mrf.mxu0
        %1283 = vdwg.mxu0
        %1285 = vrot.lane.b32.xlu0 %v1198, 96
        %v1286 = vpop.permute.xlu0 %1285
        %v1287 = vsel %vm1209, %v1198, 0
        %v1289 = vsel %vm1209, %v1286, 0
        %1291 = vmatprep.subr.mxu0 0.0
        %1292 = vmatpush1.xpose.msra.mxu0 0.0
        %1293 = vmatprep.subr.mxu0 0.0
        %1294 = vmatpush1.xpose.msra.mxu0 0.0
        %1295 = vmatprep.subr.mxu0 0.0
        %1296 = vmatpush1.xpose.msra.mxu0 0.0
        %1297 = vmatprep.subr.mxu0 0.0
        %1298 = vmatpush1.xpose.msra.mxu0 0.0
        %1299 = vmatprep.subr.mxu0 0.0
        %1300 = vmatpush1.xpose.msra.mxu0 0.0
        %1301 = vmatprep.subr.mxu0 0.0
        %1302 = vmatpush1.xpose.msra.mxu0 0.0
        %1303 = vmatprep.subr.mxu0 0.0
        %1304 = vmatpush1.xpose.msra.mxu0 0.0
        %1305 = vmatprep.subr.mxu0 0.0
        %1306 = vmatpush1.xpose.msra.mxu0 0.0
        %1307 = vmatprep.subr.mxu0 0.0
        %1308 = vmatpush1.xpose.msra.mxu0 0.0
        %1309 = vmatprep.subr.mxu0 0.0
        %1310 = vmatpush1.xpose.msra.mxu0 0.0
        %1311 = vmatprep.subr.mxu0 0.0
        %1312 = vmatpush1.xpose.msra.mxu0 0.0
        %1313 = vmatprep.subr.mxu0 0.0
        %1314 = vmatpush1.xpose.msra.mxu0 0.0
        %1315 = vmatprep.subr.mxu0 0.0
        %1316 = vmatpush1.xpose.msra.mxu0 0.0
        %1317 = vmatprep.subr.mxu0 0.0
        %1318 = vmatpush1.xpose.msra.mxu0 0.0
        %1319 = vmatprep.subr.mxu0 0.0
        %1320 = vmatpush1.xpose.msra.mxu0 0.0
        %1321 = vmatprep.subr.mxu0 0.0
        %1322 = vmatpush1.xpose.msra.mxu0 %v1289
        %1323 = vmatprep.subr.mxu0 0.0
        %1324 = vmatpush2.xpose.msra.mxu0 0.0
        %1325 = vmatprep.subr.mxu0 0.0
        %1326 = vmatpush2.xpose.msra.mxu0 0.0
        %1327 = vmatprep.subr.mxu0 0.0
        %1328 = vmatpush2.xpose.msra.mxu0 0.0
        %1329 = vmatprep.subr.mxu0 0.0
        %1330 = vmatpush2.xpose.msra.mxu0 0.0
        %1331 = vmatprep.subr.mxu0 0.0
        %1332 = vmatpush2.xpose.msra.mxu0 0.0
        %1333 = vmatprep.subr.mxu0 0.0
        %1334 = vmatpush2.xpose.msra.mxu0 0.0
        %1335 = vmatprep.subr.mxu0 0.0
        %1336 = vmatpush2.xpose.msra.mxu0 0.0
        %1337 = vmatprep.subr.mxu0 0.0
        %1338 = vmatpush2.xpose.msra.mxu0 0.0
        %1339 = vmatprep.subr.mxu0 0.0
        %1340 = vmatpush2.xpose.msra.mxu0 0.0
        %1341 = vmatprep.subr.mxu0 0.0
        %1342 = vmatpush2.xpose.msra.mxu0 0.0
        %1343 = vmatprep.subr.mxu0 0.0
        %1344 = vmatpush2.xpose.msra.mxu0 0.0
        %1345 = vmatprep.subr.mxu0 0.0
        %1346 = vmatpush2.xpose.msra.mxu0 0.0
        %1347 = vmatprep.subr.mxu0 0.0
        %1348 = vmatpush2.xpose.msra.mxu0 0.0
        %1349 = vmatprep.subr.mxu0 0.0
        %1350 = vmatpush2.xpose.msra.mxu0 0.0
        %1351 = vmatprep.subr.mxu0 0.0
        %1352 = vmatpush2.xpose.msra.mxu0 0.0
        %1353 = vmatprep.subr.mxu0 0.0
        %1354 = vmatpush2.xpose.msra.mxu0 0.0
        %1355 = vmatprep.mubr.f32.mxu0 0.0
        %1356 = vmatmul.mubr.f32.gmra.mxu0 %v1287
        %v1357 = vpop.f32.mrf.mxu0
        %v1358 = vadd.f32 0.0, %v1357
        %v1359 = vpop.f32.mrf.mxu0
        %1360 = vdwg.mxu0
        %v1361 = vmul.f32 %v1281, 0.35355338
        %v1362 = vmul.f32 %v1358, 0.35355338
        %v1363 = vsel %vm1209, %v1361, -inf
        %1364 = vmax.xlane.f32.xlu0 %v1363
        %v1365 = vpop.xlane.xlu0 %1364
        %v1366 = vsel %vm1209, %v1362, -inf
        %1367 = vmax.xlane.f32.xlu0 %v1366
        %v1368 = vpop.xlane.xlu0 %1367
        %v1369 = vsub.f32 %v1361, %v1365
        %v1370 = vsub.f32 %v1362, %v1368
        %v1371 = vmul.f32 %v1369, 1.442695
        %v1372 = vpow.pop %v1371
        %v1373 = vmul.f32 %v1370, 1.442695
        %v1374 = vpow.pop %v1373
        %v1375 = vsel %vm1209, %v1372, 0.0
        %1376 = vadd.xlane.f32.xlu0 %v1375
        %v1377 = vpop.xlane.xlu0 %1376
        %v1378 = vsel %vm1209, %v1374, 0.0
        %1379 = vadd.xlane.f32.xlu0 %v1378
        %v1380 = vpop.xlane.xlu0 %1379
        %v1381 = vrcp.pop %v1377
        %v1382 = vrcp.pop %v1380
        %v1383 = vmul.f32 %v1372, %v1381
        %v1384 = vmul.f32 %v1374, %v1382
        %1385 = vrot.lane.b32.xlu0 %v1193, 64
        %v1386 = vpop.permute.xlu0 %1385
        %v1389 = vsel %vm1209, %v1383, 0
        %1391 = vmatprep.subr.mxu0 0.0
        %1392 = vmatpush1.msra.mxu0 0.0
        %1393 = vmatprep.subr.mxu0 0.0
        %1394 = vmatpush1.msra.mxu0 0.0
        %1395 = vmatprep.subr.mxu0 0.0
        %1396 = vmatpush1.msra.mxu0 0.0
        %1397 = vmatprep.subr.mxu0 0.0
        %1398 = vmatpush1.msra.mxu0 0.0
        %1399 = vmatprep.subr.mxu0 0.0
        %1400 = vmatpush1.msra.mxu0 0.0
        %1401 = vmatprep.subr.mxu0 0.0
        %1402 = vmatpush1.msra.mxu0 0.0
        %1403 = vmatprep.subr.mxu0 0.0
        %1404 = vmatpush1.msra.mxu0 0.0
        %1405 = vmatprep.subr.mxu0 0.0
        %1406 = vmatpush1.msra.mxu0 0.0
        %1407 = vmatprep.subr.mxu0 0.0
        %1408 = vmatpush1.msra.mxu0 0.0
        %1409 = vmatprep.subr.mxu0 0.0
        %1410 = vmatpush1.msra.mxu0 0.0
        %1411 = vmatprep.subr.mxu0 0.0
        %1412 = vmatpush1.msra.mxu0 0.0
        %1413 = vmatprep.subr.mxu0 0.0
        %1414 = vmatpush1.msra.mxu0 0.0
        %1415 = vmatprep.subr.mxu0 0.0
        %1416 = vmatpush1.msra.mxu0 0.0
        %1417 = vmatprep.subr.mxu0 0.0
        %1418 = vmatpush1.msra.mxu0 0.0
        %1419 = vmatprep.subr.mxu0 0.0
        %1420 = vmatpush1.msra.mxu0 0.0
        %1421 = vmatprep.subr.mxu0 0.0
        %1422 = vmatpush1.msra.mxu0 %v1386
        %1423 = vmatprep.subr.mxu0 0.0
        %1424 = vmatpush2.msra.mxu0 0.0
        %1425 = vmatprep.subr.mxu0 0.0
        %1426 = vmatpush2.msra.mxu0 0.0
        %1427 = vmatprep.subr.mxu0 0.0
        %1428 = vmatpush2.msra.mxu0 0.0
        %1429 = vmatprep.subr.mxu0 0.0
        %1430 = vmatpush2.msra.mxu0 0.0
        %1431 = vmatprep.subr.mxu0 0.0
        %1432 = vmatpush2.msra.mxu0 0.0
        %1433 = vmatprep.subr.mxu0 0.0
        %1434 = vmatpush2.msra.mxu0 0.0
        %1435 = vmatprep.subr.mxu0 0.0
        %1436 = vmatpush2.msra.mxu0 0.0
        %1437 = vmatprep.subr.mxu0 0.0
        %1438 = vmatpush2.msra.mxu0 0.0
        %1439 = vmatprep.subr.mxu0 0.0
        %1440 = vmatpush2.msra.mxu0 0.0
        %1441 = vmatprep.subr.mxu0 0.0
        %1442 = vmatpush2.msra.mxu0 0.0
        %1443 = vmatprep.subr.mxu0 0.0
        %1444 = vmatpush2.msra.mxu0 0.0
        %1445 = vmatprep.subr.mxu0 0.0
        %1446 = vmatpush2.msra.mxu0 0.0
        %1447 = vmatprep.subr.mxu0 0.0
        %1448 = vmatpush2.msra.mxu0 0.0
        %1449 = vmatprep.subr.mxu0 0.0
        %1450 = vmatpush2.msra.mxu0 0.0
        %1451 = vmatprep.subr.mxu0 0.0
        %1452 = vmatpush2.msra.mxu0 0.0
        %1453 = vmatprep.subr.mxu0 0.0
        %1454 = vmatpush2.msra.mxu0 0.0
        %1455 = vmatprep.mubr.f32.mxu0 0.0
        %1456 = vmatmul.mubr.f32.gmra.mxu0 %v1389
        %v1457 = vpop.f32.mrf.mxu0
        %v1458 = vadd.f32 0.0, %v1457
        %v1459 = vpop.f32.mrf.mxu0
        %1460 = vdwg.mxu0
        %1461 = vrot.lane.b32.xlu0 %v1198, 64
        %v1462 = vpop.permute.xlu0 %1461
        %v1465 = vsel %vm1209, %v1384, 0
        %1467 = vmatprep.subr.mxu0 0.0
        %1468 = vmatpush1.msra.mxu0 0.0
        %1469 = vmatprep.subr.mxu0 0.0
        %1470 = vmatpush1.msra.mxu0 0.0
        %1471 = vmatprep.subr.mxu0 0.0
        %1472 = vmatpush1.msra.mxu0 0.0
        %1473 = vmatprep.subr.mxu0 0.0
        %1474 = vmatpush1.msra.mxu0 0.0
        %1475 = vmatprep.subr.mxu0 0.0
        %1476 = vmatpush1.msra.mxu0 0.0
        %1477 = vmatprep.subr.mxu0 0.0
        %1478 = vmatpush1.msra.mxu0 0.0
        %1479 = vmatprep.subr.mxu0 0.0
        %1480 = vmatpush1.msra.mxu0 0.0
        %1481 = vmatprep.subr.mxu0 0.0
        %1482 = vmatpush1.msra.mxu0 0.0
        %1483 = vmatprep.subr.mxu0 0.0
        %1484 = vmatpush1.msra.mxu0 0.0
        %1485 = vmatprep.subr.mxu0 0.0
        %1486 = vmatpush1.msra.mxu0 0.0
        %1487 = vmatprep.subr.mxu0 0.0
        %1488 = vmatpush1.msra.mxu0 0.0
        %1489 = vmatprep.subr.mxu0 0.0
        %1490 = vmatpush1.msra.mxu0 0.0
        %1491 = vmatprep.subr.mxu0 0.0
        %1492 = vmatpush1.msra.mxu0 0.0
        %1493 = vmatprep.subr.mxu0 0.0
        %1494 = vmatpush1.msra.mxu0 0.0
        %1495 = vmatprep.subr.mxu0 0.0
        %1496 = vmatpush1.msra.mxu0 0.0
        %1497 = vmatprep.subr.mxu0 0.0
        %1498 = vmatpush1.msra.mxu0 %v1462
        %1499 = vmatprep.subr.mxu0 0.0
        %1500 = vmatpush2.msra.mxu0 0.0
        %1501 = vmatprep.subr.mxu0 0.0
        %1502 = vmatpush2.msra.mxu0 0.0
        %1503 = vmatprep.subr.mxu0 0.0
        %1504 = vmatpush2.msra.mxu0 0.0
        %1505 = vmatprep.subr.mxu0 0.0
        %1506 = vmatpush2.msra.mxu0 0.0
        %1507 = vmatprep.subr.mxu0 0.0
        %1508 = vmatpush2.msra.mxu0 0.0
        %1509 = vmatprep.subr.mxu0 0.0
        %1510 = vmatpush2.msra.mxu0 0.0
        %1511 = vmatprep.subr.mxu0 0.0
        %1512 = vmatpush2.msra.mxu0 0.0
        %1513 = vmatprep.subr.mxu0 0.0
        %1514 = vmatpush2.msra.mxu0 0.0
        %1515 = vmatprep.subr.mxu0 0.0
        %1516 = vmatpush2.msra.mxu0 0.0
        %1517 = vmatprep.subr.mxu0 0.0
        %1518 = vmatpush2.msra.mxu0 0.0
        %1519 = vmatprep.subr.mxu0 0.0
        %1520 = vmatpush2.msra.mxu0 0.0
        %1521 = vmatprep.subr.mxu0 0.0
        %1522 = vmatpush2.msra.mxu0 0.0
        %1523 = vmatprep.subr.mxu0 0.0
        %1524 = vmatpush2.msra.mxu0 0.0
        %1525 = vmatprep.subr.mxu0 0.0
        %1526 = vmatpush2.msra.mxu0 0.0
        %1527 = vmatprep.subr.mxu0 0.0
        %1528 = vmatpush2.msra.mxu0 0.0
        %1529 = vmatprep.subr.mxu0 0.0
        %1530 = vmatpush2.msra.mxu0 0.0
        %1531 = vmatprep.mubr.f32.mxu0 0.0
        %1532 = vmatmul.mubr.f32.gmra.mxu0 %v1465
        %v1533 = vpop.f32.mrf.mxu0
        %v1534 = vadd.f32 0.0, %v1533
        %v1535 = vpop.f32.mrf.mxu0
        %1536 = vdwg.mxu0
        %1537 = vrot.lane.b32.xlu0 %v1193, 120
        %v1538 = vpop.permute.xlu0 %1537
        %1539 = vrot.lane.b32.xlu0 %v1193, 88
        %v1540 = vpop.permute.xlu0 %1539
        %v1541 = vsel %vm1209, %v1538, 0
        %v1543 = vsel %vm1209, %v1540, 0
        %1545 = vmatprep.subr.mxu0 0.0
        %1546 = vmatpush1.xpose.msra.mxu0 0.0
        %1547 = vmatprep.subr.mxu0 0.0
        %1548 = vmatpush1.xpose.msra.mxu0 0.0
        %1549 = vmatprep.subr.mxu0 0.0
        %1550 = vmatpush1.xpose.msra.mxu0 0.0
        %1551 = vmatprep.subr.mxu0 0.0
        %1552 = vmatpush1.xpose.msra.mxu0 0.0
        %1553 = vmatprep.subr.mxu0 0.0
        %1554 = vmatpush1.xpose.msra.mxu0 0.0
        %1555 = vmatprep.subr.mxu0 0.0
        %1556 = vmatpush1.xpose.msra.mxu0 0.0
        %1557 = vmatprep.subr.mxu0 0.0
        %1558 = vmatpush1.xpose.msra.mxu0 0.0
        %1559 = vmatprep.subr.mxu0 0.0
        %1560 = vmatpush1.xpose.msra.mxu0 0.0
        %1561 = vmatprep.subr.mxu0 0.0
        %1562 = vmatpush1.xpose.msra.mxu0 0.0
        %1563 = vmatprep.subr.mxu0 0.0
        %1564 = vmatpush1.xpose.msra.mxu0 0.0
        %1565 = vmatprep.subr.mxu0 0.0
        %1566 = vmatpush1.xpose.msra.mxu0 0.0
        %1567 = vmatprep.subr.mxu0 0.0
        %1568 = vmatpush1.xpose.msra.mxu0 0.0
        %1569 = vmatprep.subr.mxu0 0.0
        %1570 = vmatpush1.xpose.msra.mxu0 0.0
        %1571 = vmatprep.subr.mxu0 0.0
        %1572 = vmatpush1.xpose.msra.mxu0 0.0
        %1573 = vmatprep.subr.mxu0 0.0
        %1574 = vmatpush1.xpose.msra.mxu0 0.0
        %1575 = vmatprep.subr.mxu0 0.0
        %1576 = vmatpush1.xpose.msra.mxu0 %v1543
        %1577 = vmatprep.subr.mxu0 0.0
        %1578 = vmatpush2.xpose.msra.mxu0 0.0
        %1579 = vmatprep.subr.mxu0 0.0
        %1580 = vmatpush2.xpose.msra.mxu0 0.0
        %1581 = vmatprep.subr.mxu0 0.0
        %1582 = vmatpush2.xpose.msra.mxu0 0.0
        %1583 = vmatprep.subr.mxu0 0.0
        %1584 = vmatpush2.xpose.msra.mxu0 0.0
        %1585 = vmatprep.subr.mxu0 0.0
        %1586 = vmatpush2.xpose.msra.mxu0 0.0
        %1587 = vmatprep.subr.mxu0 0.0
        %1588 = vmatpush2.xpose.msra.mxu0 0.0
        %1589 = vmatprep.subr.mxu0 0.0
        %1590 = vmatpush2.xpose.msra.mxu0 0.0
        %1591 = vmatprep.subr.mxu0 0.0
        %1592 = vmatpush2.xpose.msra.mxu0 0.0
        %1593 = vmatprep.subr.mxu0 0.0
        %1594 = vmatpush2.xpose.msra.mxu0 0.0
        %1595 = vmatprep.subr.mxu0 0.0
        %1596 = vmatpush2.xpose.msra.mxu0 0.0
        %1597 = vmatprep.subr.mxu0 0.0
        %1598 = vmatpush2.xpose.msra.mxu0 0.0
        %1599 = vmatprep.subr.mxu0 0.0
        %1600 = vmatpush2.xpose.msra.mxu0 0.0
        %1601 = vmatprep.subr.mxu0 0.0
        %1602 = vmatpush2.xpose.msra.mxu0 0.0
        %1603 = vmatprep.subr.mxu0 0.0
        %1604 = vmatpush2.xpose.msra.mxu0 0.0
        %1605 = vmatprep.subr.mxu0 0.0
        %1606 = vmatpush2.xpose.msra.mxu0 0.0
        %1607 = vmatprep.subr.mxu0 0.0
        %1608 = vmatpush2.xpose.msra.mxu0 0.0
        %1609 = vmatprep.mubr.f32.mxu0 0.0
        %1610 = vmatmul.mubr.f32.gmra.mxu0 %v1541
        %v1611 = vpop.f32.mrf.mxu0
        %v1612 = vadd.f32 0.0, %v1611
        %v1613 = vpop.f32.mrf.mxu0
        %1614 = vdwg.mxu0
        %1615 = vrot.lane.b32.xlu0 %v1198, 120
        %v1616 = vpop.permute.xlu0 %1615
        %1617 = vrot.lane.b32.xlu0 %v1198, 88
        %v1618 = vpop.permute.xlu0 %1617
        %v1619 = vsel %vm1209, %v1616, 0
        %v1621 = vsel %vm1209, %v1618, 0
        %1623 = vmatprep.subr.mxu0 0.0
        %1624 = vmatpush1.xpose.msra.mxu0 0.0
        %1625 = vmatprep.subr.mxu0 0.0
        %1626 = vmatpush1.xpose.msra.mxu0 0.0
        %1627 = vmatprep.subr.mxu0 0.0
        %1628 = vmatpush1.xpose.msra.mxu0 0.0
        %1629 = vmatprep.subr.mxu0 0.0
        %1630 = vmatpush1.xpose.msra.mxu0 0.0
        %1631 = vmatprep.subr.mxu0 0.0
        %1632 = vmatpush1.xpose.msra.mxu0 0.0
        %1633 = vmatprep.subr.mxu0 0.0
        %1634 = vmatpush1.xpose.msra.mxu0 0.0
        %1635 = vmatprep.subr.mxu0 0.0
        %1636 = vmatpush1.xpose.msra.mxu0 0.0
        %1637 = vmatprep.subr.mxu0 0.0
        %1638 = vmatpush1.xpose.msra.mxu0 0.0
        %1639 = vmatprep.subr.mxu0 0.0
        %1640 = vmatpush1.xpose.msra.mxu0 0.0
        %1641 = vmatprep.subr.mxu0 0.0
        %1642 = vmatpush1.xpose.msra.mxu0 0.0
        %1643 = vmatprep.subr.mxu0 0.0
        %1644 = vmatpush1.xpose.msra.mxu0 0.0
        %1645 = vmatprep.subr.mxu0 0.0
        %1646 = vmatpush1.xpose.msra.mxu0 0.0
        %1647 = vmatprep.subr.mxu0 0.0
        %1648 = vmatpush1.xpose.msra.mxu0 0.0
        %1649 = vmatprep.subr.mxu0 0.0
        %1650 = vmatpush1.xpose.msra.mxu0 0.0
        %1651 = vmatprep.subr.mxu0 0.0
        %1652 = vmatpush1.xpose.msra.mxu0 0.0
        %1653 = vmatprep.subr.mxu0 0.0
        %1654 = vmatpush1.xpose.msra.mxu0 %v1621
        %1655 = vmatprep.subr.mxu0 0.0
        %1656 = vmatpush2.xpose.msra.mxu0 0.0
        %1657 = vmatprep.subr.mxu0 0.0
        %1658 = vmatpush2.xpose.msra.mxu0 0.0
        %1659 = vmatprep.subr.mxu0 0.0
        %1660 = vmatpush2.xpose.msra.mxu0 0.0
        %1661 = vmatprep.subr.mxu0 0.0
        %1662 = vmatpush2.xpose.msra.mxu0 0.0
        %1663 = vmatprep.subr.mxu0 0.0
        %1664 = vmatpush2.xpose.msra.mxu0 0.0
        %1665 = vmatprep.subr.mxu0 0.0
        %1666 = vmatpush2.xpose.msra.mxu0 0.0
        %1667 = vmatprep.subr.mxu0 0.0
        %1668 = vmatpush2.xpose.msra.mxu0 0.0
        %1669 = vmatprep.subr.mxu0 0.0
        %1670 = vmatpush2.xpose.msra.mxu0 0.0
        %1671 = vmatprep.subr.mxu0 0.0
        %1672 = vmatpush2.xpose.msra.mxu0 0.0
        %1673 = vmatprep.subr.mxu0 0.0
        %1674 = vmatpush2.xpose.msra.mxu0 0.0
        %1675 = vmatprep.subr.mxu0 0.0
        %1676 = vmatpush2.xpose.msra.mxu0 0.0
        %1677 = vmatprep.subr.mxu0 0.0
        %1678 = vmatpush2.xpose.msra.mxu0 0.0
        %1679 = vmatprep.subr.mxu0 0.0
        %1680 = vmatpush2.xpose.msra.mxu0 0.0
        %1681 = vmatprep.subr.mxu0 0.0
        %1682 = vmatpush2.xpose.msra.mxu0 0.0
        %1683 = vmatprep.subr.mxu0 0.0
        %1684 = vmatpush2.xpose.msra.mxu0 0.0
        %1685 = vmatprep.subr.mxu0 0.0
        %1686 = vmatpush2.xpose.msra.mxu0 0.0
        %1687 = vmatprep.mubr.f32.mxu0 0.0
        %1688 = vmatmul.mubr.f32.gmra.mxu0 %v1619
        %v1689 = vpop.f32.mrf.mxu0
        %v1690 = vadd.f32 0.0, %v1689
        %v1691 = vpop.f32.mrf.mxu0
        %1692 = vdwg.mxu0
        %v1693 = vmul.f32 %v1612, 0.35355338
        %v1694 = vmul.f32 %v1690, 0.35355338
        %v1695 = vsel %vm1209, %v1693, -inf
        %1696 = vmax.xlane.f32.xlu0 %v1695
        %v1697 = vpop.xlane.xlu0 %1696
        %v1698 = vsel %vm1209, %v1694, -inf
        %1699 = vmax.xlane.f32.xlu0 %v1698
        %v1700 = vpop.xlane.xlu0 %1699
        %v1701 = vsub.f32 %v1693, %v1697
        %v1702 = vsub.f32 %v1694, %v1700
        %v1703 = vmul.f32 %v1701, 1.442695
        %v1704 = vpow.pop %v1703
        %v1705 = vmul.f32 %v1702, 1.442695
        %v1706 = vpow.pop %v1705
        %v1707 = vsel %vm1209, %v1704, 0.0
        %1708 = vadd.xlane.f32.xlu0 %v1707
        %v1709 = vpop.xlane.xlu0 %1708
        %v1710 = vsel %vm1209, %v1706, 0.0
        %1711 = vadd.xlane.f32.xlu0 %v1710
        %v1712 = vpop.xlane.xlu0 %1711
        %v1713 = vrcp.pop %v1709
        %v1714 = vrcp.pop %v1712
        %v1715 = vmul.f32 %v1704, %v1713
        %v1716 = vmul.f32 %v1706, %v1714
        %1717 = vrot.lane.b32.xlu0 %v1193, 56
        %v1718 = vpop.permute.xlu0 %1717
        %v1721 = vsel %vm1209, %v1715, 0
        %1723 = vmatprep.subr.mxu0 0.0
        %1724 = vmatpush1.msra.mxu0 0.0
        %1725 = vmatprep.subr.mxu0 0.0
        %1726 = vmatpush1.msra.mxu0 0.0
        %1727 = vmatprep.subr.mxu0 0.0
        %1728 = vmatpush1.msra.mxu0 0.0
        %1729 = vmatprep.subr.mxu0 0.0
        %1730 = vmatpush1.msra.mxu0 0.0
        %1731 = vmatprep.subr.mxu0 0.0
        %1732 = vmatpush1.msra.mxu0 0.0
        %1733 = vmatprep.subr.mxu0 0.0
        %1734 = vmatpush1.msra.mxu0 0.0
        %1735 = vmatprep.subr.mxu0 0.0
        %1736 = vmatpush1.msra.mxu0 0.0
        %1737 = vmatprep.subr.mxu0 0.0
        %1738 = vmatpush1.msra.mxu0 0.0
        %1739 = vmatprep.subr.mxu0 0.0
        %1740 = vmatpush1.msra.mxu0 0.0
        %1741 = vmatprep.subr.mxu0 0.0
        %1742 = vmatpush1.msra.mxu0 0.0
        %1743 = vmatprep.subr.mxu0 0.0
        %1744 = vmatpush1.msra.mxu0 0.0
        %1745 = vmatprep.subr.mxu0 0.0
        %1746 = vmatpush1.msra.mxu0 0.0
        %1747 = vmatprep.subr.mxu0 0.0
        %1748 = vmatpush1.msra.mxu0 0.0
        %1749 = vmatprep.subr.mxu0 0.0
        %1750 = vmatpush1.msra.mxu0 0.0
        %1751 = vmatprep.subr.mxu0 0.0
        %1752 = vmatpush1.msra.mxu0 0.0
        %1753 = vmatprep.subr.mxu0 0.0
        %1754 = vmatpush1.msra.mxu0 %v1718
        %1755 = vmatprep.subr.mxu0 0.0
        %1756 = vmatpush2.msra.mxu0 0.0
        %1757 = vmatprep.subr.mxu0 0.0
        %1758 = vmatpush2.msra.mxu0 0.0
        %1759 = vmatprep.subr.mxu0 0.0
        %1760 = vmatpush2.msra.mxu0 0.0
        %1761 = vmatprep.subr.mxu0 0.0
        %1762 = vmatpush2.msra.mxu0 0.0
        %1763 = vmatprep.subr.mxu0 0.0
        %1764 = vmatpush2.msra.mxu0 0.0
        %1765 = vmatprep.subr.mxu0 0.0
        %1766 = vmatpush2.msra.mxu0 0.0
        %1767 = vmatprep.subr.mxu0 0.0
        %1768 = vmatpush2.msra.mxu0 0.0
        %1769 = vmatprep.subr.mxu0 0.0
        %1770 = vmatpush2.msra.mxu0 0.0
        %1771 = vmatprep.subr.mxu0 0.0
        %1772 = vmatpush2.msra.mxu0 0.0
        %1773 = vmatprep.subr.mxu0 0.0
        %1774 = vmatpush2.msra.mxu0 0.0
        %1775 = vmatprep.subr.mxu0 0.0
        %1776 = vmatpush2.msra.mxu0 0.0
        %1777 = vmatprep.subr.mxu0 0.0
        %1778 = vmatpush2.msra.mxu0 0.0
        %1779 = vmatprep.subr.mxu0 0.0
        %1780 = vmatpush2.msra.mxu0 0.0
        %1781 = vmatprep.subr.mxu0 0.0
        %1782 = vmatpush2.msra.mxu0 0.0
        %1783 = vmatprep.subr.mxu0 0.0
        %1784 = vmatpush2.msra.mxu0 0.0
        %1785 = vmatprep.subr.mxu0 0.0
        %1786 = vmatpush2.msra.mxu0 0.0
        %1787 = vmatprep.mubr.f32.mxu0 0.0
        %1788 = vmatmul.mubr.f32.gmra.mxu0 %v1721
        %v1789 = vpop.f32.mrf.mxu0
        %v1790 = vadd.f32 0.0, %v1789
        %v1791 = vpop.f32.mrf.mxu0
        %1792 = vdwg.mxu0
        %1793 = vrot.lane.b32.xlu0 %v1198, 56
        %v1794 = vpop.permute.xlu0 %1793
        %v1797 = vsel %vm1209, %v1716, 0
        %1799 = vmatprep.subr.mxu0 0.0
        %1800 = vmatpush1.msra.mxu0 0.0
        %1801 = vmatprep.subr.mxu0 0.0
        %1802 = vmatpush1.msra.mxu0 0.0
        %1803 = vmatprep.subr.mxu0 0.0
        %1804 = vmatpush1.msra.mxu0 0.0
        %1805 = vmatprep.subr.mxu0 0.0
        %1806 = vmatpush1.msra.mxu0 0.0
        %1807 = vmatprep.subr.mxu0 0.0
        %1808 = vmatpush1.msra.mxu0 0.0
        %1809 = vmatprep.subr.mxu0 0.0
        %1810 = vmatpush1.msra.mxu0 0.0
        %1811 = vmatprep.subr.mxu0 0.0
        %1812 = vmatpush1.msra.mxu0 0.0
        %1813 = vmatprep.subr.mxu0 0.0
        %1814 = vmatpush1.msra.mxu0 0.0
        %1815 = vmatprep.subr.mxu0 0.0
        %1816 = vmatpush1.msra.mxu0 0.0
        %1817 = vmatprep.subr.mxu0 0.0
        %1818 = vmatpush1.msra.mxu0 0.0
        %1819 = vmatprep.subr.mxu0 0.0
        %1820 = vmatpush1.msra.mxu0 0.0
        %1821 = vmatprep.subr.mxu0 0.0
        %1822 = vmatpush1.msra.mxu0 0.0
        %1823 = vmatprep.subr.mxu0 0.0
        %1824 = vmatpush1.msra.mxu0 0.0
        %1825 = vmatprep.subr.mxu0 0.0
        %1826 = vmatpush1.msra.mxu0 0.0
        %1827 = vmatprep.subr.mxu0 0.0
        %1828 = vmatpush1.msra.mxu0 0.0
        %1829 = vmatprep.subr.mxu0 0.0
        %1830 = vmatpush1.msra.mxu0 %v1794
        %1831 = vmatprep.subr.mxu0 0.0
        %1832 = vmatpush2.msra.mxu0 0.0
        %1833 = vmatprep.subr.mxu0 0.0
        %1834 = vmatpush2.msra.mxu0 0.0
        %1835 = vmatprep.subr.mxu0 0.0
        %1836 = vmatpush2.msra.mxu0 0.0
        %1837 = vmatprep.subr.mxu0 0.0
        %1838 = vmatpush2.msra.mxu0 0.0
        %1839 = vmatprep.subr.mxu0 0.0
        %1840 = vmatpush2.msra.mxu0 0.0
        %1841 = vmatprep.subr.mxu0 0.0
        %1842 = vmatpush2.msra.mxu0 0.0
        %1843 = vmatprep.subr.mxu0 0.0
        %1844 = vmatpush2.msra.mxu0 0.0
        %1845 = vmatprep.subr.mxu0 0.0
        %1846 = vmatpush2.msra.mxu0 0.0
        %1847 = vmatprep.subr.mxu0 0.0
        %1848 = vmatpush2.msra.mxu0 0.0
        %1849 = vmatprep.subr.mxu0 0.0
        %1850 = vmatpush2.msra.mxu0 0.0
        %1851 = vmatprep.subr.mxu0 0.0
        %1852 = vmatpush2.msra.mxu0 0.0
        %1853 = vmatprep.subr.mxu0 0.0
        %1854 = vmatpush2.msra.mxu0 0.0
        %1855 = vmatprep.subr.mxu0 0.0
        %1856 = vmatpush2.msra.mxu0 0.0
        %1857 = vmatprep.subr.mxu0 0.0
        %1858 = vmatpush2.msra.mxu0 0.0
        %1859 = vmatprep.subr.mxu0 0.0
        %1860 = vmatpush2.msra.mxu0 0.0
        %1861 = vmatprep.subr.mxu0 0.0
        %1862 = vmatpush2.msra.mxu0 0.0
        %1863 = vmatprep.mubr.f32.mxu0 0.0
        %1864 = vmatmul.mubr.f32.gmra.mxu0 %v1797
        %v1865 = vpop.f32.mrf.mxu0
        %v1866 = vadd.f32 0.0, %v1865
        %v1867 = vpop.f32.mrf.mxu0
        %1868 = vdwg.mxu0
        %1869 = vrot.lane.b32.xlu0 %v1193, 112
        %v1870 = vpop.permute.xlu0 %1869
        %1871 = vrot.lane.b32.xlu0 %v1193, 80
        %v1872 = vpop.permute.xlu0 %1871
        %v1873 = vsel %vm1209, %v1870, 0
        %v1875 = vsel %vm1209, %v1872, 0
        %1877 = vmatprep.subr.mxu0 0.0
        %1878 = vmatpush1.xpose.msra.mxu0 0.0
        %1879 = vmatprep.subr.mxu0 0.0
        %1880 = vmatpush1.xpose.msra.mxu0 0.0
        %1881 = vmatprep.subr.mxu0 0.0
        %1882 = vmatpush1.xpose.msra.mxu0 0.0
        %1883 = vmatprep.subr.mxu0 0.0
        %1884 = vmatpush1.xpose.msra.mxu0 0.0
        %1885 = vmatprep.subr.mxu0 0.0
        %1886 = vmatpush1.xpose.msra.mxu0 0.0
        %1887 = vmatprep.subr.mxu0 0.0
        %1888 = vmatpush1.xpose.msra.mxu0 0.0
        %1889 = vmatprep.subr.mxu0 0.0
        %1890 = vmatpush1.xpose.msra.mxu0 0.0
        %1891 = vmatprep.subr.mxu0 0.0
        %1892 = vmatpush1.xpose.msra.mxu0 0.0
        %1893 = vmatprep.subr.mxu0 0.0
        %1894 = vmatpush1.xpose.msra.mxu0 0.0
        %1895 = vmatprep.subr.mxu0 0.0
        %1896 = vmatpush1.xpose.msra.mxu0 0.0
        %1897 = vmatprep.subr.mxu0 0.0
        %1898 = vmatpush1.xpose.msra.mxu0 0.0
        %1899 = vmatprep.subr.mxu0 0.0
        %1900 = vmatpush1.xpose.msra.mxu0 0.0
        %1901 = vmatprep.subr.mxu0 0.0
        %1902 = vmatpush1.xpose.msra.mxu0 0.0
        %1903 = vmatprep.subr.mxu0 0.0
        %1904 = vmatpush1.xpose.msra.mxu0 0.0
        %1905 = vmatprep.subr.mxu0 0.0
        %1906 = vmatpush1.xpose.msra.mxu0 0.0
        %1907 = vmatprep.subr.mxu0 0.0
        %1908 = vmatpush1.xpose.msra.mxu0 %v1875
        %1909 = vmatprep.subr.mxu0 0.0
        %1910 = vmatpush2.xpose.msra.mxu0 0.0
        %1911 = vmatprep.subr.mxu0 0.0
        %1912 = vmatpush2.xpose.msra.mxu0 0.0
        %1913 = vmatprep.subr.mxu0 0.0
        %1914 = vmatpush2.xpose.msra.mxu0 0.0
        %1915 = vmatprep.subr.mxu0 0.0
        %1916 = vmatpush2.xpose.msra.mxu0 0.0
        %1917 = vmatprep.subr.mxu0 0.0
        %1918 = vmatpush2.xpose.msra.mxu0 0.0
        %1919 = vmatprep.subr.mxu0 0.0
        %1920 = vmatpush2.xpose.msra.mxu0 0.0
        %1921 = vmatprep.subr.mxu0 0.0
        %1922 = vmatpush2.xpose.msra.mxu0 0.0
        %1923 = vmatprep.subr.mxu0 0.0
        %1924 = vmatpush2.xpose.msra.mxu0 0.0
        %1925 = vmatprep.subr.mxu0 0.0
        %1926 = vmatpush2.xpose.msra.mxu0 0.0
        %1927 = vmatprep.subr.mxu0 0.0
        %1928 = vmatpush2.xpose.msra.mxu0 0.0
        %1929 = vmatprep.subr.mxu0 0.0
        %1930 = vmatpush2.xpose.msra.mxu0 0.0
        %1931 = vmatprep.subr.mxu0 0.0
        %1932 = vmatpush2.xpose.msra.mxu0 0.0
        %1933 = vmatprep.subr.mxu0 0.0
        %1934 = vmatpush2.xpose.msra.mxu0 0.0
        %1935 = vmatprep.subr.mxu0 0.0
        %1936 = vmatpush2.xpose.msra.mxu0 0.0
        %1937 = vmatprep.subr.mxu0 0.0
        %1938 = vmatpush2.xpose.msra.mxu0 0.0
        %1939 = vmatprep.subr.mxu0 0.0
        %1940 = vmatpush2.xpose.msra.mxu0 0.0
        %1941 = vmatprep.mubr.f32.mxu0 0.0
        %1942 = vmatmul.mubr.f32.gmra.mxu0 %v1873
        %v1943 = vpop.f32.mrf.mxu0
        %v1944 = vadd.f32 0.0, %v1943
        %v1945 = vpop.f32.mrf.mxu0
        %1946 = vdwg.mxu0
        %1947 = vrot.lane.b32.xlu0 %v1198, 112
        %v1948 = vpop.permute.xlu0 %1947
        %1949 = vrot.lane.b32.xlu0 %v1198, 80
        %v1950 = vpop.permute.xlu0 %1949
        %v1951 = vsel %vm1209, %v1948, 0
        %v1953 = vsel %vm1209, %v1950, 0
        %1955 = vmatprep.subr.mxu0 0.0
        %1956 = vmatpush1.xpose.msra.mxu0 0.0
        %1957 = vmatprep.subr.mxu0 0.0
        %1958 = vmatpush1.xpose.msra.mxu0 0.0
        %1959 = vmatprep.subr.mxu0 0.0
        %1960 = vmatpush1.xpose.msra.mxu0 0.0
        %1961 = vmatprep.subr.mxu0 0.0
        %1962 = vmatpush1.xpose.msra.mxu0 0.0
        %1963 = vmatprep.subr.mxu0 0.0
        %1964 = vmatpush1.xpose.msra.mxu0 0.0
        %1965 = vmatprep.subr.mxu0 0.0
        %1966 = vmatpush1.xpose.msra.mxu0 0.0
        %1967 = vmatprep.subr.mxu0 0.0
        %1968 = vmatpush1.xpose.msra.mxu0 0.0
        %1969 = vmatprep.subr.mxu0 0.0
        %1970 = vmatpush1.xpose.msra.mxu0 0.0
        %1971 = vmatprep.subr.mxu0 0.0
        %1972 = vmatpush1.xpose.msra.mxu0 0.0
        %1973 = vmatprep.subr.mxu0 0.0
        %1974 = vmatpush1.xpose.msra.mxu0 0.0
        %1975 = vmatprep.subr.mxu0 0.0
        %1976 = vmatpush1.xpose.msra.mxu0 0.0
        %1977 = vmatprep.subr.mxu0 0.0
        %1978 = vmatpush1.xpose.msra.mxu0 0.0
        %1979 = vmatprep.subr.mxu0 0.0
        %1980 = vmatpush1.xpose.msra.mxu0 0.0
        %1981 = vmatprep.subr.mxu0 0.0
        %1982 = vmatpush1.xpose.msra.mxu0 0.0
        %1983 = vmatprep.subr.mxu0 0.0
        %1984 = vmatpush1.xpose.msra.mxu0 0.0
        %1985 = vmatprep.subr.mxu0 0.0
        %1986 = vmatpush1.xpose.msra.mxu0 %v1953
        %1987 = vmatprep.subr.mxu0 0.0
        %1988 = vmatpush2.xpose.msra.mxu0 0.0
        %1989 = vmatprep.subr.mxu0 0.0
        %1990 = vmatpush2.xpose.msra.mxu0 0.0
        %1991 = vmatprep.subr.mxu0 0.0
        %1992 = vmatpush2.xpose.msra.mxu0 0.0
        %1993 = vmatprep.subr.mxu0 0.0
        %1994 = vmatpush2.xpose.msra.mxu0 0.0
        %1995 = vmatprep.subr.mxu0 0.0
        %1996 = vmatpush2.xpose.msra.mxu0 0.0
        %1997 = vmatprep.subr.mxu0 0.0
        %1998 = vmatpush2.xpose.msra.mxu0 0.0
        %1999 = vmatprep.subr.mxu0 0.0
        %2000 = vmatpush2.xpose.msra.mxu0 0.0
        %2001 = vmatprep.subr.mxu0 0.0
        %2002 = vmatpush2.xpose.msra.mxu0 0.0
        %2003 = vmatprep.subr.mxu0 0.0
        %2004 = vmatpush2.xpose.msra.mxu0 0.0
        %2005 = vmatprep.subr.mxu0 0.0
        %2006 = vmatpush2.xpose.msra.mxu0 0.0
        %2007 = vmatprep.subr.mxu0 0.0
        %2008 = vmatpush2.xpose.msra.mxu0 0.0
        %2009 = vmatprep.subr.mxu0 0.0
        %2010 = vmatpush2.xpose.msra.mxu0 0.0
        %2011 = vmatprep.subr.mxu0 0.0
        %2012 = vmatpush2.xpose.msra.mxu0 0.0
        %2013 = vmatprep.subr.mxu0 0.0
        %2014 = vmatpush2.xpose.msra.mxu0 0.0
        %2015 = vmatprep.subr.mxu0 0.0
        %2016 = vmatpush2.xpose.msra.mxu0 0.0
        %2017 = vmatprep.subr.mxu0 0.0
        %2018 = vmatpush2.xpose.msra.mxu0 0.0
        %2019 = vmatprep.mubr.f32.mxu0 0.0
        %2020 = vmatmul.mubr.f32.gmra.mxu0 %v1951
        %v2021 = vpop.f32.mrf.mxu0
        %v2022 = vadd.f32 0.0, %v2021
        %v2023 = vpop.f32.mrf.mxu0
        %2024 = vdwg.mxu0
        %v2025 = vmul.f32 %v1944, 0.35355338
        %v2026 = vmul.f32 %v2022, 0.35355338
        %v2027 = vsel %vm1209, %v2025, -inf
        %2028 = vmax.xlane.f32.xlu0 %v2027
        %v2029 = vpop.xlane.xlu0 %2028
        %v2030 = vsel %vm1209, %v2026, -inf
        %2031 = vmax.xlane.f32.xlu0 %v2030
        %v2032 = vpop.xlane.xlu0 %2031
        %v2033 = vsub.f32 %v2025, %v2029
        %v2034 = vsub.f32 %v2026, %v2032
        %v2035 = vmul.f32 %v2033, 1.442695
        %v2036 = vpow.pop %v2035
        %v2037 = vmul.f32 %v2034, 1.442695
        %v2038 = vpow.pop %v2037
        %v2039 = vsel %vm1209, %v2036, 0.0
        %2040 = vadd.xlane.f32.xlu0 %v2039
        %v2041 = vpop.xlane.xlu0 %2040
        %v2042 = vsel %vm1209, %v2038, 0.0
        %2043 = vadd.xlane.f32.xlu0 %v2042
        %v2044 = vpop.xlane.xlu0 %2043
        %v2045 = vrcp.pop %v2041
        %v2046 = vrcp.pop %v2044
        %v2047 = vmul.f32 %v2036, %v2045
        %v2048 = vmul.f32 %v2038, %v2046
        %2049 = vrot.lane.b32.xlu0 %v1193, 48
        %v2050 = vpop.permute.xlu0 %2049
        %v2053 = vsel %vm1209, %v2047, 0
        %2055 = vmatprep.subr.mxu0 0.0
        %2056 = vmatpush1.msra.mxu0 0.0
        %2057 = vmatprep.subr.mxu0 0.0
        %2058 = vmatpush1.msra.mxu0 0.0
        %2059 = vmatprep.subr.mxu0 0.0
        %2060 = vmatpush1.msra.mxu0 0.0
        %2061 = vmatprep.subr.mxu0 0.0
        %2062 = vmatpush1.msra.mxu0 0.0
        %2063 = vmatprep.subr.mxu0 0.0
        %2064 = vmatpush1.msra.mxu0 0.0
        %2065 = vmatprep.subr.mxu0 0.0
        %2066 = vmatpush1.msra.mxu0 0.0
        %2067 = vmatprep.subr.mxu0 0.0
        %2068 = vmatpush1.msra.mxu0 0.0
        %2069 = vmatprep.subr.mxu0 0.0
        %2070 = vmatpush1.msra.mxu0 0.0
        %2071 = vmatprep.subr.mxu0 0.0
        %2072 = vmatpush1.msra.mxu0 0.0
        %2073 = vmatprep.subr.mxu0 0.0
        %2074 = vmatpush1.msra.mxu0 0.0
        %2075 = vmatprep.subr.mxu0 0.0
        %2076 = vmatpush1.msra.mxu0 0.0
        %2077 = vmatprep.subr.mxu0 0.0
        %2078 = vmatpush1.msra.mxu0 0.0
        %2079 = vmatprep.subr.mxu0 0.0
        %2080 = vmatpush1.msra.mxu0 0.0
        %2081 = vmatprep.subr.mxu0 0.0
        %2082 = vmatpush1.msra.mxu0 0.0
        %2083 = vmatprep.subr.mxu0 0.0
        %2084 = vmatpush1.msra.mxu0 0.0
        %2085 = vmatprep.subr.mxu0 0.0
        %2086 = vmatpush1.msra.mxu0 %v2050
        %2087 = vmatprep.subr.mxu0 0.0
        %2088 = vmatpush2.msra.mxu0 0.0
        %2089 = vmatprep.subr.mxu0 0.0
        %2090 = vmatpush2.msra.mxu0 0.0
        %2091 = vmatprep.subr.mxu0 0.0
        %2092 = vmatpush2.msra.mxu0 0.0
        %2093 = vmatprep.subr.mxu0 0.0
        %2094 = vmatpush2.msra.mxu0 0.0
        %2095 = vmatprep.subr.mxu0 0.0
        %2096 = vmatpush2.msra.mxu0 0.0
        %2097 = vmatprep.subr.mxu0 0.0
        %2098 = vmatpush2.msra.mxu0 0.0
        %2099 = vmatprep.subr.mxu0 0.0
        %2100 = vmatpush2.msra.mxu0 0.0
        %2101 = vmatprep.subr.mxu0 0.0
        %2102 = vmatpush2.msra.mxu0 0.0
        %2103 = vmatprep.subr.mxu0 0.0
        %2104 = vmatpush2.msra.mxu0 0.0
        %2105 = vmatprep.subr.mxu0 0.0
        %2106 = vmatpush2.msra.mxu0 0.0
        %2107 = vmatprep.subr.mxu0 0.0
        %2108 = vmatpush2.msra.mxu0 0.0
        %2109 = vmatprep.subr.mxu0 0.0
        %2110 = vmatpush2.msra.mxu0 0.0
        %2111 = vmatprep.subr.mxu0 0.0
        %2112 = vmatpush2.msra.mxu0 0.0
        %2113 = vmatprep.subr.mxu0 0.0
        %2114 = vmatpush2.msra.mxu0 0.0
        %2115 = vmatprep.subr.mxu0 0.0
        %2116 = vmatpush2.msra.mxu0 0.0
        %2117 = vmatprep.subr.mxu0 0.0
        %2118 = vmatpush2.msra.mxu0 0.0
        %2119 = vmatprep.mubr.f32.mxu0 0.0
        %2120 = vmatmul.mubr.f32.gmra.mxu0 %v2053
        %v2121 = vpop.f32.mrf.mxu0
        %v2122 = vadd.f32 0.0, %v2121
        %v2123 = vpop.f32.mrf.mxu0
        %2124 = vdwg.mxu0
        %2125 = vrot.lane.b32.xlu0 %v1198, 48
        %v2126 = vpop.permute.xlu0 %2125
        %v2129 = vsel %vm1209, %v2048, 0
        %2131 = vmatprep.subr.mxu0 0.0
        %2132 = vmatpush1.msra.mxu0 0.0
        %2133 = vmatprep.subr.mxu0 0.0
        %2134 = vmatpush1.msra.mxu0 0.0
        %2135 = vmatprep.subr.mxu0 0.0
        %2136 = vmatpush1.msra.mxu0 0.0
        %2137 = vmatprep.subr.mxu0 0.0
        %2138 = vmatpush1.msra.mxu0 0.0
        %2139 = vmatprep.subr.mxu0 0.0
        %2140 = vmatpush1.msra.mxu0 0.0
        %2141 = vmatprep.subr.mxu0 0.0
        %2142 = vmatpush1.msra.mxu0 0.0
        %2143 = vmatprep.subr.mxu0 0.0
        %2144 = vmatpush1.msra.mxu0 0.0
        %2145 = vmatprep.subr.mxu0 0.0
        %2146 = vmatpush1.msra.mxu0 0.0
        %2147 = vmatprep.subr.mxu0 0.0
        %2148 = vmatpush1.msra.mxu0 0.0
        %2149 = vmatprep.subr.mxu0 0.0
        %2150 = vmatpush1.msra.mxu0 0.0
        %2151 = vmatprep.subr.mxu0 0.0
        %2152 = vmatpush1.msra.mxu0 0.0
        %2153 = vmatprep.subr.mxu0 0.0
        %2154 = vmatpush1.msra.mxu0 0.0
        %2155 = vmatprep.subr.mxu0 0.0
        %2156 = vmatpush1.msra.mxu0 0.0
        %2157 = vmatprep.subr.mxu0 0.0
        %2158 = vmatpush1.msra.mxu0 0.0
        %2159 = vmatprep.subr.mxu0 0.0
        %2160 = vmatpush1.msra.mxu0 0.0
        %2161 = vmatprep.subr.mxu0 0.0
        %2162 = vmatpush1.msra.mxu0 %v2126
        %2163 = vmatprep.subr.mxu0 0.0
        %2164 = vmatpush2.msra.mxu0 0.0
        %2165 = vmatprep.subr.mxu0 0.0
        %2166 = vmatpush2.msra.mxu0 0.0
        %2167 = vmatprep.subr.mxu0 0.0
        %2168 = vmatpush2.msra.mxu0 0.0
        %2169 = vmatprep.subr.mxu0 0.0
        %2170 = vmatpush2.msra.mxu0 0.0
        %2171 = vmatprep.subr.mxu0 0.0
        %2172 = vmatpush2.msra.mxu0 0.0
        %2173 = vmatprep.subr.mxu0 0.0
        %2174 = vmatpush2.msra.mxu0 0.0
        %2175 = vmatprep.subr.mxu0 0.0
        %2176 = vmatpush2.msra.mxu0 0.0
        %2177 = vmatprep.subr.mxu0 0.0
        %2178 = vmatpush2.msra.mxu0 0.0
        %2179 = vmatprep.subr.mxu0 0.0
        %2180 = vmatpush2.msra.mxu0 0.0
        %2181 = vmatprep.subr.mxu0 0.0
        %2182 = vmatpush2.msra.mxu0 0.0
        %2183 = vmatprep.subr.mxu0 0.0
        %2184 = vmatpush2.msra.mxu0 0.0
        %2185 = vmatprep.subr.mxu0 0.0
        %2186 = vmatpush2.msra.mxu0 0.0
        %2187 = vmatprep.subr.mxu0 0.0
        %2188 = vmatpush2.msra.mxu0 0.0
        %2189 = vmatprep.subr.mxu0 0.0
        %2190 = vmatpush2.msra.mxu0 0.0
        %2191 = vmatprep.subr.mxu0 0.0
        %2192 = vmatpush2.msra.mxu0 0.0
        %2193 = vmatprep.subr.mxu0 0.0
        %2194 = vmatpush2.msra.mxu0 0.0
        %2195 = vmatprep.mubr.f32.mxu0 0.0
        %2196 = vmatmul.mubr.f32.gmra.mxu0 %v2129
        %v2197 = vpop.f32.mrf.mxu0
        %v2198 = vadd.f32 0.0, %v2197
        %v2199 = vpop.f32.mrf.mxu0
        %2200 = vdwg.mxu0
        %2201 = vrot.lane.b32.xlu0 %v1193, 104
        %v2202 = vpop.permute.xlu0 %2201
        %2203 = vrot.lane.b32.xlu0 %v1193, 72
        %v2204 = vpop.permute.xlu0 %2203
        %v2205 = vsel %vm1209, %v2202, 0
        %v2207 = vsel %vm1209, %v2204, 0
        %2209 = vmatprep.subr.mxu0 0.0
        %2210 = vmatpush1.xpose.msra.mxu0 0.0
        %2211 = vmatprep.subr.mxu0 0.0
        %2212 = vmatpush1.xpose.msra.mxu0 0.0
        %2213 = vmatprep.subr.mxu0 0.0
        %2214 = vmatpush1.xpose.msra.mxu0 0.0
        %2215 = vmatprep.subr.mxu0 0.0
        %2216 = vmatpush1.xpose.msra.mxu0 0.0
        %2217 = vmatprep.subr.mxu0 0.0
        %2218 = vmatpush1.xpose.msra.mxu0 0.0
        %2219 = vmatprep.subr.mxu0 0.0
        %2220 = vmatpush1.xpose.msra.mxu0 0.0
        %2221 = vmatprep.subr.mxu0 0.0
        %2222 = vmatpush1.xpose.msra.mxu0 0.0
        %2223 = vmatprep.subr.mxu0 0.0
        %2224 = vmatpush1.xpose.msra.mxu0 0.0
        %2225 = vmatprep.subr.mxu0 0.0
        %2226 = vmatpush1.xpose.msra.mxu0 0.0
        %2227 = vmatprep.subr.mxu0 0.0
        %2228 = vmatpush1.xpose.msra.mxu0 0.0
        %2229 = vmatprep.subr.mxu0 0.0
        %2230 = vmatpush1.xpose.msra.mxu0 0.0
        %2231 = vmatprep.subr.mxu0 0.0
        %2232 = vmatpush1.xpose.msra.mxu0 0.0
        %2233 = vmatprep.subr.mxu0 0.0
        %2234 = vmatpush1.xpose.msra.mxu0 0.0
        %2235 = vmatprep.subr.mxu0 0.0
        %2236 = vmatpush1.xpose.msra.mxu0 0.0
        %2237 = vmatprep.subr.mxu0 0.0
        %2238 = vmatpush1.xpose.msra.mxu0 0.0
        %2239 = vmatprep.subr.mxu0 0.0
        %2240 = vmatpush1.xpose.msra.mxu0 %v2207
        %2241 = vmatprep.subr.mxu0 0.0
        %2242 = vmatpush2.xpose.msra.mxu0 0.0
        %2243 = vmatprep.subr.mxu0 0.0
        %2244 = vmatpush2.xpose.msra.mxu0 0.0
        %2245 = vmatprep.subr.mxu0 0.0
        %2246 = vmatpush2.xpose.msra.mxu0 0.0
        %2247 = vmatprep.subr.mxu0 0.0
        %2248 = vmatpush2.xpose.msra.mxu0 0.0
        %2249 = vmatprep.subr.mxu0 0.0
        %2250 = vmatpush2.xpose.msra.mxu0 0.0
        %2251 = vmatprep.subr.mxu0 0.0
        %2252 = vmatpush2.xpose.msra.mxu0 0.0
        %2253 = vmatprep.subr.mxu0 0.0
        %2254 = vmatpush2.xpose.msra.mxu0 0.0
        %2255 = vmatprep.subr.mxu0 0.0
        %2256 = vmatpush2.xpose.msra.mxu0 0.0
        %2257 = vmatprep.subr.mxu0 0.0
        %2258 = vmatpush2.xpose.msra.mxu0 0.0
        %2259 = vmatprep.subr.mxu0 0.0
        %2260 = vmatpush2.xpose.msra.mxu0 0.0
        %2261 = vmatprep.subr.mxu0 0.0
        %2262 = vmatpush2.xpose.msra.mxu0 0.0
        %2263 = vmatprep.subr.mxu0 0.0
        %2264 = vmatpush2.xpose.msra.mxu0 0.0
        %2265 = vmatprep.subr.mxu0 0.0
        %2266 = vmatpush2.xpose.msra.mxu0 0.0
        %2267 = vmatprep.subr.mxu0 0.0
        %2268 = vmatpush2.xpose.msra.mxu0 0.0
        %2269 = vmatprep.subr.mxu0 0.0
        %2270 = vmatpush2.xpose.msra.mxu0 0.0
        %2271 = vmatprep.subr.mxu0 0.0
        %2272 = vmatpush2.xpose.msra.mxu0 0.0
        %2273 = vmatprep.mubr.f32.mxu0 0.0
        %2274 = vmatmul.mubr.f32.gmra.mxu0 %v2205
        %v2275 = vpop.f32.mrf.mxu0
        %v2276 = vadd.f32 0.0, %v2275
        %v2277 = vpop.f32.mrf.mxu0
        %2278 = vdwg.mxu0
        %2279 = vrot.lane.b32.xlu0 %v1198, 104
        %v2280 = vpop.permute.xlu0 %2279
        %2281 = vrot.lane.b32.xlu0 %v1198, 72
        %v2282 = vpop.permute.xlu0 %2281
        %v2283 = vsel %vm1209, %v2280, 0
        %v2285 = vsel %vm1209, %v2282, 0
        %2287 = vmatprep.subr.mxu0 0.0
        %2288 = vmatpush1.xpose.msra.mxu0 0.0
        %2289 = vmatprep.subr.mxu0 0.0
        %2290 = vmatpush1.xpose.msra.mxu0 0.0
        %2291 = vmatprep.subr.mxu0 0.0
        %2292 = vmatpush1.xpose.msra.mxu0 0.0
        %2293 = vmatprep.subr.mxu0 0.0
        %2294 = vmatpush1.xpose.msra.mxu0 0.0
        %2295 = vmatprep.subr.mxu0 0.0
        %2296 = vmatpush1.xpose.msra.mxu0 0.0
        %2297 = vmatprep.subr.mxu0 0.0
        %2298 = vmatpush1.xpose.msra.mxu0 0.0
        %2299 = vmatprep.subr.mxu0 0.0
        %2300 = vmatpush1.xpose.msra.mxu0 0.0
        %2301 = vmatprep.subr.mxu0 0.0
        %2302 = vmatpush1.xpose.msra.mxu0 0.0
        %2303 = vmatprep.subr.mxu0 0.0
        %2304 = vmatpush1.xpose.msra.mxu0 0.0
        %2305 = vmatprep.subr.mxu0 0.0
        %2306 = vmatpush1.xpose.msra.mxu0 0.0
        %2307 = vmatprep.subr.mxu0 0.0
        %2308 = vmatpush1.xpose.msra.mxu0 0.0
        %2309 = vmatprep.subr.mxu0 0.0
        %2310 = vmatpush1.xpose.msra.mxu0 0.0
        %2311 = vmatprep.subr.mxu0 0.0
        %2312 = vmatpush1.xpose.msra.mxu0 0.0
        %2313 = vmatprep.subr.mxu0 0.0
        %2314 = vmatpush1.xpose.msra.mxu0 0.0
        %2315 = vmatprep.subr.mxu0 0.0
        %2316 = vmatpush1.xpose.msra.mxu0 0.0
        %2317 = vmatprep.subr.mxu0 0.0
        %2318 = vmatpush1.xpose.msra.mxu0 %v2285
        %2319 = vmatprep.subr.mxu0 0.0
        %2320 = vmatpush2.xpose.msra.mxu0 0.0
        %2321 = vmatprep.subr.mxu0 0.0
        %2322 = vmatpush2.xpose.msra.mxu0 0.0
        %2323 = vmatprep.subr.mxu0 0.0
        %2324 = vmatpush2.xpose.msra.mxu0 0.0
        %2325 = vmatprep.subr.mxu0 0.0
        %2326 = vmatpush2.xpose.msra.mxu0 0.0
        %2327 = vmatprep.subr.mxu0 0.0
        %2328 = vmatpush2.xpose.msra.mxu0 0.0
        %2329 = vmatprep.subr.mxu0 0.0
        %2330 = vmatpush2.xpose.msra.mxu0 0.0
        %2331 = vmatprep.subr.mxu0 0.0
        %2332 = vmatpush2.xpose.msra.mxu0 0.0
        %2333 = vmatprep.subr.mxu0 0.0
        %2334 = vmatpush2.xpose.msra.mxu0 0.0
        %2335 = vmatprep.subr.mxu0 0.0
        %2336 = vmatpush2.xpose.msra.mxu0 0.0
        %2337 = vmatprep.subr.mxu0 0.0
        %2338 = vmatpush2.xpose.msra.mxu0 0.0
        %2339 = vmatprep.subr.mxu0 0.0
        %2340 = vmatpush2.xpose.msra.mxu0 0.0
        %2341 = vmatprep.subr.mxu0 0.0
        %2342 = vmatpush2.xpose.msra.mxu0 0.0
        %2343 = vmatprep.subr.mxu0 0.0
        %2344 = vmatpush2.xpose.msra.mxu0 0.0
        %2345 = vmatprep.subr.mxu0 0.0
        %2346 = vmatpush2.xpose.msra.mxu0 0.0
        %2347 = vmatprep.subr.mxu0 0.0
        %2348 = vmatpush2.xpose.msra.mxu0 0.0
        %2349 = vmatprep.subr.mxu0 0.0
        %2350 = vmatpush2.xpose.msra.mxu0 0.0
        %2351 = vmatprep.mubr.f32.mxu0 0.0
        %2352 = vmatmul.mubr.f32.gmra.mxu0 %v2283
        %v2353 = vpop.f32.mrf.mxu0
        %v2354 = vadd.f32 0.0, %v2353
        %v2355 = vpop.f32.mrf.mxu0
        %2356 = vdwg.mxu0
        %v2357 = vmul.f32 %v2276, 0.35355338
        %v2358 = vmul.f32 %v2354, 0.35355338
        %v2359 = vsel %vm1209, %v2357, -inf
        %2360 = vmax.xlane.f32.xlu0 %v2359
        %v2361 = vpop.xlane.xlu0 %2360
        %v2362 = vsel %vm1209, %v2358, -inf
        %2363 = vmax.xlane.f32.xlu0 %v2362
        %v2364 = vpop.xlane.xlu0 %2363
        %v2365 = vsub.f32 %v2357, %v2361
        %v2366 = vsub.f32 %v2358, %v2364
        %v2367 = vmul.f32 %v2365, 1.442695
        %v2368 = vpow.pop %v2367
        %v2369 = vmul.f32 %v2366, 1.442695
        %v2370 = vpow.pop %v2369
        %v2371 = vsel %vm1209, %v2368, 0.0
        %2372 = vadd.xlane.f32.xlu0 %v2371
        %v2373 = vpop.xlane.xlu0 %2372
        %v2374 = vsel %vm1209, %v2370, 0.0
        %2375 = vadd.xlane.f32.xlu0 %v2374
        %v2376 = vpop.xlane.xlu0 %2375
        %v2377 = vrcp.pop %v2373
        %v2378 = vrcp.pop %v2376
        %v2379 = vmul.f32 %v2368, %v2377
        %v2380 = vmul.f32 %v2370, %v2378
        %2381 = vrot.lane.b32.xlu0 %v1193, 40
        %v2382 = vpop.permute.xlu0 %2381
        %v2385 = vsel %vm1209, %v2379, 0
        %2387 = vmatprep.subr.mxu0 0.0
        %2388 = vmatpush1.msra.mxu0 0.0
        %2389 = vmatprep.subr.mxu0 0.0
        %2390 = vmatpush1.msra.mxu0 0.0
        %2391 = vmatprep.subr.mxu0 0.0
        %2392 = vmatpush1.msra.mxu0 0.0
        %2393 = vmatprep.subr.mxu0 0.0
        %2394 = vmatpush1.msra.mxu0 0.0
        %2395 = vmatprep.subr.mxu0 0.0
        %2396 = vmatpush1.msra.mxu0 0.0
        %2397 = vmatprep.subr.mxu0 0.0
        %2398 = vmatpush1.msra.mxu0 0.0
        %2399 = vmatprep.subr.mxu0 0.0
        %2400 = vmatpush1.msra.mxu0 0.0
        %2401 = vmatprep.subr.mxu0 0.0
        %2402 = vmatpush1.msra.mxu0 0.0
        %2403 = vmatprep.subr.mxu0 0.0
        %2404 = vmatpush1.msra.mxu0 0.0
        %2405 = vmatprep.subr.mxu0 0.0
        %2406 = vmatpush1.msra.mxu0 0.0
        %2407 = vmatprep.subr.mxu0 0.0
        %2408 = vmatpush1.msra.mxu0 0.0
        %2409 = vmatprep.subr.mxu0 0.0
        %2410 = vmatpush1.msra.mxu0 0.0
        %2411 = vmatprep.subr.mxu0 0.0
        %2412 = vmatpush1.msra.mxu0 0.0
        %2413 = vmatprep.subr.mxu0 0.0
        %2414 = vmatpush1.msra.mxu0 0.0
        %2415 = vmatprep.subr.mxu0 0.0
        %2416 = vmatpush1.msra.mxu0 0.0
        %2417 = vmatprep.subr.mxu0 0.0
        %2418 = vmatpush1.msra.mxu0 %v2382
        %2419 = vmatprep.subr.mxu0 0.0
        %2420 = vmatpush2.msra.mxu0 0.0
        %2421 = vmatprep.subr.mxu0 0.0
        %2422 = vmatpush2.msra.mxu0 0.0
        %2423 = vmatprep.subr.mxu0 0.0
        %2424 = vmatpush2.msra.mxu0 0.0
        %2425 = vmatprep.subr.mxu0 0.0
        %2426 = vmatpush2.msra.mxu0 0.0
        %2427 = vmatprep.subr.mxu0 0.0
        %2428 = vmatpush2.msra.mxu0 0.0
        %2429 = vmatprep.subr.mxu0 0.0
        %2430 = vmatpush2.msra.mxu0 0.0
        %2431 = vmatprep.subr.mxu0 0.0
        %2432 = vmatpush2.msra.mxu0 0.0
        %2433 = vmatprep.subr.mxu0 0.0
        %2434 = vmatpush2.msra.mxu0 0.0
        %2435 = vmatprep.subr.mxu0 0.0
        %2436 = vmatpush2.msra.mxu0 0.0
        %2437 = vmatprep.subr.mxu0 0.0
        %2438 = vmatpush2.msra.mxu0 0.0
        %2439 = vmatprep.subr.mxu0 0.0
        %2440 = vmatpush2.msra.mxu0 0.0
        %2441 = vmatprep.subr.mxu0 0.0
        %2442 = vmatpush2.msra.mxu0 0.0
        %2443 = vmatprep.subr.mxu0 0.0
        %2444 = vmatpush2.msra.mxu0 0.0
        %2445 = vmatprep.subr.mxu0 0.0
        %2446 = vmatpush2.msra.mxu0 0.0
        %2447 = vmatprep.subr.mxu0 0.0
        %2448 = vmatpush2.msra.mxu0 0.0
        %2449 = vmatprep.subr.mxu0 0.0
        %2450 = vmatpush2.msra.mxu0 0.0
        %2451 = vmatprep.mubr.f32.mxu0 0.0
        %2452 = vmatmul.mubr.f32.gmra.mxu0 %v2385
        %v2453 = vpop.f32.mrf.mxu0
        %v2454 = vadd.f32 0.0, %v2453
        %v2455 = vpop.f32.mrf.mxu0
        %2456 = vdwg.mxu0
        %2457 = vrot.lane.b32.xlu0 %v1198, 40
        %v2458 = vpop.permute.xlu0 %2457
        %v2461 = vsel %vm1209, %v2380, 0
        %2463 = vmatprep.subr.mxu0 0.0
        %2464 = vmatpush1.msra.mxu0 0.0
        %2465 = vmatprep.subr.mxu0 0.0
        %2466 = vmatpush1.msra.mxu0 0.0
        %2467 = vmatprep.subr.mxu0 0.0
        %2468 = vmatpush1.msra.mxu0 0.0
        %2469 = vmatprep.subr.mxu0 0.0
        %2470 = vmatpush1.msra.mxu0 0.0
        %2471 = vmatprep.subr.mxu0 0.0
        %2472 = vmatpush1.msra.mxu0 0.0
        %2473 = vmatprep.subr.mxu0 0.0
        %2474 = vmatpush1.msra.mxu0 0.0
        %2475 = vmatprep.subr.mxu0 0.0
        %2476 = vmatpush1.msra.mxu0 0.0
        %2477 = vmatprep.subr.mxu0 0.0
        %2478 = vmatpush1.msra.mxu0 0.0
        %2479 = vmatprep.subr.mxu0 0.0
        %2480 = vmatpush1.msra.mxu0 0.0
        %2481 = vmatprep.subr.mxu0 0.0
        %2482 = vmatpush1.msra.mxu0 0.0
        %2483 = vmatprep.subr.mxu0 0.0
        %2484 = vmatpush1.msra.mxu0 0.0
        %2485 = vmatprep.subr.mxu0 0.0
        %2486 = vmatpush1.msra.mxu0 0.0
        %2487 = vmatprep.subr.mxu0 0.0
        %2488 = vmatpush1.msra.mxu0 0.0
        %2489 = vmatprep.subr.mxu0 0.0
        %2490 = vmatpush1.msra.mxu0 0.0
        %2491 = vmatprep.subr.mxu0 0.0
        %2492 = vmatpush1.msra.mxu0 0.0
        %2493 = vmatprep.subr.mxu0 0.0
        %2494 = vmatpush1.msra.mxu0 %v2458
        %2495 = vmatprep.subr.mxu0 0.0
        %2496 = vmatpush2.msra.mxu0 0.0
        %2497 = vmatprep.subr.mxu0 0.0
        %2498 = vmatpush2.msra.mxu0 0.0
        %2499 = vmatprep.subr.mxu0 0.0
        %2500 = vmatpush2.msra.mxu0 0.0
        %2501 = vmatprep.subr.mxu0 0.0
        %2502 = vmatpush2.msra.mxu0 0.0
        %2503 = vmatprep.subr.mxu0 0.0
        %2504 = vmatpush2.msra.mxu0 0.0
        %2505 = vmatprep.subr.mxu0 0.0
        %2506 = vmatpush2.msra.mxu0 0.0
        %2507 = vmatprep.subr.mxu0 0.0
        %2508 = vmatpush2.msra.mxu0 0.0
        %2509 = vmatprep.subr.mxu0 0.0
        %2510 = vmatpush2.msra.mxu0 0.0
        %2511 = vmatprep.subr.mxu0 0.0
        %2512 = vmatpush2.msra.mxu0 0.0
        %2513 = vmatprep.subr.mxu0 0.0
        %2514 = vmatpush2.msra.mxu0 0.0
        %2515 = vmatprep.subr.mxu0 0.0
        %2516 = vmatpush2.msra.mxu0 0.0
        %2517 = vmatprep.subr.mxu0 0.0
        %2518 = vmatpush2.msra.mxu0 0.0
        %2519 = vmatprep.subr.mxu0 0.0
        %2520 = vmatpush2.msra.mxu0 0.0
        %2521 = vmatprep.subr.mxu0 0.0
        %2522 = vmatpush2.msra.mxu0 0.0
        %2523 = vmatprep.subr.mxu0 0.0
        %2524 = vmatpush2.msra.mxu0 0.0
        %2525 = vmatprep.subr.mxu0 0.0
        %2526 = vmatpush2.msra.mxu0 0.0
        %2527 = vmatprep.mubr.f32.mxu0 0.0
        %2528 = vmatmul.mubr.f32.gmra.mxu0 %v2461
        %v2529 = vpop.f32.mrf.mxu0
        %v2530 = vadd.f32 0.0, %v2529
        %v2531 = vpop.f32.mrf.mxu0
        %2532 = vdwg.mxu0
        %2535 = vrot.lane.b32.xlu0 %v1790, 8
        %v2536 = vpop.permute.xlu0 %2535
        %2537 = vrot.lane.b32.xlu0 %v1866, 8
        %v2538 = vpop.permute.xlu0 %2537
        %2543 = vrot.lane.b32.xlu0 %v2122, 16
        %v2544 = vpop.permute.xlu0 %2543
        %2545 = vrot.lane.b32.xlu0 %v2198, 16
        %v2546 = vpop.permute.xlu0 %2545
        %2551 = vrot.lane.b32.xlu0 %v2454, 24
        %v2552 = vpop.permute.xlu0 %2551
        %2553 = vrot.lane.b32.xlu0 %v2530, 24
        %v2554 = vpop.permute.xlu0 %2553
        %v2557 = vsel %vm1209, %v1458, %v2536
        %v2558 = vsel %vm1209, %v1534, %v2538
        %vm2559 = vcmask 130048
        %v2560 = vsel %vm2559, %v2557, %v2544
        %v2561 = vsel %vm2559, %v2558, %v2546
        %vm2562 = vcmask 195584
        %v2563 = vsel %vm2562, %v2560, %v2552
        %v2564 = vsel %vm2562, %v2561, %v2554
        %v2566 = vlaneseq
        %v2567 = vshrl.u32 %v2566, 7
        %v2568 = vsub.s32 0, %v2567
        %v2569 = vrot.slane %v1205, %v2568
        %v2572 = vsel %vm1119, %v2563, 0
        %v2575 = vsel %vm1119, %v2564, 0
        %2577 = vmatprep.subr.mxu0 0.0
        %2578 = vmatpush1.msra.mxu0 0.0
        %2579 = vmatprep.subr.mxu0 0.0
        %2580 = vmatpush1.msra.mxu0 0.0
        %2581 = vmatprep.subr.mxu0 0.0
        %2582 = vmatpush1.msra.mxu0 0.0
        %2583 = vmatprep.subr.mxu0 0.0
        %2584 = vmatpush1.msra.mxu0 0.0
        %2585 = vmatprep.subr.mxu0 0.0
        %2586 = vmatpush1.msra.mxu0 0.0
        %2587 = vmatprep.subr.mxu0 0.0
        %2588 = vmatpush1.msra.mxu0 0.0
        %2589 = vmatprep.subr.mxu0 0.0
        %2590 = vmatpush1.msra.mxu0 0.0
        %2591 = vmatprep.subr.mxu0 0.0
        %2592 = vmatpush1.msra.mxu0 0.0
        %2593 = vmatprep.subr.mxu0 0.0
        %2594 = vmatpush1.msra.mxu0 0.0
        %2595 = vmatprep.subr.mxu0 0.0
        %2596 = vmatpush1.msra.mxu0 0.0
        %2597 = vmatprep.subr.mxu0 0.0
        %2598 = vmatpush1.msra.mxu0 0.0
        %2599 = vmatprep.subr.mxu0 0.0
        %2600 = vmatpush1.msra.mxu0 0.0
        %2601 = vmatprep.subr.mxu0 0.0
        %2602 = vmatpush1.msra.mxu0 %v1204
        %2603 = vmatprep.subr.mxu0 0.0
        %2604 = vmatpush1.msra.mxu0 %v1203
        %2605 = vmatprep.subr.mxu0 0.0
        %2606 = vmatpush1.msra.mxu0 %v1202
        %2607 = vmatprep.subr.mxu0 0.0
        %2608 = vmatpush1.msra.mxu0 %v1201
        %2609 = vmatprep.subr.mxu0 0.0
        %2610 = vmatpush2.msra.mxu0 0.0
        %2611 = vmatprep.subr.mxu0 0.0
        %2612 = vmatpush2.msra.mxu0 0.0
        %2613 = vmatprep.subr.mxu0 0.0
        %2614 = vmatpush2.msra.mxu0 0.0
        %2615 = vmatprep.subr.mxu0 0.0
        %2616 = vmatpush2.msra.mxu0 0.0
        %2617 = vmatprep.subr.mxu0 0.0
        %2618 = vmatpush2.msra.mxu0 0.0
        %2619 = vmatprep.subr.mxu0 0.0
        %2620 = vmatpush2.msra.mxu0 0.0
        %2621 = vmatprep.subr.mxu0 0.0
        %2622 = vmatpush2.msra.mxu0 0.0
        %2623 = vmatprep.subr.mxu0 0.0
        %2624 = vmatpush2.msra.mxu0 0.0
        %2625 = vmatprep.subr.mxu0 0.0
        %2626 = vmatpush2.msra.mxu0 0.0
        %2627 = vmatprep.subr.mxu0 0.0
        %2628 = vmatpush2.msra.mxu0 0.0
        %2629 = vmatprep.subr.mxu0 0.0
        %2630 = vmatpush2.msra.mxu0 0.0
        %2631 = vmatprep.subr.mxu0 0.0
        %2632 = vmatpush2.msra.mxu0 0.0
        %2633 = vmatprep.subr.mxu0 0.0
        %2634 = vmatpush2.msra.mxu0 0.0
        %2635 = vmatprep.subr.mxu0 0.0
        %2636 = vmatpush2.msra.mxu0 0.0
        %2637 = vmatprep.subr.mxu0 0.0
        %2638 = vmatpush2.msra.mxu0 0.0
        %2639 = vmatprep.subr.mxu0 0.0
        %2640 = vmatpush2.msra.mxu0 0.0
        %2641 = vmatprep.mubr.f32.mxu0 0.0
        %2642 = vmatmul.mubr.f32.gmra.mxu0 %v2572
        %v2643 = vpop.f32.mrf.mxu0
        %v2644 = vadd.f32 %v2569, %v2643
        %v2645 = vpop.f32.mrf.mxu0
        %2646 = vmatprep.mubr.f32.mxu0 0.0
        %2647 = vmatmul.mubr.f32.gmra.mxu0 %v2575
        %v2648 = vpop.f32.mrf.mxu0
        %v2649 = vadd.f32 %v2569, %v2648
        %v2650 = vpop.f32.mrf.mxu0
        %2651 = vdwg.mxu0
        %v2652 = vadd.f32 %v1106, %v2644
        %v2653 = vadd.f32 %v1107, %v2649
        %v2654 = vld [vmem:[%s831] sm:$0x1]
        %v2655 = vld [vmem:[%s839] sm:$0x1]
        %v2656 = vsel %vm1119, %v2652, 0.0
        %2657 = vadd.xlane.f32.xlu0 %v2656
        %v2658 = vpop.xlane.xlu0 %2657
        %v2659 = vsel %vm1119, %v2653, 0.0
        %2660 = vadd.xlane.f32.xlu0 %v2659
        %v2661 = vpop.xlane.xlu0 %2660
        %v2662 = vrcp.pop 32.0
        %v2663 = vmul.f32 %v2658, %v2662
        %v2664 = vmul.f32 %v2661, %v2662
        %v2665 = vsub.f32 %v2652, %v2663
        %v2666 = vsub.f32 %v2653, %v2664
        %v2667 = vmul.f32 %v2665, %v2665
        %v2668 = vmul.f32 %v2666, %v2666
        %v2669 = vsel %vm1119, %v2667, 0.0
        %2670 = vadd.xlane.f32.xlu0 %v2669
        %v2671 = vpop.xlane.xlu0 %2670
        %v2672 = vsel %vm1119, %v2668, 0.0
        %2673 = vadd.xlane.f32.xlu0 %v2672
        %v2674 = vpop.xlane.xlu0 %2673
        %v2675 = vmul.f32 %v2671, %v2662
        %v2676 = vmul.f32 %v2674, %v2662
        %v2677 = vadd.f32 %v2675, 1e-05
        %v2678 = vadd.f32 %v2676, 1e-05
        %v2679 = vrsqrt.pop %v2677
        %v2680 = vrsqrt.pop %v2678
        %v2681 = vmul.f32 %v2665, %v2679
        %v2682 = vmul.f32 %v2666, %v2680
        %v2684 = vlaneseq
        %v2685 = vshrl.u32 %v2684, 7
        %v2686 = vsub.s32 0, %v2685
        %v2687 = vrot.slane %v2654, %v2686
        %v2689 = vmul.f32 %v2681, %v2687
        %v2690 = vmul.f32 %v2682, %v2687
        %v2692 = vlaneseq
        %v2693 = vshrl.u32 %v2692, 7
        %v2694 = vsub.s32 0, %v2693
        %v2695 = vrot.slane %v2655, %v2694
        %v2697 = vadd.f32 %v2689, %v2695
        %v2698 = vadd.f32 %v2690, %v2695
        %v2699 = vld [vmem:[%s994] sm:$0xff]
        %v2700 = vld [vmem:[%s994 + $0x8] sm:$0xff]
        %v2701 = vld [vmem:[%s994 + $0x10] sm:$0xff]
        %v2702 = vld [vmem:[%s994 + $0x18] sm:$0xff]
        %v2703 = vld [vmem:[%s847] sm:$0x1]
        %v2705 = vlaneseq
        %v2706 = vshrl.u32 %v2705, 7
        %v2707 = vsub.s32 0, %v2706
        %v2708 = vrot.slane %v2703, %v2707
        %v2711 = vsel %vm1119, %v2697, 0
        %v2714 = vsel %vm1119, %v2698, 0
        %2716 = vmatprep.subr.mxu0 0.0
        %2717 = vmatpush1.msra.mxu0 0.0
        %2718 = vmatprep.subr.mxu0 0.0
        %2719 = vmatpush1.msra.mxu0 0.0
        %2720 = vmatprep.subr.mxu0 0.0
        %2721 = vmatpush1.msra.mxu0 0.0
        %2722 = vmatprep.subr.mxu0 0.0
        %2723 = vmatpush1.msra.mxu0 0.0
        %2724 = vmatprep.subr.mxu0 0.0
        %2725 = vmatpush1.msra.mxu0 0.0
        %2726 = vmatprep.subr.mxu0 0.0
        %2727 = vmatpush1.msra.mxu0 0.0
        %2728 = vmatprep.subr.mxu0 0.0
        %2729 = vmatpush1.msra.mxu0 0.0
        %2730 = vmatprep.subr.mxu0 0.0
        %2731 = vmatpush1.msra.mxu0 0.0
        %2732 = vmatprep.subr.mxu0 0.0
        %2733 = vmatpush1.msra.mxu0 0.0
        %2734 = vmatprep.subr.mxu0 0.0
        %2735 = vmatpush1.msra.mxu0 0.0
        %2736 = vmatprep.subr.mxu0 0.0
        %2737 = vmatpush1.msra.mxu0 0.0
        %2738 = vmatprep.subr.mxu0 0.0
        %2739 = vmatpush1.msra.mxu0 0.0
        %2740 = vmatprep.subr.mxu0 0.0
        %2741 = vmatpush1.msra.mxu0 %v2702
        %2742 = vmatprep.subr.mxu0 0.0
        %2743 = vmatpush1.msra.mxu0 %v2701
        %2744 = vmatprep.subr.mxu0 0.0
        %2745 = vmatpush1.msra.mxu0 %v2700
        %2746 = vmatprep.subr.mxu0 0.0
        %2747 = vmatpush1.msra.mxu0 %v2699
        %2748 = vmatprep.subr.mxu0 0.0
        %2749 = vmatpush2.msra.mxu0 0.0
        %2750 = vmatprep.subr.mxu0 0.0
        %2751 = vmatpush2.msra.mxu0 0.0
        %2752 = vmatprep.subr.mxu0 0.0
        %2753 = vmatpush2.msra.mxu0 0.0
        %2754 = vmatprep.subr.mxu0 0.0
        %2755 = vmatpush2.msra.mxu0 0.0
        %2756 = vmatprep.subr.mxu0 0.0
        %2757 = vmatpush2.msra.mxu0 0.0
        %2758 = vmatprep.subr.mxu0 0.0
        %2759 = vmatpush2.msra.mxu0 0.0
        %2760 = vmatprep.subr.mxu0 0.0
        %2761 = vmatpush2.msra.mxu0 0.0
        %2762 = vmatprep.subr.mxu0 0.0
        %2763 = vmatpush2.msra.mxu0 0.0
        %2764 = vmatprep.subr.mxu0 0.0
        %2765 = vmatpush2.msra.mxu0 0.0
        %2766 = vmatprep.subr.mxu0 0.0
        %2767 = vmatpush2.msra.mxu0 0.0
        %2768 = vmatprep.subr.mxu0 0.0
        %2769 = vmatpush2.msra.mxu0 0.0
        %2770 = vmatprep.subr.mxu0 0.0
        %2771 = vmatpush2.msra.mxu0 0.0
        %2772 = vmatprep.subr.mxu0 0.0
        %2773 = vmatpush2.msra.mxu0 0.0
        %2774 = vmatprep.subr.mxu0 0.0
        %2775 = vmatpush2.msra.mxu0 0.0
        %2776 = vmatprep.subr.mxu0 0.0
        %2777 = vmatpush2.msra.mxu0 0.0
        %2778 = vmatprep.subr.mxu0 0.0
        %2779 = vmatpush2.msra.mxu0 0.0
        %2780 = vmatprep.mubr.f32.mxu0 0.0
        %2781 = vmatmul.mubr.f32.gmra.mxu0 %v2711
        %v2782 = vpop.f32.mrf.mxu0
        %v2783 = vadd.f32 %v2708, %v2782
        %v2784 = vpop.f32.mrf.mxu0
        %2785 = vmatprep.mubr.f32.mxu0 0.0
        %2786 = vmatmul.mubr.f32.gmra.mxu0 %v2714
        %v2787 = vpop.f32.mrf.mxu0
        %v2788 = vadd.f32 %v2708, %v2787
        %v2789 = vpop.f32.mrf.mxu0
        %2790 = vdwg.mxu0
        %v2791 = vmax.f32 %v2783, 0.0
        %v2792 = vmax.f32 %v2788, 0.0
        %v2793 = vld [vmem:[%s999] sm:$0xff]
        %v2794 = vld [vmem:[%s999 + $0x8] sm:$0xff]
        %v2795 = vld [vmem:[%s999 + $0x10] sm:$0xff]
        %v2796 = vld [vmem:[%s999 + $0x18] sm:$0xff]
        %v2797 = vld [vmem:[%s999 + $0x20] sm:$0xff]
        %v2798 = vld [vmem:[%s999 + $0x28] sm:$0xff]
        %v2799 = vld [vmem:[%s999 + $0x30] sm:$0xff]
        %v2800 = vld [vmem:[%s999 + $0x38] sm:$0xff]
        %v2801 = vld [vmem:[%s855] sm:$0x1]
        %v2803 = vlaneseq
        %v2804 = vshrl.u32 %v2803, 7
        %v2805 = vsub.s32 0, %v2804
        %v2806 = vrot.slane %v2801, %v2805
        %vm2808 = vcmask 523264
        %v2810 = vsel %vm2808, %v2791, 0
        %v2813 = vsel %vm2808, %v2792, 0
        %2815 = vmatprep.subr.mxu0 0.0
        %2816 = vmatpush1.msra.mxu0 0.0
        %2817 = vmatprep.subr.mxu0 0.0
        %2818 = vmatpush1.msra.mxu0 0.0
        %2819 = vmatprep.subr.mxu0 0.0
        %2820 = vmatpush1.msra.mxu0 0.0
        %2821 = vmatprep.subr.mxu0 0.0
        %2822 = vmatpush1.msra.mxu0 0.0
        %2823 = vmatprep.subr.mxu0 0.0
        %2824 = vmatpush1.msra.mxu0 0.0
        %2825 = vmatprep.subr.mxu0 0.0
        %2826 = vmatpush1.msra.mxu0 0.0
        %2827 = vmatprep.subr.mxu0 0.0
        %2828 = vmatpush1.msra.mxu0 0.0
        %2829 = vmatprep.subr.mxu0 0.0
        %2830 = vmatpush1.msra.mxu0 0.0
        %2831 = vmatprep.subr.mxu0 0.0
        %2832 = vmatpush1.msra.mxu0 %v2800
        %2833 = vmatprep.subr.mxu0 0.0
        %2834 = vmatpush1.msra.mxu0 %v2799
        %2835 = vmatprep.subr.mxu0 0.0
        %2836 = vmatpush1.msra.mxu0 %v2798
        %2837 = vmatprep.subr.mxu0 0.0
        %2838 = vmatpush1.msra.mxu0 %v2797
        %2839 = vmatprep.subr.mxu0 0.0
        %2840 = vmatpush1.msra.mxu0 %v2796
        %2841 = vmatprep.subr.mxu0 0.0
        %2842 = vmatpush1.msra.mxu0 %v2795
        %2843 = vmatprep.subr.mxu0 0.0
        %2844 = vmatpush1.msra.mxu0 %v2794
        %2845 = vmatprep.subr.mxu0 0.0
        %2846 = vmatpush1.msra.mxu0 %v2793
        %2847 = vmatprep.subr.mxu0 0.0
        %2848 = vmatpush2.msra.mxu0 0.0
        %2849 = vmatprep.subr.mxu0 0.0
        %2850 = vmatpush2.msra.mxu0 0.0
        %2851 = vmatprep.subr.mxu0 0.0
        %2852 = vmatpush2.msra.mxu0 0.0
        %2853 = vmatprep.subr.mxu0 0.0
        %2854 = vmatpush2.msra.mxu0 0.0
        %2855 = vmatprep.subr.mxu0 0.0
        %2856 = vmatpush2.msra.mxu0 0.0
        %2857 = vmatprep.subr.mxu0 0.0
        %2858 = vmatpush2.msra.mxu0 0.0
        %2859 = vmatprep.subr.mxu0 0.0
        %2860 = vmatpush2.msra.mxu0 0.0
        %2861 = vmatprep.subr.mxu0 0.0
        %2862 = vmatpush2.msra.mxu0 0.0
        %2863 = vmatprep.subr.mxu0 0.0
        %2864 = vmatpush2.msra.mxu0 0.0
        %2865 = vmatprep.subr.mxu0 0.0
        %2866 = vmatpush2.msra.mxu0 0.0
        %2867 = vmatprep.subr.mxu0 0.0
        %2868 = vmatpush2.msra.mxu0 0.0
        %2869 = vmatprep.subr.mxu0 0.0
        %2870 = vmatpush2.msra.mxu0 0.0
        %2871 = vmatprep.subr.mxu0 0.0
        %2872 = vmatpush2.msra.mxu0 0.0
        %2873 = vmatprep.subr.mxu0 0.0
        %2874 = vmatpush2.msra.mxu0 0.0
        %2875 = vmatprep.subr.mxu0 0.0
        %2876 = vmatpush2.msra.mxu0 0.0
        %2877 = vmatprep.subr.mxu0 0.0
        %2878 = vmatpush2.msra.mxu0 0.0
        %2879 = vmatprep.mubr.f32.mxu0 0.0
        %2880 = vmatmul.mubr.f32.gmra.mxu0 %v2810
        %v2881 = vpop.f32.mrf.mxu0
        %v2882 = vadd.f32 %v2806, %v2881
        %v2883 = vpop.f32.mrf.mxu0
        %2884 = vmatprep.mubr.f32.mxu0 0.0
        %2885 = vmatmul.mubr.f32.gmra.mxu0 %v2813
        %v2886 = vpop.f32.mrf.mxu0
        %v2887 = vadd.f32 %v2806, %v2886
        %v2888 = vpop.f32.mrf.mxu0
        %2889 = vdwg.mxu0
        %v2890 = vadd.f32 %v2697, %v2882
        %v2891 = vadd.f32 %v2698, %v2887
        %v2892 = vld [vmem:[%s863] sm:$0x1]
        %v2893 = vld [vmem:[%s871] sm:$0x1]
        %v2894 = vsel %vm1119, %v2890, 0.0
        %2895 = vadd.xlane.f32.xlu0 %v2894
        %v2896 = vpop.xlane.xlu0 %2895
        %v2897 = vsel %vm1119, %v2891, 0.0
        %2898 = vadd.xlane.f32.xlu0 %v2897
        %v2899 = vpop.xlane.xlu0 %2898
        %v2900 = vmul.f32 %v2896, %v2662
        %v2901 = vmul.f32 %v2899, %v2662
        %v2902 = vsub.f32 %v2890, %v2900
        %v2903 = vsub.f32 %v2891, %v2901
        %v2904 = vmul.f32 %v2902, %v2902
        %v2905 = vmul.f32 %v2903, %v2903
        %v2906 = vsel %vm1119, %v2904, 0.0
        %2907 = vadd.xlane.f32.xlu0 %v2906
        %v2908 = vpop.xlane.xlu0 %2907
        %v2909 = vsel %vm1119, %v2905, 0.0
        %2910 = vadd.xlane.f32.xlu0 %v2909
        %v2911 = vpop.xlane.xlu0 %2910
        %v2912 = vmul.f32 %v2908, %v2662
        %v2913 = vmul.f32 %v2911, %v2662
        %v2914 = vadd.f32 %v2912, 1e-05
        %v2915 = vadd.f32 %v2913, 1e-05
        %v2916 = vrsqrt.pop %v2914
        %v2917 = vrsqrt.pop %v2915
        %v2918 = vmul.f32 %v2902, %v2916
        %v2919 = vmul.f32 %v2903, %v2917
        %v2921 = vlaneseq
        %v2922 = vshrl.u32 %v2921, 7
        %v2923 = vsub.s32 0, %v2922
        %v2924 = vrot.slane %v2892, %v2923
        %v2926 = vmul.f32 %v2918, %v2924
        %v2927 = vmul.f32 %v2919, %v2924
        %v2929 = vlaneseq
        %v2930 = vshrl.u32 %v2929, 7
        %v2931 = vsub.s32 0, %v2930
        %v2932 = vrot.slane %v2893, %v2931
        %v2934 = vadd.f32 %v2926, %v2932
        %v2935 = vadd.f32 %v2927, %v2932
        %2936 = vst.msk [vmem:[#allocation2] sm:$0xff] %vm1119, %v2934
        %2937 = vst.msk [vmem:[#allocation2 + $0x8] sm:$0xff] %vm1119, %v2935
        %p2938 = scmp.eq.s32.totalorder %s37, 1
        // Predicated region
        $region153: #{smtp_forward.2} parent=99 // pred_check
          %p2939 = pneg %p2938
        $region154: #{smtp_forward.2} parent=99 // pred_check_branch
          %2941 = sbr.rel (%p2939) target = $region156
        $region155: #{smtp_forward.2} parent=99 // pred_region
          %2942 = vst.msk [vmem:[%s20] sm:$0xff] %vm1119, %v2934
          %2943 = vst.msk [vmem:[%s20 + $0x8] sm:$0xff] %vm1119, %v2935
          %v2944 = vld [vmem:[#allocation16] sm:$0x1]
          %v2946 = vlaneseq
          %v2947 = vshrl.u32 %v2946, 7
          %v2948 = vsub.s32 0, %v2947
          %v2949 = vrot.slane %v2944, %v2948
          %v2951 = vadd.f32 %v2949, 0.0
          %v2952 = vld [vmem:[%s16] sm:$0xff]
          %v2953 = vld [vmem:[%s16 + $0x8] sm:$0xff]
          %v2954 = vld [vmem:[%s16 + $0x10] sm:$0xff]
          %v2955 = vld [vmem:[%s16 + $0x18] sm:$0xff]
          %v2958 = vrot.slane %v2935, 7
          %vm2959 = vcmask 1041409
          %v2960 = vsel %vm2959, %v2958, %v2934
          %v2961 = vsel %vm1119, %v2960, 0
          %2963 = vmatprep.subr.mxu0 0.0
          %2964 = vmatpush1.msra.mxu0 0.0
          %2965 = vmatprep.subr.mxu0 0.0
          %2966 = vmatpush1.msra.mxu0 0.0
          %2967 = vmatprep.subr.mxu0 0.0
          %2968 = vmatpush1.msra.mxu0 0.0
          %2969 = vmatprep.subr.mxu0 0.0
          %2970 = vmatpush1.msra.mxu0 0.0
          %2971 = vmatprep.subr.mxu0 0.0
          %2972 = vmatpush1.msra.mxu0 0.0
          %2973 = vmatprep.subr.mxu0 0.0
          %2974 = vmatpush1.msra.mxu0 0.0
          %2975 = vmatprep.subr.mxu0 0.0
          %2976 = vmatpush1.msra.mxu0 0.0
          %2977 = vmatprep.subr.mxu0 0.0
          %2978 = vmatpush1.msra.mxu0 0.0
          %2979 = vmatprep.subr.mxu0 0.0
          %2980 = vmatpush1.msra.mxu0 0.0
          %2981 = vmatprep.subr.mxu0 0.0
          %2982 = vmatpush1.msra.mxu0 0.0
          %2983 = vmatprep.subr.mxu0 0.0
          %2984 = vmatpush1.msra.mxu0 0.0
          %2985 = vmatprep.subr.mxu0 0.0
          %2986 = vmatpush1.msra.mxu0 0.0
          %2987 = vmatprep.subr.mxu0 0.0
          %2988 = vmatpush1.msra.mxu0 %v2955
          %2989 = vmatprep.subr.mxu0 0.0
          %2990 = vmatpush1.msra.mxu0 %v2954
          %2991 = vmatprep.subr.mxu0 0.0
          %2992 = vmatpush1.msra.mxu0 %v2953
          %2993 = vmatprep.subr.mxu0 0.0
          %2994 = vmatpush1.msra.mxu0 %v2952
          %2995 = vmatprep.subr.mxu0 0.0
          %2996 = vmatpush2.msra.mxu0 0.0
          %2997 = vmatprep.subr.mxu0 0.0
          %2998 = vmatpush2.msra.mxu0 0.0
          %2999 = vmatprep.subr.mxu0 0.0
          %3000 = vmatpush2.msra.mxu0 0.0
          %3001 = vmatprep.subr.mxu0 0.0
          %3002 = vmatpush2.msra.mxu0 0.0
          %3003 = vmatprep.subr.mxu0 0.0
          %3004 = vmatpush2.msra.mxu0 0.0
          %3005 = vmatprep.subr.mxu0 0.0
          %3006 = vmatpush2.msra.mxu0 0.0
          %3007 = vmatprep.subr.mxu0 0.0
          %3008 = vmatpush2.msra.mxu0 0.0
          %3009 = vmatprep.subr.mxu0 0.0
          %3010 = vmatpush2.msra.mxu0 0.0
          %3011 = vmatprep.subr.mxu0 0.0
          %3012 = vmatpush2.msra.mxu0 0.0
          %3013 = vmatprep.subr.mxu0 0.0
          %3014 = vmatpush2.msra.mxu0 0.0
          %3015 = vmatprep.subr.mxu0 0.0
          %3016 = vmatpush2.msra.mxu0 0.0
          %3017 = vmatprep.subr.mxu0 0.0
          %3018 = vmatpush2.msra.mxu0 0.0
          %3019 = vmatprep.subr.mxu0 0.0
          %3020 = vmatpush2.msra.mxu0 0.0
          %3021 = vmatprep.subr.mxu0 0.0
          %3022 = vmatpush2.msra.mxu0 0.0
          %3023 = vmatprep.subr.mxu0 0.0
          %3024 = vmatpush2.msra.mxu0 0.0
          %3025 = vmatprep.subr.mxu0 0.0
          %3026 = vmatpush2.msra.mxu0 0.0
          %3027 = vmatprep.mubr.f32.mxu0 0.0
          %3028 = vmatmul.mubr.f32.gmra.mxu0 %v2961
          %v3029 = vpop.f32.mrf.mxu0
          %v3030 = vadd.f32 0.0, %v3029
          %v3031 = vpop.f32.mrf.mxu0
          %3032 = vdwg.mxu0
          %v3033 = vadd.f32 %v2951, %v3030
          %s3034 = scalar_lea.vmem %s16, 32
          %v3035 = vld [vmem:[%s3034] sm:$0xff]
          %v3036 = vld [vmem:[%s3034 + $0x8] sm:$0xff]
          %v3037 = vld [vmem:[%s3034 + $0x10] sm:$0xff]
          %v3038 = vld [vmem:[%s3034 + $0x18] sm:$0xff]
          %v3039 = vrot.slane %v2934, 1
          %v3040 = vsel %vm2959, %v2935, %v3039
          %v3041 = vsel %vm1119, %v3040, 0
          %3043 = vmatprep.subr.mxu0 0.0
          %3044 = vmatpush1.msra.mxu0 0.0
          %3045 = vmatprep.subr.mxu0 0.0
          %3046 = vmatpush1.msra.mxu0 0.0
          %3047 = vmatprep.subr.mxu0 0.0
          %3048 = vmatpush1.msra.mxu0 0.0
          %3049 = vmatprep.subr.mxu0 0.0
          %3050 = vmatpush1.msra.mxu0 0.0
          %3051 = vmatprep.subr.mxu0 0.0
          %3052 = vmatpush1.msra.mxu0 0.0
          %3053 = vmatprep.subr.mxu0 0.0
          %3054 = vmatpush1.msra.mxu0 0.0
          %3055 = vmatprep.subr.mxu0 0.0
          %3056 = vmatpush1.msra.mxu0 0.0
          %3057 = vmatprep.subr.mxu0 0.0
          %3058 = vmatpush1.msra.mxu0 0.0
          %3059 = vmatprep.subr.mxu0 0.0
          %3060 = vmatpush1.msra.mxu0 0.0
          %3061 = vmatprep.subr.mxu0 0.0
          %3062 = vmatpush1.msra.mxu0 0.0
          %3063 = vmatprep.subr.mxu0 0.0
          %3064 = vmatpush1.msra.mxu0 0.0
          %3065 = vmatprep.subr.mxu0 0.0
          %3066 = vmatpush1.msra.mxu0 0.0
          %3067 = vmatprep.subr.mxu0 0.0
          %3068 = vmatpush1.msra.mxu0 %v3038
          %3069 = vmatprep.subr.mxu0 0.0
          %3070 = vmatpush1.msra.mxu0 %v3037
          %3071 = vmatprep.subr.mxu0 0.0
          %3072 = vmatpush1.msra.mxu0 %v3036
          %3073 = vmatprep.subr.mxu0 0.0
          %3074 = vmatpush1.msra.mxu0 %v3035
          %3075 = vmatprep.subr.mxu0 0.0
          %3076 = vmatpush2.msra.mxu0 0.0
          %3077 = vmatprep.subr.mxu0 0.0
          %3078 = vmatpush2.msra.mxu0 0.0
          %3079 = vmatprep.subr.mxu0 0.0
          %3080 = vmatpush2.msra.mxu0 0.0
          %3081 = vmatprep.subr.mxu0 0.0
          %3082 = vmatpush2.msra.mxu0 0.0
          %3083 = vmatprep.subr.mxu0 0.0
          %3084 = vmatpush2.msra.mxu0 0.0
          %3085 = vmatprep.subr.mxu0 0.0
          %3086 = vmatpush2.msra.mxu0 0.0
          %3087 = vmatprep.subr.mxu0 0.0
          %3088 = vmatpush2.msra.mxu0 0.0
          %3089 = vmatprep.subr.mxu0 0.0
          %3090 = vmatpush2.msra.mxu0 0.0
          %3091 = vmatprep.subr.mxu0 0.0
          %3092 = vmatpush2.msra.mxu0 0.0
          %3093 = vmatprep.subr.mxu0 0.0
          %3094 = vmatpush2.msra.mxu0 0.0
          %3095 = vmatprep.subr.mxu0 0.0
          %3096 = vmatpush2.msra.mxu0 0.0
          %3097 = vmatprep.subr.mxu0 0.0
          %3098 = vmatpush2.msra.mxu0 0.0
          %3099 = vmatprep.subr.mxu0 0.0
          %3100 = vmatpush2.msra.mxu0 0.0
          %3101 = vmatprep.subr.mxu0 0.0
          %3102 = vmatpush2.msra.mxu0 0.0
          %3103 = vmatprep.subr.mxu0 0.0
          %3104 = vmatpush2.msra.mxu0 0.0
          %3105 = vmatprep.subr.mxu0 0.0
          %3106 = vmatpush2.msra.mxu0 0.0
          %3107 = vmatprep.mubr.f32.mxu0 0.0
          %3108 = vmatmul.mubr.f32.gmra.mxu0 %v3041
          %v3109 = vpop.f32.mrf.mxu0
          %v3110 = vadd.f32 0.0, %v3109
          %v3111 = vpop.f32.mrf.mxu0
          %3112 = vdwg.mxu0
          %v3113 = vadd.f32 %v3033, %v3110
          %s3114 = scalar_lea.vmem %s16, 64
          %v3115 = vld [vmem:[%s3114] sm:$0xff]
          %v3116 = vld [vmem:[%s3114 + $0x8] sm:$0xff]
          %v3117 = vld [vmem:[%s3114 + $0x10] sm:$0xff]
          %v3118 = vld [vmem:[%s3114 + $0x18] sm:$0xff]
          %v3119 = vrot.slane %v2934, 2
          %v3120 = vrot.slane %v2935, 1
          %v3121 = vsel %vm2959, %v3120, %v3119
          %v3122 = vsel %vm1119, %v3121, 0
          %3124 = vmatprep.subr.mxu0 0.0
          %3125 = vmatpush1.msra.mxu0 0.0
          %3126 = vmatprep.subr.mxu0 0.0
          %3127 = vmatpush1.msra.mxu0 0.0
          %3128 = vmatprep.subr.mxu0 0.0
          %3129 = vmatpush1.msra.mxu0 0.0
          %3130 = vmatprep.subr.mxu0 0.0
          %3131 = vmatpush1.msra.mxu0 0.0
          %3132 = vmatprep.subr.mxu0 0.0
          %3133 = vmatpush1.msra.mxu0 0.0
          %3134 = vmatprep.subr.mxu0 0.0
          %3135 = vmatpush1.msra.mxu0 0.0
          %3136 = vmatprep.subr.mxu0 0.0
          %3137 = vmatpush1.msra.mxu0 0.0
          %3138 = vmatprep.subr.mxu0 0.0
          %3139 = vmatpush1.msra.mxu0 0.0
          %3140 = vmatprep.subr.mxu0 0.0
          %3141 = vmatpush1.msra.mxu0 0.0
          %3142 = vmatprep.subr.mxu0 0.0
          %3143 = vmatpush1.msra.mxu0 0.0
          %3144 = vmatprep.subr.mxu0 0.0
          %3145 = vmatpush1.msra.mxu0 0.0
          %3146 = vmatprep.subr.mxu0 0.0
          %3147 = vmatpush1.msra.mxu0 0.0
          %3148 = vmatprep.subr.mxu0 0.0
          %3149 = vmatpush1.msra.mxu0 %v3118
          %3150 = vmatprep.subr.mxu0 0.0
          %3151 = vmatpush1.msra.mxu0 %v3117
          %3152 = vmatprep.subr.mxu0 0.0
          %3153 = vmatpush1.msra.mxu0 %v3116
          %3154 = vmatprep.subr.mxu0 0.0
          %3155 = vmatpush1.msra.mxu0 %v3115
          %3156 = vmatprep.subr.mxu0 0.0
          %3157 = vmatpush2.msra.mxu0 0.0
          %3158 = vmatprep.subr.mxu0 0.0
          %3159 = vmatpush2.msra.mxu0 0.0
          %3160 = vmatprep.subr.mxu0 0.0
          %3161 = vmatpush2.msra.mxu0 0.0
          %3162 = vmatprep.subr.mxu0 0.0
          %3163 = vmatpush2.msra.mxu0 0.0
          %3164 = vmatprep.subr.mxu0 0.0
          %3165 = vmatpush2.msra.mxu0 0.0
          %3166 = vmatprep.subr.mxu0 0.0
          %3167 = vmatpush2.msra.mxu0 0.0
          %3168 = vmatprep.subr.mxu0 0.0
          %3169 = vmatpush2.msra.mxu0 0.0
          %3170 = vmatprep.subr.mxu0 0.0
          %3171 = vmatpush2.msra.mxu0 0.0
          %3172 = vmatprep.subr.mxu0 0.0
          %3173 = vmatpush2.msra.mxu0 0.0
          %3174 = vmatprep.subr.mxu0 0.0
          %3175 = vmatpush2.msra.mxu0 0.0
          %3176 = vmatprep.subr.mxu0 0.0
          %3177 = vmatpush2.msra.mxu0 0.0
          %3178 = vmatprep.subr.mxu0 0.0
          %3179 = vmatpush2.msra.mxu0 0.0
          %3180 = vmatprep.subr.mxu0 0.0
          %3181 = vmatpush2.msra.mxu0 0.0
          %3182 = vmatprep.subr.mxu0 0.0
          %3183 = vmatpush2.msra.mxu0 0.0
          %3184 = vmatprep.subr.mxu0 0.0
          %3185 = vmatpush2.msra.mxu0 0.0
          %3186 = vmatprep.subr.mxu0 0.0
          %3187 = vmatpush2.msra.mxu0 0.0
          %3188 = vmatprep.mubr.f32.mxu0 0.0
          %3189 = vmatmul.mubr.f32.gmra.mxu0 %v3122
          %v3190 = vpop.f32.mrf.mxu0
          %v3191 = vadd.f32 0.0, %v3190
          %v3192 = vpop.f32.mrf.mxu0
          %3193 = vdwg.mxu0
          %v3194 = vadd.f32 %v3113, %v3191
          %s3195 = scalar_lea.vmem %s16, 96
          %v3196 = vld [vmem:[%s3195] sm:$0xff]
          %v3197 = vld [vmem:[%s3195 + $0x8] sm:$0xff]
          %v3198 = vld [vmem:[%s3195 + $0x10] sm:$0xff]
          %v3199 = vld [vmem:[%s3195 + $0x18] sm:$0xff]
          %v3200 = vrot.slane %v2934, 3
          %v3201 = vrot.slane %v2935, 2
          %v3202 = vsel %vm2959, %v3201, %v3200
          %v3203 = vsel %vm1119, %v3202, 0
          %3205 = vmatprep.subr.mxu0 0.0
          %3206 = vmatpush1.msra.mxu0 0.0
          %3207 = vmatprep.subr.mxu0 0.0
          %3208 = vmatpush1.msra.mxu0 0.0
          %3209 = vmatprep.subr.mxu0 0.0
          %3210 = vmatpush1.msra.mxu0 0.0
          %3211 = vmatprep.subr.mxu0 0.0
          %3212 = vmatpush1.msra.mxu0 0.0
          %3213 = vmatprep.subr.mxu0 0.0
          %3214 = vmatpush1.msra.mxu0 0.0
          %3215 = vmatprep.subr.mxu0 0.0
          %3216 = vmatpush1.msra.mxu0 0.0
          %3217 = vmatprep.subr.mxu0 0.0
          %3218 = vmatpush1.msra.mxu0 0.0
          %3219 = vmatprep.subr.mxu0 0.0
          %3220 = vmatpush1.msra.mxu0 0.0
          %3221 = vmatprep.subr.mxu0 0.0
          %3222 = vmatpush1.msra.mxu0 0.0
          %3223 = vmatprep.subr.mxu0 0.0
          %3224 = vmatpush1.msra.mxu0 0.0
          %3225 = vmatprep.subr.mxu0 0.0
          %3226 = vmatpush1.msra.mxu0 0.0
          %3227 = vmatprep.subr.mxu0 0.0
          %3228 = vmatpush1.msra.mxu0 0.0
          %3229 = vmatprep.subr.mxu0 0.0
          %3230 = vmatpush1.msra.mxu0 %v3199
          %3231 = vmatprep.subr.mxu0 0.0
          %3232 = vmatpush1.msra.mxu0 %v3198
          %3233 = vmatprep.subr.mxu0 0.0
          %3234 = vmatpush1.msra.mxu0 %v3197
          %3235 = vmatprep.subr.mxu0 0.0
          %3236 = vmatpush1.msra.mxu0 %v3196
          %3237 = vmatprep.subr.mxu0 0.0
          %3238 = vmatpush2.msra.mxu0 0.0
          %3239 = vmatprep.subr.mxu0 0.0
          %3240 = vmatpush2.msra.mxu0 0.0
          %3241 = vmatprep.subr.mxu0 0.0
          %3242 = vmatpush2.msra.mxu0 0.0
          %3243 = vmatprep.subr.mxu0 0.0
          %3244 = vmatpush2.msra.mxu0 0.0
          %3245 = vmatprep.subr.mxu0 0.0
          %3246 = vmatpush2.msra.mxu0 0.0
          %3247 = vmatprep.subr.mxu0 0.0
          %3248 = vmatpush2.msra.mxu0 0.0
          %3249 = vmatprep.subr.mxu0 0.0
          %3250 = vmatpush2.msra.mxu0 0.0
          %3251 = vmatprep.subr.mxu0 0.0
          %3252 = vmatpush2.msra.mxu0 0.0
          %3253 = vmatprep.subr.mxu0 0.0
          %3254 = vmatpush2.msra.mxu0 0.0
          %3255 = vmatprep.subr.mxu0 0.0
          %3256 = vmatpush2.msra.mxu0 0.0
          %3257 = vmatprep.subr.mxu0 0.0
          %3258 = vmatpush2.msra.mxu0 0.0
          %3259 = vmatprep.subr.mxu0 0.0
          %3260 = vmatpush2.msra.mxu0 0.0
          %3261 = vmatprep.subr.mxu0 0.0
          %3262 = vmatpush2.msra.mxu0 0.0
          %3263 = vmatprep.subr.mxu0 0.0
          %3264 = vmatpush2.msra.mxu0 0.0
          %3265 = vmatprep.subr.mxu0 0.0
          %3266 = vmatpush2.msra.mxu0 0.0
          %3267 = vmatprep.subr.mxu0 0.0
          %3268 = vmatpush2.msra.mxu0 0.0
          %3269 = vmatprep.mubr.f32.mxu0 0.0
          %3270 = vmatmul.mubr.f32.gmra.mxu0 %v3203
          %v3271 = vpop.f32.mrf.mxu0
          %v3272 = vadd.f32 0.0, %v3271
          %v3273 = vpop.f32.mrf.mxu0
          %3274 = vdwg.mxu0
          %v3275 = vadd.f32 %v3194, %v3272
          %s3276 = scalar_lea.vmem %s16, 128
          %v3277 = vld [vmem:[%s3276] sm:$0xff]
          %v3278 = vld [vmem:[%s3276 + $0x8] sm:$0xff]
          %v3279 = vld [vmem:[%s3276 + $0x10] sm:$0xff]
          %v3280 = vld [vmem:[%s3276 + $0x18] sm:$0xff]
          %v3281 = vrot.slane %v2934, 4
          %v3282 = vrot.slane %v2935, 3
          %v3283 = vsel %vm2959, %v3282, %v3281
          %v3284 = vsel %vm1119, %v3283, 0
          %3286 = vmatprep.subr.mxu0 0.0
          %3287 = vmatpush1.msra.mxu0 0.0
          %3288 = vmatprep.subr.mxu0 0.0
          %3289 = vmatpush1.msra.mxu0 0.0
          %3290 = vmatprep.subr.mxu0 0.0
          %3291 = vmatpush1.msra.mxu0 0.0
          %3292 = vmatprep.subr.mxu0 0.0
          %3293 = vmatpush1.msra.mxu0 0.0
          %3294 = vmatprep.subr.mxu0 0.0
          %3295 = vmatpush1.msra.mxu0 0.0
          %3296 = vmatprep.subr.mxu0 0.0
          %3297 = vmatpush1.msra.mxu0 0.0
          %3298 = vmatprep.subr.mxu0 0.0
          %3299 = vmatpush1.msra.mxu0 0.0
          %3300 = vmatprep.subr.mxu0 0.0
          %3301 = vmatpush1.msra.mxu0 0.0
          %3302 = vmatprep.subr.mxu0 0.0
          %3303 = vmatpush1.msra.mxu0 0.0
          %3304 = vmatprep.subr.mxu0 0.0
          %3305 = vmatpush1.msra.mxu0 0.0
          %3306 = vmatprep.subr.mxu0 0.0
          %3307 = vmatpush1.msra.mxu0 0.0
          %3308 = vmatprep.subr.mxu0 0.0
          %3309 = vmatpush1.msra.mxu0 0.0
          %3310 = vmatprep.subr.mxu0 0.0
          %3311 = vmatpush1.msra.mxu0 %v3280
          %3312 = vmatprep.subr.mxu0 0.0
          %3313 = vmatpush1.msra.mxu0 %v3279
          %3314 = vmatprep.subr.mxu0 0.0
          %3315 = vmatpush1.msra.mxu0 %v3278
          %3316 = vmatprep.subr.mxu0 0.0
          %3317 = vmatpush1.msra.mxu0 %v3277
          %3318 = vmatprep.subr.mxu0 0.0
          %3319 = vmatpush2.msra.mxu0 0.0
          %3320 = vmatprep.subr.mxu0 0.0
          %3321 = vmatpush2.msra.mxu0 0.0
          %3322 = vmatprep.subr.mxu0 0.0
          %3323 = vmatpush2.msra.mxu0 0.0
          %3324 = vmatprep.subr.mxu0 0.0
          %3325 = vmatpush2.msra.mxu0 0.0
          %3326 = vmatprep.subr.mxu0 0.0
          %3327 = vmatpush2.msra.mxu0 0.0
          %3328 = vmatprep.subr.mxu0 0.0
          %3329 = vmatpush2.msra.mxu0 0.0
          %3330 = vmatprep.subr.mxu0 0.0
          %3331 = vmatpush2.msra.mxu0 0.0
          %3332 = vmatprep.subr.mxu0 0.0
          %3333 = vmatpush2.msra.mxu0 0.0
          %3334 = vmatprep.subr.mxu0 0.0
          %3335 = vmatpush2.msra.mxu0 0.0
          %3336 = vmatprep.subr.mxu0 0.0
          %3337 = vmatpush2.msra.mxu0 0.0
          %3338 = vmatprep.subr.mxu0 0.0
          %3339 = vmatpush2.msra.mxu0 0.0
          %3340 = vmatprep.subr.mxu0 0.0
          %3341 = vmatpush2.msra.mxu0 0.0
          %3342 = vmatprep.subr.mxu0 0.0
          %3343 = vmatpush2.msra.mxu0 0.0
          %3344 = vmatprep.subr.mxu0 0.0
          %3345 = vmatpush2.msra.mxu0 0.0
          %3346 = vmatprep.subr.mxu0 0.0
          %3347 = vmatpush2.msra.mxu0 0.0
          %3348 = vmatprep.subr.mxu0 0.0
          %3349 = vmatpush2.msra.mxu0 0.0
          %3350 = vmatprep.mubr.f32.mxu0 0.0
          %3351 = vmatmul.mubr.f32.gmra.mxu0 %v3284
          %v3352 = vpop.f32.mrf.mxu0
          %v3353 = vadd.f32 0.0, %v3352
          %v3354 = vpop.f32.mrf.mxu0
          %3355 = vdwg.mxu0
          %v3356 = vadd.f32 %v3275, %v3353
          %s3357 = scalar_lea.vmem %s16, 160
          %v3358 = vld [vmem:[%s3357] sm:$0xff]
          %v3359 = vld [vmem:[%s3357 + $0x8] sm:$0xff]
          %v3360 = vld [vmem:[%s3357 + $0x10] sm:$0xff]
          %v3361 = vld [vmem:[%s3357 + $0x18] sm:$0xff]
          %v3362 = vrot.slane %v2934, 5
          %v3363 = vrot.slane %v2935, 4
          %v3364 = vsel %vm2959, %v3363, %v3362
          %v3365 = vsel %vm1119, %v3364, 0
          %3367 = vmatprep.subr.mxu0 0.0
          %3368 = vmatpush1.msra.mxu0 0.0
          %3369 = vmatprep.subr.mxu0 0.0
          %3370 = vmatpush1.msra.mxu0 0.0
          %3371 = vmatprep.subr.mxu0 0.0
          %3372 = vmatpush1.msra.mxu0 0.0
          %3373 = vmatprep.subr.mxu0 0.0
          %3374 = vmatpush1.msra.mxu0 0.0
          %3375 = vmatprep.subr.mxu0 0.0
          %3376 = vmatpush1.msra.mxu0 0.0
          %3377 = vmatprep.subr.mxu0 0.0
          %3378 = vmatpush1.msra.mxu0 0.0
          %3379 = vmatprep.subr.mxu0 0.0
          %3380 = vmatpush1.msra.mxu0 0.0
          %3381 = vmatprep.subr.mxu0 0.0
          %3382 = vmatpush1.msra.mxu0 0.0
          %3383 = vmatprep.subr.mxu0 0.0
          %3384 = vmatpush1.msra.mxu0 0.0
          %3385 = vmatprep.subr.mxu0 0.0
          %3386 = vmatpush1.msra.mxu0 0.0
          %3387 = vmatprep.subr.mxu0 0.0
          %3388 = vmatpush1.msra.mxu0 0.0
          %3389 = vmatprep.subr.mxu0 0.0
          %3390 = vmatpush1.msra.mxu0 0.0
          %3391 = vmatprep.subr.mxu0 0.0
          %3392 = vmatpush1.msra.mxu0 %v3361
          %3393 = vmatprep.subr.mxu0 0.0
          %3394 = vmatpush1.msra.mxu0 %v3360
          %3395 = vmatprep.subr.mxu0 0.0
          %3396 = vmatpush1.msra.mxu0 %v3359
          %3397 = vmatprep.subr.mxu0 0.0
          %3398 = vmatpush1.msra.mxu0 %v3358
          %3399 = vmatprep.subr.mxu0 0.0
          %3400 = vmatpush2.msra.mxu0 0.0
          %3401 = vmatprep.subr.mxu0 0.0
          %3402 = vmatpush2.msra.mxu0 0.0
          %3403 = vmatprep.subr.mxu0 0.0
          %3404 = vmatpush2.msra.mxu0 0.0
          %3405 = vmatprep.subr.mxu0 0.0
          %3406 = vmatpush2.msra.mxu0 0.0
          %3407 = vmatprep.subr.mxu0 0.0
          %3408 = vmatpush2.msra.mxu0 0.0
          %3409 = vmatprep.subr.mxu0 0.0
          %3410 = vmatpush2.msra.mxu0 0.0
          %3411 = vmatprep.subr.mxu0 0.0
          %3412 = vmatpush2.msra.mxu0 0.0
          %3413 = vmatprep.subr.mxu0 0.0
          %3414 = vmatpush2.msra.mxu0 0.0
          %3415 = vmatprep.subr.mxu0 0.0
          %3416 = vmatpush2.msra.mxu0 0.0
          %3417 = vmatprep.subr.mxu0 0.0
          %3418 = vmatpush2.msra.mxu0 0.0
          %3419 = vmatprep.subr.mxu0 0.0
          %3420 = vmatpush2.msra.mxu0 0.0
          %3421 = vmatprep.subr.mxu0 0.0
          %3422 = vmatpush2.msra.mxu0 0.0
          %3423 = vmatprep.subr.mxu0 0.0
          %3424 = vmatpush2.msra.mxu0 0.0
          %3425 = vmatprep.subr.mxu0 0.0
          %3426 = vmatpush2.msra.mxu0 0.0
          %3427 = vmatprep.subr.mxu0 0.0
          %3428 = vmatpush2.msra.mxu0 0.0
          %3429 = vmatprep.subr.mxu0 0.0
          %3430 = vmatpush2.msra.mxu0 0.0
          %3431 = vmatprep.mubr.f32.mxu0 0.0
          %3432 = vmatmul.mubr.f32.gmra.mxu0 %v3365
          %v3433 = vpop.f32.mrf.mxu0
          %v3434 = vadd.f32 0.0, %v3433
          %v3435 = vpop.f32.mrf.mxu0
          %3436 = vdwg.mxu0
          %v3437 = vadd.f32 %v3356, %v3434
          %s3438 = scalar_lea.vmem %s16, 192
          %v3439 = vld [vmem:[%s3438] sm:$0xff]
          %v3440 = vld [vmem:[%s3438 + $0x8] sm:$0xff]
          %v3441 = vld [vmem:[%s3438 + $0x10] sm:$0xff]
          %v3442 = vld [vmem:[%s3438 + $0x18] sm:$0xff]
          %v3443 = vrot.slane %v2934, 6
          %v3444 = vrot.slane %v2935, 5
          %v3445 = vsel %vm2959, %v3444, %v3443
          %v3446 = vsel %vm1119, %v3445, 0
          %3448 = vmatprep.subr.mxu0 0.0
          %3449 = vmatpush1.msra.mxu0 0.0
          %3450 = vmatprep.subr.mxu0 0.0
          %3451 = vmatpush1.msra.mxu0 0.0
          %3452 = vmatprep.subr.mxu0 0.0
          %3453 = vmatpush1.msra.mxu0 0.0
          %3454 = vmatprep.subr.mxu0 0.0
          %3455 = vmatpush1.msra.mxu0 0.0
          %3456 = vmatprep.subr.mxu0 0.0
          %3457 = vmatpush1.msra.mxu0 0.0
          %3458 = vmatprep.subr.mxu0 0.0
          %3459 = vmatpush1.msra.mxu0 0.0
          %3460 = vmatprep.subr.mxu0 0.0
          %3461 = vmatpush1.msra.mxu0 0.0
          %3462 = vmatprep.subr.mxu0 0.0
          %3463 = vmatpush1.msra.mxu0 0.0
          %3464 = vmatprep.subr.mxu0 0.0
          %3465 = vmatpush1.msra.mxu0 0.0
          %3466 = vmatprep.subr.mxu0 0.0
          %3467 = vmatpush1.msra.mxu0 0.0
          %3468 = vmatprep.subr.mxu0 0.0
          %3469 = vmatpush1.msra.mxu0 0.0
          %3470 = vmatprep.subr.mxu0 0.0
          %3471 = vmatpush1.msra.mxu0 0.0
          %3472 = vmatprep.subr.mxu0 0.0
          %3473 = vmatpush1.msra.mxu0 %v3442
          %3474 = vmatprep.subr.mxu0 0.0
          %3475 = vmatpush1.msra.mxu0 %v3441
          %3476 = vmatprep.subr.mxu0 0.0
          %3477 = vmatpush1.msra.mxu0 %v3440
          %3478 = vmatprep.subr.mxu0 0.0
          %3479 = vmatpush1.msra.mxu0 %v3439
          %3480 = vmatprep.subr.mxu0 0.0
          %3481 = vmatpush2.msra.mxu0 0.0
          %3482 = vmatprep.subr.mxu0 0.0
          %3483 = vmatpush2.msra.mxu0 0.0
          %3484 = vmatprep.subr.mxu0 0.0
          %3485 = vmatpush2.msra.mxu0 0.0
          %3486 = vmatprep.subr.mxu0 0.0
          %3487 = vmatpush2.msra.mxu0 0.0
          %3488 = vmatprep.subr.mxu0 0.0
          %3489 = vmatpush2.msra.mxu0 0.0
          %3490 = vmatprep.subr.mxu0 0.0
          %3491 = vmatpush2.msra.mxu0 0.0
          %3492 = vmatprep.subr.mxu0 0.0
          %3493 = vmatpush2.msra.mxu0 0.0
          %3494 = vmatprep.subr.mxu0 0.0
          %3495 = vmatpush2.msra.mxu0 0.0
          %3496 = vmatprep.subr.mxu0 0.0
          %3497 = vmatpush2.msra.mxu0 0.0
          %3498 = vmatprep.subr.mxu0 0.0
          %3499 = vmatpush2.msra.mxu0 0.0
          %3500 = vmatprep.subr.mxu0 0.0
          %3501 = vmatpush2.msra.mxu0 0.0
          %3502 = vmatprep.subr.mxu0 0.0
          %3503 = vmatpush2.msra.mxu0 0.0
          %3504 = vmatprep.subr.mxu0 0.0
          %3505 = vmatpush2.msra.mxu0 0.0
          %3506 = vmatprep.subr.mxu0 0.0
          %3507 = vmatpush2.msra.mxu0 0.0
          %3508 = vmatprep.subr.mxu0 0.0
          %3509 = vmatpush2.msra.mxu0 0.0
          %3510 = vmatprep.subr.mxu0 0.0
          %3511 = vmatpush2.msra.mxu0 0.0
          %3512 = vmatprep.mubr.f32.mxu0 0.0
          %3513 = vmatmul.mubr.f32.gmra.mxu0 %v3446
          %v3514 = vpop.f32.mrf.mxu0
          %v3515 = vadd.f32 0.0, %v3514
          %v3516 = vpop.f32.mrf.mxu0
          %3517 = vdwg.mxu0
          %v3518 = vadd.f32 %v3437, %v3515
          %s3519 = scalar_lea.vmem %s16, 224
          %v3520 = vld [vmem:[%s3519] sm:$0xff]
          %v3521 = vld [vmem:[%s3519 + $0x8] sm:$0xff]
          %v3522 = vld [vmem:[%s3519 + $0x10] sm:$0xff]
          %v3523 = vld [vmem:[%s3519 + $0x18] sm:$0xff]
          %v3524 = vrot.slane %v2934, 7
          %v3525 = vrot.slane %v2935, 6
          %v3526 = vsel %vm2959, %v3525, %v3524
          %v3527 = vsel %vm1119, %v3526, 0
          %3529 = vmatprep.subr.mxu0 0.0
          %3530 = vmatpush1.msra.mxu0 0.0
          %3531 = vmatprep.subr.mxu0 0.0
          %3532 = vmatpush1.msra.mxu0 0.0
          %3533 = vmatprep.subr.mxu0 0.0
          %3534 = vmatpush1.msra.mxu0 0.0
          %3535 = vmatprep.subr.mxu0 0.0
          %3536 = vmatpush1.msra.mxu0 0.0
          %3537 = vmatprep.subr.mxu0 0.0
          %3538 = vmatpush1.msra.mxu0 0.0
          %3539 = vmatprep.subr.mxu0 0.0
          %3540 = vmatpush1.msra.mxu0 0.0
          %3541 = vmatprep.subr.mxu0 0.0
          %3542 = vmatpush1.msra.mxu0 0.0
          %3543 = vmatprep.subr.mxu0 0.0
          %3544 = vmatpush1.msra.mxu0 0.0
          %3545 = vmatprep.subr.mxu0 0.0
          %3546 = vmatpush1.msra.mxu0 0.0
          %3547 = vmatprep.subr.mxu0 0.0
          %3548 = vmatpush1.msra.mxu0 0.0
          %3549 = vmatprep.subr.mxu0 0.0
          %3550 = vmatpush1.msra.mxu0 0.0
          %3551 = vmatprep.subr.mxu0 0.0
          %3552 = vmatpush1.msra.mxu0 0.0
          %3553 = vmatprep.subr.mxu0 0.0
          %3554 = vmatpush1.msra.mxu0 %v3523
          %3555 = vmatprep.subr.mxu0 0.0
          %3556 = vmatpush1.msra.mxu0 %v3522
          %3557 = vmatprep.subr.mxu0 0.0
          %3558 = vmatpush1.msra.mxu0 %v3521
          %3559 = vmatprep.subr.mxu0 0.0
          %3560 = vmatpush1.msra.mxu0 %v3520
          %3561 = vmatprep.subr.mxu0 0.0
          %3562 = vmatpush2.msra.mxu0 0.0
          %3563 = vmatprep.subr.mxu0 0.0
          %3564 = vmatpush2.msra.mxu0 0.0
          %3565 = vmatprep.subr.mxu0 0.0
          %3566 = vmatpush2.msra.mxu0 0.0
          %3567 = vmatprep.subr.mxu0 0.0
          %3568 = vmatpush2.msra.mxu0 0.0
          %3569 = vmatprep.subr.mxu0 0.0
          %3570 = vmatpush2.msra.mxu0 0.0
          %3571 = vmatprep.subr.mxu0 0.0
          %3572 = vmatpush2.msra.mxu0 0.0
          %3573 = vmatprep.subr.mxu0 0.0
          %3574 = vmatpush2.msra.mxu0 0.0
          %3575 = vmatprep.subr.mxu0 0.0
          %3576 = vmatpush2.msra.mxu0 0.0
          %3577 = vmatprep.subr.mxu0 0.0
          %3578 = vmatpush2.msra.mxu0 0.0
          %3579 = vmatprep.subr.mxu0 0.0
          %3580 = vmatpush2.msra.mxu0 0.0
          %3581 = vmatprep.subr.mxu0 0.0
          %3582 = vmatpush2.msra.mxu0 0.0
          %3583 = vmatprep.subr.mxu0 0.0
          %3584 = vmatpush2.msra.mxu0 0.0
          %3585 = vmatprep.subr.mxu0 0.0
          %3586 = vmatpush2.msra.mxu0 0.0
          %3587 = vmatprep.subr.mxu0 0.0
          %3588 = vmatpush2.msra.mxu0 0.0
          %3589 = vmatprep.subr.mxu0 0.0
          %3590 = vmatpush2.msra.mxu0 0.0
          %3591 = vmatprep.subr.mxu0 0.0
          %3592 = vmatpush2.msra.mxu0 0.0
          %3593 = vmatprep.mubr.f32.mxu0 0.0
          %3594 = vmatmul.mubr.f32.gmra.mxu0 %v3527
          %v3595 = vpop.f32.mrf.mxu0
          %v3596 = vadd.f32 0.0, %v3595
          %v3597 = vpop.f32.mrf.mxu0
          %3598 = vdwg.mxu0
          %v3599 = vadd.f32 %v3518, %v3596
          %v3600 = vmax.f32 %v3599, 0.0
          %v3601 = vld [vmem:[%s18] sm:$0xff]
          %v3602 = vld [vmem:[%s18 + $0x8] sm:$0xff]
          %v3603 = vld [vmem:[%s18 + $0x10] sm:$0xff]
          %v3604 = vld [vmem:[%s18 + $0x18] sm:$0xff]
          %v3605 = vld [vmem:[#allocation17] sm:$0x1]
          %v3607 = vlaneseq
          %v3608 = vshrl.u32 %v3607, 7
          %v3609 = vsub.s32 0, %v3608
          %v3610 = vrot.slane %v3605, %v3609
          %v3613 = vsel %vm1119, %v3600, 0
          %3615 = vmatprep.subr.mxu0 0.0
          %3616 = vmatpush1.msra.mxu0 0.0
          %3617 = vmatprep.subr.mxu0 0.0
          %3618 = vmatpush1.msra.mxu0 0.0
          %3619 = vmatprep.subr.mxu0 0.0
          %3620 = vmatpush1.msra.mxu0 0.0
          %3621 = vmatprep.subr.mxu0 0.0
          %3622 = vmatpush1.msra.mxu0 0.0
          %3623 = vmatprep.subr.mxu0 0.0
          %3624 = vmatpush1.msra.mxu0 0.0
          %3625 = vmatprep.subr.mxu0 0.0
          %3626 = vmatpush1.msra.mxu0 0.0
          %3627 = vmatprep.subr.mxu0 0.0
          %3628 = vmatpush1.msra.mxu0 0.0
          %3629 = vmatprep.subr.mxu0 0.0
          %3630 = vmatpush1.msra.mxu0 0.0
          %3631 = vmatprep.subr.mxu0 0.0
          %3632 = vmatpush1.msra.mxu0 0.0
          %3633 = vmatprep.subr.mxu0 0.0
          %3634 = vmatpush1.msra.mxu0 0.0
          %3635 = vmatprep.subr.mxu0 0.0
          %3636 = vmatpush1.msra.mxu0 0.0
          %3637 = vmatprep.subr.mxu0 0.0
          %3638 = vmatpush1.msra.mxu0 0.0
          %3639 = vmatprep.subr.mxu0 0.0
          %3640 = vmatpush1.msra.mxu0 %v3604
          %3641 = vmatprep.subr.mxu0 0.0
          %3642 = vmatpush1.msra.mxu0 %v3603
          %3643 = vmatprep.subr.mxu0 0.0
          %3644 = vmatpush1.msra.mxu0 %v3602
          %3645 = vmatprep.subr.mxu0 0.0
          %3646 = vmatpush1.msra.mxu0 %v3601
          %3647 = vmatprep.subr.mxu0 0.0
          %3648 = vmatpush2.msra.mxu0 0.0
          %3649 = vmatprep.subr.mxu0 0.0
          %3650 = vmatpush2.msra.mxu0 0.0
          %3651 = vmatprep.subr.mxu0 0.0
          %3652 = vmatpush2.msra.mxu0 0.0
          %3653 = vmatprep.subr.mxu0 0.0
          %3654 = vmatpush2.msra.mxu0 0.0
          %3655 = vmatprep.subr.mxu0 0.0
          %3656 = vmatpush2.msra.mxu0 0.0
          %3657 = vmatprep.subr.mxu0 0.0
          %3658 = vmatpush2.msra.mxu0 0.0
          %3659 = vmatprep.subr.mxu0 0.0
          %3660 = vmatpush2.msra.mxu0 0.0
          %3661 = vmatprep.subr.mxu0 0.0
          %3662 = vmatpush2.msra.mxu0 0.0
          %3663 = vmatprep.subr.mxu0 0.0
          %3664 = vmatpush2.msra.mxu0 0.0
          %3665 = vmatprep.subr.mxu0 0.0
          %3666 = vmatpush2.msra.mxu0 0.0
          %3667 = vmatprep.subr.mxu0 0.0
          %3668 = vmatpush2.msra.mxu0 0.0
          %3669 = vmatprep.subr.mxu0 0.0
          %3670 = vmatpush2.msra.mxu0 0.0
          %3671 = vmatprep.subr.mxu0 0.0
          %3672 = vmatpush2.msra.mxu0 0.0
          %3673 = vmatprep.subr.mxu0 0.0
          %3674 = vmatpush2.msra.mxu0 0.0
          %3675 = vmatprep.subr.mxu0 0.0
          %3676 = vmatpush2.msra.mxu0 0.0
          %3677 = vmatprep.subr.mxu0 0.0
          %3678 = vmatpush2.msra.mxu0 0.0
          %3679 = vmatprep.mubr.f32.mxu0 0.0
          %3680 = vmatmul.mubr.f32.gmra.mxu0 %v3613
          %v3681 = vpop.f32.mrf.mxu0
          %v3682 = vadd.f32 %v3610, %v3681
          %v3683 = vpop.f32.mrf.mxu0
          %3684 = vdwg.mxu0
          %vm3685 = vcmask 17408
          %3686 = vst.msk [vmem:[#allocation19] sm:$0x3] %vm3685, %v3682
        $region156: #{smtp_forward.2} parent=99 // pred_fallthru
          _
        // Predicated region
        $region157: #{smtp_forward.2} parent=99 // pred_check
          %p3687 = pneg %p530
        $region158: #{smtp_forward.2} parent=99 // pred_check_branch
          %3689 = sbr.rel (%p3687) target = $region160
        $region159: #{smtp_forward.2} parent=99 // pred_region
          _
        $region160: #{smtp_forward.2} parent=99 // pred_fallthru
          _
        // Predicated region
        $region161: #{smtp_forward.2} parent=99 // pred_check
          %p3690 = pneg %p551
        $region162: #{smtp_forward.2} parent=99 // pred_check_branch
          %3692 = sbr.rel (%p3690) target = $region164
        $region163: #{smtp_forward.2} parent=99 // pred_region
          %s3694 = ssub.s32 32, 32
          %3695 = vsyncadd [#allocation5], %s3694
          %s3697 = sshll.u32 [#allocation19], 4
          %s3698 = int_to_ptr.vmem [resolvable:$true] %s3697
          %3700 = dma.vmem_to_hbm [thread:$0]  %s3698, 32, %s21, [#allocation5]
        $region164: #{smtp_forward.2} parent=99 // pred_fallthru
          _
        // Predicated region
        $region165: #{smtp_forward.2} parent=99 // pred_check
          %p3701 = pneg %p530
        $region166: #{smtp_forward.2} parent=99 // pred_check_branch
          %3703 = sbr.rel (%p3701) target = $region168
        $region167: #{smtp_forward.2} parent=99 // pred_region
          _
        $region168: #{smtp_forward.2} parent=99 // pred_fallthru
          _
        // Predicated region
        $region169: #{smtp_forward.2} parent=99 // pred_check
          %p3704 = pneg %p551
        $region170: #{smtp_forward.2} parent=99 // pred_check_branch
          %3706 = sbr.rel (%p3704) target = $region172
        $region171: #{smtp_forward.2} parent=99 // pred_region
          %3707 = dma.done [#allocation5], 32
        $region172: #{smtp_forward.2} parent=99 // pred_fallthru
          _
      $region100: #{smtp_forward.2} parent=5 // pred_fallthru
        _
      %p3708 = scmp.le.s32.totalorder 2, %s32
      // Predicated region
      $region173: #{smtp_forward.2} parent=5 // pred_check
        %p3709 = pneg %p3708
      $region174: #{smtp_forward.2} parent=5 // pred_check_branch
        %3711 = sbr.rel (%p3709) target = $region176
      $region175: #{smtp_forward.2} parent=5 // pred_region
        %s3712 = ssub.s32 %s32, 2
      $region176: #{smtp_forward.2} parent=5 // pred_fallthru
        _
    $region6: #{smtp_forward.2} parent=1 // loop_footer
      %s36 = sadd.s32 1, %s32
    $region7: #{smtp_forward.2} parent=1 // loop_footer_branch
      %31 = sbr.rel target = $region3
    $region8: #{smtp_forward.2} parent=1 // loop_exit
      _
    %3713 = vsyncpa [#allocation4], 1
    %s3714 = scalar_lea.sflag [#allocation4], 1
    %3715 = vsyncpa %s3714, 1
    %3716 = vsyncpa [#allocation7], 1
    %3717 = vsyncpa [#allocation18], 1
    %3718 = vsyncpa [#allocation5], 1
    %s3719 = scalar_lea.sflag [#allocation5], 1
    %3720 = vsyncpa %s3719, 1

// kernel: smtp_forward.3
$region0: #{smtp_forward.3}
  #allocation0 [shape = 'u32[]', space=smem, size = 0x4, offset = 0x4, fixed_abs, tag = 'smem constant byte address 0x4 - core index']
  #allocation1 [shape = 'u32[144,128]{1,0:T(1,128)}', space=vmem, size = 0x12000, scoped, tag = 'internal scratch']
  #allocation2 [shape = 'f32[16,32]{1,0:T(8,128)}', space=vmem, size = 0x2000, scoped, tag = 'scratch operand']
  %s0 = inlined_call_operand.vmem [shape: f32[2,8,2], index: 0, kind: input, shape index: {}]
  %s1 = inlined_call_operand.vmem [shape: f32[8,32], index: 1, kind: input, shape index: {}]
  %s2 = inlined_call_operand.vmem [shape: f32[2,32], index: 2, kind: input, shape index: {}]
  %s3 = inlined_call_operand.hbm [shape: f32[1,32], index: 3, kind: input, shape index: {}]
  %s4 = inlined_call_operand.vmem [shape: f32[2,8,32], index: 4, kind: input, shape index: {}]
  %s5 = inlined_call_operand.vmem [shape: f32[8,8], index: 5, kind: input, shape index: {}]
  %s6 = inlined_call_operand.vmem [shape: f32[3,2,32,96], index: 6, kind: input, shape index: {}]
  %s7 = inlined_call_operand.vmem [shape: f32[3,2,1,96], index: 7, kind: input, shape index: {}]
  %s8 = inlined_call_operand.vmem [shape: f32[3,2,32,32], index: 8, kind: input, shape index: {}]
  %s9 = inlined_call_operand.vmem [shape: f32[3,2,1,32], index: 9, kind: input, shape index: {}]
  %s10 = inlined_call_operand.vmem [shape: f32[3,2,1,32], index: 10, kind: input, shape index: {}]
  %s11 = inlined_call_operand.vmem [shape: f32[3,2,1,32], index: 11, kind: input, shape index: {}]
  %s12 = inlined_call_operand.vmem [shape: f32[3,2,32,96], index: 12, kind: input, shape index: {}]
  %s13 = inlined_call_operand.vmem [shape: f32[3,2,1,96], index: 13, kind: input, shape index: {}]
  %s14 = inlined_call_operand.vmem [shape: f32[3,2,32,32], index: 14, kind: input, shape index: {}]
  %s15 = inlined_call_operand.vmem [shape: f32[3,2,1,32], index: 15, kind: input, shape index: {}]
  %s16 = inlined_call_operand.vmem [shape: f32[3,2,1,32], index: 16, kind: input, shape index: {}]
  %s17 = inlined_call_operand.vmem [shape: f32[3,2,1,32], index: 17, kind: input, shape index: {}]
  %s18 = inlined_call_operand.vmem [shape: f32[3,2,32,64], index: 18, kind: input, shape index: {}]
  %s19 = inlined_call_operand.vmem [shape: f32[3,2,1,64], index: 19, kind: input, shape index: {}]
  %s20 = inlined_call_operand.vmem [shape: f32[3,2,64,32], index: 20, kind: input, shape index: {}]
  %s21 = inlined_call_operand.vmem [shape: f32[3,2,1,32], index: 21, kind: input, shape index: {}]
  %s22 = inlined_call_operand.vmem [shape: f32[3,2,1,32], index: 22, kind: input, shape index: {}]
  %s23 = inlined_call_operand.vmem [shape: f32[3,2,1,32], index: 23, kind: input, shape index: {}]
  %s24 = inlined_call_operand.vmem [shape: f32[3,32,2], index: 24, kind: input, shape index: {}]
  %s25 = inlined_call_operand.vmem [shape: f32[3,1,2], index: 25, kind: input, shape index: {}]
  %s26 = inlined_call_operand.vmem [shape: f32[2,3,8,2], index: 26, kind: output, shape index: {}]
  %s27 = sld [smem:[#allocation0]]
  $region183: #{smtp_forward.3} parent=0
    _
  %s29 = ssub.s32 1, %s27
  %s30 = scalar_select 0, %s29, %s27
  $region1: #{smtp_forward.3} parent=0
    #allocation3 [shape = 'u8[512]{0}', space=vmem, size = 0x400, scoped, tag = 'input window, operand 3, single buffered']
    #allocation4 [shape = 's32[2]{0}', space=sflag, size = 0x8, scoped, tag = 'scoped memory for smtp_forward.3']
    #allocation5 [shape = 'u8[16384]{0}', space=vmem, size = 0x4000, scoped, tag = 'output window, operand 0']
    %31 = vsyncpa [#allocation4], 0
    loop: start=0, step=1, limit=8
    $region2: #{smtp_forward.3} parent=1 // loop_pre_header
      _
    $region3: #{smtp_forward.3} parent=1 // loop_header
      %s33 = sphi 0, %s37
      %p34 = scmp.ge.s32.totalorder %s33, 8
      %s40 = sphi 0, %s52
      %s41 = sphi 0, %s48
      %s42 = sphi 0, %s40
      %s43 = sphi 0, %s41
      %s44 = sphi 0, %s42
      %s45 = sphi 0, %s43
      %s53 = sphi 0, %s53
      %s55 = sphi 0, %s53
      %s56 = sphi 0, %s55
      %s70 = sphi 0, %s56
      %s74 = sphi 0, %s74
      %s76 = sphi 0, %s74
      %s77 = sphi 0, %s76
      %s91 = sphi 0, %s77
      %s95 = sphi 0, %s95
      %s97 = sphi 0, %s95
      %s98 = sphi 0, %s97
      %s112 = sphi 0, %s98
      %s116 = sphi 0, %s116
      %s118 = sphi 0, %s116
      %s119 = sphi 0, %s118
      %s133 = sphi 0, %s119
      %s137 = sphi 0, %s137
      %s139 = sphi 0, %s137
      %s140 = sphi 0, %s139
      %s154 = sphi 0, %s140
      %s158 = sphi 0, %s158
      %s160 = sphi 0, %s158
      %s161 = sphi 0, %s160
      %s175 = sphi 0, %s161
      %s183 = sphi 0, %s185
      %s186 = sphi 0, %s183
      %s187 = sphi 0, %s186
      %s203 = sphi 0, %s187
      %s211 = sphi 0, %s213
      %s214 = sphi 0, %s211
      %s215 = sphi 0, %s214
      %s231 = sphi 0, %s215
      %s239 = sphi 0, %s241
      %s242 = sphi 0, %s239
      %s243 = sphi 0, %s242
      %s259 = sphi 0, %s243
      %s267 = sphi 0, %s269
      %s270 = sphi 0, %s267
      %s271 = sphi 0, %s270
      %s287 = sphi 0, %s271
      %s295 = sphi 0, %s297
      %s298 = sphi 0, %s295
      %s299 = sphi 0, %s298
      %s315 = sphi 0, %s299
      %s323 = sphi 0, %s325
      %s326 = sphi 0, %s323
      %s327 = sphi 0, %s326
      %s343 = sphi 0, %s327
      %s351 = sphi 0, %s353
      %s354 = sphi 0, %s351
      %s355 = sphi 0, %s354
      %s371 = sphi 0, %s355
      %s379 = sphi 0, %s381
      %s382 = sphi 0, %s379
      %s383 = sphi 0, %s382
      %s399 = sphi 0, %s383
      %s407 = sphi 0, %s409
      %s410 = sphi 0, %s407
      %s411 = sphi 0, %s410
      %s427 = sphi 0, %s411
      %s435 = sphi 0, %s437
      %s438 = sphi 0, %s435
      %s439 = sphi 0, %s438
      %s455 = sphi 0, %s439
      %s463 = sphi 0, %s465
      %s466 = sphi 0, %s463
      %s467 = sphi 0, %s466
      %s483 = sphi 0, %s467
      %s491 = sphi 0, %s493
      %s494 = sphi 0, %s491
      %s495 = sphi 0, %s494
      %s511 = sphi 0, %s495
      %s519 = sphi 0, %s521
      %s522 = sphi 0, %s519
      %s523 = sphi 0, %s522
      %s539 = sphi 0, %s523
      %s547 = sphi 0, %s549
      %s550 = sphi 0, %s547
      %s551 = sphi 0, %s550
      %s567 = sphi 0, %s551
      %s575 = sphi 0, %s577
      %s578 = sphi 0, %s575
      %s579 = sphi 0, %s578
      %s595 = sphi 0, %s579
      %s603 = sphi 0, %s605
      %s606 = sphi 0, %s603
      %s607 = sphi 0, %s606
      %s623 = sphi 0, %s607
      %s631 = sphi 0, %s633
      %s634 = sphi 0, %s631
      %s635 = sphi 0, %s634
      %s651 = sphi 0, %s635
      %s659 = sphi 0, %s661
      %s662 = sphi 0, %s659
      %s663 = sphi 0, %s662
      %s679 = sphi 0, %s663
      %s685 = sphi 0, %s687
      %s688 = sphi 0, %s685
      %s689 = sphi 0, %s688
      %s705 = sphi 0, %s689
      %s711 = sphi 0, %s713
      %s714 = sphi 0, %s711
      %s715 = sphi 0, %s714
      %s731 = sphi 0, %s715
      %s737 = sphi 0, %s739
      %s740 = sphi 0, %s737
      %s741 = sphi 0, %s740
      %s757 = sphi 0, %s741
    $region4: #{smtp_forward.3} parent=1 // loop_header_branch
      %36 = sbr.rel (%p34) target = $region8
    $region5: #{smtp_forward.3} parent=1 // loop_body
      %s38 = ssub.s32 %s33, 1
      %s39 = ssub.s32 %s33, 2
      %s46 = sadd.s32 1, %s41
      %p47 = scmp.ge.s32.totalorder %s46, 2
      %s48 = scalar_select %p47, 0, %s46
      %s49 = sadd.s32 1, %s40
      %s50 = scalar_select %p47, %s49, %s40
      %p51 = scmp.ge.s32.totalorder %s50, 3
      %s52 = scalar_select %p51, 0, %s50
      %s54 = sadd.s32 %s53, 1
      %p57 = scmp.eq.s32.totalorder %s33, 5
      %p58 = scmp.ne.s32.totalorder %s53, %s55
      %p59 = scmp.eq.s32.totalorder %s33, 0
      %p60 = por %p58, %p59
      %p61 = scmp.ne.s32.totalorder %s53, %s55
      %p62 = scmp.eq.s32.totalorder %s38, 5
      %p63 = por %p61, %p62
      %p64 = scmp.ne.s32.totalorder %s55, %s56
      %p65 = scmp.eq.s32.totalorder %s38, 0
      %p66 = por %p64, %p65
      %p67 = scmp.ne.s32.totalorder %s55, %s56
      %p68 = scmp.eq.s32.totalorder %s39, 5
      %p69 = por %p67, %p68
      %p71 = scmp.ne.s32.totalorder %s56, %s70
      %p72 = scmp.eq.s32.totalorder %s39, 0
      %p73 = por %p71, %p72
      %s75 = sadd.s32 %s74, 1
      %p78 = scmp.eq.s32.totalorder %s33, 5
      %p79 = scmp.ne.s32.totalorder %s74, %s76
      %p80 = scmp.eq.s32.totalorder %s33, 0
      %p81 = por %p79, %p80
      %p82 = scmp.ne.s32.totalorder %s74, %s76
      %p83 = scmp.eq.s32.totalorder %s38, 5
      %p84 = por %p82, %p83
      %p85 = scmp.ne.s32.totalorder %s76, %s77
      %p86 = scmp.eq.s32.totalorder %s38, 0
      %p87 = por %p85, %p86
      %p88 = scmp.ne.s32.totalorder %s76, %s77
      %p89 = scmp.eq.s32.totalorder %s39, 5
      %p90 = por %p88, %p89
      %p92 = scmp.ne.s32.totalorder %s77, %s91
      %p93 = scmp.eq.s32.totalorder %s39, 0
      %p94 = por %p92, %p93
      %s96 = sadd.s32 %s95, 1
      %p99 = scmp.eq.s32.totalorder %s33, 5
      %p100 = scmp.ne.s32.totalorder %s95, %s97
      %p101 = scmp.eq.s32.totalorder %s33, 0
      %p102 = por %p100, %p101
      %p103 = scmp.ne.s32.totalorder %s95, %s97
      %p104 = scmp.eq.s32.totalorder %s38, 5
      %p105 = por %p103, %p104
      %p106 = scmp.ne.s32.totalorder %s97, %s98
      %p107 = scmp.eq.s32.totalorder %s38, 0
      %p108 = por %p106, %p107
      %p109 = scmp.ne.s32.totalorder %s97, %s98
      %p110 = scmp.eq.s32.totalorder %s39, 5
      %p111 = por %p109, %p110
      %p113 = scmp.ne.s32.totalorder %s98, %s112
      %p114 = scmp.eq.s32.totalorder %s39, 0
      %p115 = por %p113, %p114
      %s117 = sadd.s32 %s116, 1
      %p120 = scmp.eq.s32.totalorder %s33, 5
      %p121 = scmp.ne.s32.totalorder %s116, %s118
      %p122 = scmp.eq.s32.totalorder %s33, 0
      %p123 = por %p121, %p122
      %p124 = scmp.ne.s32.totalorder %s116, %s118
      %p125 = scmp.eq.s32.totalorder %s38, 5
      %p126 = por %p124, %p125
      %p127 = scmp.ne.s32.totalorder %s118, %s119
      %p128 = scmp.eq.s32.totalorder %s38, 0
      %p129 = por %p127, %p128
      %p130 = scmp.ne.s32.totalorder %s118, %s119
      %p131 = scmp.eq.s32.totalorder %s39, 5
      %p132 = por %p130, %p131
      %p134 = scmp.ne.s32.totalorder %s119, %s133
      %p135 = scmp.eq.s32.totalorder %s39, 0
      %p136 = por %p134, %p135
      %s138 = sadd.s32 %s137, 1
      %p141 = scmp.eq.s32.totalorder %s33, 5
      %p142 = scmp.ne.s32.totalorder %s137, %s139
      %p143 = scmp.eq.s32.totalorder %s33, 0
      %p144 = por %p142, %p143
      %p145 = scmp.ne.s32.totalorder %s137, %s139
      %p146 = scmp.eq.s32.totalorder %s38, 5
      %p147 = por %p145, %p146
      %p148 = scmp.ne.s32.totalorder %s139, %s140
      %p149 = scmp.eq.s32.totalorder %s38, 0
      %p150 = por %p148, %p149
      %p151 = scmp.ne.s32.totalorder %s139, %s140
      %p152 = scmp.eq.s32.totalorder %s39, 5
      %p153 = por %p151, %p152
      %p155 = scmp.ne.s32.totalorder %s140, %s154
      %p156 = scmp.eq.s32.totalorder %s39, 0
      %p157 = por %p155, %p156
      %s159 = sadd.s32 %s158, 1
      %p162 = scmp.eq.s32.totalorder %s33, 5
      %p163 = scmp.ne.s32.totalorder %s158, %s160
      %p164 = scmp.eq.s32.totalorder %s33, 0
      %p165 = por %p163, %p164
      %p166 = scmp.ne.s32.totalorder %s158, %s160
      %p167 = scmp.eq.s32.totalorder %s38, 5
      %p168 = por %p166, %p167
      %p169 = scmp.ne.s32.totalorder %s160, %s161
      %p170 = scmp.eq.s32.totalorder %s38, 0
      %p171 = por %p169, %p170
      %p172 = scmp.ne.s32.totalorder %s160, %s161
      %p173 = scmp.eq.s32.totalorder %s39, 5
      %p174 = por %p172, %p173
      %p176 = scmp.ne.s32.totalorder %s161, %s175
      %p177 = scmp.eq.s32.totalorder %s39, 0
      %p178 = por %p176, %p177
      %s179 = ssub.s32 %s40, %s52
      %s180 = ssub.s32 %s41, %s48
      %s181 = sor.u32 %s179, %s180
      %p182 = scmp.eq.s32.totalorder %s181, 0
      %s184 = sadd.s32 %s183, 1
      %s185 = scalar_select %p182, %s183, %s184
      %p188 = pneg %p182
      %p189 = scmp.eq.s32.totalorder %s33, 5
      %p190 = por %p188, %p189
      %p191 = scmp.ne.s32.totalorder %s183, %s186
      %p192 = scmp.eq.s32.totalorder %s33, 0
      %p193 = por %p191, %p192
      %p194 = scmp.ne.s32.totalorder %s183, %s186
      %p195 = scmp.eq.s32.totalorder %s38, 5
      %p196 = por %p194, %p195
      %p197 = scmp.ne.s32.totalorder %s186, %s187
      %p198 = scmp.eq.s32.totalorder %s38, 0
      %p199 = por %p197, %p198
      %p200 = scmp.ne.s32.totalorder %s186, %s187
      %p201 = scmp.eq.s32.totalorder %s39, 5
      %p202 = por %p200, %p201
      %p204 = scmp.ne.s32.totalorder %s187, %s203
      %p205 = scmp.eq.s32.totalorder %s39, 0
      %p206 = por %p204, %p205
      %s207 = ssub.s32 %s40, %s52
      %s208 = ssub.s32 %s41, %s48
      %s209 = sor.u32 %s207, %s208
      %p210 = scmp.eq.s32.totalorder %s209, 0
      %s212 = sadd.s32 %s211, 1
      %s213 = scalar_select %p210, %s211, %s212
      %p216 = pneg %p210
      %p217 = scmp.eq.s32.totalorder %s33, 5
      %p218 = por %p216, %p217
      %p219 = scmp.ne.s32.totalorder %s211, %s214
      %p220 = scmp.eq.s32.totalorder %s33, 0
      %p221 = por %p219, %p220
      %p222 = scmp.ne.s32.totalorder %s211, %s214
      %p223 = scmp.eq.s32.totalorder %s38, 5
      %p224 = por %p222, %p223
      %p225 = scmp.ne.s32.totalorder %s214, %s215
      %p226 = scmp.eq.s32.totalorder %s38, 0
      %p227 = por %p225, %p226
      %p228 = scmp.ne.s32.totalorder %s214, %s215
      %p229 = scmp.eq.s32.totalorder %s39, 5
      %p230 = por %p228, %p229
      %p232 = scmp.ne.s32.totalorder %s215, %s231
      %p233 = scmp.eq.s32.totalorder %s39, 0
      %p234 = por %p232, %p233
      %s235 = ssub.s32 %s40, %s52
      %s236 = ssub.s32 %s41, %s48
      %s237 = sor.u32 %s235, %s236
      %p238 = scmp.eq.s32.totalorder %s237, 0
      %s240 = sadd.s32 %s239, 1
      %s241 = scalar_select %p238, %s239, %s240
      %p244 = pneg %p238
      %p245 = scmp.eq.s32.totalorder %s33, 5
      %p246 = por %p244, %p245
      %p247 = scmp.ne.s32.totalorder %s239, %s242
      %p248 = scmp.eq.s32.totalorder %s33, 0
      %p249 = por %p247, %p248
      %p250 = scmp.ne.s32.totalorder %s239, %s242
      %p251 = scmp.eq.s32.totalorder %s38, 5
      %p252 = por %p250, %p251
      %p253 = scmp.ne.s32.totalorder %s242, %s243
      %p254 = scmp.eq.s32.totalorder %s38, 0
      %p255 = por %p253, %p254
      %p256 = scmp.ne.s32.totalorder %s242, %s243
      %p257 = scmp.eq.s32.totalorder %s39, 5
      %p258 = por %p256, %p257
      %p260 = scmp.ne.s32.totalorder %s243, %s259
      %p261 = scmp.eq.s32.totalorder %s39, 0
      %p262 = por %p260, %p261
      %s263 = ssub.s32 %s40, %s52
      %s264 = ssub.s32 %s41, %s48
      %s265 = sor.u32 %s263, %s264
      %p266 = scmp.eq.s32.totalorder %s265, 0
      %s268 = sadd.s32 %s267, 1
      %s269 = scalar_select %p266, %s267, %s268
      %p272 = pneg %p266
      %p273 = scmp.eq.s32.totalorder %s33, 5
      %p274 = por %p272, %p273
      %p275 = scmp.ne.s32.totalorder %s267, %s270
      %p276 = scmp.eq.s32.totalorder %s33, 0
      %p277 = por %p275, %p276
      %p278 = scmp.ne.s32.totalorder %s267, %s270
      %p279 = scmp.eq.s32.totalorder %s38, 5
      %p280 = por %p278, %p279
      %p281 = scmp.ne.s32.totalorder %s270, %s271
      %p282 = scmp.eq.s32.totalorder %s38, 0
      %p283 = por %p281, %p282
      %p284 = scmp.ne.s32.totalorder %s270, %s271
      %p285 = scmp.eq.s32.totalorder %s39, 5
      %p286 = por %p284, %p285
      %p288 = scmp.ne.s32.totalorder %s271, %s287
      %p289 = scmp.eq.s32.totalorder %s39, 0
      %p290 = por %p288, %p289
      %s291 = ssub.s32 %s40, %s52
      %s292 = ssub.s32 %s41, %s48
      %s293 = sor.u32 %s291, %s292
      %p294 = scmp.eq.s32.totalorder %s293, 0
      %s296 = sadd.s32 %s295, 1
      %s297 = scalar_select %p294, %s295, %s296
      %p300 = pneg %p294
      %p301 = scmp.eq.s32.totalorder %s33, 5
      %p302 = por %p300, %p301
      %p303 = scmp.ne.s32.totalorder %s295, %s298
      %p304 = scmp.eq.s32.totalorder %s33, 0
      %p305 = por %p303, %p304
      %p306 = scmp.ne.s32.totalorder %s295, %s298
      %p307 = scmp.eq.s32.totalorder %s38, 5
      %p308 = por %p306, %p307
      %p309 = scmp.ne.s32.totalorder %s298, %s299
      %p310 = scmp.eq.s32.totalorder %s38, 0
      %p311 = por %p309, %p310
      %p312 = scmp.ne.s32.totalorder %s298, %s299
      %p313 = scmp.eq.s32.totalorder %s39, 5
      %p314 = por %p312, %p313
      %p316 = scmp.ne.s32.totalorder %s299, %s315
      %p317 = scmp.eq.s32.totalorder %s39, 0
      %p318 = por %p316, %p317
      %s319 = ssub.s32 %s40, %s52
      %s320 = ssub.s32 %s41, %s48
      %s321 = sor.u32 %s319, %s320
      %p322 = scmp.eq.s32.totalorder %s321, 0
      %s324 = sadd.s32 %s323, 1
      %s325 = scalar_select %p322, %s323, %s324
      %p328 = pneg %p322
      %p329 = scmp.eq.s32.totalorder %s33, 5
      %p330 = por %p328, %p329
      %p331 = scmp.ne.s32.totalorder %s323, %s326
      %p332 = scmp.eq.s32.totalorder %s33, 0
      %p333 = por %p331, %p332
      %p334 = scmp.ne.s32.totalorder %s323, %s326
      %p335 = scmp.eq.s32.totalorder %s38, 5
      %p336 = por %p334, %p335
      %p337 = scmp.ne.s32.totalorder %s326, %s327
      %p338 = scmp.eq.s32.totalorder %s38, 0
      %p339 = por %p337, %p338
      %p340 = scmp.ne.s32.totalorder %s326, %s327
      %p341 = scmp.eq.s32.totalorder %s39, 5
      %p342 = por %p340, %p341
      %p344 = scmp.ne.s32.totalorder %s327, %s343
      %p345 = scmp.eq.s32.totalorder %s39, 0
      %p346 = por %p344, %p345
      %s347 = ssub.s32 %s40, %s52
      %s348 = ssub.s32 %s41, %s48
      %s349 = sor.u32 %s347, %s348
      %p350 = scmp.eq.s32.totalorder %s349, 0
      %s352 = sadd.s32 %s351, 1
      %s353 = scalar_select %p350, %s351, %s352
      %p356 = pneg %p350
      %p357 = scmp.eq.s32.totalorder %s33, 5
      %p358 = por %p356, %p357
      %p359 = scmp.ne.s32.totalorder %s351, %s354
      %p360 = scmp.eq.s32.totalorder %s33, 0
      %p361 = por %p359, %p360
      %p362 = scmp.ne.s32.totalorder %s351, %s354
      %p363 = scmp.eq.s32.totalorder %s38, 5
      %p364 = por %p362, %p363
      %p365 = scmp.ne.s32.totalorder %s354, %s355
      %p366 = scmp.eq.s32.totalorder %s38, 0
      %p367 = por %p365, %p366
      %p368 = scmp.ne.s32.totalorder %s354, %s355
      %p369 = scmp.eq.s32.totalorder %s39, 5
      %p370 = por %p368, %p369
      %p372 = scmp.ne.s32.totalorder %s355, %s371
      %p373 = scmp.eq.s32.totalorder %s39, 0
      %p374 = por %p372, %p373
      %s375 = ssub.s32 %s40, %s52
      %s376 = ssub.s32 %s41, %s48
      %s377 = sor.u32 %s375, %s376
      %p378 = scmp.eq.s32.totalorder %s377, 0
      %s380 = sadd.s32 %s379, 1
      %s381 = scalar_select %p378, %s379, %s380
      %p384 = pneg %p378
      %p385 = scmp.eq.s32.totalorder %s33, 5
      %p386 = por %p384, %p385
      %p387 = scmp.ne.s32.totalorder %s379, %s382
      %p388 = scmp.eq.s32.totalorder %s33, 0
      %p389 = por %p387, %p388
      %p390 = scmp.ne.s32.totalorder %s379, %s382
      %p391 = scmp.eq.s32.totalorder %s38, 5
      %p392 = por %p390, %p391
      %p393 = scmp.ne.s32.totalorder %s382, %s383
      %p394 = scmp.eq.s32.totalorder %s38, 0
      %p395 = por %p393, %p394
      %p396 = scmp.ne.s32.totalorder %s382, %s383
      %p397 = scmp.eq.s32.totalorder %s39, 5
      %p398 = por %p396, %p397
      %p400 = scmp.ne.s32.totalorder %s383, %s399
      %p401 = scmp.eq.s32.totalorder %s39, 0
      %p402 = por %p400, %p401
      %s403 = ssub.s32 %s40, %s52
      %s404 = ssub.s32 %s41, %s48
      %s405 = sor.u32 %s403, %s404
      %p406 = scmp.eq.s32.totalorder %s405, 0
      %s408 = sadd.s32 %s407, 1
      %s409 = scalar_select %p406, %s407, %s408
      %p412 = pneg %p406
      %p413 = scmp.eq.s32.totalorder %s33, 5
      %p414 = por %p412, %p413
      %p415 = scmp.ne.s32.totalorder %s407, %s410
      %p416 = scmp.eq.s32.totalorder %s33, 0
      %p417 = por %p415, %p416
      %p418 = scmp.ne.s32.totalorder %s407, %s410
      %p419 = scmp.eq.s32.totalorder %s38, 5
      %p420 = por %p418, %p419
      %p421 = scmp.ne.s32.totalorder %s410, %s411
      %p422 = scmp.eq.s32.totalorder %s38, 0
      %p423 = por %p421, %p422
      %p424 = scmp.ne.s32.totalorder %s410, %s411
      %p425 = scmp.eq.s32.totalorder %s39, 5
      %p426 = por %p424, %p425
      %p428 = scmp.ne.s32.totalorder %s411, %s427
      %p429 = scmp.eq.s32.totalorder %s39, 0
      %p430 = por %p428, %p429
      %s431 = ssub.s32 %s40, %s52
      %s432 = ssub.s32 %s41, %s48
      %s433 = sor.u32 %s431, %s432
      %p434 = scmp.eq.s32.totalorder %s433, 0
      %s436 = sadd.s32 %s435, 1
      %s437 = scalar_select %p434, %s435, %s436
      %p440 = pneg %p434
      %p441 = scmp.eq.s32.totalorder %s33, 5
      %p442 = por %p440, %p441
      %p443 = scmp.ne.s32.totalorder %s435, %s438
      %p444 = scmp.eq.s32.totalorder %s33, 0
      %p445 = por %p443, %p444
      %p446 = scmp.ne.s32.totalorder %s435, %s438
      %p447 = scmp.eq.s32.totalorder %s38, 5
      %p448 = por %p446, %p447
      %p449 = scmp.ne.s32.totalorder %s438, %s439
      %p450 = scmp.eq.s32.totalorder %s38, 0
      %p451 = por %p449, %p450
      %p452 = scmp.ne.s32.totalorder %s438, %s439
      %p453 = scmp.eq.s32.totalorder %s39, 5
      %p454 = por %p452, %p453
      %p456 = scmp.ne.s32.totalorder %s439, %s455
      %p457 = scmp.eq.s32.totalorder %s39, 0
      %p458 = por %p456, %p457
      %s459 = ssub.s32 %s40, %s52
      %s460 = ssub.s32 %s41, %s48
      %s461 = sor.u32 %s459, %s460
      %p462 = scmp.eq.s32.totalorder %s461, 0
      %s464 = sadd.s32 %s463, 1
      %s465 = scalar_select %p462, %s463, %s464
      %p468 = pneg %p462
      %p469 = scmp.eq.s32.totalorder %s33, 5
      %p470 = por %p468, %p469
      %p471 = scmp.ne.s32.totalorder %s463, %s466
      %p472 = scmp.eq.s32.totalorder %s33, 0
      %p473 = por %p471, %p472
      %p474 = scmp.ne.s32.totalorder %s463, %s466
      %p475 = scmp.eq.s32.totalorder %s38, 5
      %p476 = por %p474, %p475
      %p477 = scmp.ne.s32.totalorder %s466, %s467
      %p478 = scmp.eq.s32.totalorder %s38, 0
      %p479 = por %p477, %p478
      %p480 = scmp.ne.s32.totalorder %s466, %s467
      %p481 = scmp.eq.s32.totalorder %s39, 5
      %p482 = por %p480, %p481
      %p484 = scmp.ne.s32.totalorder %s467, %s483
      %p485 = scmp.eq.s32.totalorder %s39, 0
      %p486 = por %p484, %p485
      %s487 = ssub.s32 %s40, %s52
      %s488 = ssub.s32 %s41, %s48
      %s489 = sor.u32 %s487, %s488
      %p490 = scmp.eq.s32.totalorder %s489, 0
      %s492 = sadd.s32 %s491, 1
      %s493 = scalar_select %p490, %s491, %s492
      %p496 = pneg %p490
      %p497 = scmp.eq.s32.totalorder %s33, 5
      %p498 = por %p496, %p497
      %p499 = scmp.ne.s32.totalorder %s491, %s494
      %p500 = scmp.eq.s32.totalorder %s33, 0
      %p501 = por %p499, %p500
      %p502 = scmp.ne.s32.totalorder %s491, %s494
      %p503 = scmp.eq.s32.totalorder %s38, 5
      %p504 = por %p502, %p503
      %p505 = scmp.ne.s32.totalorder %s494, %s495
      %p506 = scmp.eq.s32.totalorder %s38, 0
      %p507 = por %p505, %p506
      %p508 = scmp.ne.s32.totalorder %s494, %s495
      %p509 = scmp.eq.s32.totalorder %s39, 5
      %p510 = por %p508, %p509
      %p512 = scmp.ne.s32.totalorder %s495, %s511
      %p513 = scmp.eq.s32.totalorder %s39, 0
      %p514 = por %p512, %p513
      %s515 = ssub.s32 %s40, %s52
      %s516 = ssub.s32 %s41, %s48
      %s517 = sor.u32 %s515, %s516
      %p518 = scmp.eq.s32.totalorder %s517, 0
      %s520 = sadd.s32 %s519, 1
      %s521 = scalar_select %p518, %s519, %s520
      %p524 = pneg %p518
      %p525 = scmp.eq.s32.totalorder %s33, 5
      %p526 = por %p524, %p525
      %p527 = scmp.ne.s32.totalorder %s519, %s522
      %p528 = scmp.eq.s32.totalorder %s33, 0
      %p529 = por %p527, %p528
      %p530 = scmp.ne.s32.totalorder %s519, %s522
      %p531 = scmp.eq.s32.totalorder %s38, 5
      %p532 = por %p530, %p531
      %p533 = scmp.ne.s32.totalorder %s522, %s523
      %p534 = scmp.eq.s32.totalorder %s38, 0
      %p535 = por %p533, %p534
      %p536 = scmp.ne.s32.totalorder %s522, %s523
      %p537 = scmp.eq.s32.totalorder %s39, 5
      %p538 = por %p536, %p537
      %p540 = scmp.ne.s32.totalorder %s523, %s539
      %p541 = scmp.eq.s32.totalorder %s39, 0
      %p542 = por %p540, %p541
      %s543 = ssub.s32 %s40, %s52
      %s544 = ssub.s32 %s41, %s48
      %s545 = sor.u32 %s543, %s544
      %p546 = scmp.eq.s32.totalorder %s545, 0
      %s548 = sadd.s32 %s547, 1
      %s549 = scalar_select %p546, %s547, %s548
      %p552 = pneg %p546
      %p553 = scmp.eq.s32.totalorder %s33, 5
      %p554 = por %p552, %p553
      %p555 = scmp.ne.s32.totalorder %s547, %s550
      %p556 = scmp.eq.s32.totalorder %s33, 0
      %p557 = por %p555, %p556
      %p558 = scmp.ne.s32.totalorder %s547, %s550
      %p559 = scmp.eq.s32.totalorder %s38, 5
      %p560 = por %p558, %p559
      %p561 = scmp.ne.s32.totalorder %s550, %s551
      %p562 = scmp.eq.s32.totalorder %s38, 0
      %p563 = por %p561, %p562
      %p564 = scmp.ne.s32.totalorder %s550, %s551
      %p565 = scmp.eq.s32.totalorder %s39, 5
      %p566 = por %p564, %p565
      %p568 = scmp.ne.s32.totalorder %s551, %s567
      %p569 = scmp.eq.s32.totalorder %s39, 0
      %p570 = por %p568, %p569
      %s571 = ssub.s32 %s40, %s52
      %s572 = ssub.s32 %s41, %s48
      %s573 = sor.u32 %s571, %s572
      %p574 = scmp.eq.s32.totalorder %s573, 0
      %s576 = sadd.s32 %s575, 1
      %s577 = scalar_select %p574, %s575, %s576
      %p580 = pneg %p574
      %p581 = scmp.eq.s32.totalorder %s33, 5
      %p582 = por %p580, %p581
      %p583 = scmp.ne.s32.totalorder %s575, %s578
      %p584 = scmp.eq.s32.totalorder %s33, 0
      %p585 = por %p583, %p584
      %p586 = scmp.ne.s32.totalorder %s575, %s578
      %p587 = scmp.eq.s32.totalorder %s38, 5
      %p588 = por %p586, %p587
      %p589 = scmp.ne.s32.totalorder %s578, %s579
      %p590 = scmp.eq.s32.totalorder %s38, 0
      %p591 = por %p589, %p590
      %p592 = scmp.ne.s32.totalorder %s578, %s579
      %p593 = scmp.eq.s32.totalorder %s39, 5
      %p594 = por %p592, %p593
      %p596 = scmp.ne.s32.totalorder %s579, %s595
      %p597 = scmp.eq.s32.totalorder %s39, 0
      %p598 = por %p596, %p597
      %s599 = ssub.s32 %s40, %s52
      %s600 = ssub.s32 %s41, %s48
      %s601 = sor.u32 %s599, %s600
      %p602 = scmp.eq.s32.totalorder %s601, 0
      %s604 = sadd.s32 %s603, 1
      %s605 = scalar_select %p602, %s603, %s604
      %p608 = pneg %p602
      %p609 = scmp.eq.s32.totalorder %s33, 5
      %p610 = por %p608, %p609
      %p611 = scmp.ne.s32.totalorder %s603, %s606
      %p612 = scmp.eq.s32.totalorder %s33, 0
      %p613 = por %p611, %p612
      %p614 = scmp.ne.s32.totalorder %s603, %s606
      %p615 = scmp.eq.s32.totalorder %s38, 5
      %p616 = por %p614, %p615
      %p617 = scmp.ne.s32.totalorder %s606, %s607
      %p618 = scmp.eq.s32.totalorder %s38, 0
      %p619 = por %p617, %p618
      %p620 = scmp.ne.s32.totalorder %s606, %s607
      %p621 = scmp.eq.s32.totalorder %s39, 5
      %p622 = por %p620, %p621
      %p624 = scmp.ne.s32.totalorder %s607, %s623
      %p625 = scmp.eq.s32.totalorder %s39, 0
      %p626 = por %p624, %p625
      %s627 = ssub.s32 %s40, %s52
      %s628 = ssub.s32 %s41, %s48
      %s629 = sor.u32 %s627, %s628
      %p630 = scmp.eq.s32.totalorder %s629, 0
      %s632 = sadd.s32 %s631, 1
      %s633 = scalar_select %p630, %s631, %s632
      %p636 = pneg %p630
      %p637 = scmp.eq.s32.totalorder %s33, 5
      %p638 = por %p636, %p637
      %p639 = scmp.ne.s32.totalorder %s631, %s634
      %p640 = scmp.eq.s32.totalorder %s33, 0
      %p641 = por %p639, %p640
      %p642 = scmp.ne.s32.totalorder %s631, %s634
      %p643 = scmp.eq.s32.totalorder %s38, 5
      %p644 = por %p642, %p643
      %p645 = scmp.ne.s32.totalorder %s634, %s635
      %p646 = scmp.eq.s32.totalorder %s38, 0
      %p647 = por %p645, %p646
      %p648 = scmp.ne.s32.totalorder %s634, %s635
      %p649 = scmp.eq.s32.totalorder %s39, 5
      %p650 = por %p648, %p649
      %p652 = scmp.ne.s32.totalorder %s635, %s651
      %p653 = scmp.eq.s32.totalorder %s39, 0
      %p654 = por %p652, %p653
      %s655 = ssub.s32 %s40, %s52
      %s656 = ssub.s32 %s41, %s48
      %s657 = sor.u32 %s655, %s656
      %p658 = scmp.eq.s32.totalorder %s657, 0
      %s660 = sadd.s32 %s659, 1
      %s661 = scalar_select %p658, %s659, %s660
      %p664 = pneg %p658
      %p665 = scmp.eq.s32.totalorder %s33, 5
      %p666 = por %p664, %p665
      %p667 = scmp.ne.s32.totalorder %s659, %s662
      %p668 = scmp.eq.s32.totalorder %s33, 0
      %p669 = por %p667, %p668
      %p670 = scmp.ne.s32.totalorder %s659, %s662
      %p671 = scmp.eq.s32.totalorder %s38, 5
      %p672 = por %p670, %p671
      %p673 = scmp.ne.s32.totalorder %s662, %s663
      %p674 = scmp.eq.s32.totalorder %s38, 0
      %p675 = por %p673, %p674
      %p676 = scmp.ne.s32.totalorder %s662, %s663
      %p677 = scmp.eq.s32.totalorder %s39, 5
      %p678 = por %p676, %p677
      %p680 = scmp.ne.s32.totalorder %s663, %s679
      %p681 = scmp.eq.s32.totalorder %s39, 0
      %p682 = por %p680, %p681
      %s683 = ssub.s32 %s40, %s52
      %p684 = scmp.eq.s32.totalorder %s683, 0
      %s686 = sadd.s32 %s685, 1
      %s687 = scalar_select %p684, %s685, %s686
      %p690 = pneg %p684
      %p691 = scmp.eq.s32.totalorder %s33, 5
      %p692 = por %p690, %p691
      %p693 = scmp.ne.s32.totalorder %s685, %s688
      %p694 = scmp.eq.s32.totalorder %s33, 0
      %p695 = por %p693, %p694
      %p696 = scmp.ne.s32.totalorder %s685, %s688
      %p697 = scmp.eq.s32.totalorder %s38, 5
      %p698 = por %p696, %p697
      %p699 = scmp.ne.s32.totalorder %s688, %s689
      %p700 = scmp.eq.s32.totalorder %s38, 0
      %p701 = por %p699, %p700
      %p702 = scmp.ne.s32.totalorder %s688, %s689
      %p703 = scmp.eq.s32.totalorder %s39, 5
      %p704 = por %p702, %p703
      %p706 = scmp.ne.s32.totalorder %s689, %s705
      %p707 = scmp.eq.s32.totalorder %s39, 0
      %p708 = por %p706, %p707
      %s709 = ssub.s32 %s40, %s52
      %p710 = scmp.eq.s32.totalorder %s709, 0
      %s712 = sadd.s32 %s711, 1
      %s713 = scalar_select %p710, %s711, %s712
      %p716 = pneg %p710
      %p717 = scmp.eq.s32.totalorder %s33, 5
      %p718 = por %p716, %p717
      %p719 = scmp.ne.s32.totalorder %s711, %s714
      %p720 = scmp.eq.s32.totalorder %s33, 0
      %p721 = por %p719, %p720
      %p722 = scmp.ne.s32.totalorder %s711, %s714
      %p723 = scmp.eq.s32.totalorder %s38, 5
      %p724 = por %p722, %p723
      %p725 = scmp.ne.s32.totalorder %s714, %s715
      %p726 = scmp.eq.s32.totalorder %s38, 0
      %p727 = por %p725, %p726
      %p728 = scmp.ne.s32.totalorder %s714, %s715
      %p729 = scmp.eq.s32.totalorder %s39, 5
      %p730 = por %p728, %p729
      %p732 = scmp.ne.s32.totalorder %s715, %s731
      %p733 = scmp.eq.s32.totalorder %s39, 0
      %p734 = por %p732, %p733
      %s735 = ssub.s32 %s40, %s52
      %p736 = scmp.eq.s32.totalorder %s735, 0
      %s738 = sadd.s32 %s737, 1
      %s739 = scalar_select %p736, %s737, %s738
      %p742 = pneg %p736
      %p743 = scmp.eq.s32.totalorder %s33, 5
      %p744 = por %p742, %p743
      %p745 = scmp.ne.s32.totalorder %s737, %s740
      %p746 = scmp.eq.s32.totalorder %s33, 0
      %p747 = por %p745, %p746
      %p748 = scmp.ne.s32.totalorder %s737, %s740
      %p749 = scmp.eq.s32.totalorder %s38, 5
      %p750 = por %p748, %p749
      %p751 = scmp.ne.s32.totalorder %s740, %s741
      %p752 = scmp.eq.s32.totalorder %s38, 0
      %p753 = por %p751, %p752
      %p754 = scmp.ne.s32.totalorder %s740, %s741
      %p755 = scmp.eq.s32.totalorder %s39, 5
      %p756 = por %p754, %p755
      %p758 = scmp.ne.s32.totalorder %s741, %s757
      %p759 = scmp.eq.s32.totalorder %s39, 0
      %p760 = por %p758, %p759
      %p761 = scmp.le.s32.totalorder 1, %s33
      %p762 = scmp.lt.s32.totalorder %s33, 7
      %p763 = pnand %p761, %p762
      %p764 = pneg %p763
      // Predicated region
      $region9: #{smtp_forward.3} parent=5 // pred_check
        _
      $region10: #{smtp_forward.3} parent=5 // pred_check_branch
        %766 = sbr.rel (%p763) target = $region12
      $region11: #{smtp_forward.3} parent=5 // pred_region
        %s767 = ssub.s32 %s33, 1
        // Predicated region
        $region13: #{smtp_forward.3} parent=11 // pred_check
          %p768 = pneg %p66
        $region14: #{smtp_forward.3} parent=11 // pred_check_branch
          %770 = sbr.rel (%p768) target = $region16
        $region15: #{smtp_forward.3} parent=11 // pred_region
          _
        $region16: #{smtp_forward.3} parent=11 // pred_fallthru
          _
        // Predicated region
        $region17: #{smtp_forward.3} parent=11 // pred_check
          %p771 = pneg %p87
        $region18: #{smtp_forward.3} parent=11 // pred_check_branch
          %773 = sbr.rel (%p771) target = $region20
        $region19: #{smtp_forward.3} parent=11 // pred_region
          _
        $region20: #{smtp_forward.3} parent=11 // pred_fallthru
          _
        // Predicated region
        $region21: #{smtp_forward.3} parent=11 // pred_check
          %p774 = pneg %p108
        $region22: #{smtp_forward.3} parent=11 // pred_check_branch
          %776 = sbr.rel (%p774) target = $region24
        $region23: #{smtp_forward.3} parent=11 // pred_region
          _
        $region24: #{smtp_forward.3} parent=11 // pred_fallthru
          _
        // Predicated region
        $region25: #{smtp_forward.3} parent=11 // pred_check
          %p777 = pneg %p129
        $region26: #{smtp_forward.3} parent=11 // pred_check_branch
          %779 = sbr.rel (%p777) target = $region28
        $region27: #{smtp_forward.3} parent=11 // pred_region
          %s781 = ssub.s32 16, 16
          %782 = vsyncadd [#allocation4], %s781
          %s784 = sshll.u32 [#allocation3], 4
          %s785 = int_to_ptr.vmem [resolvable:$true] %s784
          %787 = dma.hbm_to_vmem [thread:$0]  %s3, 16, %s785, [#allocation4]
        $region28: #{smtp_forward.3} parent=11 // pred_fallthru
          _
        // Predicated region
        $region29: #{smtp_forward.3} parent=11 // pred_check
          %p788 = pneg %p150
        $region30: #{smtp_forward.3} parent=11 // pred_check_branch
          %790 = sbr.rel (%p788) target = $region32
        $region31: #{smtp_forward.3} parent=11 // pred_region
          _
        $region32: #{smtp_forward.3} parent=11 // pred_fallthru
          _
        // Predicated region
        $region33: #{smtp_forward.3} parent=11 // pred_check
          %p791 = pneg %p171
        $region34: #{smtp_forward.3} parent=11 // pred_check_branch
          %793 = sbr.rel (%p791) target = $region36
        $region35: #{smtp_forward.3} parent=11 // pred_region
          _
        $region36: #{smtp_forward.3} parent=11 // pred_fallthru
          _
      $region12: #{smtp_forward.3} parent=5 // pred_fallthru
        _
      %p794 = scmp.lt.s32.totalorder %s33, 6
      // Predicated region
      $region37: #{smtp_forward.3} parent=5 // pred_check
        %p795 = pneg %p794
      $region38: #{smtp_forward.3} parent=5 // pred_check_branch
        %797 = sbr.rel (%p795) target = $region40
      $region39: #{smtp_forward.3} parent=5 // pred_region
        // Predicated region
        $region41: #{smtp_forward.3} parent=39 // pred_check
          %p798 = pneg %p193
        $region42: #{smtp_forward.3} parent=39 // pred_check_branch
          %800 = sbr.rel (%p798) target = $region44
        $region43: #{smtp_forward.3} parent=39 // pred_region
          %p801 = scmp.lt.s32.totalorder %s40, 2
          %s802 = scalar_select %p801, %s40, 2
          %p803 = scmp.lt.s32.totalorder %s41, 1
          %s804 = scalar_select %p803, %s41, 1
          %s805 = smul.addr %s804, 4
          %s806 = smul.addr %s802, 8
          %s807 = sadd.s32 %s805, %s806
          %s808 = smul.addr %s807, 8
          %s809 = scalar_lea.vmem %s6, %s808
        $region44: #{smtp_forward.3} parent=39 // pred_fallthru
          _
        // Predicated region
        $region45: #{smtp_forward.3} parent=39 // pred_check
          %p810 = pneg %p221
        $region46: #{smtp_forward.3} parent=39 // pred_check_branch
          %812 = sbr.rel (%p810) target = $region48
        $region47: #{smtp_forward.3} parent=39 // pred_region
          %p813 = scmp.lt.s32.totalorder %s40, 2
          %s814 = scalar_select %p813, %s40, 2
          %p815 = scmp.lt.s32.totalorder %s41, 1
          %s816 = scalar_select %p815, %s41, 1
          %s817 = smul.addr %s814, 2
          %s818 = sadd.s32 %s816, %s817
          %s819 = scalar_lea.vmem %s7, %s818
        $region48: #{smtp_forward.3} parent=39 // pred_fallthru
          _
        // Predicated region
        $region49: #{smtp_forward.3} parent=39 // pred_check
          %p820 = pneg %p249
        $region50: #{smtp_forward.3} parent=39 // pred_check_branch
          %822 = sbr.rel (%p820) target = $region52
        $region51: #{smtp_forward.3} parent=39 // pred_region
          %p823 = scmp.lt.s32.totalorder %s40, 2
          %s824 = scalar_select %p823, %s40, 2
          %p825 = scmp.lt.s32.totalorder %s41, 1
          %s826 = scalar_select %p825, %s41, 1
          %s827 = smul.addr %s826, 4
          %s828 = smul.addr %s824, 8
          %s829 = sadd.s32 %s827, %s828
          %s830 = smul.addr %s829, 8
          %s831 = scalar_lea.vmem %s8, %s830
        $region52: #{smtp_forward.3} parent=39 // pred_fallthru
          _
        // Predicated region
        $region53: #{smtp_forward.3} parent=39 // pred_check
          %p832 = pneg %p277
        $region54: #{smtp_forward.3} parent=39 // pred_check_branch
          %834 = sbr.rel (%p832) target = $region56
        $region55: #{smtp_forward.3} parent=39 // pred_region
          %p835 = scmp.lt.s32.totalorder %s40, 2
          %s836 = scalar_select %p835, %s40, 2
          %p837 = scmp.lt.s32.totalorder %s41, 1
          %s838 = scalar_select %p837, %s41, 1
          %s839 = smul.addr %s836, 2
          %s840 = sadd.s32 %s838, %s839
          %s841 = scalar_lea.vmem %s9, %s840
        $region56: #{smtp_forward.3} parent=39 // pred_fallthru
          _
        // Predicated region
        $region57: #{smtp_forward.3} parent=39 // pred_check
          %p842 = pneg %p305
        $region58: #{smtp_forward.3} parent=39 // pred_check_branch
          %844 = sbr.rel (%p842) target = $region60
        $region59: #{smtp_forward.3} parent=39 // pred_region
          %p845 = scmp.lt.s32.totalorder %s40, 2
          %s846 = scalar_select %p845, %s40, 2
          %p847 = scmp.lt.s32.totalorder %s41, 1
          %s848 = scalar_select %p847, %s41, 1
          %s849 = smul.addr %s846, 2
          %s850 = sadd.s32 %s848, %s849
          %s851 = scalar_lea.vmem %s10, %s850
        $region60: #{smtp_forward.3} parent=39 // pred_fallthru
          _
        // Predicated region
        $region61: #{smtp_forward.3} parent=39 // pred_check
          %p852 = pneg %p333
        $region62: #{smtp_forward.3} parent=39 // pred_check_branch
          %854 = sbr.rel (%p852) target = $region64
        $region63: #{smtp_forward.3} parent=39 // pred_region
          %p855 = scmp.lt.s32.totalorder %s40, 2
          %s856 = scalar_select %p855, %s40, 2
          %p857 = scmp.lt.s32.totalorder %s41, 1
          %s858 = scalar_select %p857, %s41, 1
          %s859 = smul.addr %s856, 2
          %s860 = sadd.s32 %s858, %s859
          %s861 = scalar_lea.vmem %s11, %s860
        $region64: #{smtp_forward.3} parent=39 // pred_fallthru
          _
        // Predicated region
        $region65: #{smtp_forward.3} parent=39 // pred_check
          %p862 = pneg %p361
        $region66: #{smtp_forward.3} parent=39 // pred_check_branch
          %864 = sbr.rel (%p862) target = $region68
        $region67: #{smtp_forward.3} parent=39 // pred_region
          %p865 = scmp.lt.s32.totalorder %s40, 2
          %s866 = scalar_select %p865, %s40, 2
          %p867 = scmp.lt.s32.totalorder %s41, 1
          %s868 = scalar_select %p867, %s41, 1
          %s869 = smul.addr %s868, 4
          %s870 = smul.addr %s866, 8
          %s871 = sadd.s32 %s869, %s870
          %s872 = smul.addr %s871, 8
          %s873 = scalar_lea.vmem %s12, %s872
        $region68: #{smtp_forward.3} parent=39 // pred_fallthru
          _
        // Predicated region
        $region69: #{smtp_forward.3} parent=39 // pred_check
          %p874 = pneg %p389
        $region70: #{smtp_forward.3} parent=39 // pred_check_branch
          %876 = sbr.rel (%p874) target = $region72
        $region71: #{smtp_forward.3} parent=39 // pred_region
          %p877 = scmp.lt.s32.totalorder %s40, 2
          %s878 = scalar_select %p877, %s40, 2
          %p879 = scmp.lt.s32.totalorder %s41, 1
          %s880 = scalar_select %p879, %s41, 1
          %s881 = smul.addr %s878, 2
          %s882 = sadd.s32 %s880, %s881
          %s883 = scalar_lea.vmem %s13, %s882
        $region72: #{smtp_forward.3} parent=39 // pred_fallthru
          _
        // Predicated region
        $region73: #{smtp_forward.3} parent=39 // pred_check
          %p884 = pneg %p417
        $region74: #{smtp_forward.3} parent=39 // pred_check_branch
          %886 = sbr.rel (%p884) target = $region76
        $region75: #{smtp_forward.3} parent=39 // pred_region
          %p887 = scmp.lt.s32.totalorder %s40, 2
          %s888 = scalar_select %p887, %s40, 2
          %p889 = scmp.lt.s32.totalorder %s41, 1
          %s890 = scalar_select %p889, %s41, 1
          %s891 = smul.addr %s890, 4
          %s892 = smul.addr %s888, 8
          %s893 = sadd.s32 %s891, %s892
          %s894 = smul.addr %s893, 8
          %s895 = scalar_lea.vmem %s14, %s894
        $region76: #{smtp_forward.3} parent=39 // pred_fallthru
          _
        // Predicated region
        $region77: #{smtp_forward.3} parent=39 // pred_check
          %p896 = pneg %p445
        $region78: #{smtp_forward.3} parent=39 // pred_check_branch
          %898 = sbr.rel (%p896) target = $region80
        $region79: #{smtp_forward.3} parent=39 // pred_region
          %p899 = scmp.lt.s32.totalorder %s40, 2
          %s900 = scalar_select %p899, %s40, 2
          %p901 = scmp.lt.s32.totalorder %s41, 1
          %s902 = scalar_select %p901, %s41, 1
          %s903 = smul.addr %s900, 2
          %s904 = sadd.s32 %s902, %s903
          %s905 = scalar_lea.vmem %s15, %s904
        $region80: #{smtp_forward.3} parent=39 // pred_fallthru
          _
        // Predicated region
        $region81: #{smtp_forward.3} parent=39 // pred_check
          %p906 = pneg %p473
        $region82: #{smtp_forward.3} parent=39 // pred_check_branch
          %908 = sbr.rel (%p906) target = $region84
        $region83: #{smtp_forward.3} parent=39 // pred_region
          %p909 = scmp.lt.s32.totalorder %s40, 2
          %s910 = scalar_select %p909, %s40, 2
          %p911 = scmp.lt.s32.totalorder %s41, 1
          %s912 = scalar_select %p911, %s41, 1
          %s913 = smul.addr %s910, 2
          %s914 = sadd.s32 %s912, %s913
          %s915 = scalar_lea.vmem %s16, %s914
        $region84: #{smtp_forward.3} parent=39 // pred_fallthru
          _
        // Predicated region
        $region85: #{smtp_forward.3} parent=39 // pred_check
          %p916 = pneg %p501
        $region86: #{smtp_forward.3} parent=39 // pred_check_branch
          %918 = sbr.rel (%p916) target = $region88
        $region87: #{smtp_forward.3} parent=39 // pred_region
          %p919 = scmp.lt.s32.totalorder %s40, 2
          %s920 = scalar_select %p919, %s40, 2
          %p921 = scmp.lt.s32.totalorder %s41, 1
          %s922 = scalar_select %p921, %s41, 1
          %s923 = smul.addr %s920, 2
          %s924 = sadd.s32 %s922, %s923
          %s925 = scalar_lea.vmem %s17, %s924
        $region88: #{smtp_forward.3} parent=39 // pred_fallthru
          _
        // Predicated region
        $region89: #{smtp_forward.3} parent=39 // pred_check
          %p926 = pneg %p529
        $region90: #{smtp_forward.3} parent=39 // pred_check_branch
          %928 = sbr.rel (%p926) target = $region92
        $region91: #{smtp_forward.3} parent=39 // pred_region
          %p929 = scmp.lt.s32.totalorder %s40, 2
          %s930 = scalar_select %p929, %s40, 2
          %p931 = scmp.lt.s32.totalorder %s41, 1
          %s932 = scalar_select %p931, %s41, 1
          %s933 = smul.addr %s932, 4
          %s934 = smul.addr %s930, 8
          %s935 = sadd.s32 %s933, %s934
          %s936 = smul.addr %s935, 8
          %s937 = scalar_lea.vmem %s18, %s936
        $region92: #{smtp_forward.3} parent=39 // pred_fallthru
          _
        // Predicated region
        $region93: #{smtp_forward.3} parent=39 // pred_check
          %p938 = pneg %p557
        $region94: #{smtp_forward.3} parent=39 // pred_check_branch
          %940 = sbr.rel (%p938) target = $region96
        $region95: #{smtp_forward.3} parent=39 // pred_region
          %p941 = scmp.lt.s32.totalorder %s40, 2
          %s942 = scalar_select %p941, %s40, 2
          %p943 = scmp.lt.s32.totalorder %s41, 1
          %s944 = scalar_select %p943, %s41, 1
          %s945 = smul.addr %s942, 2
          %s946 = sadd.s32 %s944, %s945
          %s947 = scalar_lea.vmem %s19, %s946
        $region96: #{smtp_forward.3} parent=39 // pred_fallthru
          _
        // Predicated region
        $region97: #{smtp_forward.3} parent=39 // pred_check
          %p948 = pneg %p585
        $region98: #{smtp_forward.3} parent=39 // pred_check_branch
          %950 = sbr.rel (%p948) target = $region100
        $region99: #{smtp_forward.3} parent=39 // pred_region
          %p951 = scmp.lt.s32.totalorder %s40, 2
          %s952 = scalar_select %p951, %s40, 2
          %p953 = scmp.lt.s32.totalorder %s41, 1
          %s954 = scalar_select %p953, %s41, 1
          %s955 = smul.addr %s954, 8
          %s956 = smul.addr %s952, 16
          %s957 = sadd.s32 %s955, %s956
          %s958 = smul.addr %s957, 8
          %s959 = scalar_lea.vmem %s20, %s958
        $region100: #{smtp_forward.3} parent=39 // pred_fallthru
          _
        // Predicated region
        $region101: #{smtp_forward.3} parent=39 // pred_check
          %p960 = pneg %p613
        $region102: #{smtp_forward.3} parent=39 // pred_check_branch
          %962 = sbr.rel (%p960) target = $region104
        $region103: #{smtp_forward.3} parent=39 // pred_region
          %p963 = scmp.lt.s32.totalorder %s40, 2
          %s964 = scalar_select %p963, %s40, 2
          %p965 = scmp.lt.s32.totalorder %s41, 1
          %s966 = scalar_select %p965, %s41, 1
          %s967 = smul.addr %s964, 2
          %s968 = sadd.s32 %s966, %s967
          %s969 = scalar_lea.vmem %s21, %s968
        $region104: #{smtp_forward.3} parent=39 // pred_fallthru
          _
        // Predicated region
        $region105: #{smtp_forward.3} parent=39 // pred_check
          %p970 = pneg %p641
        $region106: #{smtp_forward.3} parent=39 // pred_check_branch
          %972 = sbr.rel (%p970) target = $region108
        $region107: #{smtp_forward.3} parent=39 // pred_region
          %p973 = scmp.lt.s32.totalorder %s40, 2
          %s974 = scalar_select %p973, %s40, 2
          %p975 = scmp.lt.s32.totalorder %s41, 1
          %s976 = scalar_select %p975, %s41, 1
          %s977 = smul.addr %s974, 2
          %s978 = sadd.s32 %s976, %s977
          %s979 = scalar_lea.vmem %s22, %s978
        $region108: #{smtp_forward.3} parent=39 // pred_fallthru
          _
        // Predicated region
        $region109: #{smtp_forward.3} parent=39 // pred_check
          %p980 = pneg %p669
        $region110: #{smtp_forward.3} parent=39 // pred_check_branch
          %982 = sbr.rel (%p980) target = $region112
        $region111: #{smtp_forward.3} parent=39 // pred_region
          %p983 = scmp.lt.s32.totalorder %s40, 2
          %s984 = scalar_select %p983, %s40, 2
          %p985 = scmp.lt.s32.totalorder %s41, 1
          %s986 = scalar_select %p985, %s41, 1
          %s987 = smul.addr %s984, 2
          %s988 = sadd.s32 %s986, %s987
          %s989 = scalar_lea.vmem %s23, %s988
        $region112: #{smtp_forward.3} parent=39 // pred_fallthru
          _
        // Predicated region
        $region113: #{smtp_forward.3} parent=39 // pred_check
          %p990 = pneg %p695
        $region114: #{smtp_forward.3} parent=39 // pred_check_branch
          %992 = sbr.rel (%p990) target = $region116
        $region115: #{smtp_forward.3} parent=39 // pred_region
          %p993 = scmp.lt.s32.totalorder %s40, 2
          %s994 = scalar_select %p993, %s40, 2
          %s995 = smul.addr %s994, 4
          %s996 = smul.addr %s995, 8
          %s997 = scalar_lea.vmem %s24, %s996
        $region116: #{smtp_forward.3} parent=39 // pred_fallthru
          _
        // Predicated region
        $region117: #{smtp_forward.3} parent=39 // pred_check
          %p998 = pneg %p721
        $region118: #{smtp_forward.3} parent=39 // pred_check_branch
          %1000 = sbr.rel (%p998) target = $region120
        $region119: #{smtp_forward.3} parent=39 // pred_region
          %p1001 = scmp.lt.s32.totalorder %s40, 2
          %s1002 = scalar_select %p1001, %s40, 2
          %s1003 = scalar_lea.vmem %s25, %s1002
        $region120: #{smtp_forward.3} parent=39 // pred_fallthru
          _
      $region40: #{smtp_forward.3} parent=5 // pred_fallthru
        _
      %p1004 = scmp.le.s32.totalorder 1, %s33
      %p1005 = scmp.lt.s32.totalorder %s33, 7
      %p1006 = pnand %p1004, %p1005
      %p1007 = pneg %p1006
      // Predicated region
      $region121: #{smtp_forward.3} parent=5 // pred_check
        _
      $region122: #{smtp_forward.3} parent=5 // pred_check_branch
        %1009 = sbr.rel (%p1006) target = $region124
      $region123: #{smtp_forward.3} parent=5 // pred_region
        %s1010 = ssub.s32 %s33, 1
        // Predicated region
        $region125: #{smtp_forward.3} parent=123 // pred_check
          %p1011 = pneg %p129
        $region126: #{smtp_forward.3} parent=123 // pred_check_branch
          %1013 = sbr.rel (%p1011) target = $region128
        $region127: #{smtp_forward.3} parent=123 // pred_region
          %1014 = dma.done [#allocation4], 16
        $region128: #{smtp_forward.3} parent=123 // pred_fallthru
          _
        %p1015 = pneg %p66
        %p1016 = pneg %p63
        %p1017 = pneg %p87
        %p1018 = pneg %p84
        %p1019 = pneg %p108
        %p1020 = pneg %p105
        %p1021 = pneg %p129
        %p1022 = pneg %p126
        %p1023 = pneg %p150
        %p1024 = pneg %p147
        %p1025 = pneg %p171
        %p1026 = pneg %p168
        %p1027 = scmp.lt.s32.totalorder %s42, 2
        %s1028 = scalar_select %p1027, %s42, 2
        %p1029 = scmp.lt.s32.totalorder %s43, 1
        %s1030 = scalar_select %p1029, %s43, 1
        %s1031 = smul.addr %s1030, 4
        %s1032 = smul.addr %s1028, 8
        %s1033 = sadd.s32 %s1031, %s1032
        %s1034 = smul.addr %s1033, 8
        %s1035 = scalar_lea.vmem %s6, %s1034
        %p1036 = pneg %p199
        %p1037 = pneg %p196
        %p1038 = scmp.lt.s32.totalorder %s42, 2
        %s1039 = scalar_select %p1038, %s42, 2
        %p1040 = scmp.lt.s32.totalorder %s43, 1
        %s1041 = scalar_select %p1040, %s43, 1
        %s1042 = smul.addr %s1039, 2
        %s1043 = sadd.s32 %s1041, %s1042
        %s1044 = scalar_lea.vmem %s7, %s1043
        %p1045 = pneg %p227
        %p1046 = pneg %p224
        %p1047 = scmp.lt.s32.totalorder %s42, 2
        %s1048 = scalar_select %p1047, %s42, 2
        %p1049 = scmp.lt.s32.totalorder %s43, 1
        %s1050 = scalar_select %p1049, %s43, 1
        %s1051 = smul.addr %s1050, 4
        %s1052 = smul.addr %s1048, 8
        %s1053 = sadd.s32 %s1051, %s1052
        %s1054 = smul.addr %s1053, 8
        %s1055 = scalar_lea.vmem %s8, %s1054
        %p1056 = pneg %p255
        %p1057 = pneg %p252
        %p1058 = scmp.lt.s32.totalorder %s42, 2
        %s1059 = scalar_select %p1058, %s42, 2
        %p1060 = scmp.lt.s32.totalorder %s43, 1
        %s1061 = scalar_select %p1060, %s43, 1
        %s1062 = smul.addr %s1059, 2
        %s1063 = sadd.s32 %s1061, %s1062
        %s1064 = scalar_lea.vmem %s9, %s1063
        %p1065 = pneg %p283
        %p1066 = pneg %p280
        %p1067 = scmp.lt.s32.totalorder %s42, 2
        %s1068 = scalar_select %p1067, %s42, 2
        %p1069 = scmp.lt.s32.totalorder %s43, 1
        %s1070 = scalar_select %p1069, %s43, 1
        %s1071 = smul.addr %s1068, 2
        %s1072 = sadd.s32 %s1070, %s1071
        %s1073 = scalar_lea.vmem %s10, %s1072
        %p1074 = pneg %p311
        %p1075 = pneg %p308
        %p1076 = scmp.lt.s32.totalorder %s42, 2
        %s1077 = scalar_select %p1076, %s42, 2
        %p1078 = scmp.lt.s32.totalorder %s43, 1
        %s1079 = scalar_select %p1078, %s43, 1
        %s1080 = smul.addr %s1077, 2
        %s1081 = sadd.s32 %s1079, %s1080
        %s1082 = scalar_lea.vmem %s11, %s1081
        %p1083 = pneg %p339
        %p1084 = pneg %p336
        %p1085 = scmp.lt.s32.totalorder %s42, 2
        %s1086 = scalar_select %p1085, %s42, 2
        %p1087 = scmp.lt.s32.totalorder %s43, 1
        %s1088 = scalar_select %p1087, %s43, 1
        %s1089 = smul.addr %s1088, 4
        %s1090 = smul.addr %s1086, 8
        %s1091 = sadd.s32 %s1089, %s1090
        %s1092 = smul.addr %s1091, 8
        %s1093 = scalar_lea.vmem %s12, %s1092
        %p1094 = pneg %p367
        %p1095 = pneg %p364
        %p1096 = scmp.lt.s32.totalorder %s42, 2
        %s1097 = scalar_select %p1096, %s42, 2
        %p1098 = scmp.lt.s32.totalorder %s43, 1
        %s1099 = scalar_select %p1098, %s43, 1
        %s1100 = smul.addr %s1097, 2
        %s1101 = sadd.s32 %s1099, %s1100
        %s1102 = scalar_lea.vmem %s13, %s1101
        %p1103 = pneg %p395
        %p1104 = pneg %p392
        %p1105 = scmp.lt.s32.totalorder %s42, 2
        %s1106 = scalar_select %p1105, %s42, 2
        %p1107 = scmp.lt.s32.totalorder %s43, 1
        %s1108 = scalar_select %p1107, %s43, 1
        %s1109 = smul.addr %s1108, 4
        %s1110 = smul.addr %s1106, 8
        %s1111 = sadd.s32 %s1109, %s1110
        %s1112 = smul.addr %s1111, 8
        %s1113 = scalar_lea.vmem %s14, %s1112
        %p1114 = pneg %p423
        %p1115 = pneg %p420
        %p1116 = scmp.lt.s32.totalorder %s42, 2
        %s1117 = scalar_select %p1116, %s42, 2
        %p1118 = scmp.lt.s32.totalorder %s43, 1
        %s1119 = scalar_select %p1118, %s43, 1
        %s1120 = smul.addr %s1117, 2
        %s1121 = sadd.s32 %s1119, %s1120
        %s1122 = scalar_lea.vmem %s15, %s1121
        %p1123 = pneg %p451
        %p1124 = pneg %p448
        %p1125 = scmp.lt.s32.totalorder %s42, 2
        %s1126 = scalar_select %p1125, %s42, 2
        %p1127 = scmp.lt.s32.totalorder %s43, 1
        %s1128 = scalar_select %p1127, %s43, 1
        %s1129 = smul.addr %s1126, 2
        %s1130 = sadd.s32 %s1128, %s1129
        %s1131 = scalar_lea.vmem %s16, %s1130
        %p1132 = pneg %p479
        %p1133 = pneg %p476
        %p1134 = scmp.lt.s32.totalorder %s42, 2
        %s1135 = scalar_select %p1134, %s42, 2
        %p1136 = scmp.lt.s32.totalorder %s43, 1
        %s1137 = scalar_select %p1136, %s43, 1
        %s1138 = smul.addr %s1135, 2
        %s1139 = sadd.s32 %s1137, %s1138
        %s1140 = scalar_lea.vmem %s17, %s1139
        %p1141 = pneg %p507
        %p1142 = pneg %p504
        %p1143 = scmp.lt.s32.totalorder %s42, 2
        %s1144 = scalar_select %p1143, %s42, 2
        %p1145 = scmp.lt.s32.totalorder %s43, 1
        %s1146 = scalar_select %p1145, %s43, 1
        %s1147 = smul.addr %s1146, 4
        %s1148 = smul.addr %s1144, 8
        %s1149 = sadd.s32 %s1147, %s1148
        %s1150 = smul.addr %s1149, 8
        %s1151 = scalar_lea.vmem %s18, %s1150
        %p1152 = pneg %p535
        %p1153 = pneg %p532
        %p1154 = scmp.lt.s32.totalorder %s42, 2
        %s1155 = scalar_select %p1154, %s42, 2
        %p1156 = scmp.lt.s32.totalorder %s43, 1
        %s1157 = scalar_select %p1156, %s43, 1
        %s1158 = smul.addr %s1155, 2
        %s1159 = sadd.s32 %s1157, %s1158
        %s1160 = scalar_lea.vmem %s19, %s1159
        %p1161 = pneg %p563
        %p1162 = pneg %p560
        %p1163 = scmp.lt.s32.totalorder %s42, 2
        %s1164 = scalar_select %p1163, %s42, 2
        %p1165 = scmp.lt.s32.totalorder %s43, 1
        %s1166 = scalar_select %p1165, %s43, 1
        %s1167 = smul.addr %s1166, 8
        %s1168 = smul.addr %s1164, 16
        %s1169 = sadd.s32 %s1167, %s1168
        %s1170 = smul.addr %s1169, 8
        %s1171 = scalar_lea.vmem %s20, %s1170
        %p1172 = pneg %p591
        %p1173 = pneg %p588
        %p1174 = scmp.lt.s32.totalorder %s42, 2
        %s1175 = scalar_select %p1174, %s42, 2
        %p1176 = scmp.lt.s32.totalorder %s43, 1
        %s1177 = scalar_select %p1176, %s43, 1
        %s1178 = smul.addr %s1175, 2
        %s1179 = sadd.s32 %s1177, %s1178
        %s1180 = scalar_lea.vmem %s21, %s1179
        %p1181 = pneg %p619
        %p1182 = pneg %p616
        %p1183 = scmp.lt.s32.totalorder %s42, 2
        %s1184 = scalar_select %p1183, %s42, 2
        %p1185 = scmp.lt.s32.totalorder %s43, 1
        %s1186 = scalar_select %p1185, %s43, 1
        %s1187 = smul.addr %s1184, 2
        %s1188 = sadd.s32 %s1186, %s1187
        %s1189 = scalar_lea.vmem %s22, %s1188
        %p1190 = pneg %p647
        %p1191 = pneg %p644
        %p1192 = scmp.lt.s32.totalorder %s42, 2
        %s1193 = scalar_select %p1192, %s42, 2
        %p1194 = scmp.lt.s32.totalorder %s43, 1
        %s1195 = scalar_select %p1194, %s43, 1
        %s1196 = smul.addr %s1193, 2
        %s1197 = sadd.s32 %s1195, %s1196
        %s1198 = scalar_lea.vmem %s23, %s1197
        %p1199 = pneg %p675
        %p1200 = pneg %p672
        %p1201 = scmp.lt.s32.totalorder %s42, 2
        %s1202 = scalar_select %p1201, %s42, 2
        %s1203 = smul.addr %s1202, 4
        %s1204 = smul.addr %s1203, 8
        %s1205 = scalar_lea.vmem %s24, %s1204
        %p1206 = pneg %p701
        %p1207 = pneg %p698
        %p1208 = scmp.lt.s32.totalorder %s42, 2
        %s1209 = scalar_select %p1208, %s42, 2
        %s1210 = scalar_lea.vmem %s25, %s1209
        %p1211 = pneg %p727
        %p1212 = pneg %p724
        %p1213 = pneg %p753
        %p1214 = pneg %p750
        %s1215 = sand.u32 %s740, 1
        %s1216 = sand.u32 %s740, 1
        %s1217 = smul.addr %s1216, 16
        %s1218 = scalar_lea.vmem [#allocation5], %s1217
        %p1219 = scmp.lt.s32.totalorder %s42, 2
        %s1220 = scalar_select %p1219, %s42, 2
        %p1221 = scmp.lt.s32.totalorder %s43, 1
        %s1222 = scalar_select %p1221, %s43, 1
        %s1223 = smul.addr %s1222, 4
        %s1224 = smul.addr %s1220, 8
        %s1225 = sadd.s32 %s1223, %s1224
        %s1226 = smul.addr %s1225, 8
        %s1227 = scalar_lea.vmem %s6, %s1226
        %p1228 = scmp.lt.s32.totalorder %s42, 2
        %s1229 = scalar_select %p1228, %s42, 2
        %p1230 = scmp.lt.s32.totalorder %s43, 1
        %s1231 = scalar_select %p1230, %s43, 1
        %s1232 = smul.addr %s1229, 2
        %s1233 = sadd.s32 %s1231, %s1232
        %s1234 = scalar_lea.vmem %s7, %s1233
        %p1235 = scmp.lt.s32.totalorder %s42, 2
        %s1236 = scalar_select %p1235, %s42, 2
        %p1237 = scmp.lt.s32.totalorder %s43, 1
        %s1238 = scalar_select %p1237, %s43, 1
        %s1239 = smul.addr %s1238, 4
        %s1240 = smul.addr %s1236, 8
        %s1241 = sadd.s32 %s1239, %s1240
        %s1242 = smul.addr %s1241, 8
        %s1243 = scalar_lea.vmem %s8, %s1242
        %p1244 = scmp.lt.s32.totalorder %s42, 2
        %s1245 = scalar_select %p1244, %s42, 2
        %p1246 = scmp.lt.s32.totalorder %s43, 1
        %s1247 = scalar_select %p1246, %s43, 1
        %s1248 = smul.addr %s1245, 2
        %s1249 = sadd.s32 %s1247, %s1248
        %s1250 = scalar_lea.vmem %s9, %s1249
        %p1251 = scmp.lt.s32.totalorder %s42, 2
        %s1252 = scalar_select %p1251, %s42, 2
        %p1253 = scmp.lt.s32.totalorder %s43, 1
        %s1254 = scalar_select %p1253, %s43, 1
        %s1255 = smul.addr %s1252, 2
        %s1256 = sadd.s32 %s1254, %s1255
        %s1257 = scalar_lea.vmem %s10, %s1256
        %p1258 = scmp.lt.s32.totalorder %s42, 2
        %s1259 = scalar_select %p1258, %s42, 2
        %p1260 = scmp.lt.s32.totalorder %s43, 1
        %s1261 = scalar_select %p1260, %s43, 1
        %s1262 = smul.addr %s1259, 2
        %s1263 = sadd.s32 %s1261, %s1262
        %s1264 = scalar_lea.vmem %s11, %s1263
        %p1265 = scmp.lt.s32.totalorder %s42, 2
        %s1266 = scalar_select %p1265, %s42, 2
        %p1267 = scmp.lt.s32.totalorder %s43, 1
        %s1268 = scalar_select %p1267, %s43, 1
        %s1269 = smul.addr %s1268, 4
        %s1270 = smul.addr %s1266, 8
        %s1271 = sadd.s32 %s1269, %s1270
        %s1272 = smul.addr %s1271, 8
        %s1273 = scalar_lea.vmem %s12, %s1272
        %p1274 = scmp.lt.s32.totalorder %s42, 2
        %s1275 = scalar_select %p1274, %s42, 2
        %p1276 = scmp.lt.s32.totalorder %s43, 1
        %s1277 = scalar_select %p1276, %s43, 1
        %s1278 = smul.addr %s1275, 2
        %s1279 = sadd.s32 %s1277, %s1278
        %s1280 = scalar_lea.vmem %s13, %s1279
        %p1281 = scmp.lt.s32.totalorder %s42, 2
        %s1282 = scalar_select %p1281, %s42, 2
        %p1283 = scmp.lt.s32.totalorder %s43, 1
        %s1284 = scalar_select %p1283, %s43, 1
        %s1285 = smul.addr %s1284, 4
        %s1286 = smul.addr %s1282, 8
        %s1287 = sadd.s32 %s1285, %s1286
        %s1288 = smul.addr %s1287, 8
        %s1289 = scalar_lea.vmem %s14, %s1288
        %p1290 = scmp.lt.s32.totalorder %s42, 2
        %s1291 = scalar_select %p1290, %s42, 2
        %p1292 = scmp.lt.s32.totalorder %s43, 1
        %s1293 = scalar_select %p1292, %s43, 1
        %s1294 = smul.addr %s1291, 2
        %s1295 = sadd.s32 %s1293, %s1294
        %s1296 = scalar_lea.vmem %s15, %s1295
        %p1297 = scmp.lt.s32.totalorder %s42, 2
        %s1298 = scalar_select %p1297, %s42, 2
        %p1299 = scmp.lt.s32.totalorder %s43, 1
        %s1300 = scalar_select %p1299, %s43, 1
        %s1301 = smul.addr %s1298, 2
        %s1302 = sadd.s32 %s1300, %s1301
        %s1303 = scalar_lea.vmem %s16, %s1302
        %p1304 = scmp.lt.s32.totalorder %s42, 2
        %s1305 = scalar_select %p1304, %s42, 2
        %p1306 = scmp.lt.s32.totalorder %s43, 1
        %s1307 = scalar_select %p1306, %s43, 1
        %s1308 = smul.addr %s1305, 2
        %s1309 = sadd.s32 %s1307, %s1308
        %s1310 = scalar_lea.vmem %s17, %s1309
        %p1311 = scmp.lt.s32.totalorder %s42, 2
        %s1312 = scalar_select %p1311, %s42, 2
        %p1313 = scmp.lt.s32.totalorder %s43, 1
        %s1314 = scalar_select %p1313, %s43, 1
        %s1315 = smul.addr %s1314, 4
        %s1316 = smul.addr %s1312, 8
        %s1317 = sadd.s32 %s1315, %s1316
        %s1318 = smul.addr %s1317, 8
        %s1319 = scalar_lea.vmem %s18, %s1318
        %p1320 = scmp.lt.s32.totalorder %s42, 2
        %s1321 = scalar_select %p1320, %s42, 2
        %p1322 = scmp.lt.s32.totalorder %s43, 1
        %s1323 = scalar_select %p1322, %s43, 1
        %s1324 = smul.addr %s1321, 2
        %s1325 = sadd.s32 %s1323, %s1324
        %s1326 = scalar_lea.vmem %s19, %s1325
        %p1327 = scmp.lt.s32.totalorder %s42, 2
        %s1328 = scalar_select %p1327, %s42, 2
        %p1329 = scmp.lt.s32.totalorder %s43, 1
        %s1330 = scalar_select %p1329, %s43, 1
        %s1331 = smul.addr %s1330, 8
        %s1332 = smul.addr %s1328, 16
        %s1333 = sadd.s32 %s1331, %s1332
        %s1334 = smul.addr %s1333, 8
        %s1335 = scalar_lea.vmem %s20, %s1334
        %p1336 = scmp.lt.s32.totalorder %s42, 2
        %s1337 = scalar_select %p1336, %s42, 2
        %p1338 = scmp.lt.s32.totalorder %s43, 1
        %s1339 = scalar_select %p1338, %s43, 1
        %s1340 = smul.addr %s1337, 2
        %s1341 = sadd.s32 %s1339, %s1340
        %s1342 = scalar_lea.vmem %s21, %s1341
        %p1343 = scmp.lt.s32.totalorder %s42, 2
        %s1344 = scalar_select %p1343, %s42, 2
        %p1345 = scmp.lt.s32.totalorder %s43, 1
        %s1346 = scalar_select %p1345, %s43, 1
        %s1347 = smul.addr %s1344, 2
        %s1348 = sadd.s32 %s1346, %s1347
        %s1349 = scalar_lea.vmem %s22, %s1348
        %p1350 = scmp.lt.s32.totalorder %s42, 2
        %s1351 = scalar_select %p1350, %s42, 2
        %p1352 = scmp.lt.s32.totalorder %s43, 1
        %s1353 = scalar_select %p1352, %s43, 1
        %s1354 = smul.addr %s1351, 2
        %s1355 = sadd.s32 %s1353, %s1354
        %s1356 = scalar_lea.vmem %s23, %s1355
        %p1357 = scmp.lt.s32.totalorder %s42, 2
        %s1358 = scalar_select %p1357, %s42, 2
        %s1359 = smul.addr %s1358, 4
        %s1360 = smul.addr %s1359, 8
        %s1361 = scalar_lea.vmem %s24, %s1360
        %p1362 = scmp.lt.s32.totalorder %s42, 2
        %s1363 = scalar_select %p1362, %s42, 2
        %s1364 = scalar_lea.vmem %s25, %s1363
        %p1365 = scmp.eq.s32.totalorder %s43, 0
        // Predicated region
        $region129: #{smtp_forward.3} parent=123 // pred_check
          %p1366 = pneg %p1365
        $region130: #{smtp_forward.3} parent=123 // pred_check_branch
          %1368 = sbr.rel (%p1366) target = $region132
        $region131: #{smtp_forward.3} parent=123 // pred_region
          %v1369 = vld [vmem:[%s0] sm:$0xff]
          %v1370 = vld [vmem:[%s0 + $0x8] sm:$0xff]
          %v1371 = vld [vmem:[%s2] sm:$0x3]
          %v1372 = vld [vmem:[#allocation3] sm:$0x1]
          %v1373 = vld [vmem:[%s1] sm:$0xff]
          %v1375 = vlaneseq
          %v1376 = vshrl.u32 %v1375, 7
          %v1377 = vsub.s32 0, %v1376
          %v1378 = vrot.slane %v1372, %v1377
          %vm1380 = vcmask 15360
          %v1382 = vsel %vm1380, %v1369, 0
          %v1385 = vsel %vm1380, %v1370, 0
          %vm1387 = vcmask 1041408
          %v1389 = vsel %vm1387, %v1371, 0
          %1391 = vmatprep.subr.mxu0 0.0
          %1392 = vmatpush1.msra.mxu0 0.0
          %1393 = vmatprep.subr.mxu0 0.0
          %1394 = vmatpush1.msra.mxu0 0.0
          %1395 = vmatprep.subr.mxu0 0.0
          %1396 = vmatpush1.msra.mxu0 0.0
          %1397 = vmatprep.subr.mxu0 0.0
          %1398 = vmatpush1.msra.mxu0 0.0
          %1399 = vmatprep.subr.mxu0 0.0
          %1400 = vmatpush1.msra.mxu0 0.0
          %1401 = vmatprep.subr.mxu0 0.0
          %1402 = vmatpush1.msra.mxu0 0.0
          %1403 = vmatprep.subr.mxu0 0.0
          %1404 = vmatpush1.msra.mxu0 0.0
          %1405 = vmatprep.subr.mxu0 0.0
          %1406 = vmatpush1.msra.mxu0 0.0
          %1407 = vmatprep.subr.mxu0 0.0
          %1408 = vmatpush1.msra.mxu0 0.0
          %1409 = vmatprep.subr.mxu0 0.0
          %1410 = vmatpush1.msra.mxu0 0.0
          %1411 = vmatprep.subr.mxu0 0.0
          %1412 = vmatpush1.msra.mxu0 0.0
          %1413 = vmatprep.subr.mxu0 0.0
          %1414 = vmatpush1.msra.mxu0 0.0
          %1415 = vmatprep.subr.mxu0 0.0
          %1416 = vmatpush1.msra.mxu0 0.0
          %1417 = vmatprep.subr.mxu0 0.0
          %1418 = vmatpush1.msra.mxu0 0.0
          %1419 = vmatprep.subr.mxu0 0.0
          %1420 = vmatpush1.msra.mxu0 0.0
          %1421 = vmatprep.subr.mxu0 0.0
          %1422 = vmatpush1.msra.mxu0 %v1389
          %1423 = vmatprep.subr.mxu0 0.0
          %1424 = vmatpush2.msra.mxu0 0.0
          %1425 = vmatprep.subr.mxu0 0.0
          %1426 = vmatpush2.msra.mxu0 0.0
          %1427 = vmatprep.subr.mxu0 0.0
          %1428 = vmatpush2.msra.mxu0 0.0
          %1429 = vmatprep.subr.mxu0 0.0
          %1430 = vmatpush2.msra.mxu0 0.0
          %1431 = vmatprep.subr.mxu0 0.0
          %1432 = vmatpush2.msra.mxu0 0.0
          %1433 = vmatprep.subr.mxu0 0.0
          %1434 = vmatpush2.msra.mxu0 0.0
          %1435 = vmatprep.subr.mxu0 0.0
          %1436 = vmatpush2.msra.mxu0 0.0
          %1437 = vmatprep.subr.mxu0 0.0
          %1438 = vmatpush2.msra.mxu0 0.0
          %1439 = vmatprep.subr.mxu0 0.0
          %1440 = vmatpush2.msra.mxu0 0.0
          %1441 = vmatprep.subr.mxu0 0.0
          %1442 = vmatpush2.msra.mxu0 0.0
          %1443 = vmatprep.subr.mxu0 0.0
          %1444 = vmatpush2.msra.mxu0 0.0
          %1445 = vmatprep.subr.mxu0 0.0
          %1446 = vmatpush2.msra.mxu0 0.0
          %1447 = vmatprep.subr.mxu0 0.0
          %1448 = vmatpush2.msra.mxu0 0.0
          %1449 = vmatprep.subr.mxu0 0.0
          %1450 = vmatpush2.msra.mxu0 0.0
          %1451 = vmatprep.subr.mxu0 0.0
          %1452 = vmatpush2.msra.mxu0 0.0
          %1453 = vmatprep.subr.mxu0 0.0
          %1454 = vmatpush2.msra.mxu0 0.0
          %1455 = vmatprep.mubr.f32.mxu0 0.0
          %1456 = vmatmul.mubr.f32.gmra.mxu0 %v1382
          %v1457 = vpop.f32.mrf.mxu0
          %v1458 = vadd.f32 %v1378, %v1457
          %v1459 = vpop.f32.mrf.mxu0
          %1460 = vmatprep.mubr.f32.mxu0 0.0
          %1461 = vmatmul.mubr.f32.gmra.mxu0 %v1385
          %v1462 = vpop.f32.mrf.mxu0
          %v1463 = vadd.f32 %v1378, %v1462
          %v1464 = vpop.f32.mrf.mxu0
          %1465 = vdwg.mxu0
          %v1466 = vadd.f32 %v1458, %v1373
          %v1467 = vadd.f32 %v1463, %v1373
          %vm1468 = vcmask 261120
          %1469 = vst.msk [vmem:[#allocation2] sm:$0xff] %vm1468, %v1466
          %1470 = vst.msk [vmem:[#allocation2 + $0x8] sm:$0xff] %vm1468, %v1467
        $region132: #{smtp_forward.3} parent=123 // pred_fallthru
          _
        %v1471 = vld [vmem:[#allocation2] sm:$0xff]
        %v1472 = vld [vmem:[#allocation2 + $0x8] sm:$0xff]
        %v1473 = vld [vmem:[%s4] sm:$0xff]
        %v1474 = vld [vmem:[%s4 + $0x8] sm:$0xff]
        %v1475 = vld [vmem:[%s5] sm:$0xff]
        %v1476 = vld [vmem:[%s1227] sm:$0xff]
        %v1477 = vld [vmem:[%s1227 + $0x8] sm:$0xff]
        %v1478 = vld [vmem:[%s1227 + $0x10] sm:$0xff]
        %v1479 = vld [vmem:[%s1227 + $0x18] sm:$0xff]
        %v1480 = vld [vmem:[%s1234] sm:$0x1]
        %v1482 = vlaneseq
        %v1483 = vshrl.u32 %v1482, 7
        %v1484 = vsub.s32 0, %v1483
        %v1485 = vrot.slane %v1480, %v1484
        %vm1487 = vcmask 261120
        %v1489 = vsel %vm1487, %v1471, 0
        %v1492 = vsel %vm1487, %v1472, 0
        %1494 = vmatprep.subr.mxu0 0.0
        %1495 = vmatpush1.msra.mxu0 0.0
        %1496 = vmatprep.subr.mxu0 0.0
        %1497 = vmatpush1.msra.mxu0 0.0
        %1498 = vmatprep.subr.mxu0 0.0
        %1499 = vmatpush1.msra.mxu0 0.0
        %1500 = vmatprep.subr.mxu0 0.0
        %1501 = vmatpush1.msra.mxu0 0.0
        %1502 = vmatprep.subr.mxu0 0.0
        %1503 = vmatpush1.msra.mxu0 0.0
        %1504 = vmatprep.subr.mxu0 0.0
        %1505 = vmatpush1.msra.mxu0 0.0
        %1506 = vmatprep.subr.mxu0 0.0
        %1507 = vmatpush1.msra.mxu0 0.0
        %1508 = vmatprep.subr.mxu0 0.0
        %1509 = vmatpush1.msra.mxu0 0.0
        %1510 = vmatprep.subr.mxu0 0.0
        %1511 = vmatpush1.msra.mxu0 0.0
        %1512 = vmatprep.subr.mxu0 0.0
        %1513 = vmatpush1.msra.mxu0 0.0
        %1514 = vmatprep.subr.mxu0 0.0
        %1515 = vmatpush1.msra.mxu0 0.0
        %1516 = vmatprep.subr.mxu0 0.0
        %1517 = vmatpush1.msra.mxu0 0.0
        %1518 = vmatprep.subr.mxu0 0.0
        %1519 = vmatpush1.msra.mxu0 %v1479
        %1520 = vmatprep.subr.mxu0 0.0
        %1521 = vmatpush1.msra.mxu0 %v1478
        %1522 = vmatprep.subr.mxu0 0.0
        %1523 = vmatpush1.msra.mxu0 %v1477
        %1524 = vmatprep.subr.mxu0 0.0
        %1525 = vmatpush1.msra.mxu0 %v1476
        %1526 = vmatprep.subr.mxu0 0.0
        %1527 = vmatpush2.msra.mxu0 0.0
        %1528 = vmatprep.subr.mxu0 0.0
        %1529 = vmatpush2.msra.mxu0 0.0
        %1530 = vmatprep.subr.mxu0 0.0
        %1531 = vmatpush2.msra.mxu0 0.0
        %1532 = vmatprep.subr.mxu0 0.0
        %1533 = vmatpush2.msra.mxu0 0.0
        %1534 = vmatprep.subr.mxu0 0.0
        %1535 = vmatpush2.msra.mxu0 0.0
        %1536 = vmatprep.subr.mxu0 0.0
        %1537 = vmatpush2.msra.mxu0 0.0
        %1538 = vmatprep.subr.mxu0 0.0
        %1539 = vmatpush2.msra.mxu0 0.0
        %1540 = vmatprep.subr.mxu0 0.0
        %1541 = vmatpush2.msra.mxu0 0.0
        %1542 = vmatprep.subr.mxu0 0.0
        %1543 = vmatpush2.msra.mxu0 0.0
        %1544 = vmatprep.subr.mxu0 0.0
        %1545 = vmatpush2.msra.mxu0 0.0
        %1546 = vmatprep.subr.mxu0 0.0
        %1547 = vmatpush2.msra.mxu0 0.0
        %1548 = vmatprep.subr.mxu0 0.0
        %1549 = vmatpush2.msra.mxu0 0.0
        %1550 = vmatprep.subr.mxu0 0.0
        %1551 = vmatpush2.msra.mxu0 0.0
        %1552 = vmatprep.subr.mxu0 0.0
        %1553 = vmatpush2.msra.mxu0 0.0
        %1554 = vmatprep.subr.mxu0 0.0
        %1555 = vmatpush2.msra.mxu0 0.0
        %1556 = vmatprep.subr.mxu0 0.0
        %1557 = vmatpush2.msra.mxu0 0.0
        %1558 = vmatprep.mubr.f32.mxu0 0.0
        %1559 = vmatmul.mubr.f32.gmra.mxu0 %v1489
        %v1560 = vpop.f32.mrf.mxu0
        %v1561 = vadd.f32 %v1485, %v1560
        %v1562 = vpop.f32.mrf.mxu0
        %1563 = vmatprep.mubr.f32.mxu0 0.0
        %1564 = vmatmul.mubr.f32.gmra.mxu0 %v1492
        %v1565 = vpop.f32.mrf.mxu0
        %v1566 = vadd.f32 %v1485, %v1565
        %v1567 = vpop.f32.mrf.mxu0
        %1568 = vdwg.mxu0
        %v1569 = vld [vmem:[%s1243] sm:$0xff]
        %v1570 = vld [vmem:[%s1243 + $0x8] sm:$0xff]
        %v1571 = vld [vmem:[%s1243 + $0x10] sm:$0xff]
        %v1572 = vld [vmem:[%s1243 + $0x18] sm:$0xff]
        %v1573 = vld [vmem:[%s1250] sm:$0x1]
        %1575 = vrot.lane.b32.xlu0 %v1561, 96
        %v1576 = vpop.permute.xlu0 %1575
        %vm1577 = vcmask 64512
        %v1578 = vsel %vm1577, %v1561, 0
        %v1580 = vsel %vm1577, %v1576, 0
        %1582 = vmatprep.subr.mxu0 0.0
        %1583 = vmatpush1.xpose.msra.mxu0 0.0
        %1584 = vmatprep.subr.mxu0 0.0
        %1585 = vmatpush1.xpose.msra.mxu0 0.0
        %1586 = vmatprep.subr.mxu0 0.0
        %1587 = vmatpush1.xpose.msra.mxu0 0.0
        %1588 = vmatprep.subr.mxu0 0.0
        %1589 = vmatpush1.xpose.msra.mxu0 0.0
        %1590 = vmatprep.subr.mxu0 0.0
        %1591 = vmatpush1.xpose.msra.mxu0 0.0
        %1592 = vmatprep.subr.mxu0 0.0
        %1593 = vmatpush1.xpose.msra.mxu0 0.0
        %1594 = vmatprep.subr.mxu0 0.0
        %1595 = vmatpush1.xpose.msra.mxu0 0.0
        %1596 = vmatprep.subr.mxu0 0.0
        %1597 = vmatpush1.xpose.msra.mxu0 0.0
        %1598 = vmatprep.subr.mxu0 0.0
        %1599 = vmatpush1.xpose.msra.mxu0 0.0
        %1600 = vmatprep.subr.mxu0 0.0
        %1601 = vmatpush1.xpose.msra.mxu0 0.0
        %1602 = vmatprep.subr.mxu0 0.0
        %1603 = vmatpush1.xpose.msra.mxu0 0.0
        %1604 = vmatprep.subr.mxu0 0.0
        %1605 = vmatpush1.xpose.msra.mxu0 0.0
        %1606 = vmatprep.subr.mxu0 0.0
        %1607 = vmatpush1.xpose.msra.mxu0 0.0
        %1608 = vmatprep.subr.mxu0 0.0
        %1609 = vmatpush1.xpose.msra.mxu0 0.0
        %1610 = vmatprep.subr.mxu0 0.0
        %1611 = vmatpush1.xpose.msra.mxu0 0.0
        %1612 = vmatprep.subr.mxu0 0.0
        %1613 = vmatpush1.xpose.msra.mxu0 %v1580
        %1614 = vmatprep.subr.mxu0 0.0
        %1615 = vmatpush2.xpose.msra.mxu0 0.0
        %1616 = vmatprep.subr.mxu0 0.0
        %1617 = vmatpush2.xpose.msra.mxu0 0.0
        %1618 = vmatprep.subr.mxu0 0.0
        %1619 = vmatpush2.xpose.msra.mxu0 0.0
        %1620 = vmatprep.subr.mxu0 0.0
        %1621 = vmatpush2.xpose.msra.mxu0 0.0
        %1622 = vmatprep.subr.mxu0 0.0
        %1623 = vmatpush2.xpose.msra.mxu0 0.0
        %1624 = vmatprep.subr.mxu0 0.0
        %1625 = vmatpush2.xpose.msra.mxu0 0.0
        %1626 = vmatprep.subr.mxu0 0.0
        %1627 = vmatpush2.xpose.msra.mxu0 0.0
        %1628 = vmatprep.subr.mxu0 0.0
        %1629 = vmatpush2.xpose.msra.mxu0 0.0
        %1630 = vmatprep.subr.mxu0 0.0
        %1631 = vmatpush2.xpose.msra.mxu0 0.0
        %1632 = vmatprep.subr.mxu0 0.0
        %1633 = vmatpush2.xpose.msra.mxu0 0.0
        %1634 = vmatprep.subr.mxu0 0.0
        %1635 = vmatpush2.xpose.msra.mxu0 0.0
        %1636 = vmatprep.subr.mxu0 0.0
        %1637 = vmatpush2.xpose.msra.mxu0 0.0
        %1638 = vmatprep.subr.mxu0 0.0
        %1639 = vmatpush2.xpose.msra.mxu0 0.0
        %1640 = vmatprep.subr.mxu0 0.0
        %1641 = vmatpush2.xpose.msra.mxu0 0.0
        %1642 = vmatprep.subr.mxu0 0.0
        %1643 = vmatpush2.xpose.msra.mxu0 0.0
        %1644 = vmatprep.subr.mxu0 0.0
        %1645 = vmatpush2.xpose.msra.mxu0 0.0
        %1646 = vmatprep.mubr.f32.mxu0 0.0
        %1647 = vmatmul.mubr.f32.gmra.mxu0 %v1578
        %v1648 = vpop.f32.mrf.mxu0
        %v1649 = vadd.f32 0.0, %v1648
        %v1650 = vpop.f32.mrf.mxu0
        %1651 = vdwg.mxu0
        %1653 = vrot.lane.b32.xlu0 %v1566, 96
        %v1654 = vpop.permute.xlu0 %1653
        %v1655 = vsel %vm1577, %v1566, 0
        %v1657 = vsel %vm1577, %v1654, 0
        %1659 = vmatprep.subr.mxu0 0.0
        %1660 = vmatpush1.xpose.msra.mxu0 0.0
        %1661 = vmatprep.subr.mxu0 0.0
        %1662 = vmatpush1.xpose.msra.mxu0 0.0
        %1663 = vmatprep.subr.mxu0 0.0
        %1664 = vmatpush1.xpose.msra.mxu0 0.0
        %1665 = vmatprep.subr.mxu0 0.0
        %1666 = vmatpush1.xpose.msra.mxu0 0.0
        %1667 = vmatprep.subr.mxu0 0.0
        %1668 = vmatpush1.xpose.msra.mxu0 0.0
        %1669 = vmatprep.subr.mxu0 0.0
        %1670 = vmatpush1.xpose.msra.mxu0 0.0
        %1671 = vmatprep.subr.mxu0 0.0
        %1672 = vmatpush1.xpose.msra.mxu0 0.0
        %1673 = vmatprep.subr.mxu0 0.0
        %1674 = vmatpush1.xpose.msra.mxu0 0.0
        %1675 = vmatprep.subr.mxu0 0.0
        %1676 = vmatpush1.xpose.msra.mxu0 0.0
        %1677 = vmatprep.subr.mxu0 0.0
        %1678 = vmatpush1.xpose.msra.mxu0 0.0
        %1679 = vmatprep.subr.mxu0 0.0
        %1680 = vmatpush1.xpose.msra.mxu0 0.0
        %1681 = vmatprep.subr.mxu0 0.0
        %1682 = vmatpush1.xpose.msra.mxu0 0.0
        %1683 = vmatprep.subr.mxu0 0.0
        %1684 = vmatpush1.xpose.msra.mxu0 0.0
        %1685 = vmatprep.subr.mxu0 0.0
        %1686 = vmatpush1.xpose.msra.mxu0 0.0
        %1687 = vmatprep.subr.mxu0 0.0
        %1688 = vmatpush1.xpose.msra.mxu0 0.0
        %1689 = vmatprep.subr.mxu0 0.0
        %1690 = vmatpush1.xpose.msra.mxu0 %v1657
        %1691 = vmatprep.subr.mxu0 0.0
        %1692 = vmatpush2.xpose.msra.mxu0 0.0
        %1693 = vmatprep.subr.mxu0 0.0
        %1694 = vmatpush2.xpose.msra.mxu0 0.0
        %1695 = vmatprep.subr.mxu0 0.0
        %1696 = vmatpush2.xpose.msra.mxu0 0.0
        %1697 = vmatprep.subr.mxu0 0.0
        %1698 = vmatpush2.xpose.msra.mxu0 0.0
        %1699 = vmatprep.subr.mxu0 0.0
        %1700 = vmatpush2.xpose.msra.mxu0 0.0
        %1701 = vmatprep.subr.mxu0 0.0
        %1702 = vmatpush2.xpose.msra.mxu0 0.0
        %1703 = vmatprep.subr.mxu0 0.0
        %1704 = vmatpush2.xpose.msra.mxu0 0.0
        %1705 = vmatprep.subr.mxu0 0.0
        %1706 = vmatpush2.xpose.msra.mxu0 0.0
        %1707 = vmatprep.subr.mxu0 0.0
        %1708 = vmatpush2.xpose.msra.mxu0 0.0
        %1709 = vmatprep.subr.mxu0 0.0
        %1710 = vmatpush2.xpose.msra.mxu0 0.0
        %1711 = vmatprep.subr.mxu0 0.0
        %1712 = vmatpush2.xpose.msra.mxu0 0.0
        %1713 = vmatprep.subr.mxu0 0.0
        %1714 = vmatpush2.xpose.msra.mxu0 0.0
        %1715 = vmatprep.subr.mxu0 0.0
        %1716 = vmatpush2.xpose.msra.mxu0 0.0
        %1717 = vmatprep.subr.mxu0 0.0
        %1718 = vmatpush2.xpose.msra.mxu0 0.0
        %1719 = vmatprep.subr.mxu0 0.0
        %1720 = vmatpush2.xpose.msra.mxu0 0.0
        %1721 = vmatprep.subr.mxu0 0.0
        %1722 = vmatpush2.xpose.msra.mxu0 0.0
        %1723 = vmatprep.mubr.f32.mxu0 0.0
        %1724 = vmatmul.mubr.f32.gmra.mxu0 %v1655
        %v1725 = vpop.f32.mrf.mxu0
        %v1726 = vadd.f32 0.0, %v1725
        %v1727 = vpop.f32.mrf.mxu0
        %1728 = vdwg.mxu0
        %v1729 = vmul.f32 %v1649, 0.35355338
        %v1730 = vmul.f32 %v1726, 0.35355338
        %v1731 = vadd.f32 %v1729, %v1475
        %v1732 = vadd.f32 %v1730, %v1475
        %v1733 = vsel %vm1577, %v1731, -inf
        %1734 = vmax.xlane.f32.xlu0 %v1733
        %v1735 = vpop.xlane.xlu0 %1734
        %v1736 = vsel %vm1577, %v1732, -inf
        %1737 = vmax.xlane.f32.xlu0 %v1736
        %v1738 = vpop.xlane.xlu0 %1737
        %v1739 = vsub.f32 %v1731, %v1735
        %v1740 = vsub.f32 %v1732, %v1738
        %v1741 = vmul.f32 %v1739, 1.442695
        %v1742 = vpow.pop %v1741
        %v1743 = vmul.f32 %v1740, 1.442695
        %v1744 = vpow.pop %v1743
        %v1745 = vsel %vm1577, %v1742, 0.0
        %1746 = vadd.xlane.f32.xlu0 %v1745
        %v1747 = vpop.xlane.xlu0 %1746
        %v1748 = vsel %vm1577, %v1744, 0.0
        %1749 = vadd.xlane.f32.xlu0 %v1748
        %v1750 = vpop.xlane.xlu0 %1749
        %v1751 = vrcp.pop %v1747
        %v1752 = vrcp.pop %v1750
        %v1753 = vmul.f32 %v1742, %v1751
        %v1754 = vmul.f32 %v1744, %v1752
        %1755 = vrot.lane.b32.xlu0 %v1561, 64
        %v1756 = vpop.permute.xlu0 %1755
        %v1759 = vsel %vm1577, %v1753, 0
        %1761 = vmatprep.subr.mxu0 0.0
        %1762 = vmatpush1.msra.mxu0 0.0
        %1763 = vmatprep.subr.mxu0 0.0
        %1764 = vmatpush1.msra.mxu0 0.0
        %1765 = vmatprep.subr.mxu0 0.0
        %1766 = vmatpush1.msra.mxu0 0.0
        %1767 = vmatprep.subr.mxu0 0.0
        %1768 = vmatpush1.msra.mxu0 0.0
        %1769 = vmatprep.subr.mxu0 0.0
        %1770 = vmatpush1.msra.mxu0 0.0
        %1771 = vmatprep.subr.mxu0 0.0
        %1772 = vmatpush1.msra.mxu0 0.0
        %1773 = vmatprep.subr.mxu0 0.0
        %1774 = vmatpush1.msra.mxu0 0.0
        %1775 = vmatprep.subr.mxu0 0.0
        %1776 = vmatpush1.msra.mxu0 0.0
        %1777 = vmatprep.subr.mxu0 0.0
        %1778 = vmatpush1.msra.mxu0 0.0
        %1779 = vmatprep.subr.mxu0 0.0
        %1780 = vmatpush1.msra.mxu0 0.0
        %1781 = vmatprep.subr.mxu0 0.0
        %1782 = vmatpush1.msra.mxu0 0.0
        %1783 = vmatprep.subr.mxu0 0.0
        %1784 = vmatpush1.msra.mxu0 0.0
        %1785 = vmatprep.subr.mxu0 0.0
        %1786 = vmatpush1.msra.mxu0 0.0
        %1787 = vmatprep.subr.mxu0 0.0
        %1788 = vmatpush1.msra.mxu0 0.0
        %1789 = vmatprep.subr.mxu0 0.0
        %1790 = vmatpush1.msra.mxu0 0.0
        %1791 = vmatprep.subr.mxu0 0.0
        %1792 = vmatpush1.msra.mxu0 %v1756
        %1793 = vmatprep.subr.mxu0 0.0
        %1794 = vmatpush2.msra.mxu0 0.0
        %1795 = vmatprep.subr.mxu0 0.0
        %1796 = vmatpush2.msra.mxu0 0.0
        %1797 = vmatprep.subr.mxu0 0.0
        %1798 = vmatpush2.msra.mxu0 0.0
        %1799 = vmatprep.subr.mxu0 0.0
        %1800 = vmatpush2.msra.mxu0 0.0
        %1801 = vmatprep.subr.mxu0 0.0
        %1802 = vmatpush2.msra.mxu0 0.0
        %1803 = vmatprep.subr.mxu0 0.0
        %1804 = vmatpush2.msra.mxu0 0.0
        %1805 = vmatprep.subr.mxu0 0.0
        %1806 = vmatpush2.msra.mxu0 0.0
        %1807 = vmatprep.subr.mxu0 0.0
        %1808 = vmatpush2.msra.mxu0 0.0
        %1809 = vmatprep.subr.mxu0 0.0
        %1810 = vmatpush2.msra.mxu0 0.0
        %1811 = vmatprep.subr.mxu0 0.0
        %1812 = vmatpush2.msra.mxu0 0.0
        %1813 = vmatprep.subr.mxu0 0.0
        %1814 = vmatpush2.msra.mxu0 0.0
        %1815 = vmatprep.subr.mxu0 0.0
        %1816 = vmatpush2.msra.mxu0 0.0
        %1817 = vmatprep.subr.mxu0 0.0
        %1818 = vmatpush2.msra.mxu0 0.0
        %1819 = vmatprep.subr.mxu0 0.0
        %1820 = vmatpush2.msra.mxu0 0.0
        %1821 = vmatprep.subr.mxu0 0.0
        %1822 = vmatpush2.msra.mxu0 0.0
        %1823 = vmatprep.subr.mxu0 0.0
        %1824 = vmatpush2.msra.mxu0 0.0
        %1825 = vmatprep.mubr.f32.mxu0 0.0
        %1826 = vmatmul.mubr.f32.gmra.mxu0 %v1759
        %v1827 = vpop.f32.mrf.mxu0
        %v1828 = vadd.f32 0.0, %v1827
        %v1829 = vpop.f32.mrf.mxu0
        %1830 = vdwg.mxu0
        %1831 = vrot.lane.b32.xlu0 %v1566, 64
        %v1832 = vpop.permute.xlu0 %1831
        %v1835 = vsel %vm1577, %v1754, 0
        %1837 = vmatprep.subr.mxu0 0.0
        %1838 = vmatpush1.msra.mxu0 0.0
        %1839 = vmatprep.subr.mxu0 0.0
        %1840 = vmatpush1.msra.mxu0 0.0
        %1841 = vmatprep.subr.mxu0 0.0
        %1842 = vmatpush1.msra.mxu0 0.0
        %1843 = vmatprep.subr.mxu0 0.0
        %1844 = vmatpush1.msra.mxu0 0.0
        %1845 = vmatprep.subr.mxu0 0.0
        %1846 = vmatpush1.msra.mxu0 0.0
        %1847 = vmatprep.subr.mxu0 0.0
        %1848 = vmatpush1.msra.mxu0 0.0
        %1849 = vmatprep.subr.mxu0 0.0
        %1850 = vmatpush1.msra.mxu0 0.0
        %1851 = vmatprep.subr.mxu0 0.0
        %1852 = vmatpush1.msra.mxu0 0.0
        %1853 = vmatprep.subr.mxu0 0.0
        %1854 = vmatpush1.msra.mxu0 0.0
        %1855 = vmatprep.subr.mxu0 0.0
        %1856 = vmatpush1.msra.mxu0 0.0
        %1857 = vmatprep.subr.mxu0 0.0
        %1858 = vmatpush1.msra.mxu0 0.0
        %1859 = vmatprep.subr.mxu0 0.0
        %1860 = vmatpush1.msra.mxu0 0.0
        %1861 = vmatprep.subr.mxu0 0.0
        %1862 = vmatpush1.msra.mxu0 0.0
        %1863 = vmatprep.subr.mxu0 0.0
        %1864 = vmatpush1.msra.mxu0 0.0
        %1865 = vmatprep.subr.mxu0 0.0
        %1866 = vmatpush1.msra.mxu0 0.0
        %1867 = vmatprep.subr.mxu0 0.0
        %1868 = vmatpush1.msra.mxu0 %v1832
        %1869 = vmatprep.subr.mxu0 0.0
        %1870 = vmatpush2.msra.mxu0 0.0
        %1871 = vmatprep.subr.mxu0 0.0
        %1872 = vmatpush2.msra.mxu0 0.0
        %1873 = vmatprep.subr.mxu0 0.0
        %1874 = vmatpush2.msra.mxu0 0.0
        %1875 = vmatprep.subr.mxu0 0.0
        %1876 = vmatpush2.msra.mxu0 0.0
        %1877 = vmatprep.subr.mxu0 0.0
        %1878 = vmatpush2.msra.mxu0 0.0
        %1879 = vmatprep.subr.mxu0 0.0
        %1880 = vmatpush2.msra.mxu0 0.0
        %1881 = vmatprep.subr.mxu0 0.0
        %1882 = vmatpush2.msra.mxu0 0.0
        %1883 = vmatprep.subr.mxu0 0.0
        %1884 = vmatpush2.msra.mxu0 0.0
        %1885 = vmatprep.subr.mxu0 0.0
        %1886 = vmatpush2.msra.mxu0 0.0
        %1887 = vmatprep.subr.mxu0 0.0
        %1888 = vmatpush2.msra.mxu0 0.0
        %1889 = vmatprep.subr.mxu0 0.0
        %1890 = vmatpush2.msra.mxu0 0.0
        %1891 = vmatprep.subr.mxu0 0.0
        %1892 = vmatpush2.msra.mxu0 0.0
        %1893 = vmatprep.subr.mxu0 0.0
        %1894 = vmatpush2.msra.mxu0 0.0
        %1895 = vmatprep.subr.mxu0 0.0
        %1896 = vmatpush2.msra.mxu0 0.0
        %1897 = vmatprep.subr.mxu0 0.0
        %1898 = vmatpush2.msra.mxu0 0.0
        %1899 = vmatprep.subr.mxu0 0.0
        %1900 = vmatpush2.msra.mxu0 0.0
        %1901 = vmatprep.mubr.f32.mxu0 0.0
        %1902 = vmatmul.mubr.f32.gmra.mxu0 %v1835
        %v1903 = vpop.f32.mrf.mxu0
        %v1904 = vadd.f32 0.0, %v1903
        %v1905 = vpop.f32.mrf.mxu0
        %1906 = vdwg.mxu0
        %1907 = vrot.lane.b32.xlu0 %v1561, 120
        %v1908 = vpop.permute.xlu0 %1907
        %1909 = vrot.lane.b32.xlu0 %v1561, 88
        %v1910 = vpop.permute.xlu0 %1909
        %v1911 = vsel %vm1577, %v1908, 0
        %v1913 = vsel %vm1577, %v1910, 0
        %1915 = vmatprep.subr.mxu0 0.0
        %1916 = vmatpush1.xpose.msra.mxu0 0.0
        %1917 = vmatprep.subr.mxu0 0.0
        %1918 = vmatpush1.xpose.msra.mxu0 0.0
        %1919 = vmatprep.subr.mxu0 0.0
        %1920 = vmatpush1.xpose.msra.mxu0 0.0
        %1921 = vmatprep.subr.mxu0 0.0
        %1922 = vmatpush1.xpose.msra.mxu0 0.0
        %1923 = vmatprep.subr.mxu0 0.0
        %1924 = vmatpush1.xpose.msra.mxu0 0.0
        %1925 = vmatprep.subr.mxu0 0.0
        %1926 = vmatpush1.xpose.msra.mxu0 0.0
        %1927 = vmatprep.subr.mxu0 0.0
        %1928 = vmatpush1.xpose.msra.mxu0 0.0
        %1929 = vmatprep.subr.mxu0 0.0
        %1930 = vmatpush1.xpose.msra.mxu0 0.0
        %1931 = vmatprep.subr.mxu0 0.0
        %1932 = vmatpush1.xpose.msra.mxu0 0.0
        %1933 = vmatprep.subr.mxu0 0.0
        %1934 = vmatpush1.xpose.msra.mxu0 0.0
        %1935 = vmatprep.subr.mxu0 0.0
        %1936 = vmatpush1.xpose.msra.mxu0 0.0
        %1937 = vmatprep.subr.mxu0 0.0
        %1938 = vmatpush1.xpose.msra.mxu0 0.0
        %1939 = vmatprep.subr.mxu0 0.0
        %1940 = vmatpush1.xpose.msra.mxu0 0.0
        %1941 = vmatprep.subr.mxu0 0.0
        %1942 = vmatpush1.xpose.msra.mxu0 0.0
        %1943 = vmatprep.subr.mxu0 0.0
        %1944 = vmatpush1.xpose.msra.mxu0 0.0
        %1945 = vmatprep.subr.mxu0 0.0
        %1946 = vmatpush1.xpose.msra.mxu0 %v1913
        %1947 = vmatprep.subr.mxu0 0.0
        %1948 = vmatpush2.xpose.msra.mxu0 0.0
        %1949 = vmatprep.subr.mxu0 0.0
        %1950 = vmatpush2.xpose.msra.mxu0 0.0
        %1951 = vmatprep.subr.mxu0 0.0
        %1952 = vmatpush2.xpose.msra.mxu0 0.0
        %1953 = vmatprep.subr.mxu0 0.0
        %1954 = vmatpush2.xpose.msra.mxu0 0.0
        %1955 = vmatprep.subr.mxu0 0.0
        %1956 = vmatpush2.xpose.msra.mxu0 0.0
        %1957 = vmatprep.subr.mxu0 0.0
        %1958 = vmatpush2.xpose.msra.mxu0 0.0
        %1959 = vmatprep.subr.mxu0 0.0
        %1960 = vmatpush2.xpose.msra.mxu0 0.0
        %1961 = vmatprep.subr.mxu0 0.0
        %1962 = vmatpush2.xpose.msra.mxu0 0.0
        %1963 = vmatprep.subr.mxu0 0.0
        %1964 = vmatpush2.xpose.msra.mxu0 0.0
        %1965 = vmatprep.subr.mxu0 0.0
        %1966 = vmatpush2.xpose.msra.mxu0 0.0
        %1967 = vmatprep.subr.mxu0 0.0
        %1968 = vmatpush2.xpose.msra.mxu0 0.0
        %1969 = vmatprep.subr.mxu0 0.0
        %1970 = vmatpush2.xpose.msra.mxu0 0.0
        %1971 = vmatprep.subr.mxu0 0.0
        %1972 = vmatpush2.xpose.msra.mxu0 0.0
        %1973 = vmatprep.subr.mxu0 0.0
        %1974 = vmatpush2.xpose.msra.mxu0 0.0
        %1975 = vmatprep.subr.mxu0 0.0
        %1976 = vmatpush2.xpose.msra.mxu0 0.0
        %1977 = vmatprep.subr.mxu0 0.0
        %1978 = vmatpush2.xpose.msra.mxu0 0.0
        %1979 = vmatprep.mubr.f32.mxu0 0.0
        %1980 = vmatmul.mubr.f32.gmra.mxu0 %v1911
        %v1981 = vpop.f32.mrf.mxu0
        %v1982 = vadd.f32 0.0, %v1981
        %v1983 = vpop.f32.mrf.mxu0
        %1984 = vdwg.mxu0
        %1985 = vrot.lane.b32.xlu0 %v1566, 120
        %v1986 = vpop.permute.xlu0 %1985
        %1987 = vrot.lane.b32.xlu0 %v1566, 88
        %v1988 = vpop.permute.xlu0 %1987
        %v1989 = vsel %vm1577, %v1986, 0
        %v1991 = vsel %vm1577, %v1988, 0
        %1993 = vmatprep.subr.mxu0 0.0
        %1994 = vmatpush1.xpose.msra.mxu0 0.0
        %1995 = vmatprep.subr.mxu0 0.0
        %1996 = vmatpush1.xpose.msra.mxu0 0.0
        %1997 = vmatprep.subr.mxu0 0.0
        %1998 = vmatpush1.xpose.msra.mxu0 0.0
        %1999 = vmatprep.subr.mxu0 0.0
        %2000 = vmatpush1.xpose.msra.mxu0 0.0
        %2001 = vmatprep.subr.mxu0 0.0
        %2002 = vmatpush1.xpose.msra.mxu0 0.0
        %2003 = vmatprep.subr.mxu0 0.0
        %2004 = vmatpush1.xpose.msra.mxu0 0.0
        %2005 = vmatprep.subr.mxu0 0.0
        %2006 = vmatpush1.xpose.msra.mxu0 0.0
        %2007 = vmatprep.subr.mxu0 0.0
        %2008 = vmatpush1.xpose.msra.mxu0 0.0
        %2009 = vmatprep.subr.mxu0 0.0
        %2010 = vmatpush1.xpose.msra.mxu0 0.0
        %2011 = vmatprep.subr.mxu0 0.0
        %2012 = vmatpush1.xpose.msra.mxu0 0.0
        %2013 = vmatprep.subr.mxu0 0.0
        %2014 = vmatpush1.xpose.msra.mxu0 0.0
        %2015 = vmatprep.subr.mxu0 0.0
        %2016 = vmatpush1.xpose.msra.mxu0 0.0
        %2017 = vmatprep.subr.mxu0 0.0
        %2018 = vmatpush1.xpose.msra.mxu0 0.0
        %2019 = vmatprep.subr.mxu0 0.0
        %2020 = vmatpush1.xpose.msra.mxu0 0.0
        %2021 = vmatprep.subr.mxu0 0.0
        %2022 = vmatpush1.xpose.msra.mxu0 0.0
        %2023 = vmatprep.subr.mxu0 0.0
        %2024 = vmatpush1.xpose.msra.mxu0 %v1991
        %2025 = vmatprep.subr.mxu0 0.0
        %2026 = vmatpush2.xpose.msra.mxu0 0.0
        %2027 = vmatprep.subr.mxu0 0.0
        %2028 = vmatpush2.xpose.msra.mxu0 0.0
        %2029 = vmatprep.subr.mxu0 0.0
        %2030 = vmatpush2.xpose.msra.mxu0 0.0
        %2031 = vmatprep.subr.mxu0 0.0
        %2032 = vmatpush2.xpose.msra.mxu0 0.0
        %2033 = vmatprep.subr.mxu0 0.0
        %2034 = vmatpush2.xpose.msra.mxu0 0.0
        %2035 = vmatprep.subr.mxu0 0.0
        %2036 = vmatpush2.xpose.msra.mxu0 0.0
        %2037 = vmatprep.subr.mxu0 0.0
        %2038 = vmatpush2.xpose.msra.mxu0 0.0
        %2039 = vmatprep.subr.mxu0 0.0
        %2040 = vmatpush2.xpose.msra.mxu0 0.0
        %2041 = vmatprep.subr.mxu0 0.0
        %2042 = vmatpush2.xpose.msra.mxu0 0.0
        %2043 = vmatprep.subr.mxu0 0.0
        %2044 = vmatpush2.xpose.msra.mxu0 0.0
        %2045 = vmatprep.subr.mxu0 0.0
        %2046 = vmatpush2.xpose.msra.mxu0 0.0
        %2047 = vmatprep.subr.mxu0 0.0
        %2048 = vmatpush2.xpose.msra.mxu0 0.0
        %2049 = vmatprep.subr.mxu0 0.0
        %2050 = vmatpush2.xpose.msra.mxu0 0.0
        %2051 = vmatprep.subr.mxu0 0.0
        %2052 = vmatpush2.xpose.msra.mxu0 0.0
        %2053 = vmatprep.subr.mxu0 0.0
        %2054 = vmatpush2.xpose.msra.mxu0 0.0
        %2055 = vmatprep.subr.mxu0 0.0
        %2056 = vmatpush2.xpose.msra.mxu0 0.0
        %2057 = vmatprep.mubr.f32.mxu0 0.0
        %2058 = vmatmul.mubr.f32.gmra.mxu0 %v1989
        %v2059 = vpop.f32.mrf.mxu0
        %v2060 = vadd.f32 0.0, %v2059
        %v2061 = vpop.f32.mrf.mxu0
        %2062 = vdwg.mxu0
        %v2063 = vmul.f32 %v1982, 0.35355338
        %v2064 = vmul.f32 %v2060, 0.35355338
        %v2065 = vadd.f32 %v2063, %v1475
        %v2066 = vadd.f32 %v2064, %v1475
        %v2067 = vsel %vm1577, %v2065, -inf
        %2068 = vmax.xlane.f32.xlu0 %v2067
        %v2069 = vpop.xlane.xlu0 %2068
        %v2070 = vsel %vm1577, %v2066, -inf
        %2071 = vmax.xlane.f32.xlu0 %v2070
        %v2072 = vpop.xlane.xlu0 %2071
        %v2073 = vsub.f32 %v2065, %v2069
        %v2074 = vsub.f32 %v2066, %v2072
        %v2075 = vmul.f32 %v2073, 1.442695
        %v2076 = vpow.pop %v2075
        %v2077 = vmul.f32 %v2074, 1.442695
        %v2078 = vpow.pop %v2077
        %v2079 = vsel %vm1577, %v2076, 0.0
        %2080 = vadd.xlane.f32.xlu0 %v2079
        %v2081 = vpop.xlane.xlu0 %2080
        %v2082 = vsel %vm1577, %v2078, 0.0
        %2083 = vadd.xlane.f32.xlu0 %v2082
        %v2084 = vpop.xlane.xlu0 %2083
        %v2085 = vrcp.pop %v2081
        %v2086 = vrcp.pop %v2084
        %v2087 = vmul.f32 %v2076, %v2085
        %v2088 = vmul.f32 %v2078, %v2086
        %2089 = vrot.lane.b32.xlu0 %v1561, 56
        %v2090 = vpop.permute.xlu0 %2089
        %v2093 = vsel %vm1577, %v2087, 0
        %2095 = vmatprep.subr.mxu0 0.0
        %2096 = vmatpush1.msra.mxu0 0.0
        %2097 = vmatprep.subr.mxu0 0.0
        %2098 = vmatpush1.msra.mxu0 0.0
        %2099 = vmatprep.subr.mxu0 0.0
        %2100 = vmatpush1.msra.mxu0 0.0
        %2101 = vmatprep.subr.mxu0 0.0
        %2102 = vmatpush1.msra.mxu0 0.0
        %2103 = vmatprep.subr.mxu0 0.0
        %2104 = vmatpush1.msra.mxu0 0.0
        %2105 = vmatprep.subr.mxu0 0.0
        %2106 = vmatpush1.msra.mxu0 0.0
        %2107 = vmatprep.subr.mxu0 0.0
        %2108 = vmatpush1.msra.mxu0 0.0
        %2109 = vmatprep.subr.mxu0 0.0
        %2110 = vmatpush1.msra.mxu0 0.0
        %2111 = vmatprep.subr.mxu0 0.0
        %2112 = vmatpush1.msra.mxu0 0.0
        %2113 = vmatprep.subr.mxu0 0.0
        %2114 = vmatpush1.msra.mxu0 0.0
        %2115 = vmatprep.subr.mxu0 0.0
        %2116 = vmatpush1.msra.mxu0 0.0
        %2117 = vmatprep.subr.mxu0 0.0
        %2118 = vmatpush1.msra.mxu0 0.0
        %2119 = vmatprep.subr.mxu0 0.0
        %2120 = vmatpush1.msra.mxu0 0.0
        %2121 = vmatprep.subr.mxu0 0.0
        %2122 = vmatpush1.msra.mxu0 0.0
        %2123 = vmatprep.subr.mxu0 0.0
        %2124 = vmatpush1.msra.mxu0 0.0
        %2125 = vmatprep.subr.mxu0 0.0
        %2126 = vmatpush1.msra.mxu0 %v2090
        %2127 = vmatprep.subr.mxu0 0.0
        %2128 = vmatpush2.msra.mxu0 0.0
        %2129 = vmatprep.subr.mxu0 0.0
        %2130 = vmatpush2.msra.mxu0 0.0
        %2131 = vmatprep.subr.mxu0 0.0
        %2132 = vmatpush2.msra.mxu0 0.0
        %2133 = vmatprep.subr.mxu0 0.0
        %2134 = vmatpush2.msra.mxu0 0.0
        %2135 = vmatprep.subr.mxu0 0.0
        %2136 = vmatpush2.msra.mxu0 0.0
        %2137 = vmatprep.subr.mxu0 0.0
        %2138 = vmatpush2.msra.mxu0 0.0
        %2139 = vmatprep.subr.mxu0 0.0
        %2140 = vmatpush2.msra.mxu0 0.0
        %2141 = vmatprep.subr.mxu0 0.0
        %2142 = vmatpush2.msra.mxu0 0.0
        %2143 = vmatprep.subr.mxu0 0.0
        %2144 = vmatpush2.msra.mxu0 0.0
        %2145 = vmatprep.subr.mxu0 0.0
        %2146 = vmatpush2.msra.mxu0 0.0
        %2147 = vmatprep.subr.mxu0 0.0
        %2148 = vmatpush2.msra.mxu0 0.0
        %2149 = vmatprep.subr.mxu0 0.0
        %2150 = vmatpush2.msra.mxu0 0.0
        %2151 = vmatprep.subr.mxu0 0.0
        %2152 = vmatpush2.msra.mxu0 0.0
        %2153 = vmatprep.subr.mxu0 0.0
        %2154 = vmatpush2.msra.mxu0 0.0
        %2155 = vmatprep.subr.mxu0 0.0
        %2156 = vmatpush2.msra.mxu0 0.0
        %2157 = vmatprep.subr.mxu0 0.0
        %2158 = vmatpush2.msra.mxu0 0.0
        %2159 = vmatprep.mubr.f32.mxu0 0.0
        %2160 = vmatmul.mubr.f32.gmra.mxu0 %v2093
        %v2161 = vpop.f32.mrf.mxu0
        %v2162 = vadd.f32 0.0, %v2161
        %v2163 = vpop.f32.mrf.mxu0
        %2164 = vdwg.mxu0
        %2165 = vrot.lane.b32.xlu0 %v1566, 56
        %v2166 = vpop.permute.xlu0 %2165
        %v2169 = vsel %vm1577, %v2088, 0
        %2171 = vmatprep.subr.mxu0 0.0
        %2172 = vmatpush1.msra.mxu0 0.0
        %2173 = vmatprep.subr.mxu0 0.0
        %2174 = vmatpush1.msra.mxu0 0.0
        %2175 = vmatprep.subr.mxu0 0.0
        %2176 = vmatpush1.msra.mxu0 0.0
        %2177 = vmatprep.subr.mxu0 0.0
        %2178 = vmatpush1.msra.mxu0 0.0
        %2179 = vmatprep.subr.mxu0 0.0
        %2180 = vmatpush1.msra.mxu0 0.0
        %2181 = vmatprep.subr.mxu0 0.0
        %2182 = vmatpush1.msra.mxu0 0.0
        %2183 = vmatprep.subr.mxu0 0.0
        %2184 = vmatpush1.msra.mxu0 0.0
        %2185 = vmatprep.subr.mxu0 0.0
        %2186 = vmatpush1.msra.mxu0 0.0
        %2187 = vmatprep.subr.mxu0 0.0
        %2188 = vmatpush1.msra.mxu0 0.0
        %2189 = vmatprep.subr.mxu0 0.0
        %2190 = vmatpush1.msra.mxu0 0.0
        %2191 = vmatprep.subr.mxu0 0.0
        %2192 = vmatpush1.msra.mxu0 0.0
        %2193 = vmatprep.subr.mxu0 0.0
        %2194 = vmatpush1.msra.mxu0 0.0
        %2195 = vmatprep.subr.mxu0 0.0
        %2196 = vmatpush1.msra.mxu0 0.0
        %2197 = vmatprep.subr.mxu0 0.0
        %2198 = vmatpush1.msra.mxu0 0.0
        %2199 = vmatprep.subr.mxu0 0.0
        %2200 = vmatpush1.msra.mxu0 0.0
        %2201 = vmatprep.subr.mxu0 0.0
        %2202 = vmatpush1.msra.mxu0 %v2166
        %2203 = vmatprep.subr.mxu0 0.0
        %2204 = vmatpush2.msra.mxu0 0.0
        %2205 = vmatprep.subr.mxu0 0.0
        %2206 = vmatpush2.msra.mxu0 0.0
        %2207 = vmatprep.subr.mxu0 0.0
        %2208 = vmatpush2.msra.mxu0 0.0
        %2209 = vmatprep.subr.mxu0 0.0
        %2210 = vmatpush2.msra.mxu0 0.0
        %2211 = vmatprep.subr.mxu0 0.0
        %2212 = vmatpush2.msra.mxu0 0.0
        %2213 = vmatprep.subr.mxu0 0.0
        %2214 = vmatpush2.msra.mxu0 0.0
        %2215 = vmatprep.subr.mxu0 0.0
        %2216 = vmatpush2.msra.mxu0 0.0
        %2217 = vmatprep.subr.mxu0 0.0
        %2218 = vmatpush2.msra.mxu0 0.0
        %2219 = vmatprep.subr.mxu0 0.0
        %2220 = vmatpush2.msra.mxu0 0.0
        %2221 = vmatprep.subr.mxu0 0.0
        %2222 = vmatpush2.msra.mxu0 0.0
        %2223 = vmatprep.subr.mxu0 0.0
        %2224 = vmatpush2.msra.mxu0 0.0
        %2225 = vmatprep.subr.mxu0 0.0
        %2226 = vmatpush2.msra.mxu0 0.0
        %2227 = vmatprep.subr.mxu0 0.0
        %2228 = vmatpush2.msra.mxu0 0.0
        %2229 = vmatprep.subr.mxu0 0.0
        %2230 = vmatpush2.msra.mxu0 0.0
        %2231 = vmatprep.subr.mxu0 0.0
        %2232 = vmatpush2.msra.mxu0 0.0
        %2233 = vmatprep.subr.mxu0 0.0
        %2234 = vmatpush2.msra.mxu0 0.0
        %2235 = vmatprep.mubr.f32.mxu0 0.0
        %2236 = vmatmul.mubr.f32.gmra.mxu0 %v2169
        %v2237 = vpop.f32.mrf.mxu0
        %v2238 = vadd.f32 0.0, %v2237
        %v2239 = vpop.f32.mrf.mxu0
        %2240 = vdwg.mxu0
        %2241 = vrot.lane.b32.xlu0 %v1561, 112
        %v2242 = vpop.permute.xlu0 %2241
        %2243 = vrot.lane.b32.xlu0 %v1561, 80
        %v2244 = vpop.permute.xlu0 %2243
        %v2245 = vsel %vm1577, %v2242, 0
        %v2247 = vsel %vm1577, %v2244, 0
        %2249 = vmatprep.subr.mxu0 0.0
        %2250 = vmatpush1.xpose.msra.mxu0 0.0
        %2251 = vmatprep.subr.mxu0 0.0
        %2252 = vmatpush1.xpose.msra.mxu0 0.0
        %2253 = vmatprep.subr.mxu0 0.0
        %2254 = vmatpush1.xpose.msra.mxu0 0.0
        %2255 = vmatprep.subr.mxu0 0.0
        %2256 = vmatpush1.xpose.msra.mxu0 0.0
        %2257 = vmatprep.subr.mxu0 0.0
        %2258 = vmatpush1.xpose.msra.mxu0 0.0
        %2259 = vmatprep.subr.mxu0 0.0
        %2260 = vmatpush1.xpose.msra.mxu0 0.0
        %2261 = vmatprep.subr.mxu0 0.0
        %2262 = vmatpush1.xpose.msra.mxu0 0.0
        %2263 = vmatprep.subr.mxu0 0.0
        %2264 = vmatpush1.xpose.msra.mxu0 0.0
        %2265 = vmatprep.subr.mxu0 0.0
        %2266 = vmatpush1.xpose.msra.mxu0 0.0
        %2267 = vmatprep.subr.mxu0 0.0
        %2268 = vmatpush1.xpose.msra.mxu0 0.0
        %2269 = vmatprep.subr.mxu0 0.0
        %2270 = vmatpush1.xpose.msra.mxu0 0.0
        %2271 = vmatprep.subr.mxu0 0.0
        %2272 = vmatpush1.xpose.msra.mxu0 0.0
        %2273 = vmatprep.subr.mxu0 0.0
        %2274 = vmatpush1.xpose.msra.mxu0 0.0
        %2275 = vmatprep.subr.mxu0 0.0
        %2276 = vmatpush1.xpose.msra.mxu0 0.0
        %2277 = vmatprep.subr.mxu0 0.0
        %2278 = vmatpush1.xpose.msra.mxu0 0.0
        %2279 = vmatprep.subr.mxu0 0.0
        %2280 = vmatpush1.xpose.msra.mxu0 %v2247
        %2281 = vmatprep.subr.mxu0 0.0
        %2282 = vmatpush2.xpose.msra.mxu0 0.0
        %2283 = vmatprep.subr.mxu0 0.0
        %2284 = vmatpush2.xpose.msra.mxu0 0.0
        %2285 = vmatprep.subr.mxu0 0.0
        %2286 = vmatpush2.xpose.msra.mxu0 0.0
        %2287 = vmatprep.subr.mxu0 0.0
        %2288 = vmatpush2.xpose.msra.mxu0 0.0
        %2289 = vmatprep.subr.mxu0 0.0
        %2290 = vmatpush2.xpose.msra.mxu0 0.0
        %2291 = vmatprep.subr.mxu0 0.0
        %2292 = vmatpush2.xpose.msra.mxu0 0.0
        %2293 = vmatprep.subr.mxu0 0.0
        %2294 = vmatpush2.xpose.msra.mxu0 0.0
        %2295 = vmatprep.subr.mxu0 0.0
        %2296 = vmatpush2.xpose.msra.mxu0 0.0
        %2297 = vmatprep.subr.mxu0 0.0
        %2298 = vmatpush2.xpose.msra.mxu0 0.0
        %2299 = vmatprep.subr.mxu0 0.0
        %2300 = vmatpush2.xpose.msra.mxu0 0.0
        %2301 = vmatprep.subr.mxu0 0.0
        %2302 = vmatpush2.xpose.msra.mxu0 0.0
        %2303 = vmatprep.subr.mxu0 0.0
        %2304 = vmatpush2.xpose.msra.mxu0 0.0
        %2305 = vmatprep.subr.mxu0 0.0
        %2306 = vmatpush2.xpose.msra.mxu0 0.0
        %2307 = vmatprep.subr.mxu0 0.0
        %2308 = vmatpush2.xpose.msra.mxu0 0.0
        %2309 = vmatprep.subr.mxu0 0.0
        %2310 = vmatpush2.xpose.msra.mxu0 0.0
        %2311 = vmatprep.subr.mxu0 0.0
        %2312 = vmatpush2.xpose.msra.mxu0 0.0
        %2313 = vmatprep.mubr.f32.mxu0 0.0
        %2314 = vmatmul.mubr.f32.gmra.mxu0 %v2245
        %v2315 = vpop.f32.mrf.mxu0
        %v2316 = vadd.f32 0.0, %v2315
        %v2317 = vpop.f32.mrf.mxu0
        %2318 = vdwg.mxu0
        %2319 = vrot.lane.b32.xlu0 %v1566, 112
        %v2320 = vpop.permute.xlu0 %2319
        %2321 = vrot.lane.b32.xlu0 %v1566, 80
        %v2322 = vpop.permute.xlu0 %2321
        %v2323 = vsel %vm1577, %v2320, 0
        %v2325 = vsel %vm1577, %v2322, 0
        %2327 = vmatprep.subr.mxu0 0.0
        %2328 = vmatpush1.xpose.msra.mxu0 0.0
        %2329 = vmatprep.subr.mxu0 0.0
        %2330 = vmatpush1.xpose.msra.mxu0 0.0
        %2331 = vmatprep.subr.mxu0 0.0
        %2332 = vmatpush1.xpose.msra.mxu0 0.0
        %2333 = vmatprep.subr.mxu0 0.0
        %2334 = vmatpush1.xpose.msra.mxu0 0.0
        %2335 = vmatprep.subr.mxu0 0.0
        %2336 = vmatpush1.xpose.msra.mxu0 0.0
        %2337 = vmatprep.subr.mxu0 0.0
        %2338 = vmatpush1.xpose.msra.mxu0 0.0
        %2339 = vmatprep.subr.mxu0 0.0
        %2340 = vmatpush1.xpose.msra.mxu0 0.0
        %2341 = vmatprep.subr.mxu0 0.0
        %2342 = vmatpush1.xpose.msra.mxu0 0.0
        %2343 = vmatprep.subr.mxu0 0.0
        %2344 = vmatpush1.xpose.msra.mxu0 0.0
        %2345 = vmatprep.subr.mxu0 0.0
        %2346 = vmatpush1.xpose.msra.mxu0 0.0
        %2347 = vmatprep.subr.mxu0 0.0
        %2348 = vmatpush1.xpose.msra.mxu0 0.0
        %2349 = vmatprep.subr.mxu0 0.0
        %2350 = vmatpush1.xpose.msra.mxu0 0.0
        %2351 = vmatprep.subr.mxu0 0.0
        %2352 = vmatpush1.xpose.msra.mxu0 0.0
        %2353 = vmatprep.subr.mxu0 0.0
        %2354 = vmatpush1.xpose.msra.mxu0 0.0
        %2355 = vmatprep.subr.mxu0 0.0
        %2356 = vmatpush1.xpose.msra.mxu0 0.0
        %2357 = vmatprep.subr.mxu0 0.0
        %2358 = vmatpush1.xpose.msra.mxu0 %v2325
        %2359 = vmatprep.subr.mxu0 0.0
        %2360 = vmatpush2.xpose.msra.mxu0 0.0
        %2361 = vmatprep.subr.mxu0 0.0
        %2362 = vmatpush2.xpose.msra.mxu0 0.0
        %2363 = vmatprep.subr.mxu0 0.0
        %2364 = vmatpush2.xpose.msra.mxu0 0.0
        %2365 = vmatprep.subr.mxu0 0.0
        %2366 = vmatpush2.xpose.msra.mxu0 0.0
        %2367 = vmatprep.subr.mxu0 0.0
        %2368 = vmatpush2.xpose.msra.mxu0 0.0
        %2369 = vmatprep.subr.mxu0 0.0
        %2370 = vmatpush2.xpose.msra.mxu0 0.0
        %2371 = vmatprep.subr.mxu0 0.0
        %2372 = vmatpush2.xpose.msra.mxu0 0.0
        %2373 = vmatprep.subr.mxu0 0.0
        %2374 = vmatpush2.xpose.msra.mxu0 0.0
        %2375 = vmatprep.subr.mxu0 0.0
        %2376 = vmatpush2.xpose.msra.mxu0 0.0
        %2377 = vmatprep.subr.mxu0 0.0
        %2378 = vmatpush2.xpose.msra.mxu0 0.0
        %2379 = vmatprep.subr.mxu0 0.0
        %2380 = vmatpush2.xpose.msra.mxu0 0.0
        %2381 = vmatprep.subr.mxu0 0.0
        %2382 = vmatpush2.xpose.msra.mxu0 0.0
        %2383 = vmatprep.subr.mxu0 0.0
        %2384 = vmatpush2.xpose.msra.mxu0 0.0
        %2385 = vmatprep.subr.mxu0 0.0
        %2386 = vmatpush2.xpose.msra.mxu0 0.0
        %2387 = vmatprep.subr.mxu0 0.0
        %2388 = vmatpush2.xpose.msra.mxu0 0.0
        %2389 = vmatprep.subr.mxu0 0.0
        %2390 = vmatpush2.xpose.msra.mxu0 0.0
        %2391 = vmatprep.mubr.f32.mxu0 0.0
        %2392 = vmatmul.mubr.f32.gmra.mxu0 %v2323
        %v2393 = vpop.f32.mrf.mxu0
        %v2394 = vadd.f32 0.0, %v2393
        %v2395 = vpop.f32.mrf.mxu0
        %2396 = vdwg.mxu0
        %v2397 = vmul.f32 %v2316, 0.35355338
        %v2398 = vmul.f32 %v2394, 0.35355338
        %v2399 = vadd.f32 %v2397, %v1475
        %v2400 = vadd.f32 %v2398, %v1475
        %v2401 = vsel %vm1577, %v2399, -inf
        %2402 = vmax.xlane.f32.xlu0 %v2401
        %v2403 = vpop.xlane.xlu0 %2402
        %v2404 = vsel %vm1577, %v2400, -inf
        %2405 = vmax.xlane.f32.xlu0 %v2404
        %v2406 = vpop.xlane.xlu0 %2405
        %v2407 = vsub.f32 %v2399, %v2403
        %v2408 = vsub.f32 %v2400, %v2406
        %v2409 = vmul.f32 %v2407, 1.442695
        %v2410 = vpow.pop %v2409
        %v2411 = vmul.f32 %v2408, 1.442695
        %v2412 = vpow.pop %v2411
        %v2413 = vsel %vm1577, %v2410, 0.0
        %2414 = vadd.xlane.f32.xlu0 %v2413
        %v2415 = vpop.xlane.xlu0 %2414
        %v2416 = vsel %vm1577, %v2412, 0.0
        %2417 = vadd.xlane.f32.xlu0 %v2416
        %v2418 = vpop.xlane.xlu0 %2417
        %v2419 = vrcp.pop %v2415
        %v2420 = vrcp.pop %v2418
        %v2421 = vmul.f32 %v2410, %v2419
        %v2422 = vmul.f32 %v2412, %v2420
        %2423 = vrot.lane.b32.xlu0 %v1561, 48
        %v2424 = vpop.permute.xlu0 %2423
        %v2427 = vsel %vm1577, %v2421, 0
        %2429 = vmatprep.subr.mxu0 0.0
        %2430 = vmatpush1.msra.mxu0 0.0
        %2431 = vmatprep.subr.mxu0 0.0
        %2432 = vmatpush1.msra.mxu0 0.0
        %2433 = vmatprep.subr.mxu0 0.0
        %2434 = vmatpush1.msra.mxu0 0.0
        %2435 = vmatprep.subr.mxu0 0.0
        %2436 = vmatpush1.msra.mxu0 0.0
        %2437 = vmatprep.subr.mxu0 0.0
        %2438 = vmatpush1.msra.mxu0 0.0
        %2439 = vmatprep.subr.mxu0 0.0
        %2440 = vmatpush1.msra.mxu0 0.0
        %2441 = vmatprep.subr.mxu0 0.0
        %2442 = vmatpush1.msra.mxu0 0.0
        %2443 = vmatprep.subr.mxu0 0.0
        %2444 = vmatpush1.msra.mxu0 0.0
        %2445 = vmatprep.subr.mxu0 0.0
        %2446 = vmatpush1.msra.mxu0 0.0
        %2447 = vmatprep.subr.mxu0 0.0
        %2448 = vmatpush1.msra.mxu0 0.0
        %2449 = vmatprep.subr.mxu0 0.0
        %2450 = vmatpush1.msra.mxu0 0.0
        %2451 = vmatprep.subr.mxu0 0.0
        %2452 = vmatpush1.msra.mxu0 0.0
        %2453 = vmatprep.subr.mxu0 0.0
        %2454 = vmatpush1.msra.mxu0 0.0
        %2455 = vmatprep.subr.mxu0 0.0
        %2456 = vmatpush1.msra.mxu0 0.0
        %2457 = vmatprep.subr.mxu0 0.0
        %2458 = vmatpush1.msra.mxu0 0.0
        %2459 = vmatprep.subr.mxu0 0.0
        %2460 = vmatpush1.msra.mxu0 %v2424
        %2461 = vmatprep.subr.mxu0 0.0
        %2462 = vmatpush2.msra.mxu0 0.0
        %2463 = vmatprep.subr.mxu0 0.0
        %2464 = vmatpush2.msra.mxu0 0.0
        %2465 = vmatprep.subr.mxu0 0.0
        %2466 = vmatpush2.msra.mxu0 0.0
        %2467 = vmatprep.subr.mxu0 0.0
        %2468 = vmatpush2.msra.mxu0 0.0
        %2469 = vmatprep.subr.mxu0 0.0
        %2470 = vmatpush2.msra.mxu0 0.0
        %2471 = vmatprep.subr.mxu0 0.0
        %2472 = vmatpush2.msra.mxu0 0.0
        %2473 = vmatprep.subr.mxu0 0.0
        %2474 = vmatpush2.msra.mxu0 0.0
        %2475 = vmatprep.subr.mxu0 0.0
        %2476 = vmatpush2.msra.mxu0 0.0
        %2477 = vmatprep.subr.mxu0 0.0
        %2478 = vmatpush2.msra.mxu0 0.0
        %2479 = vmatprep.subr.mxu0 0.0
        %2480 = vmatpush2.msra.mxu0 0.0
        %2481 = vmatprep.subr.mxu0 0.0
        %2482 = vmatpush2.msra.mxu0 0.0
        %2483 = vmatprep.subr.mxu0 0.0
        %2484 = vmatpush2.msra.mxu0 0.0
        %2485 = vmatprep.subr.mxu0 0.0
        %2486 = vmatpush2.msra.mxu0 0.0
        %2487 = vmatprep.subr.mxu0 0.0
        %2488 = vmatpush2.msra.mxu0 0.0
        %2489 = vmatprep.subr.mxu0 0.0
        %2490 = vmatpush2.msra.mxu0 0.0
        %2491 = vmatprep.subr.mxu0 0.0
        %2492 = vmatpush2.msra.mxu0 0.0
        %2493 = vmatprep.mubr.f32.mxu0 0.0
        %2494 = vmatmul.mubr.f32.gmra.mxu0 %v2427
        %v2495 = vpop.f32.mrf.mxu0
        %v2496 = vadd.f32 0.0, %v2495
        %v2497 = vpop.f32.mrf.mxu0
        %2498 = vdwg.mxu0
        %2499 = vrot.lane.b32.xlu0 %v1566, 48
        %v2500 = vpop.permute.xlu0 %2499
        %v2503 = vsel %vm1577, %v2422, 0
        %2505 = vmatprep.subr.mxu0 0.0
        %2506 = vmatpush1.msra.mxu0 0.0
        %2507 = vmatprep.subr.mxu0 0.0
        %2508 = vmatpush1.msra.mxu0 0.0
        %2509 = vmatprep.subr.mxu0 0.0
        %2510 = vmatpush1.msra.mxu0 0.0
        %2511 = vmatprep.subr.mxu0 0.0
        %2512 = vmatpush1.msra.mxu0 0.0
        %2513 = vmatprep.subr.mxu0 0.0
        %2514 = vmatpush1.msra.mxu0 0.0
        %2515 = vmatprep.subr.mxu0 0.0
        %2516 = vmatpush1.msra.mxu0 0.0
        %2517 = vmatprep.subr.mxu0 0.0
        %2518 = vmatpush1.msra.mxu0 0.0
        %2519 = vmatprep.subr.mxu0 0.0
        %2520 = vmatpush1.msra.mxu0 0.0
        %2521 = vmatprep.subr.mxu0 0.0
        %2522 = vmatpush1.msra.mxu0 0.0
        %2523 = vmatprep.subr.mxu0 0.0
        %2524 = vmatpush1.msra.mxu0 0.0
        %2525 = vmatprep.subr.mxu0 0.0
        %2526 = vmatpush1.msra.mxu0 0.0
        %2527 = vmatprep.subr.mxu0 0.0
        %2528 = vmatpush1.msra.mxu0 0.0
        %2529 = vmatprep.subr.mxu0 0.0
        %2530 = vmatpush1.msra.mxu0 0.0
        %2531 = vmatprep.subr.mxu0 0.0
        %2532 = vmatpush1.msra.mxu0 0.0
        %2533 = vmatprep.subr.mxu0 0.0
        %2534 = vmatpush1.msra.mxu0 0.0
        %2535 = vmatprep.subr.mxu0 0.0
        %2536 = vmatpush1.msra.mxu0 %v2500
        %2537 = vmatprep.subr.mxu0 0.0
        %2538 = vmatpush2.msra.mxu0 0.0
        %2539 = vmatprep.subr.mxu0 0.0
        %2540 = vmatpush2.msra.mxu0 0.0
        %2541 = vmatprep.subr.mxu0 0.0
        %2542 = vmatpush2.msra.mxu0 0.0
        %2543 = vmatprep.subr.mxu0 0.0
        %2544 = vmatpush2.msra.mxu0 0.0
        %2545 = vmatprep.subr.mxu0 0.0
        %2546 = vmatpush2.msra.mxu0 0.0
        %2547 = vmatprep.subr.mxu0 0.0
        %2548 = vmatpush2.msra.mxu0 0.0
        %2549 = vmatprep.subr.mxu0 0.0
        %2550 = vmatpush2.msra.mxu0 0.0
        %2551 = vmatprep.subr.mxu0 0.0
        %2552 = vmatpush2.msra.mxu0 0.0
        %2553 = vmatprep.subr.mxu0 0.0
        %2554 = vmatpush2.msra.mxu0 0.0
        %2555 = vmatprep.subr.mxu0 0.0
        %2556 = vmatpush2.msra.mxu0 0.0
        %2557 = vmatprep.subr.mxu0 0.0
        %2558 = vmatpush2.msra.mxu0 0.0
        %2559 = vmatprep.subr.mxu0 0.0
        %2560 = vmatpush2.msra.mxu0 0.0
        %2561 = vmatprep.subr.mxu0 0.0
        %2562 = vmatpush2.msra.mxu0 0.0
        %2563 = vmatprep.subr.mxu0 0.0
        %2564 = vmatpush2.msra.mxu0 0.0
        %2565 = vmatprep.subr.mxu0 0.0
        %2566 = vmatpush2.msra.mxu0 0.0
        %2567 = vmatprep.subr.mxu0 0.0
        %2568 = vmatpush2.msra.mxu0 0.0
        %2569 = vmatprep.mubr.f32.mxu0 0.0
        %2570 = vmatmul.mubr.f32.gmra.mxu0 %v2503
        %v2571 = vpop.f32.mrf.mxu0
        %v2572 = vadd.f32 0.0, %v2571
        %v2573 = vpop.f32.mrf.mxu0
        %2574 = vdwg.mxu0
        %2575 = vrot.lane.b32.xlu0 %v1561, 104
        %v2576 = vpop.permute.xlu0 %2575
        %2577 = vrot.lane.b32.xlu0 %v1561, 72
        %v2578 = vpop.permute.xlu0 %2577
        %v2579 = vsel %vm1577, %v2576, 0
        %v2581 = vsel %vm1577, %v2578, 0
        %2583 = vmatprep.subr.mxu0 0.0
        %2584 = vmatpush1.xpose.msra.mxu0 0.0
        %2585 = vmatprep.subr.mxu0 0.0
        %2586 = vmatpush1.xpose.msra.mxu0 0.0
        %2587 = vmatprep.subr.mxu0 0.0
        %2588 = vmatpush1.xpose.msra.mxu0 0.0
        %2589 = vmatprep.subr.mxu0 0.0
        %2590 = vmatpush1.xpose.msra.mxu0 0.0
        %2591 = vmatprep.subr.mxu0 0.0
        %2592 = vmatpush1.xpose.msra.mxu0 0.0
        %2593 = vmatprep.subr.mxu0 0.0
        %2594 = vmatpush1.xpose.msra.mxu0 0.0
        %2595 = vmatprep.subr.mxu0 0.0
        %2596 = vmatpush1.xpose.msra.mxu0 0.0
        %2597 = vmatprep.subr.mxu0 0.0
        %2598 = vmatpush1.xpose.msra.mxu0 0.0
        %2599 = vmatprep.subr.mxu0 0.0
        %2600 = vmatpush1.xpose.msra.mxu0 0.0
        %2601 = vmatprep.subr.mxu0 0.0
        %2602 = vmatpush1.xpose.msra.mxu0 0.0
        %2603 = vmatprep.subr.mxu0 0.0
        %2604 = vmatpush1.xpose.msra.mxu0 0.0
        %2605 = vmatprep.subr.mxu0 0.0
        %2606 = vmatpush1.xpose.msra.mxu0 0.0
        %2607 = vmatprep.subr.mxu0 0.0
        %2608 = vmatpush1.xpose.msra.mxu0 0.0
        %2609 = vmatprep.subr.mxu0 0.0
        %2610 = vmatpush1.xpose.msra.mxu0 0.0
        %2611 = vmatprep.subr.mxu0 0.0
        %2612 = vmatpush1.xpose.msra.mxu0 0.0
        %2613 = vmatprep.subr.mxu0 0.0
        %2614 = vmatpush1.xpose.msra.mxu0 %v2581
        %2615 = vmatprep.subr.mxu0 0.0
        %2616 = vmatpush2.xpose.msra.mxu0 0.0
        %2617 = vmatprep.subr.mxu0 0.0
        %2618 = vmatpush2.xpose.msra.mxu0 0.0
        %2619 = vmatprep.subr.mxu0 0.0
        %2620 = vmatpush2.xpose.msra.mxu0 0.0
        %2621 = vmatprep.subr.mxu0 0.0
        %2622 = vmatpush2.xpose.msra.mxu0 0.0
        %2623 = vmatprep.subr.mxu0 0.0
        %2624 = vmatpush2.xpose.msra.mxu0 0.0
        %2625 = vmatprep.subr.mxu0 0.0
        %2626 = vmatpush2.xpose.msra.mxu0 0.0
        %2627 = vmatprep.subr.mxu0 0.0
        %2628 = vmatpush2.xpose.msra.mxu0 0.0
        %2629 = vmatprep.subr.mxu0 0.0
        %2630 = vmatpush2.xpose.msra.mxu0 0.0
        %2631 = vmatprep.subr.mxu0 0.0
        %2632 = vmatpush2.xpose.msra.mxu0 0.0
        %2633 = vmatprep.subr.mxu0 0.0
        %2634 = vmatpush2.xpose.msra.mxu0 0.0
        %2635 = vmatprep.subr.mxu0 0.0
        %2636 = vmatpush2.xpose.msra.mxu0 0.0
        %2637 = vmatprep.subr.mxu0 0.0
        %2638 = vmatpush2.xpose.msra.mxu0 0.0
        %2639 = vmatprep.subr.mxu0 0.0
        %2640 = vmatpush2.xpose.msra.mxu0 0.0
        %2641 = vmatprep.subr.mxu0 0.0
        %2642 = vmatpush2.xpose.msra.mxu0 0.0
        %2643 = vmatprep.subr.mxu0 0.0
        %2644 = vmatpush2.xpose.msra.mxu0 0.0
        %2645 = vmatprep.subr.mxu0 0.0
        %2646 = vmatpush2.xpose.msra.mxu0 0.0
        %2647 = vmatprep.mubr.f32.mxu0 0.0
        %2648 = vmatmul.mubr.f32.gmra.mxu0 %v2579
        %v2649 = vpop.f32.mrf.mxu0
        %v2650 = vadd.f32 0.0, %v2649
        %v2651 = vpop.f32.mrf.mxu0
        %2652 = vdwg.mxu0
        %2653 = vrot.lane.b32.xlu0 %v1566, 104
        %v2654 = vpop.permute.xlu0 %2653
        %2655 = vrot.lane.b32.xlu0 %v1566, 72
        %v2656 = vpop.permute.xlu0 %2655
        %v2657 = vsel %vm1577, %v2654, 0
        %v2659 = vsel %vm1577, %v2656, 0
        %2661 = vmatprep.subr.mxu0 0.0
        %2662 = vmatpush1.xpose.msra.mxu0 0.0
        %2663 = vmatprep.subr.mxu0 0.0
        %2664 = vmatpush1.xpose.msra.mxu0 0.0
        %2665 = vmatprep.subr.mxu0 0.0
        %2666 = vmatpush1.xpose.msra.mxu0 0.0
        %2667 = vmatprep.subr.mxu0 0.0
        %2668 = vmatpush1.xpose.msra.mxu0 0.0
        %2669 = vmatprep.subr.mxu0 0.0
        %2670 = vmatpush1.xpose.msra.mxu0 0.0
        %2671 = vmatprep.subr.mxu0 0.0
        %2672 = vmatpush1.xpose.msra.mxu0 0.0
        %2673 = vmatprep.subr.mxu0 0.0
        %2674 = vmatpush1.xpose.msra.mxu0 0.0
        %2675 = vmatprep.subr.mxu0 0.0
        %2676 = vmatpush1.xpose.msra.mxu0 0.0
        %2677 = vmatprep.subr.mxu0 0.0
        %2678 = vmatpush1.xpose.msra.mxu0 0.0
        %2679 = vmatprep.subr.mxu0 0.0
        %2680 = vmatpush1.xpose.msra.mxu0 0.0
        %2681 = vmatprep.subr.mxu0 0.0
        %2682 = vmatpush1.xpose.msra.mxu0 0.0
        %2683 = vmatprep.subr.mxu0 0.0
        %2684 = vmatpush1.xpose.msra.mxu0 0.0
        %2685 = vmatprep.subr.mxu0 0.0
        %2686 = vmatpush1.xpose.msra.mxu0 0.0
        %2687 = vmatprep.subr.mxu0 0.0
        %2688 = vmatpush1.xpose.msra.mxu0 0.0
        %2689 = vmatprep.subr.mxu0 0.0
        %2690 = vmatpush1.xpose.msra.mxu0 0.0
        %2691 = vmatprep.subr.mxu0 0.0
        %2692 = vmatpush1.xpose.msra.mxu0 %v2659
        %2693 = vmatprep.subr.mxu0 0.0
        %2694 = vmatpush2.xpose.msra.mxu0 0.0
        %2695 = vmatprep.subr.mxu0 0.0
        %2696 = vmatpush2.xpose.msra.mxu0 0.0
        %2697 = vmatprep.subr.mxu0 0.0
        %2698 = vmatpush2.xpose.msra.mxu0 0.0
        %2699 = vmatprep.subr.mxu0 0.0
        %2700 = vmatpush2.xpose.msra.mxu0 0.0
        %2701 = vmatprep.subr.mxu0 0.0
        %2702 = vmatpush2.xpose.msra.mxu0 0.0
        %2703 = vmatprep.subr.mxu0 0.0
        %2704 = vmatpush2.xpose.msra.mxu0 0.0
        %2705 = vmatprep.subr.mxu0 0.0
        %2706 = vmatpush2.xpose.msra.mxu0 0.0
        %2707 = vmatprep.subr.mxu0 0.0
        %2708 = vmatpush2.xpose.msra.mxu0 0.0
        %2709 = vmatprep.subr.mxu0 0.0
        %2710 = vmatpush2.xpose.msra.mxu0 0.0
        %2711 = vmatprep.subr.mxu0 0.0
        %2712 = vmatpush2.xpose.msra.mxu0 0.0
        %2713 = vmatprep.subr.mxu0 0.0
        %2714 = vmatpush2.xpose.msra.mxu0 0.0
        %2715 = vmatprep.subr.mxu0 0.0
        %2716 = vmatpush2.xpose.msra.mxu0 0.0
        %2717 = vmatprep.subr.mxu0 0.0
        %2718 = vmatpush2.xpose.msra.mxu0 0.0
        %2719 = vmatprep.subr.mxu0 0.0
        %2720 = vmatpush2.xpose.msra.mxu0 0.0
        %2721 = vmatprep.subr.mxu0 0.0
        %2722 = vmatpush2.xpose.msra.mxu0 0.0
        %2723 = vmatprep.subr.mxu0 0.0
        %2724 = vmatpush2.xpose.msra.mxu0 0.0
        %2725 = vmatprep.mubr.f32.mxu0 0.0
        %2726 = vmatmul.mubr.f32.gmra.mxu0 %v2657
        %v2727 = vpop.f32.mrf.mxu0
        %v2728 = vadd.f32 0.0, %v2727
        %v2729 = vpop.f32.mrf.mxu0
        %2730 = vdwg.mxu0
        %v2731 = vmul.f32 %v2650, 0.35355338
        %v2732 = vmul.f32 %v2728, 0.35355338
        %v2733 = vadd.f32 %v2731, %v1475
        %v2734 = vadd.f32 %v2732, %v1475
        %v2735 = vsel %vm1577, %v2733, -inf
        %2736 = vmax.xlane.f32.xlu0 %v2735
        %v2737 = vpop.xlane.xlu0 %2736
        %v2738 = vsel %vm1577, %v2734, -inf
        %2739 = vmax.xlane.f32.xlu0 %v2738
        %v2740 = vpop.xlane.xlu0 %2739
        %v2741 = vsub.f32 %v2733, %v2737
        %v2742 = vsub.f32 %v2734, %v2740
        %v2743 = vmul.f32 %v2741, 1.442695
        %v2744 = vpow.pop %v2743
        %v2745 = vmul.f32 %v2742, 1.442695
        %v2746 = vpow.pop %v2745
        %v2747 = vsel %vm1577, %v2744, 0.0
        %2748 = vadd.xlane.f32.xlu0 %v2747
        %v2749 = vpop.xlane.xlu0 %2748
        %v2750 = vsel %vm1577, %v2746, 0.0
        %2751 = vadd.xlane.f32.xlu0 %v2750
        %v2752 = vpop.xlane.xlu0 %2751
        %v2753 = vrcp.pop %v2749
        %v2754 = vrcp.pop %v2752
        %v2755 = vmul.f32 %v2744, %v2753
        %v2756 = vmul.f32 %v2746, %v2754
        %2757 = vrot.lane.b32.xlu0 %v1561, 40
        %v2758 = vpop.permute.xlu0 %2757
        %v2761 = vsel %vm1577, %v2755, 0
        %2763 = vmatprep.subr.mxu0 0.0
        %2764 = vmatpush1.msra.mxu0 0.0
        %2765 = vmatprep.subr.mxu0 0.0
        %2766 = vmatpush1.msra.mxu0 0.0
        %2767 = vmatprep.subr.mxu0 0.0
        %2768 = vmatpush1.msra.mxu0 0.0
        %2769 = vmatprep.subr.mxu0 0.0
        %2770 = vmatpush1.msra.mxu0 0.0
        %2771 = vmatprep.subr.mxu0 0.0
        %2772 = vmatpush1.msra.mxu0 0.0
        %2773 = vmatprep.subr.mxu0 0.0
        %2774 = vmatpush1.msra.mxu0 0.0
        %2775 = vmatprep.subr.mxu0 0.0
        %2776 = vmatpush1.msra.mxu0 0.0
        %2777 = vmatprep.subr.mxu0 0.0
        %2778 = vmatpush1.msra.mxu0 0.0
        %2779 = vmatprep.subr.mxu0 0.0
        %2780 = vmatpush1.msra.mxu0 0.0
        %2781 = vmatprep.subr.mxu0 0.0
        %2782 = vmatpush1.msra.mxu0 0.0
        %2783 = vmatprep.subr.mxu0 0.0
        %2784 = vmatpush1.msra.mxu0 0.0
        %2785 = vmatprep.subr.mxu0 0.0
        %2786 = vmatpush1.msra.mxu0 0.0
        %2787 = vmatprep.subr.mxu0 0.0
        %2788 = vmatpush1.msra.mxu0 0.0
        %2789 = vmatprep.subr.mxu0 0.0
        %2790 = vmatpush1.msra.mxu0 0.0
        %2791 = vmatprep.subr.mxu0 0.0
        %2792 = vmatpush1.msra.mxu0 0.0
        %2793 = vmatprep.subr.mxu0 0.0
        %2794 = vmatpush1.msra.mxu0 %v2758
        %2795 = vmatprep.subr.mxu0 0.0
        %2796 = vmatpush2.msra.mxu0 0.0
        %2797 = vmatprep.subr.mxu0 0.0
        %2798 = vmatpush2.msra.mxu0 0.0
        %2799 = vmatprep.subr.mxu0 0.0
        %2800 = vmatpush2.msra.mxu0 0.0
        %2801 = vmatprep.subr.mxu0 0.0
        %2802 = vmatpush2.msra.mxu0 0.0
        %2803 = vmatprep.subr.mxu0 0.0
        %2804 = vmatpush2.msra.mxu0 0.0
        %2805 = vmatprep.subr.mxu0 0.0
        %2806 = vmatpush2.msra.mxu0 0.0
        %2807 = vmatprep.subr.mxu0 0.0
        %2808 = vmatpush2.msra.mxu0 0.0
        %2809 = vmatprep.subr.mxu0 0.0
        %2810 = vmatpush2.msra.mxu0 0.0
        %2811 = vmatprep.subr.mxu0 0.0
        %2812 = vmatpush2.msra.mxu0 0.0
        %2813 = vmatprep.subr.mxu0 0.0
        %2814 = vmatpush2.msra.mxu0 0.0
        %2815 = vmatprep.subr.mxu0 0.0
        %2816 = vmatpush2.msra.mxu0 0.0
        %2817 = vmatprep.subr.mxu0 0.0
        %2818 = vmatpush2.msra.mxu0 0.0
        %2819 = vmatprep.subr.mxu0 0.0
        %2820 = vmatpush2.msra.mxu0 0.0
        %2821 = vmatprep.subr.mxu0 0.0
        %2822 = vmatpush2.msra.mxu0 0.0
        %2823 = vmatprep.subr.mxu0 0.0
        %2824 = vmatpush2.msra.mxu0 0.0
        %2825 = vmatprep.subr.mxu0 0.0
        %2826 = vmatpush2.msra.mxu0 0.0
        %2827 = vmatprep.mubr.f32.mxu0 0.0
        %2828 = vmatmul.mubr.f32.gmra.mxu0 %v2761
        %v2829 = vpop.f32.mrf.mxu0
        %v2830 = vadd.f32 0.0, %v2829
        %v2831 = vpop.f32.mrf.mxu0
        %2832 = vdwg.mxu0
        %2833 = vrot.lane.b32.xlu0 %v1566, 40
        %v2834 = vpop.permute.xlu0 %2833
        %v2837 = vsel %vm1577, %v2756, 0
        %2839 = vmatprep.subr.mxu0 0.0
        %2840 = vmatpush1.msra.mxu0 0.0
        %2841 = vmatprep.subr.mxu0 0.0
        %2842 = vmatpush1.msra.mxu0 0.0
        %2843 = vmatprep.subr.mxu0 0.0
        %2844 = vmatpush1.msra.mxu0 0.0
        %2845 = vmatprep.subr.mxu0 0.0
        %2846 = vmatpush1.msra.mxu0 0.0
        %2847 = vmatprep.subr.mxu0 0.0
        %2848 = vmatpush1.msra.mxu0 0.0
        %2849 = vmatprep.subr.mxu0 0.0
        %2850 = vmatpush1.msra.mxu0 0.0
        %2851 = vmatprep.subr.mxu0 0.0
        %2852 = vmatpush1.msra.mxu0 0.0
        %2853 = vmatprep.subr.mxu0 0.0
        %2854 = vmatpush1.msra.mxu0 0.0
        %2855 = vmatprep.subr.mxu0 0.0
        %2856 = vmatpush1.msra.mxu0 0.0
        %2857 = vmatprep.subr.mxu0 0.0
        %2858 = vmatpush1.msra.mxu0 0.0
        %2859 = vmatprep.subr.mxu0 0.0
        %2860 = vmatpush1.msra.mxu0 0.0
        %2861 = vmatprep.subr.mxu0 0.0
        %2862 = vmatpush1.msra.mxu0 0.0
        %2863 = vmatprep.subr.mxu0 0.0
        %2864 = vmatpush1.msra.mxu0 0.0
        %2865 = vmatprep.subr.mxu0 0.0
        %2866 = vmatpush1.msra.mxu0 0.0
        %2867 = vmatprep.subr.mxu0 0.0
        %2868 = vmatpush1.msra.mxu0 0.0
        %2869 = vmatprep.subr.mxu0 0.0
        %2870 = vmatpush1.msra.mxu0 %v2834
        %2871 = vmatprep.subr.mxu0 0.0
        %2872 = vmatpush2.msra.mxu0 0.0
        %2873 = vmatprep.subr.mxu0 0.0
        %2874 = vmatpush2.msra.mxu0 0.0
        %2875 = vmatprep.subr.mxu0 0.0
        %2876 = vmatpush2.msra.mxu0 0.0
        %2877 = vmatprep.subr.mxu0 0.0
        %2878 = vmatpush2.msra.mxu0 0.0
        %2879 = vmatprep.subr.mxu0 0.0
        %2880 = vmatpush2.msra.mxu0 0.0
        %2881 = vmatprep.subr.mxu0 0.0
        %2882 = vmatpush2.msra.mxu0 0.0
        %2883 = vmatprep.subr.mxu0 0.0
        %2884 = vmatpush2.msra.mxu0 0.0
        %2885 = vmatprep.subr.mxu0 0.0
        %2886 = vmatpush2.msra.mxu0 0.0
        %2887 = vmatprep.subr.mxu0 0.0
        %2888 = vmatpush2.msra.mxu0 0.0
        %2889 = vmatprep.subr.mxu0 0.0
        %2890 = vmatpush2.msra.mxu0 0.0
        %2891 = vmatprep.subr.mxu0 0.0
        %2892 = vmatpush2.msra.mxu0 0.0
        %2893 = vmatprep.subr.mxu0 0.0
        %2894 = vmatpush2.msra.mxu0 0.0
        %2895 = vmatprep.subr.mxu0 0.0
        %2896 = vmatpush2.msra.mxu0 0.0
        %2897 = vmatprep.subr.mxu0 0.0
        %2898 = vmatpush2.msra.mxu0 0.0
        %2899 = vmatprep.subr.mxu0 0.0
        %2900 = vmatpush2.msra.mxu0 0.0
        %2901 = vmatprep.subr.mxu0 0.0
        %2902 = vmatpush2.msra.mxu0 0.0
        %2903 = vmatprep.mubr.f32.mxu0 0.0
        %2904 = vmatmul.mubr.f32.gmra.mxu0 %v2837
        %v2905 = vpop.f32.mrf.mxu0
        %v2906 = vadd.f32 0.0, %v2905
        %v2907 = vpop.f32.mrf.mxu0
        %2908 = vdwg.mxu0
        %2911 = vrot.lane.b32.xlu0 %v2162, 8
        %v2912 = vpop.permute.xlu0 %2911
        %2913 = vrot.lane.b32.xlu0 %v2238, 8
        %v2914 = vpop.permute.xlu0 %2913
        %2919 = vrot.lane.b32.xlu0 %v2496, 16
        %v2920 = vpop.permute.xlu0 %2919
        %2921 = vrot.lane.b32.xlu0 %v2572, 16
        %v2922 = vpop.permute.xlu0 %2921
        %2927 = vrot.lane.b32.xlu0 %v2830, 24
        %v2928 = vpop.permute.xlu0 %2927
        %2929 = vrot.lane.b32.xlu0 %v2906, 24
        %v2930 = vpop.permute.xlu0 %2929
        %v2933 = vsel %vm1577, %v1828, %v2912
        %v2934 = vsel %vm1577, %v1904, %v2914
        %vm2935 = vcmask 130048
        %v2936 = vsel %vm2935, %v2933, %v2920
        %v2937 = vsel %vm2935, %v2934, %v2922
        %vm2938 = vcmask 195584
        %v2939 = vsel %vm2938, %v2936, %v2928
        %v2940 = vsel %vm2938, %v2937, %v2930
        %v2942 = vlaneseq
        %v2943 = vshrl.u32 %v2942, 7
        %v2944 = vsub.s32 0, %v2943
        %v2945 = vrot.slane %v1573, %v2944
        %v2948 = vsel %vm1487, %v2939, 0
        %v2951 = vsel %vm1487, %v2940, 0
        %2953 = vmatprep.subr.mxu0 0.0
        %2954 = vmatpush1.msra.mxu0 0.0
        %2955 = vmatprep.subr.mxu0 0.0
        %2956 = vmatpush1.msra.mxu0 0.0
        %2957 = vmatprep.subr.mxu0 0.0
        %2958 = vmatpush1.msra.mxu0 0.0
        %2959 = vmatprep.subr.mxu0 0.0
        %2960 = vmatpush1.msra.mxu0 0.0
        %2961 = vmatprep.subr.mxu0 0.0
        %2962 = vmatpush1.msra.mxu0 0.0
        %2963 = vmatprep.subr.mxu0 0.0
        %2964 = vmatpush1.msra.mxu0 0.0
        %2965 = vmatprep.subr.mxu0 0.0
        %2966 = vmatpush1.msra.mxu0 0.0
        %2967 = vmatprep.subr.mxu0 0.0
        %2968 = vmatpush1.msra.mxu0 0.0
        %2969 = vmatprep.subr.mxu0 0.0
        %2970 = vmatpush1.msra.mxu0 0.0
        %2971 = vmatprep.subr.mxu0 0.0
        %2972 = vmatpush1.msra.mxu0 0.0
        %2973 = vmatprep.subr.mxu0 0.0
        %2974 = vmatpush1.msra.mxu0 0.0
        %2975 = vmatprep.subr.mxu0 0.0
        %2976 = vmatpush1.msra.mxu0 0.0
        %2977 = vmatprep.subr.mxu0 0.0
        %2978 = vmatpush1.msra.mxu0 %v1572
        %2979 = vmatprep.subr.mxu0 0.0
        %2980 = vmatpush1.msra.mxu0 %v1571
        %2981 = vmatprep.subr.mxu0 0.0
        %2982 = vmatpush1.msra.mxu0 %v1570
        %2983 = vmatprep.subr.mxu0 0.0
        %2984 = vmatpush1.msra.mxu0 %v1569
        %2985 = vmatprep.subr.mxu0 0.0
        %2986 = vmatpush2.msra.mxu0 0.0
        %2987 = vmatprep.subr.mxu0 0.0
        %2988 = vmatpush2.msra.mxu0 0.0
        %2989 = vmatprep.subr.mxu0 0.0
        %2990 = vmatpush2.msra.mxu0 0.0
        %2991 = vmatprep.subr.mxu0 0.0
        %2992 = vmatpush2.msra.mxu0 0.0
        %2993 = vmatprep.subr.mxu0 0.0
        %2994 = vmatpush2.msra.mxu0 0.0
        %2995 = vmatprep.subr.mxu0 0.0
        %2996 = vmatpush2.msra.mxu0 0.0
        %2997 = vmatprep.subr.mxu0 0.0
        %2998 = vmatpush2.msra.mxu0 0.0
        %2999 = vmatprep.subr.mxu0 0.0
        %3000 = vmatpush2.msra.mxu0 0.0
        %3001 = vmatprep.subr.mxu0 0.0
        %3002 = vmatpush2.msra.mxu0 0.0
        %3003 = vmatprep.subr.mxu0 0.0
        %3004 = vmatpush2.msra.mxu0 0.0
        %3005 = vmatprep.subr.mxu0 0.0
        %3006 = vmatpush2.msra.mxu0 0.0
        %3007 = vmatprep.subr.mxu0 0.0
        %3008 = vmatpush2.msra.mxu0 0.0
        %3009 = vmatprep.subr.mxu0 0.0
        %3010 = vmatpush2.msra.mxu0 0.0
        %3011 = vmatprep.subr.mxu0 0.0
        %3012 = vmatpush2.msra.mxu0 0.0
        %3013 = vmatprep.subr.mxu0 0.0
        %3014 = vmatpush2.msra.mxu0 0.0
        %3015 = vmatprep.subr.mxu0 0.0
        %3016 = vmatpush2.msra.mxu0 0.0
        %3017 = vmatprep.mubr.f32.mxu0 0.0
        %3018 = vmatmul.mubr.f32.gmra.mxu0 %v2948
        %v3019 = vpop.f32.mrf.mxu0
        %v3020 = vadd.f32 %v2945, %v3019
        %v3021 = vpop.f32.mrf.mxu0
        %3022 = vmatprep.mubr.f32.mxu0 0.0
        %3023 = vmatmul.mubr.f32.gmra.mxu0 %v2951
        %v3024 = vpop.f32.mrf.mxu0
        %v3025 = vadd.f32 %v2945, %v3024
        %v3026 = vpop.f32.mrf.mxu0
        %3027 = vdwg.mxu0
        %v3028 = vadd.f32 %v1471, %v3020
        %v3029 = vadd.f32 %v1472, %v3025
        %v3030 = vld [vmem:[%s1257] sm:$0x1]
        %v3031 = vld [vmem:[%s1264] sm:$0x1]
        %v3032 = vsel %vm1487, %v3028, 0.0
        %3033 = vadd.xlane.f32.xlu0 %v3032
        %v3034 = vpop.xlane.xlu0 %3033
        %v3035 = vsel %vm1487, %v3029, 0.0
        %3036 = vadd.xlane.f32.xlu0 %v3035
        %v3037 = vpop.xlane.xlu0 %3036
        %v3038 = vrcp.pop 32.0
        %v3039 = vmul.f32 %v3034, %v3038
        %v3040 = vmul.f32 %v3037, %v3038
        %v3041 = vsub.f32 %v3028, %v3039
        %v3042 = vsub.f32 %v3029, %v3040
        %v3043 = vmul.f32 %v3041, %v3041
        %v3044 = vmul.f32 %v3042, %v3042
        %v3045 = vsel %vm1487, %v3043, 0.0
        %3046 = vadd.xlane.f32.xlu0 %v3045
        %v3047 = vpop.xlane.xlu0 %3046
        %v3048 = vsel %vm1487, %v3044, 0.0
        %3049 = vadd.xlane.f32.xlu0 %v3048
        %v3050 = vpop.xlane.xlu0 %3049
        %v3051 = vmul.f32 %v3047, %v3038
        %v3052 = vmul.f32 %v3050, %v3038
        %v3053 = vadd.f32 %v3051, 1e-05
        %v3054 = vadd.f32 %v3052, 1e-05
        %v3055 = vrsqrt.pop %v3053
        %v3056 = vrsqrt.pop %v3054
        %v3057 = vmul.f32 %v3041, %v3055
        %v3058 = vmul.f32 %v3042, %v3056
        %v3060 = vlaneseq
        %v3061 = vshrl.u32 %v3060, 7
        %v3062 = vsub.s32 0, %v3061
        %v3063 = vrot.slane %v3030, %v3062
        %v3065 = vmul.f32 %v3057, %v3063
        %v3066 = vmul.f32 %v3058, %v3063
        %v3068 = vlaneseq
        %v3069 = vshrl.u32 %v3068, 7
        %v3070 = vsub.s32 0, %v3069
        %v3071 = vrot.slane %v3031, %v3070
        %v3073 = vadd.f32 %v3065, %v3071
        %v3074 = vadd.f32 %v3066, %v3071
        %v3075 = vld [vmem:[%s1273] sm:$0xff]
        %v3076 = vld [vmem:[%s1273 + $0x8] sm:$0xff]
        %v3077 = vld [vmem:[%s1273 + $0x10] sm:$0xff]
        %v3078 = vld [vmem:[%s1273 + $0x18] sm:$0xff]
        %v3079 = vld [vmem:[%s1280] sm:$0x1]
        %v3081 = vlaneseq
        %v3082 = vshrl.u32 %v3081, 7
        %v3083 = vsub.s32 0, %v3082
        %v3084 = vrot.slane %v3079, %v3083
        %v3087 = vsel %vm1487, %v3073, 0
        %v3090 = vsel %vm1487, %v3074, 0
        %3092 = vmatprep.subr.mxu0 0.0
        %3093 = vmatpush1.msra.mxu0 0.0
        %3094 = vmatprep.subr.mxu0 0.0
        %3095 = vmatpush1.msra.mxu0 0.0
        %3096 = vmatprep.subr.mxu0 0.0
        %3097 = vmatpush1.msra.mxu0 0.0
        %3098 = vmatprep.subr.mxu0 0.0
        %3099 = vmatpush1.msra.mxu0 0.0
        %3100 = vmatprep.subr.mxu0 0.0
        %3101 = vmatpush1.msra.mxu0 0.0
        %3102 = vmatprep.subr.mxu0 0.0
        %3103 = vmatpush1.msra.mxu0 0.0
        %3104 = vmatprep.subr.mxu0 0.0
        %3105 = vmatpush1.msra.mxu0 0.0
        %3106 = vmatprep.subr.mxu0 0.0
        %3107 = vmatpush1.msra.mxu0 0.0
        %3108 = vmatprep.subr.mxu0 0.0
        %3109 = vmatpush1.msra.mxu0 0.0
        %3110 = vmatprep.subr.mxu0 0.0
        %3111 = vmatpush1.msra.mxu0 0.0
        %3112 = vmatprep.subr.mxu0 0.0
        %3113 = vmatpush1.msra.mxu0 0.0
        %3114 = vmatprep.subr.mxu0 0.0
        %3115 = vmatpush1.msra.mxu0 0.0
        %3116 = vmatprep.subr.mxu0 0.0
        %3117 = vmatpush1.msra.mxu0 %v3078
        %3118 = vmatprep.subr.mxu0 0.0
        %3119 = vmatpush1.msra.mxu0 %v3077
        %3120 = vmatprep.subr.mxu0 0.0
        %3121 = vmatpush1.msra.mxu0 %v3076
        %3122 = vmatprep.subr.mxu0 0.0
        %3123 = vmatpush1.msra.mxu0 %v3075
        %3124 = vmatprep.subr.mxu0 0.0
        %3125 = vmatpush2.msra.mxu0 0.0
        %3126 = vmatprep.subr.mxu0 0.0
        %3127 = vmatpush2.msra.mxu0 0.0
        %3128 = vmatprep.subr.mxu0 0.0
        %3129 = vmatpush2.msra.mxu0 0.0
        %3130 = vmatprep.subr.mxu0 0.0
        %3131 = vmatpush2.msra.mxu0 0.0
        %3132 = vmatprep.subr.mxu0 0.0
        %3133 = vmatpush2.msra.mxu0 0.0
        %3134 = vmatprep.subr.mxu0 0.0
        %3135 = vmatpush2.msra.mxu0 0.0
        %3136 = vmatprep.subr.mxu0 0.0
        %3137 = vmatpush2.msra.mxu0 0.0
        %3138 = vmatprep.subr.mxu0 0.0
        %3139 = vmatpush2.msra.mxu0 0.0
        %3140 = vmatprep.subr.mxu0 0.0
        %3141 = vmatpush2.msra.mxu0 0.0
        %3142 = vmatprep.subr.mxu0 0.0
        %3143 = vmatpush2.msra.mxu0 0.0
        %3144 = vmatprep.subr.mxu0 0.0
        %3145 = vmatpush2.msra.mxu0 0.0
        %3146 = vmatprep.subr.mxu0 0.0
        %3147 = vmatpush2.msra.mxu0 0.0
        %3148 = vmatprep.subr.mxu0 0.0
        %3149 = vmatpush2.msra.mxu0 0.0
        %3150 = vmatprep.subr.mxu0 0.0
        %3151 = vmatpush2.msra.mxu0 0.0
        %3152 = vmatprep.subr.mxu0 0.0
        %3153 = vmatpush2.msra.mxu0 0.0
        %3154 = vmatprep.subr.mxu0 0.0
        %3155 = vmatpush2.msra.mxu0 0.0
        %3156 = vmatprep.mubr.f32.mxu0 0.0
        %3157 = vmatmul.mubr.f32.gmra.mxu0 %v3087
        %v3158 = vpop.f32.mrf.mxu0
        %v3159 = vadd.f32 %v3084, %v3158
        %v3160 = vpop.f32.mrf.mxu0
        %3161 = vmatprep.mubr.f32.mxu0 0.0
        %3162 = vmatmul.mubr.f32.gmra.mxu0 %v3090
        %v3163 = vpop.f32.mrf.mxu0
        %v3164 = vadd.f32 %v3084, %v3163
        %v3165 = vpop.f32.mrf.mxu0
        %3166 = vdwg.mxu0
        %3171 = vrot.lane.b32.xlu0 %v3075, 96
        %v3172 = vpop.permute.xlu0 %3171
        %3173 = vrot.lane.b32.xlu0 %v3076, 96
        %v3174 = vpop.permute.xlu0 %3173
        %3175 = vrot.lane.b32.xlu0 %v3077, 96
        %v3176 = vpop.permute.xlu0 %3175
        %3177 = vrot.lane.b32.xlu0 %v3078, 96
        %v3178 = vpop.permute.xlu0 %3177
        %3183 = vrot.lane.b32.xlu0 %v3084, 96
        %v3184 = vpop.permute.xlu0 %3183
        %v3187 = vsel %vm1487, %v1473, 0
        %v3190 = vsel %vm1487, %v1474, 0
        %3192 = vmatprep.subr.mxu0 0.0
        %3193 = vmatpush1.msra.mxu0 0.0
        %3194 = vmatprep.subr.mxu0 0.0
        %3195 = vmatpush1.msra.mxu0 0.0
        %3196 = vmatprep.subr.mxu0 0.0
        %3197 = vmatpush1.msra.mxu0 0.0
        %3198 = vmatprep.subr.mxu0 0.0
        %3199 = vmatpush1.msra.mxu0 0.0
        %3200 = vmatprep.subr.mxu0 0.0
        %3201 = vmatpush1.msra.mxu0 0.0
        %3202 = vmatprep.subr.mxu0 0.0
        %3203 = vmatpush1.msra.mxu0 0.0
        %3204 = vmatprep.subr.mxu0 0.0
        %3205 = vmatpush1.msra.mxu0 0.0
        %3206 = vmatprep.subr.mxu0 0.0
        %3207 = vmatpush1.msra.mxu0 0.0
        %3208 = vmatprep.subr.mxu0 0.0
        %3209 = vmatpush1.msra.mxu0 0.0
        %3210 = vmatprep.subr.mxu0 0.0
        %3211 = vmatpush1.msra.mxu0 0.0
        %3212 = vmatprep.subr.mxu0 0.0
        %3213 = vmatpush1.msra.mxu0 0.0
        %3214 = vmatprep.subr.mxu0 0.0
        %3215 = vmatpush1.msra.mxu0 0.0
        %3216 = vmatprep.subr.mxu0 0.0
        %3217 = vmatpush1.msra.mxu0 %v3178
        %3218 = vmatprep.subr.mxu0 0.0
        %3219 = vmatpush1.msra.mxu0 %v3176
        %3220 = vmatprep.subr.mxu0 0.0
        %3221 = vmatpush1.msra.mxu0 %v3174
        %3222 = vmatprep.subr.mxu0 0.0
        %3223 = vmatpush1.msra.mxu0 %v3172
        %3224 = vmatprep.subr.mxu0 0.0
        %3225 = vmatpush2.msra.mxu0 0.0
        %3226 = vmatprep.subr.mxu0 0.0
        %3227 = vmatpush2.msra.mxu0 0.0
        %3228 = vmatprep.subr.mxu0 0.0
        %3229 = vmatpush2.msra.mxu0 0.0
        %3230 = vmatprep.subr.mxu0 0.0
        %3231 = vmatpush2.msra.mxu0 0.0
        %3232 = vmatprep.subr.mxu0 0.0
        %3233 = vmatpush2.msra.mxu0 0.0
        %3234 = vmatprep.subr.mxu0 0.0
        %3235 = vmatpush2.msra.mxu0 0.0
        %3236 = vmatprep.subr.mxu0 0.0
        %3237 = vmatpush2.msra.mxu0 0.0
        %3238 = vmatprep.subr.mxu0 0.0
        %3239 = vmatpush2.msra.mxu0 0.0
        %3240 = vmatprep.subr.mxu0 0.0
        %3241 = vmatpush2.msra.mxu0 0.0
        %3242 = vmatprep.subr.mxu0 0.0
        %3243 = vmatpush2.msra.mxu0 0.0
        %3244 = vmatprep.subr.mxu0 0.0
        %3245 = vmatpush2.msra.mxu0 0.0
        %3246 = vmatprep.subr.mxu0 0.0
        %3247 = vmatpush2.msra.mxu0 0.0
        %3248 = vmatprep.subr.mxu0 0.0
        %3249 = vmatpush2.msra.mxu0 0.0
        %3250 = vmatprep.subr.mxu0 0.0
        %3251 = vmatpush2.msra.mxu0 0.0
        %3252 = vmatprep.subr.mxu0 0.0
        %3253 = vmatpush2.msra.mxu0 0.0
        %3254 = vmatprep.subr.mxu0 0.0
        %3255 = vmatpush2.msra.mxu0 0.0
        %3256 = vmatprep.mubr.f32.mxu0 0.0
        %3257 = vmatmul.mubr.f32.gmra.mxu0 %v3187
        %v3258 = vpop.f32.mrf.mxu0
        %v3259 = vadd.f32 %v3184, %v3258
        %v3260 = vpop.f32.mrf.mxu0
        %3261 = vmatprep.mubr.f32.mxu0 0.0
        %3262 = vmatmul.mubr.f32.gmra.mxu0 %v3190
        %v3263 = vpop.f32.mrf.mxu0
        %v3264 = vadd.f32 %v3184, %v3263
        %v3265 = vpop.f32.mrf.mxu0
        %3266 = vdwg.mxu0
        %v3267 = vld [vmem:[%s1289] sm:$0xff]
        %v3268 = vld [vmem:[%s1289 + $0x8] sm:$0xff]
        %v3269 = vld [vmem:[%s1289 + $0x10] sm:$0xff]
        %v3270 = vld [vmem:[%s1289 + $0x18] sm:$0xff]
        %v3271 = vld [vmem:[%s1296] sm:$0x1]
        %v3273 = vsel %vm1577, %v3159, 0
        %v3276 = vsel %vm1577, %v3259, 0
        %3278 = vmatprep.subr.mxu0 0.0
        %3279 = vmatpush1.xpose.msra.mxu0 0.0
        %3280 = vmatprep.subr.mxu0 0.0
        %3281 = vmatpush1.xpose.msra.mxu0 0.0
        %3282 = vmatprep.subr.mxu0 0.0
        %3283 = vmatpush1.xpose.msra.mxu0 0.0
        %3284 = vmatprep.subr.mxu0 0.0
        %3285 = vmatpush1.xpose.msra.mxu0 0.0
        %3286 = vmatprep.subr.mxu0 0.0
        %3287 = vmatpush1.xpose.msra.mxu0 0.0
        %3288 = vmatprep.subr.mxu0 0.0
        %3289 = vmatpush1.xpose.msra.mxu0 0.0
        %3290 = vmatprep.subr.mxu0 0.0
        %3291 = vmatpush1.xpose.msra.mxu0 0.0
        %3292 = vmatprep.subr.mxu0 0.0
        %3293 = vmatpush1.xpose.msra.mxu0 0.0
        %3294 = vmatprep.subr.mxu0 0.0
        %3295 = vmatpush1.xpose.msra.mxu0 0.0
        %3296 = vmatprep.subr.mxu0 0.0
        %3297 = vmatpush1.xpose.msra.mxu0 0.0
        %3298 = vmatprep.subr.mxu0 0.0
        %3299 = vmatpush1.xpose.msra.mxu0 0.0
        %3300 = vmatprep.subr.mxu0 0.0
        %3301 = vmatpush1.xpose.msra.mxu0 0.0
        %3302 = vmatprep.subr.mxu0 0.0
        %3303 = vmatpush1.xpose.msra.mxu0 0.0
        %3304 = vmatprep.subr.mxu0 0.0
        %3305 = vmatpush1.xpose.msra.mxu0 0.0
        %3306 = vmatprep.subr.mxu0 0.0
        %3307 = vmatpush1.xpose.msra.mxu0 0.0
        %3308 = vmatprep.subr.mxu0 0.0
        %3309 = vmatpush1.xpose.msra.mxu0 %v3276
        %3310 = vmatprep.subr.mxu0 0.0
        %3311 = vmatpush2.xpose.msra.mxu0 0.0
        %3312 = vmatprep.subr.mxu0 0.0
        %3313 = vmatpush2.xpose.msra.mxu0 0.0
        %3314 = vmatprep.subr.mxu0 0.0
        %3315 = vmatpush2.xpose.msra.mxu0 0.0
        %3316 = vmatprep.subr.mxu0 0.0
        %3317 = vmatpush2.xpose.msra.mxu0 0.0
        %3318 = vmatprep.subr.mxu0 0.0
        %3319 = vmatpush2.xpose.msra.mxu0 0.0
        %3320 = vmatprep.subr.mxu0 0.0
        %3321 = vmatpush2.xpose.msra.mxu0 0.0
        %3322 = vmatprep.subr.mxu0 0.0
        %3323 = vmatpush2.xpose.msra.mxu0 0.0
        %3324 = vmatprep.subr.mxu0 0.0
        %3325 = vmatpush2.xpose.msra.mxu0 0.0
        %3326 = vmatprep.subr.mxu0 0.0
        %3327 = vmatpush2.xpose.msra.mxu0 0.0
        %3328 = vmatprep.subr.mxu0 0.0
        %3329 = vmatpush2.xpose.msra.mxu0 0.0
        %3330 = vmatprep.subr.mxu0 0.0
        %3331 = vmatpush2.xpose.msra.mxu0 0.0
        %3332 = vmatprep.subr.mxu0 0.0
        %3333 = vmatpush2.xpose.msra.mxu0 0.0
        %3334 = vmatprep.subr.mxu0 0.0
        %3335 = vmatpush2.xpose.msra.mxu0 0.0
        %3336 = vmatprep.subr.mxu0 0.0
        %3337 = vmatpush2.xpose.msra.mxu0 0.0
        %3338 = vmatprep.subr.mxu0 0.0
        %3339 = vmatpush2.xpose.msra.mxu0 0.0
        %3340 = vmatprep.subr.mxu0 0.0
        %3341 = vmatpush2.xpose.msra.mxu0 0.0
        %3342 = vmatprep.mubr.f32.mxu0 0.0
        %3343 = vmatmul.mubr.f32.gmra.mxu0 %v3273
        %v3344 = vpop.f32.mrf.mxu0
        %v3345 = vadd.f32 0.0, %v3344
        %v3346 = vpop.f32.mrf.mxu0
        %3347 = vdwg.mxu0
        %v3349 = vsel %vm1577, %v3164, 0
        %v3352 = vsel %vm1577, %v3264, 0
        %3354 = vmatprep.subr.mxu0 0.0
        %3355 = vmatpush1.xpose.msra.mxu0 0.0
        %3356 = vmatprep.subr.mxu0 0.0
        %3357 = vmatpush1.xpose.msra.mxu0 0.0
        %3358 = vmatprep.subr.mxu0 0.0
        %3359 = vmatpush1.xpose.msra.mxu0 0.0
        %3360 = vmatprep.subr.mxu0 0.0
        %3361 = vmatpush1.xpose.msra.mxu0 0.0
        %3362 = vmatprep.subr.mxu0 0.0
        %3363 = vmatpush1.xpose.msra.mxu0 0.0
        %3364 = vmatprep.subr.mxu0 0.0
        %3365 = vmatpush1.xpose.msra.mxu0 0.0
        %3366 = vmatprep.subr.mxu0 0.0
        %3367 = vmatpush1.xpose.msra.mxu0 0.0
        %3368 = vmatprep.subr.mxu0 0.0
        %3369 = vmatpush1.xpose.msra.mxu0 0.0
        %3370 = vmatprep.subr.mxu0 0.0
        %3371 = vmatpush1.xpose.msra.mxu0 0.0
        %3372 = vmatprep.subr.mxu0 0.0
        %3373 = vmatpush1.xpose.msra.mxu0 0.0
        %3374 = vmatprep.subr.mxu0 0.0
        %3375 = vmatpush1.xpose.msra.mxu0 0.0
        %3376 = vmatprep.subr.mxu0 0.0
        %3377 = vmatpush1.xpose.msra.mxu0 0.0
        %3378 = vmatprep.subr.mxu0 0.0
        %3379 = vmatpush1.xpose.msra.mxu0 0.0
        %3380 = vmatprep.subr.mxu0 0.0
        %3381 = vmatpush1.xpose.msra.mxu0 0.0
        %3382 = vmatprep.subr.mxu0 0.0
        %3383 = vmatpush1.xpose.msra.mxu0 0.0
        %3384 = vmatprep.subr.mxu0 0.0
        %3385 = vmatpush1.xpose.msra.mxu0 %v3352
        %3386 = vmatprep.subr.mxu0 0.0
        %3387 = vmatpush2.xpose.msra.mxu0 0.0
        %3388 = vmatprep.subr.mxu0 0.0
        %3389 = vmatpush2.xpose.msra.mxu0 0.0
        %3390 = vmatprep.subr.mxu0 0.0
        %3391 = vmatpush2.xpose.msra.mxu0 0.0
        %3392 = vmatprep.subr.mxu0 0.0
        %3393 = vmatpush2.xpose.msra.mxu0 0.0
        %3394 = vmatprep.subr.mxu0 0.0
        %3395 = vmatpush2.xpose.msra.mxu0 0.0
        %3396 = vmatprep.subr.mxu0 0.0
        %3397 = vmatpush2.xpose.msra.mxu0 0.0
        %3398 = vmatprep.subr.mxu0 0.0
        %3399 = vmatpush2.xpose.msra.mxu0 0.0
        %3400 = vmatprep.subr.mxu0 0.0
        %3401 = vmatpush2.xpose.msra.mxu0 0.0
        %3402 = vmatprep.subr.mxu0 0.0
        %3403 = vmatpush2.xpose.msra.mxu0 0.0
        %3404 = vmatprep.subr.mxu0 0.0
        %3405 = vmatpush2.xpose.msra.mxu0 0.0
        %3406 = vmatprep.subr.mxu0 0.0
        %3407 = vmatpush2.xpose.msra.mxu0 0.0
        %3408 = vmatprep.subr.mxu0 0.0
        %3409 = vmatpush2.xpose.msra.mxu0 0.0
        %3410 = vmatprep.subr.mxu0 0.0
        %3411 = vmatpush2.xpose.msra.mxu0 0.0
        %3412 = vmatprep.subr.mxu0 0.0
        %3413 = vmatpush2.xpose.msra.mxu0 0.0
        %3414 = vmatprep.subr.mxu0 0.0
        %3415 = vmatpush2.xpose.msra.mxu0 0.0
        %3416 = vmatprep.subr.mxu0 0.0
        %3417 = vmatpush2.xpose.msra.mxu0 0.0
        %3418 = vmatprep.mubr.f32.mxu0 0.0
        %3419 = vmatmul.mubr.f32.gmra.mxu0 %v3349
        %v3420 = vpop.f32.mrf.mxu0
        %v3421 = vadd.f32 0.0, %v3420
        %v3422 = vpop.f32.mrf.mxu0
        %3423 = vdwg.mxu0
        %v3424 = vmul.f32 %v3345, 0.35355338
        %v3425 = vmul.f32 %v3421, 0.35355338
        %v3426 = vsel %vm1577, %v3424, -inf
        %3427 = vmax.xlane.f32.xlu0 %v3426
        %v3428 = vpop.xlane.xlu0 %3427
        %v3429 = vsel %vm1577, %v3425, -inf
        %3430 = vmax.xlane.f32.xlu0 %v3429
        %v3431 = vpop.xlane.xlu0 %3430
        %v3432 = vsub.f32 %v3424, %v3428
        %v3433 = vsub.f32 %v3425, %v3431
        %v3434 = vmul.f32 %v3432, 1.442695
        %v3435 = vpow.pop %v3434
        %v3436 = vmul.f32 %v3433, 1.442695
        %v3437 = vpow.pop %v3436
        %v3438 = vsel %vm1577, %v3435, 0.0
        %3439 = vadd.xlane.f32.xlu0 %v3438
        %v3440 = vpop.xlane.xlu0 %3439
        %v3441 = vsel %vm1577, %v3437, 0.0
        %3442 = vadd.xlane.f32.xlu0 %v3441
        %v3443 = vpop.xlane.xlu0 %3442
        %v3444 = vrcp.pop %v3440
        %v3445 = vrcp.pop %v3443
        %v3446 = vmul.f32 %v3435, %v3444
        %v3447 = vmul.f32 %v3437, %v3445
        %3448 = vrot.lane.b32.xlu0 %v3259, 96
        %v3449 = vpop.permute.xlu0 %3448
        %v3452 = vsel %vm1577, %v3446, 0
        %3454 = vmatprep.subr.mxu0 0.0
        %3455 = vmatpush1.msra.mxu0 0.0
        %3456 = vmatprep.subr.mxu0 0.0
        %3457 = vmatpush1.msra.mxu0 0.0
        %3458 = vmatprep.subr.mxu0 0.0
        %3459 = vmatpush1.msra.mxu0 0.0
        %3460 = vmatprep.subr.mxu0 0.0
        %3461 = vmatpush1.msra.mxu0 0.0
        %3462 = vmatprep.subr.mxu0 0.0
        %3463 = vmatpush1.msra.mxu0 0.0
        %3464 = vmatprep.subr.mxu0 0.0
        %3465 = vmatpush1.msra.mxu0 0.0
        %3466 = vmatprep.subr.mxu0 0.0
        %3467 = vmatpush1.msra.mxu0 0.0
        %3468 = vmatprep.subr.mxu0 0.0
        %3469 = vmatpush1.msra.mxu0 0.0
        %3470 = vmatprep.subr.mxu0 0.0
        %3471 = vmatpush1.msra.mxu0 0.0
        %3472 = vmatprep.subr.mxu0 0.0
        %3473 = vmatpush1.msra.mxu0 0.0
        %3474 = vmatprep.subr.mxu0 0.0
        %3475 = vmatpush1.msra.mxu0 0.0
        %3476 = vmatprep.subr.mxu0 0.0
        %3477 = vmatpush1.msra.mxu0 0.0
        %3478 = vmatprep.subr.mxu0 0.0
        %3479 = vmatpush1.msra.mxu0 0.0
        %3480 = vmatprep.subr.mxu0 0.0
        %3481 = vmatpush1.msra.mxu0 0.0
        %3482 = vmatprep.subr.mxu0 0.0
        %3483 = vmatpush1.msra.mxu0 0.0
        %3484 = vmatprep.subr.mxu0 0.0
        %3485 = vmatpush1.msra.mxu0 %v3449
        %3486 = vmatprep.subr.mxu0 0.0
        %3487 = vmatpush2.msra.mxu0 0.0
        %3488 = vmatprep.subr.mxu0 0.0
        %3489 = vmatpush2.msra.mxu0 0.0
        %3490 = vmatprep.subr.mxu0 0.0
        %3491 = vmatpush2.msra.mxu0 0.0
        %3492 = vmatprep.subr.mxu0 0.0
        %3493 = vmatpush2.msra.mxu0 0.0
        %3494 = vmatprep.subr.mxu0 0.0
        %3495 = vmatpush2.msra.mxu0 0.0
        %3496 = vmatprep.subr.mxu0 0.0
        %3497 = vmatpush2.msra.mxu0 0.0
        %3498 = vmatprep.subr.mxu0 0.0
        %3499 = vmatpush2.msra.mxu0 0.0
        %3500 = vmatprep.subr.mxu0 0.0
        %3501 = vmatpush2.msra.mxu0 0.0
        %3502 = vmatprep.subr.mxu0 0.0
        %3503 = vmatpush2.msra.mxu0 0.0
        %3504 = vmatprep.subr.mxu0 0.0
        %3505 = vmatpush2.msra.mxu0 0.0
        %3506 = vmatprep.subr.mxu0 0.0
        %3507 = vmatpush2.msra.mxu0 0.0
        %3508 = vmatprep.subr.mxu0 0.0
        %3509 = vmatpush2.msra.mxu0 0.0
        %3510 = vmatprep.subr.mxu0 0.0
        %3511 = vmatpush2.msra.mxu0 0.0
        %3512 = vmatprep.subr.mxu0 0.0
        %3513 = vmatpush2.msra.mxu0 0.0
        %3514 = vmatprep.subr.mxu0 0.0
        %3515 = vmatpush2.msra.mxu0 0.0
        %3516 = vmatprep.subr.mxu0 0.0
        %3517 = vmatpush2.msra.mxu0 0.0
        %3518 = vmatprep.mubr.f32.mxu0 0.0
        %3519 = vmatmul.mubr.f32.gmra.mxu0 %v3452
        %v3520 = vpop.f32.mrf.mxu0
        %v3521 = vadd.f32 0.0, %v3520
        %v3522 = vpop.f32.mrf.mxu0
        %3523 = vdwg.mxu0
        %3524 = vrot.lane.b32.xlu0 %v3264, 96
        %v3525 = vpop.permute.xlu0 %3524
        %v3528 = vsel %vm1577, %v3447, 0
        %3530 = vmatprep.subr.mxu0 0.0
        %3531 = vmatpush1.msra.mxu0 0.0
        %3532 = vmatprep.subr.mxu0 0.0
        %3533 = vmatpush1.msra.mxu0 0.0
        %3534 = vmatprep.subr.mxu0 0.0
        %3535 = vmatpush1.msra.mxu0 0.0
        %3536 = vmatprep.subr.mxu0 0.0
        %3537 = vmatpush1.msra.mxu0 0.0
        %3538 = vmatprep.subr.mxu0 0.0
        %3539 = vmatpush1.msra.mxu0 0.0
        %3540 = vmatprep.subr.mxu0 0.0
        %3541 = vmatpush1.msra.mxu0 0.0
        %3542 = vmatprep.subr.mxu0 0.0
        %3543 = vmatpush1.msra.mxu0 0.0
        %3544 = vmatprep.subr.mxu0 0.0
        %3545 = vmatpush1.msra.mxu0 0.0
        %3546 = vmatprep.subr.mxu0 0.0
        %3547 = vmatpush1.msra.mxu0 0.0
        %3548 = vmatprep.subr.mxu0 0.0
        %3549 = vmatpush1.msra.mxu0 0.0
        %3550 = vmatprep.subr.mxu0 0.0
        %3551 = vmatpush1.msra.mxu0 0.0
        %3552 = vmatprep.subr.mxu0 0.0
        %3553 = vmatpush1.msra.mxu0 0.0
        %3554 = vmatprep.subr.mxu0 0.0
        %3555 = vmatpush1.msra.mxu0 0.0
        %3556 = vmatprep.subr.mxu0 0.0
        %3557 = vmatpush1.msra.mxu0 0.0
        %3558 = vmatprep.subr.mxu0 0.0
        %3559 = vmatpush1.msra.mxu0 0.0
        %3560 = vmatprep.subr.mxu0 0.0
        %3561 = vmatpush1.msra.mxu0 %v3525
        %3562 = vmatprep.subr.mxu0 0.0
        %3563 = vmatpush2.msra.mxu0 0.0
        %3564 = vmatprep.subr.mxu0 0.0
        %3565 = vmatpush2.msra.mxu0 0.0
        %3566 = vmatprep.subr.mxu0 0.0
        %3567 = vmatpush2.msra.mxu0 0.0
        %3568 = vmatprep.subr.mxu0 0.0
        %3569 = vmatpush2.msra.mxu0 0.0
        %3570 = vmatprep.subr.mxu0 0.0
        %3571 = vmatpush2.msra.mxu0 0.0
        %3572 = vmatprep.subr.mxu0 0.0
        %3573 = vmatpush2.msra.mxu0 0.0
        %3574 = vmatprep.subr.mxu0 0.0
        %3575 = vmatpush2.msra.mxu0 0.0
        %3576 = vmatprep.subr.mxu0 0.0
        %3577 = vmatpush2.msra.mxu0 0.0
        %3578 = vmatprep.subr.mxu0 0.0
        %3579 = vmatpush2.msra.mxu0 0.0
        %3580 = vmatprep.subr.mxu0 0.0
        %3581 = vmatpush2.msra.mxu0 0.0
        %3582 = vmatprep.subr.mxu0 0.0
        %3583 = vmatpush2.msra.mxu0 0.0
        %3584 = vmatprep.subr.mxu0 0.0
        %3585 = vmatpush2.msra.mxu0 0.0
        %3586 = vmatprep.subr.mxu0 0.0
        %3587 = vmatpush2.msra.mxu0 0.0
        %3588 = vmatprep.subr.mxu0 0.0
        %3589 = vmatpush2.msra.mxu0 0.0
        %3590 = vmatprep.subr.mxu0 0.0
        %3591 = vmatpush2.msra.mxu0 0.0
        %3592 = vmatprep.subr.mxu0 0.0
        %3593 = vmatpush2.msra.mxu0 0.0
        %3594 = vmatprep.mubr.f32.mxu0 0.0
        %3595 = vmatmul.mubr.f32.gmra.mxu0 %v3528
        %v3596 = vpop.f32.mrf.mxu0
        %v3597 = vadd.f32 0.0, %v3596
        %v3598 = vpop.f32.mrf.mxu0
        %3599 = vdwg.mxu0
        %3600 = vrot.lane.b32.xlu0 %v3159, 120
        %v3601 = vpop.permute.xlu0 %3600
        %3602 = vrot.lane.b32.xlu0 %v3259, 120
        %v3603 = vpop.permute.xlu0 %3602
        %v3604 = vsel %vm1577, %v3601, 0
        %v3606 = vsel %vm1577, %v3603, 0
        %3608 = vmatprep.subr.mxu0 0.0
        %3609 = vmatpush1.xpose.msra.mxu0 0.0
        %3610 = vmatprep.subr.mxu0 0.0
        %3611 = vmatpush1.xpose.msra.mxu0 0.0
        %3612 = vmatprep.subr.mxu0 0.0
        %3613 = vmatpush1.xpose.msra.mxu0 0.0
        %3614 = vmatprep.subr.mxu0 0.0
        %3615 = vmatpush1.xpose.msra.mxu0 0.0
        %3616 = vmatprep.subr.mxu0 0.0
        %3617 = vmatpush1.xpose.msra.mxu0 0.0
        %3618 = vmatprep.subr.mxu0 0.0
        %3619 = vmatpush1.xpose.msra.mxu0 0.0
        %3620 = vmatprep.subr.mxu0 0.0
        %3621 = vmatpush1.xpose.msra.mxu0 0.0
        %3622 = vmatprep.subr.mxu0 0.0
        %3623 = vmatpush1.xpose.msra.mxu0 0.0
        %3624 = vmatprep.subr.mxu0 0.0
        %3625 = vmatpush1.xpose.msra.mxu0 0.0
        %3626 = vmatprep.subr.mxu0 0.0
        %3627 = vmatpush1.xpose.msra.mxu0 0.0
        %3628 = vmatprep.subr.mxu0 0.0
        %3629 = vmatpush1.xpose.msra.mxu0 0.0
        %3630 = vmatprep.subr.mxu0 0.0
        %3631 = vmatpush1.xpose.msra.mxu0 0.0
        %3632 = vmatprep.subr.mxu0 0.0
        %3633 = vmatpush1.xpose.msra.mxu0 0.0
        %3634 = vmatprep.subr.mxu0 0.0
        %3635 = vmatpush1.xpose.msra.mxu0 0.0
        %3636 = vmatprep.subr.mxu0 0.0
        %3637 = vmatpush1.xpose.msra.mxu0 0.0
        %3638 = vmatprep.subr.mxu0 0.0
        %3639 = vmatpush1.xpose.msra.mxu0 %v3606
        %3640 = vmatprep.subr.mxu0 0.0
        %3641 = vmatpush2.xpose.msra.mxu0 0.0
        %3642 = vmatprep.subr.mxu0 0.0
        %3643 = vmatpush2.xpose.msra.mxu0 0.0
        %3644 = vmatprep.subr.mxu0 0.0
        %3645 = vmatpush2.xpose.msra.mxu0 0.0
        %3646 = vmatprep.subr.mxu0 0.0
        %3647 = vmatpush2.xpose.msra.mxu0 0.0
        %3648 = vmatprep.subr.mxu0 0.0
        %3649 = vmatpush2.xpose.msra.mxu0 0.0
        %3650 = vmatprep.subr.mxu0 0.0
        %3651 = vmatpush2.xpose.msra.mxu0 0.0
        %3652 = vmatprep.subr.mxu0 0.0
        %3653 = vmatpush2.xpose.msra.mxu0 0.0
        %3654 = vmatprep.subr.mxu0 0.0
        %3655 = vmatpush2.xpose.msra.mxu0 0.0
        %3656 = vmatprep.subr.mxu0 0.0
        %3657 = vmatpush2.xpose.msra.mxu0 0.0
        %3658 = vmatprep.subr.mxu0 0.0
        %3659 = vmatpush2.xpose.msra.mxu0 0.0
        %3660 = vmatprep.subr.mxu0 0.0
        %3661 = vmatpush2.xpose.msra.mxu0 0.0
        %3662 = vmatprep.subr.mxu0 0.0
        %3663 = vmatpush2.xpose.msra.mxu0 0.0
        %3664 = vmatprep.subr.mxu0 0.0
        %3665 = vmatpush2.xpose.msra.mxu0 0.0
        %3666 = vmatprep.subr.mxu0 0.0
        %3667 = vmatpush2.xpose.msra.mxu0 0.0
        %3668 = vmatprep.subr.mxu0 0.0
        %3669 = vmatpush2.xpose.msra.mxu0 0.0
        %3670 = vmatprep.subr.mxu0 0.0
        %3671 = vmatpush2.xpose.msra.mxu0 0.0
        %3672 = vmatprep.mubr.f32.mxu0 0.0
        %3673 = vmatmul.mubr.f32.gmra.mxu0 %v3604
        %v3674 = vpop.f32.mrf.mxu0
        %v3675 = vadd.f32 0.0, %v3674
        %v3676 = vpop.f32.mrf.mxu0
        %3677 = vdwg.mxu0
        %3678 = vrot.lane.b32.xlu0 %v3164, 120
        %v3679 = vpop.permute.xlu0 %3678
        %3680 = vrot.lane.b32.xlu0 %v3264, 120
        %v3681 = vpop.permute.xlu0 %3680
        %v3682 = vsel %vm1577, %v3679, 0
        %v3684 = vsel %vm1577, %v3681, 0
        %3686 = vmatprep.subr.mxu0 0.0
        %3687 = vmatpush1.xpose.msra.mxu0 0.0
        %3688 = vmatprep.subr.mxu0 0.0
        %3689 = vmatpush1.xpose.msra.mxu0 0.0
        %3690 = vmatprep.subr.mxu0 0.0
        %3691 = vmatpush1.xpose.msra.mxu0 0.0
        %3692 = vmatprep.subr.mxu0 0.0
        %3693 = vmatpush1.xpose.msra.mxu0 0.0
        %3694 = vmatprep.subr.mxu0 0.0
        %3695 = vmatpush1.xpose.msra.mxu0 0.0
        %3696 = vmatprep.subr.mxu0 0.0
        %3697 = vmatpush1.xpose.msra.mxu0 0.0
        %3698 = vmatprep.subr.mxu0 0.0
        %3699 = vmatpush1.xpose.msra.mxu0 0.0
        %3700 = vmatprep.subr.mxu0 0.0
        %3701 = vmatpush1.xpose.msra.mxu0 0.0
        %3702 = vmatprep.subr.mxu0 0.0
        %3703 = vmatpush1.xpose.msra.mxu0 0.0
        %3704 = vmatprep.subr.mxu0 0.0
        %3705 = vmatpush1.xpose.msra.mxu0 0.0
        %3706 = vmatprep.subr.mxu0 0.0
        %3707 = vmatpush1.xpose.msra.mxu0 0.0
        %3708 = vmatprep.subr.mxu0 0.0
        %3709 = vmatpush1.xpose.msra.mxu0 0.0
        %3710 = vmatprep.subr.mxu0 0.0
        %3711 = vmatpush1.xpose.msra.mxu0 0.0
        %3712 = vmatprep.subr.mxu0 0.0
        %3713 = vmatpush1.xpose.msra.mxu0 0.0
        %3714 = vmatprep.subr.mxu0 0.0
        %3715 = vmatpush1.xpose.msra.mxu0 0.0
        %3716 = vmatprep.subr.mxu0 0.0
        %3717 = vmatpush1.xpose.msra.mxu0 %v3684
        %3718 = vmatprep.subr.mxu0 0.0
        %3719 = vmatpush2.xpose.msra.mxu0 0.0
        %3720 = vmatprep.subr.mxu0 0.0
        %3721 = vmatpush2.xpose.msra.mxu0 0.0
        %3722 = vmatprep.subr.mxu0 0.0
        %3723 = vmatpush2.xpose.msra.mxu0 0.0
        %3724 = vmatprep.subr.mxu0 0.0
        %3725 = vmatpush2.xpose.msra.mxu0 0.0
        %3726 = vmatprep.subr.mxu0 0.0
        %3727 = vmatpush2.xpose.msra.mxu0 0.0
        %3728 = vmatprep.subr.mxu0 0.0
        %3729 = vmatpush2.xpose.msra.mxu0 0.0
        %3730 = vmatprep.subr.mxu0 0.0
        %3731 = vmatpush2.xpose.msra.mxu0 0.0
        %3732 = vmatprep.subr.mxu0 0.0
        %3733 = vmatpush2.xpose.msra.mxu0 0.0
        %3734 = vmatprep.subr.mxu0 0.0
        %3735 = vmatpush2.xpose.msra.mxu0 0.0
        %3736 = vmatprep.subr.mxu0 0.0
        %3737 = vmatpush2.xpose.msra.mxu0 0.0
        %3738 = vmatprep.subr.mxu0 0.0
        %3739 = vmatpush2.xpose.msra.mxu0 0.0
        %3740 = vmatprep.subr.mxu0 0.0
        %3741 = vmatpush2.xpose.msra.mxu0 0.0
        %3742 = vmatprep.subr.mxu0 0.0
        %3743 = vmatpush2.xpose.msra.mxu0 0.0
        %3744 = vmatprep.subr.mxu0 0.0
        %3745 = vmatpush2.xpose.msra.mxu0 0.0
        %3746 = vmatprep.subr.mxu0 0.0
        %3747 = vmatpush2.xpose.msra.mxu0 0.0
        %3748 = vmatprep.subr.mxu0 0.0
        %3749 = vmatpush2.xpose.msra.mxu0 0.0
        %3750 = vmatprep.mubr.f32.mxu0 0.0
        %3751 = vmatmul.mubr.f32.gmra.mxu0 %v3682
        %v3752 = vpop.f32.mrf.mxu0
        %v3753 = vadd.f32 0.0, %v3752
        %v3754 = vpop.f32.mrf.mxu0
        %3755 = vdwg.mxu0
        %v3756 = vmul.f32 %v3675, 0.35355338
        %v3757 = vmul.f32 %v3753, 0.35355338
        %v3758 = vsel %vm1577, %v3756, -inf
        %3759 = vmax.xlane.f32.xlu0 %v3758
        %v3760 = vpop.xlane.xlu0 %3759
        %v3761 = vsel %vm1577, %v3757, -inf
        %3762 = vmax.xlane.f32.xlu0 %v3761
        %v3763 = vpop.xlane.xlu0 %3762
        %v3764 = vsub.f32 %v3756, %v3760
        %v3765 = vsub.f32 %v3757, %v3763
        %v3766 = vmul.f32 %v3764, 1.442695
        %v3767 = vpow.pop %v3766
        %v3768 = vmul.f32 %v3765, 1.442695
        %v3769 = vpow.pop %v3768
        %v3770 = vsel %vm1577, %v3767, 0.0
        %3771 = vadd.xlane.f32.xlu0 %v3770
        %v3772 = vpop.xlane.xlu0 %3771
        %v3773 = vsel %vm1577, %v3769, 0.0
        %3774 = vadd.xlane.f32.xlu0 %v3773
        %v3775 = vpop.xlane.xlu0 %3774
        %v3776 = vrcp.pop %v3772
        %v3777 = vrcp.pop %v3775
        %v3778 = vmul.f32 %v3767, %v3776
        %v3779 = vmul.f32 %v3769, %v3777
        %3780 = vrot.lane.b32.xlu0 %v3259, 88
        %v3781 = vpop.permute.xlu0 %3780
        %v3784 = vsel %vm1577, %v3778, 0
        %3786 = vmatprep.subr.mxu0 0.0
        %3787 = vmatpush1.msra.mxu0 0.0
        %3788 = vmatprep.subr.mxu0 0.0
        %3789 = vmatpush1.msra.mxu0 0.0
        %3790 = vmatprep.subr.mxu0 0.0
        %3791 = vmatpush1.msra.mxu0 0.0
        %3792 = vmatprep.subr.mxu0 0.0
        %3793 = vmatpush1.msra.mxu0 0.0
        %3794 = vmatprep.subr.mxu0 0.0
        %3795 = vmatpush1.msra.mxu0 0.0
        %3796 = vmatprep.subr.mxu0 0.0
        %3797 = vmatpush1.msra.mxu0 0.0
        %3798 = vmatprep.subr.mxu0 0.0
        %3799 = vmatpush1.msra.mxu0 0.0
        %3800 = vmatprep.subr.mxu0 0.0
        %3801 = vmatpush1.msra.mxu0 0.0
        %3802 = vmatprep.subr.mxu0 0.0
        %3803 = vmatpush1.msra.mxu0 0.0
        %3804 = vmatprep.subr.mxu0 0.0
        %3805 = vmatpush1.msra.mxu0 0.0
        %3806 = vmatprep.subr.mxu0 0.0
        %3807 = vmatpush1.msra.mxu0 0.0
        %3808 = vmatprep.subr.mxu0 0.0
        %3809 = vmatpush1.msra.mxu0 0.0
        %3810 = vmatprep.subr.mxu0 0.0
        %3811 = vmatpush1.msra.mxu0 0.0
        %3812 = vmatprep.subr.mxu0 0.0
        %3813 = vmatpush1.msra.mxu0 0.0
        %3814 = vmatprep.subr.mxu0 0.0
        %3815 = vmatpush1.msra.mxu0 0.0
        %3816 = vmatprep.subr.mxu0 0.0
        %3817 = vmatpush1.msra.mxu0 %v3781
        %3818 = vmatprep.subr.mxu0 0.0
        %3819 = vmatpush2.msra.mxu0 0.0
        %3820 = vmatprep.subr.mxu0 0.0
        %3821 = vmatpush2.msra.mxu0 0.0
        %3822 = vmatprep.subr.mxu0 0.0
        %3823 = vmatpush2.msra.mxu0 0.0
        %3824 = vmatprep.subr.mxu0 0.0
        %3825 = vmatpush2.msra.mxu0 0.0
        %3826 = vmatprep.subr.mxu0 0.0
        %3827 = vmatpush2.msra.mxu0 0.0
        %3828 = vmatprep.subr.mxu0 0.0
        %3829 = vmatpush2.msra.mxu0 0.0
        %3830 = vmatprep.subr.mxu0 0.0
        %3831 = vmatpush2.msra.mxu0 0.0
        %3832 = vmatprep.subr.mxu0 0.0
        %3833 = vmatpush2.msra.mxu0 0.0
        %3834 = vmatprep.subr.mxu0 0.0
        %3835 = vmatpush2.msra.mxu0 0.0
        %3836 = vmatprep.subr.mxu0 0.0
        %3837 = vmatpush2.msra.mxu0 0.0
        %3838 = vmatprep.subr.mxu0 0.0
        %3839 = vmatpush2.msra.mxu0 0.0
        %3840 = vmatprep.subr.mxu0 0.0
        %3841 = vmatpush2.msra.mxu0 0.0
        %3842 = vmatprep.subr.mxu0 0.0
        %3843 = vmatpush2.msra.mxu0 0.0
        %3844 = vmatprep.subr.mxu0 0.0
        %3845 = vmatpush2.msra.mxu0 0.0
        %3846 = vmatprep.subr.mxu0 0.0
        %3847 = vmatpush2.msra.mxu0 0.0
        %3848 = vmatprep.subr.mxu0 0.0
        %3849 = vmatpush2.msra.mxu0 0.0
        %3850 = vmatprep.mubr.f32.mxu0 0.0
        %3851 = vmatmul.mubr.f32.gmra.mxu0 %v3784
        %v3852 = vpop.f32.mrf.mxu0
        %v3853 = vadd.f32 0.0, %v3852
        %v3854 = vpop.f32.mrf.mxu0
        %3855 = vdwg.mxu0
        %3856 = vrot.lane.b32.xlu0 %v3264, 88
        %v3857 = vpop.permute.xlu0 %3856
        %v3860 = vsel %vm1577, %v3779, 0
        %3862 = vmatprep.subr.mxu0 0.0
        %3863 = vmatpush1.msra.mxu0 0.0
        %3864 = vmatprep.subr.mxu0 0.0
        %3865 = vmatpush1.msra.mxu0 0.0
        %3866 = vmatprep.subr.mxu0 0.0
        %3867 = vmatpush1.msra.mxu0 0.0
        %3868 = vmatprep.subr.mxu0 0.0
        %3869 = vmatpush1.msra.mxu0 0.0
        %3870 = vmatprep.subr.mxu0 0.0
        %3871 = vmatpush1.msra.mxu0 0.0
        %3872 = vmatprep.subr.mxu0 0.0
        %3873 = vmatpush1.msra.mxu0 0.0
        %3874 = vmatprep.subr.mxu0 0.0
        %3875 = vmatpush1.msra.mxu0 0.0
        %3876 = vmatprep.subr.mxu0 0.0
        %3877 = vmatpush1.msra.mxu0 0.0
        %3878 = vmatprep.subr.mxu0 0.0
        %3879 = vmatpush1.msra.mxu0 0.0
        %3880 = vmatprep.subr.mxu0 0.0
        %3881 = vmatpush1.msra.mxu0 0.0
        %3882 = vmatprep.subr.mxu0 0.0
        %3883 = vmatpush1.msra.mxu0 0.0
        %3884 = vmatprep.subr.mxu0 0.0
        %3885 = vmatpush1.msra.mxu0 0.0
        %3886 = vmatprep.subr.mxu0 0.0
        %3887 = vmatpush1.msra.mxu0 0.0
        %3888 = vmatprep.subr.mxu0 0.0
        %3889 = vmatpush1.msra.mxu0 0.0
        %3890 = vmatprep.subr.mxu0 0.0
        %3891 = vmatpush1.msra.mxu0 0.0
        %3892 = vmatprep.subr.mxu0 0.0
        %3893 = vmatpush1.msra.mxu0 %v3857
        %3894 = vmatprep.subr.mxu0 0.0
        %3895 = vmatpush2.msra.mxu0 0.0
        %3896 = vmatprep.subr.mxu0 0.0
        %3897 = vmatpush2.msra.mxu0 0.0
        %3898 = vmatprep.subr.mxu0 0.0
        %3899 = vmatpush2.msra.mxu0 0.0
        %3900 = vmatprep.subr.mxu0 0.0
        %3901 = vmatpush2.msra.mxu0 0.0
        %3902 = vmatprep.subr.mxu0 0.0
        %3903 = vmatpush2.msra.mxu0 0.0
        %3904 = vmatprep.subr.mxu0 0.0
        %3905 = vmatpush2.msra.mxu0 0.0
        %3906 = vmatprep.subr.mxu0 0.0
        %3907 = vmatpush2.msra.mxu0 0.0
        %3908 = vmatprep.subr.mxu0 0.0
        %3909 = vmatpush2.msra.mxu0 0.0
        %3910 = vmatprep.subr.mxu0 0.0
        %3911 = vmatpush2.msra.mxu0 0.0
        %3912 = vmatprep.subr.mxu0 0.0
        %3913 = vmatpush2.msra.mxu0 0.0
        %3914 = vmatprep.subr.mxu0 0.0
        %3915 = vmatpush2.msra.mxu0 0.0
        %3916 = vmatprep.subr.mxu0 0.0
        %3917 = vmatpush2.msra.mxu0 0.0
        %3918 = vmatprep.subr.mxu0 0.0
        %3919 = vmatpush2.msra.mxu0 0.0
        %3920 = vmatprep.subr.mxu0 0.0
        %3921 = vmatpush2.msra.mxu0 0.0
        %3922 = vmatprep.subr.mxu0 0.0
        %3923 = vmatpush2.msra.mxu0 0.0
        %3924 = vmatprep.subr.mxu0 0.0
        %3925 = vmatpush2.msra.mxu0 0.0
        %3926 = vmatprep.mubr.f32.mxu0 0.0
        %3927 = vmatmul.mubr.f32.gmra.mxu0 %v3860
        %v3928 = vpop.f32.mrf.mxu0
        %v3929 = vadd.f32 0.0, %v3928
        %v3930 = vpop.f32.mrf.mxu0
        %3931 = vdwg.mxu0
        %3932 = vrot.lane.b32.xlu0 %v3159, 112
        %v3933 = vpop.permute.xlu0 %3932
        %3934 = vrot.lane.b32.xlu0 %v3259, 112
        %v3935 = vpop.permute.xlu0 %3934
        %v3936 = vsel %vm1577, %v3933, 0
        %v3938 = vsel %vm1577, %v3935, 0
        %3940 = vmatprep.subr.mxu0 0.0
        %3941 = vmatpush1.xpose.msra.mxu0 0.0
        %3942 = vmatprep.subr.mxu0 0.0
        %3943 = vmatpush1.xpose.msra.mxu0 0.0
        %3944 = vmatprep.subr.mxu0 0.0
        %3945 = vmatpush1.xpose.msra.mxu0 0.0
        %3946 = vmatprep.subr.mxu0 0.0
        %3947 = vmatpush1.xpose.msra.mxu0 0.0
        %3948 = vmatprep.subr.mxu0 0.0
        %3949 = vmatpush1.xpose.msra.mxu0 0.0
        %3950 = vmatprep.subr.mxu0 0.0
        %3951 = vmatpush1.xpose.msra.mxu0 0.0
        %3952 = vmatprep.subr.mxu0 0.0
        %3953 = vmatpush1.xpose.msra.mxu0 0.0
        %3954 = vmatprep.subr.mxu0 0.0
        %3955 = vmatpush1.xpose.msra.mxu0 0.0
        %3956 = vmatprep.subr.mxu0 0.0
        %3957 = vmatpush1.xpose.msra.mxu0 0.0
        %3958 = vmatprep.subr.mxu0 0.0
        %3959 = vmatpush1.xpose.msra.mxu0 0.0
        %3960 = vmatprep.subr.mxu0 0.0
        %3961 = vmatpush1.xpose.msra.mxu0 0.0
        %3962 = vmatprep.subr.mxu0 0.0
        %3963 = vmatpush1.xpose.msra.mxu0 0.0
        %3964 = vmatprep.subr.mxu0 0.0
        %3965 = vmatpush1.xpose.msra.mxu0 0.0
        %3966 = vmatprep.subr.mxu0 0.0
        %3967 = vmatpush1.xpose.msra.mxu0 0.0
        %3968 = vmatprep.subr.mxu0 0.0
        %3969 = vmatpush1.xpose.msra.mxu0 0.0
        %3970 = vmatprep.subr.mxu0 0.0
        %3971 = vmatpush1.xpose.msra.mxu0 %v3938
        %3972 = vmatprep.subr.mxu0 0.0
        %3973 = vmatpush2.xpose.msra.mxu0 0.0
        %3974 = vmatprep.subr.mxu0 0.0
        %3975 = vmatpush2.xpose.msra.mxu0 0.0
        %3976 = vmatprep.subr.mxu0 0.0
        %3977 = vmatpush2.xpose.msra.mxu0 0.0
        %3978 = vmatprep.subr.mxu0 0.0
        %3979 = vmatpush2.xpose.msra.mxu0 0.0
        %3980 = vmatprep.subr.mxu0 0.0
        %3981 = vmatpush2.xpose.msra.mxu0 0.0
        %3982 = vmatprep.subr.mxu0 0.0
        %3983 = vmatpush2.xpose.msra.mxu0 0.0
        %3984 = vmatprep.subr.mxu0 0.0
        %3985 = vmatpush2.xpose.msra.mxu0 0.0
        %3986 = vmatprep.subr.mxu0 0.0
        %3987 = vmatpush2.xpose.msra.mxu0 0.0
        %3988 = vmatprep.subr.mxu0 0.0
        %3989 = vmatpush2.xpose.msra.mxu0 0.0
        %3990 = vmatprep.subr.mxu0 0.0
        %3991 = vmatpush2.xpose.msra.mxu0 0.0
        %3992 = vmatprep.subr.mxu0 0.0
        %3993 = vmatpush2.xpose.msra.mxu0 0.0
        %3994 = vmatprep.subr.mxu0 0.0
        %3995 = vmatpush2.xpose.msra.mxu0 0.0
        %3996 = vmatprep.subr.mxu0 0.0
        %3997 = vmatpush2.xpose.msra.mxu0 0.0
        %3998 = vmatprep.subr.mxu0 0.0
        %3999 = vmatpush2.xpose.msra.mxu0 0.0
        %4000 = vmatprep.subr.mxu0 0.0
        %4001 = vmatpush2.xpose.msra.mxu0 0.0
        %4002 = vmatprep.subr.mxu0 0.0
        %4003 = vmatpush2.xpose.msra.mxu0 0.0
        %4004 = vmatprep.mubr.f32.mxu0 0.0
        %4005 = vmatmul.mubr.f32.gmra.mxu0 %v3936
        %v4006 = vpop.f32.mrf.mxu0
        %v4007 = vadd.f32 0.0, %v4006
        %v4008 = vpop.f32.mrf.mxu0
        %4009 = vdwg.mxu0
        %4010 = vrot.lane.b32.xlu0 %v3164, 112
        %v4011 = vpop.permute.xlu0 %4010
        %4012 = vrot.lane.b32.xlu0 %v3264, 112
        %v4013 = vpop.permute.xlu0 %4012
        %v4014 = vsel %vm1577, %v4011, 0
        %v4016 = vsel %vm1577, %v4013, 0
        %4018 = vmatprep.subr.mxu0 0.0
        %4019 = vmatpush1.xpose.msra.mxu0 0.0
        %4020 = vmatprep.subr.mxu0 0.0
        %4021 = vmatpush1.xpose.msra.mxu0 0.0
        %4022 = vmatprep.subr.mxu0 0.0
        %4023 = vmatpush1.xpose.msra.mxu0 0.0
        %4024 = vmatprep.subr.mxu0 0.0
        %4025 = vmatpush1.xpose.msra.mxu0 0.0
        %4026 = vmatprep.subr.mxu0 0.0
        %4027 = vmatpush1.xpose.msra.mxu0 0.0
        %4028 = vmatprep.subr.mxu0 0.0
        %4029 = vmatpush1.xpose.msra.mxu0 0.0
        %4030 = vmatprep.subr.mxu0 0.0
        %4031 = vmatpush1.xpose.msra.mxu0 0.0
        %4032 = vmatprep.subr.mxu0 0.0
        %4033 = vmatpush1.xpose.msra.mxu0 0.0
        %4034 = vmatprep.subr.mxu0 0.0
        %4035 = vmatpush1.xpose.msra.mxu0 0.0
        %4036 = vmatprep.subr.mxu0 0.0
        %4037 = vmatpush1.xpose.msra.mxu0 0.0
        %4038 = vmatprep.subr.mxu0 0.0
        %4039 = vmatpush1.xpose.msra.mxu0 0.0
        %4040 = vmatprep.subr.mxu0 0.0
        %4041 = vmatpush1.xpose.msra.mxu0 0.0
        %4042 = vmatprep.subr.mxu0 0.0
        %4043 = vmatpush1.xpose.msra.mxu0 0.0
        %4044 = vmatprep.subr.mxu0 0.0
        %4045 = vmatpush1.xpose.msra.mxu0 0.0
        %4046 = vmatprep.subr.mxu0 0.0
        %4047 = vmatpush1.xpose.msra.mxu0 0.0
        %4048 = vmatprep.subr.mxu0 0.0
        %4049 = vmatpush1.xpose.msra.mxu0 %v4016
        %4050 = vmatprep.subr.mxu0 0.0
        %4051 = vmatpush2.xpose.msra.mxu0 0.0
        %4052 = vmatprep.subr.mxu0 0.0
        %4053 = vmatpush2.xpose.msra.mxu0 0.0
        %4054 = vmatprep.subr.mxu0 0.0
        %4055 = vmatpush2.xpose.msra.mxu0 0.0
        %4056 = vmatprep.subr.mxu0 0.0
        %4057 = vmatpush2.xpose.msra.mxu0 0.0
        %4058 = vmatprep.subr.mxu0 0.0
        %4059 = vmatpush2.xpose.msra.mxu0 0.0
        %4060 = vmatprep.subr.mxu0 0.0
        %4061 = vmatpush2.xpose.msra.mxu0 0.0
        %4062 = vmatprep.subr.mxu0 0.0
        %4063 = vmatpush2.xpose.msra.mxu0 0.0
        %4064 = vmatprep.subr.mxu0 0.0
        %4065 = vmatpush2.xpose.msra.mxu0 0.0
        %4066 = vmatprep.subr.mxu0 0.0
        %4067 = vmatpush2.xpose.msra.mxu0 0.0
        %4068 = vmatprep.subr.mxu0 0.0
        %4069 = vmatpush2.xpose.msra.mxu0 0.0
        %4070 = vmatprep.subr.mxu0 0.0
        %4071 = vmatpush2.xpose.msra.mxu0 0.0
        %4072 = vmatprep.subr.mxu0 0.0
        %4073 = vmatpush2.xpose.msra.mxu0 0.0
        %4074 = vmatprep.subr.mxu0 0.0
        %4075 = vmatpush2.xpose.msra.mxu0 0.0
        %4076 = vmatprep.subr.mxu0 0.0
        %4077 = vmatpush2.xpose.msra.mxu0 0.0
        %4078 = vmatprep.subr.mxu0 0.0
        %4079 = vmatpush2.xpose.msra.mxu0 0.0
        %4080 = vmatprep.subr.mxu0 0.0
        %4081 = vmatpush2.xpose.msra.mxu0 0.0
        %4082 = vmatprep.mubr.f32.mxu0 0.0
        %4083 = vmatmul.mubr.f32.gmra.mxu0 %v4014
        %v4084 = vpop.f32.mrf.mxu0
        %v4085 = vadd.f32 0.0, %v4084
        %v4086 = vpop.f32.mrf.mxu0
        %4087 = vdwg.mxu0
        %v4088 = vmul.f32 %v4007, 0.35355338
        %v4089 = vmul.f32 %v4085, 0.35355338
        %v4090 = vsel %vm1577, %v4088, -inf
        %4091 = vmax.xlane.f32.xlu0 %v4090
        %v4092 = vpop.xlane.xlu0 %4091
        %v4093 = vsel %vm1577, %v4089, -inf
        %4094 = vmax.xlane.f32.xlu0 %v4093
        %v4095 = vpop.xlane.xlu0 %4094
        %v4096 = vsub.f32 %v4088, %v4092
        %v4097 = vsub.f32 %v4089, %v4095
        %v4098 = vmul.f32 %v4096, 1.442695
        %v4099 = vpow.pop %v4098
        %v4100 = vmul.f32 %v4097, 1.442695
        %v4101 = vpow.pop %v4100
        %v4102 = vsel %vm1577, %v4099, 0.0
        %4103 = vadd.xlane.f32.xlu0 %v4102
        %v4104 = vpop.xlane.xlu0 %4103
        %v4105 = vsel %vm1577, %v4101, 0.0
        %4106 = vadd.xlane.f32.xlu0 %v4105
        %v4107 = vpop.xlane.xlu0 %4106
        %v4108 = vrcp.pop %v4104
        %v4109 = vrcp.pop %v4107
        %v4110 = vmul.f32 %v4099, %v4108
        %v4111 = vmul.f32 %v4101, %v4109
        %4112 = vrot.lane.b32.xlu0 %v3259, 80
        %v4113 = vpop.permute.xlu0 %4112
        %v4116 = vsel %vm1577, %v4110, 0
        %4118 = vmatprep.subr.mxu0 0.0
        %4119 = vmatpush1.msra.mxu0 0.0
        %4120 = vmatprep.subr.mxu0 0.0
        %4121 = vmatpush1.msra.mxu0 0.0
        %4122 = vmatprep.subr.mxu0 0.0
        %4123 = vmatpush1.msra.mxu0 0.0
        %4124 = vmatprep.subr.mxu0 0.0
        %4125 = vmatpush1.msra.mxu0 0.0
        %4126 = vmatprep.subr.mxu0 0.0
        %4127 = vmatpush1.msra.mxu0 0.0
        %4128 = vmatprep.subr.mxu0 0.0
        %4129 = vmatpush1.msra.mxu0 0.0
        %4130 = vmatprep.subr.mxu0 0.0
        %4131 = vmatpush1.msra.mxu0 0.0
        %4132 = vmatprep.subr.mxu0 0.0
        %4133 = vmatpush1.msra.mxu0 0.0
        %4134 = vmatprep.subr.mxu0 0.0
        %4135 = vmatpush1.msra.mxu0 0.0
        %4136 = vmatprep.subr.mxu0 0.0
        %4137 = vmatpush1.msra.mxu0 0.0
        %4138 = vmatprep.subr.mxu0 0.0
        %4139 = vmatpush1.msra.mxu0 0.0
        %4140 = vmatprep.subr.mxu0 0.0
        %4141 = vmatpush1.msra.mxu0 0.0
        %4142 = vmatprep.subr.mxu0 0.0
        %4143 = vmatpush1.msra.mxu0 0.0
        %4144 = vmatprep.subr.mxu0 0.0
        %4145 = vmatpush1.msra.mxu0 0.0
        %4146 = vmatprep.subr.mxu0 0.0
        %4147 = vmatpush1.msra.mxu0 0.0
        %4148 = vmatprep.subr.mxu0 0.0
        %4149 = vmatpush1.msra.mxu0 %v4113
        %4150 = vmatprep.subr.mxu0 0.0
        %4151 = vmatpush2.msra.mxu0 0.0
        %4152 = vmatprep.subr.mxu0 0.0
        %4153 = vmatpush2.msra.mxu0 0.0
        %4154 = vmatprep.subr.mxu0 0.0
        %4155 = vmatpush2.msra.mxu0 0.0
        %4156 = vmatprep.subr.mxu0 0.0
        %4157 = vmatpush2.msra.mxu0 0.0
        %4158 = vmatprep.subr.mxu0 0.0
        %4159 = vmatpush2.msra.mxu0 0.0
        %4160 = vmatprep.subr.mxu0 0.0
        %4161 = vmatpush2.msra.mxu0 0.0
        %4162 = vmatprep.subr.mxu0 0.0
        %4163 = vmatpush2.msra.mxu0 0.0
        %4164 = vmatprep.subr.mxu0 0.0
        %4165 = vmatpush2.msra.mxu0 0.0
        %4166 = vmatprep.subr.mxu0 0.0
        %4167 = vmatpush2.msra.mxu0 0.0
        %4168 = vmatprep.subr.mxu0 0.0
        %4169 = vmatpush2.msra.mxu0 0.0
        %4170 = vmatprep.subr.mxu0 0.0
        %4171 = vmatpush2.msra.mxu0 0.0
        %4172 = vmatprep.subr.mxu0 0.0
        %4173 = vmatpush2.msra.mxu0 0.0
        %4174 = vmatprep.subr.mxu0 0.0
        %4175 = vmatpush2.msra.mxu0 0.0
        %4176 = vmatprep.subr.mxu0 0.0
        %4177 = vmatpush2.msra.mxu0 0.0
        %4178 = vmatprep.subr.mxu0 0.0
        %4179 = vmatpush2.msra.mxu0 0.0
        %4180 = vmatprep.subr.mxu0 0.0
        %4181 = vmatpush2.msra.mxu0 0.0
        %4182 = vmatprep.mubr.f32.mxu0 0.0
        %4183 = vmatmul.mubr.f32.gmra.mxu0 %v4116
        %v4184 = vpop.f32.mrf.mxu0
        %v4185 = vadd.f32 0.0, %v4184
        %v4186 = vpop.f32.mrf.mxu0
        %4187 = vdwg.mxu0
        %4188 = vrot.lane.b32.xlu0 %v3264, 80
        %v4189 = vpop.permute.xlu0 %4188
        %v4192 = vsel %vm1577, %v4111, 0
        %4194 = vmatprep.subr.mxu0 0.0
        %4195 = vmatpush1.msra.mxu0 0.0
        %4196 = vmatprep.subr.mxu0 0.0
        %4197 = vmatpush1.msra.mxu0 0.0
        %4198 = vmatprep.subr.mxu0 0.0
        %4199 = vmatpush1.msra.mxu0 0.0
        %4200 = vmatprep.subr.mxu0 0.0
        %4201 = vmatpush1.msra.mxu0 0.0
        %4202 = vmatprep.subr.mxu0 0.0
        %4203 = vmatpush1.msra.mxu0 0.0
        %4204 = vmatprep.subr.mxu0 0.0
        %4205 = vmatpush1.msra.mxu0 0.0
        %4206 = vmatprep.subr.mxu0 0.0
        %4207 = vmatpush1.msra.mxu0 0.0
        %4208 = vmatprep.subr.mxu0 0.0
        %4209 = vmatpush1.msra.mxu0 0.0
        %4210 = vmatprep.subr.mxu0 0.0
        %4211 = vmatpush1.msra.mxu0 0.0
        %4212 = vmatprep.subr.mxu0 0.0
        %4213 = vmatpush1.msra.mxu0 0.0
        %4214 = vmatprep.subr.mxu0 0.0
        %4215 = vmatpush1.msra.mxu0 0.0
        %4216 = vmatprep.subr.mxu0 0.0
        %4217 = vmatpush1.msra.mxu0 0.0
        %4218 = vmatprep.subr.mxu0 0.0
        %4219 = vmatpush1.msra.mxu0 0.0
        %4220 = vmatprep.subr.mxu0 0.0
        %4221 = vmatpush1.msra.mxu0 0.0
        %4222 = vmatprep.subr.mxu0 0.0
        %4223 = vmatpush1.msra.mxu0 0.0
        %4224 = vmatprep.subr.mxu0 0.0
        %4225 = vmatpush1.msra.mxu0 %v4189
        %4226 = vmatprep.subr.mxu0 0.0
        %4227 = vmatpush2.msra.mxu0 0.0
        %4228 = vmatprep.subr.mxu0 0.0
        %4229 = vmatpush2.msra.mxu0 0.0
        %4230 = vmatprep.subr.mxu0 0.0
        %4231 = vmatpush2.msra.mxu0 0.0
        %4232 = vmatprep.subr.mxu0 0.0
        %4233 = vmatpush2.msra.mxu0 0.0
        %4234 = vmatprep.subr.mxu0 0.0
        %4235 = vmatpush2.msra.mxu0 0.0
        %4236 = vmatprep.subr.mxu0 0.0
        %4237 = vmatpush2.msra.mxu0 0.0
        %4238 = vmatprep.subr.mxu0 0.0
        %4239 = vmatpush2.msra.mxu0 0.0
        %4240 = vmatprep.subr.mxu0 0.0
        %4241 = vmatpush2.msra.mxu0 0.0
        %4242 = vmatprep.subr.mxu0 0.0
        %4243 = vmatpush2.msra.mxu0 0.0
        %4244 = vmatprep.subr.mxu0 0.0
        %4245 = vmatpush2.msra.mxu0 0.0
        %4246 = vmatprep.subr.mxu0 0.0
        %4247 = vmatpush2.msra.mxu0 0.0
        %4248 = vmatprep.subr.mxu0 0.0
        %4249 = vmatpush2.msra.mxu0 0.0
        %4250 = vmatprep.subr.mxu0 0.0
        %4251 = vmatpush2.msra.mxu0 0.0
        %4252 = vmatprep.subr.mxu0 0.0
        %4253 = vmatpush2.msra.mxu0 0.0
        %4254 = vmatprep.subr.mxu0 0.0
        %4255 = vmatpush2.msra.mxu0 0.0
        %4256 = vmatprep.subr.mxu0 0.0
        %4257 = vmatpush2.msra.mxu0 0.0
        %4258 = vmatprep.mubr.f32.mxu0 0.0
        %4259 = vmatmul.mubr.f32.gmra.mxu0 %v4192
        %v4260 = vpop.f32.mrf.mxu0
        %v4261 = vadd.f32 0.0, %v4260
        %v4262 = vpop.f32.mrf.mxu0
        %4263 = vdwg.mxu0
        %4264 = vrot.lane.b32.xlu0 %v3159, 104
        %v4265 = vpop.permute.xlu0 %4264
        %4266 = vrot.lane.b32.xlu0 %v3259, 104
        %v4267 = vpop.permute.xlu0 %4266
        %v4268 = vsel %vm1577, %v4265, 0
        %v4270 = vsel %vm1577, %v4267, 0
        %4272 = vmatprep.subr.mxu0 0.0
        %4273 = vmatpush1.xpose.msra.mxu0 0.0
        %4274 = vmatprep.subr.mxu0 0.0
        %4275 = vmatpush1.xpose.msra.mxu0 0.0
        %4276 = vmatprep.subr.mxu0 0.0
        %4277 = vmatpush1.xpose.msra.mxu0 0.0
        %4278 = vmatprep.subr.mxu0 0.0
        %4279 = vmatpush1.xpose.msra.mxu0 0.0
        %4280 = vmatprep.subr.mxu0 0.0
        %4281 = vmatpush1.xpose.msra.mxu0 0.0
        %4282 = vmatprep.subr.mxu0 0.0
        %4283 = vmatpush1.xpose.msra.mxu0 0.0
        %4284 = vmatprep.subr.mxu0 0.0
        %4285 = vmatpush1.xpose.msra.mxu0 0.0
        %4286 = vmatprep.subr.mxu0 0.0
        %4287 = vmatpush1.xpose.msra.mxu0 0.0
        %4288 = vmatprep.subr.mxu0 0.0
        %4289 = vmatpush1.xpose.msra.mxu0 0.0
        %4290 = vmatprep.subr.mxu0 0.0
        %4291 = vmatpush1.xpose.msra.mxu0 0.0
        %4292 = vmatprep.subr.mxu0 0.0
        %4293 = vmatpush1.xpose.msra.mxu0 0.0
        %4294 = vmatprep.subr.mxu0 0.0
        %4295 = vmatpush1.xpose.msra.mxu0 0.0
        %4296 = vmatprep.subr.mxu0 0.0
        %4297 = vmatpush1.xpose.msra.mxu0 0.0
        %4298 = vmatprep.subr.mxu0 0.0
        %4299 = vmatpush1.xpose.msra.mxu0 0.0
        %4300 = vmatprep.subr.mxu0 0.0
        %4301 = vmatpush1.xpose.msra.mxu0 0.0
        %4302 = vmatprep.subr.mxu0 0.0
        %4303 = vmatpush1.xpose.msra.mxu0 %v4270
        %4304 = vmatprep.subr.mxu0 0.0
        %4305 = vmatpush2.xpose.msra.mxu0 0.0
        %4306 = vmatprep.subr.mxu0 0.0
        %4307 = vmatpush2.xpose.msra.mxu0 0.0
        %4308 = vmatprep.subr.mxu0 0.0
        %4309 = vmatpush2.xpose.msra.mxu0 0.0
        %4310 = vmatprep.subr.mxu0 0.0
        %4311 = vmatpush2.xpose.msra.mxu0 0.0
        %4312 = vmatprep.subr.mxu0 0.0
        %4313 = vmatpush2.xpose.msra.mxu0 0.0
        %4314 = vmatprep.subr.mxu0 0.0
        %4315 = vmatpush2.xpose.msra.mxu0 0.0
        %4316 = vmatprep.subr.mxu0 0.0
        %4317 = vmatpush2.xpose.msra.mxu0 0.0
        %4318 = vmatprep.subr.mxu0 0.0
        %4319 = vmatpush2.xpose.msra.mxu0 0.0
        %4320 = vmatprep.subr.mxu0 0.0
        %4321 = vmatpush2.xpose.msra.mxu0 0.0
        %4322 = vmatprep.subr.mxu0 0.0
        %4323 = vmatpush2.xpose.msra.mxu0 0.0
        %4324 = vmatprep.subr.mxu0 0.0
        %4325 = vmatpush2.xpose.msra.mxu0 0.0
        %4326 = vmatprep.subr.mxu0 0.0
        %4327 = vmatpush2.xpose.msra.mxu0 0.0
        %4328 = vmatprep.subr.mxu0 0.0
        %4329 = vmatpush2.xpose.msra.mxu0 0.0
        %4330 = vmatprep.subr.mxu0 0.0
        %4331 = vmatpush2.xpose.msra.mxu0 0.0
        %4332 = vmatprep.subr.mxu0 0.0
        %4333 = vmatpush2.xpose.msra.mxu0 0.0
        %4334 = vmatprep.subr.mxu0 0.0
        %4335 = vmatpush2.xpose.msra.mxu0 0.0
        %4336 = vmatprep.mubr.f32.mxu0 0.0
        %4337 = vmatmul.mubr.f32.gmra.mxu0 %v4268
        %v4338 = vpop.f32.mrf.mxu0
        %v4339 = vadd.f32 0.0, %v4338
        %v4340 = vpop.f32.mrf.mxu0
        %4341 = vdwg.mxu0
        %4342 = vrot.lane.b32.xlu0 %v3164, 104
        %v4343 = vpop.permute.xlu0 %4342
        %4344 = vrot.lane.b32.xlu0 %v3264, 104
        %v4345 = vpop.permute.xlu0 %4344
        %v4346 = vsel %vm1577, %v4343, 0
        %v4348 = vsel %vm1577, %v4345, 0
        %4350 = vmatprep.subr.mxu0 0.0
        %4351 = vmatpush1.xpose.msra.mxu0 0.0
        %4352 = vmatprep.subr.mxu0 0.0
        %4353 = vmatpush1.xpose.msra.mxu0 0.0
        %4354 = vmatprep.subr.mxu0 0.0
        %4355 = vmatpush1.xpose.msra.mxu0 0.0
        %4356 = vmatprep.subr.mxu0 0.0
        %4357 = vmatpush1.xpose.msra.mxu0 0.0
        %4358 = vmatprep.subr.mxu0 0.0
        %4359 = vmatpush1.xpose.msra.mxu0 0.0
        %4360 = vmatprep.subr.mxu0 0.0
        %4361 = vmatpush1.xpose.msra.mxu0 0.0
        %4362 = vmatprep.subr.mxu0 0.0
        %4363 = vmatpush1.xpose.msra.mxu0 0.0
        %4364 = vmatprep.subr.mxu0 0.0
        %4365 = vmatpush1.xpose.msra.mxu0 0.0
        %4366 = vmatprep.subr.mxu0 0.0
        %4367 = vmatpush1.xpose.msra.mxu0 0.0
        %4368 = vmatprep.subr.mxu0 0.0
        %4369 = vmatpush1.xpose.msra.mxu0 0.0
        %4370 = vmatprep.subr.mxu0 0.0
        %4371 = vmatpush1.xpose.msra.mxu0 0.0
        %4372 = vmatprep.subr.mxu0 0.0
        %4373 = vmatpush1.xpose.msra.mxu0 0.0
        %4374 = vmatprep.subr.mxu0 0.0
        %4375 = vmatpush1.xpose.msra.mxu0 0.0
        %4376 = vmatprep.subr.mxu0 0.0
        %4377 = vmatpush1.xpose.msra.mxu0 0.0
        %4378 = vmatprep.subr.mxu0 0.0
        %4379 = vmatpush1.xpose.msra.mxu0 0.0
        %4380 = vmatprep.subr.mxu0 0.0
        %4381 = vmatpush1.xpose.msra.mxu0 %v4348
        %4382 = vmatprep.subr.mxu0 0.0
        %4383 = vmatpush2.xpose.msra.mxu0 0.0
        %4384 = vmatprep.subr.mxu0 0.0
        %4385 = vmatpush2.xpose.msra.mxu0 0.0
        %4386 = vmatprep.subr.mxu0 0.0
        %4387 = vmatpush2.xpose.msra.mxu0 0.0
        %4388 = vmatprep.subr.mxu0 0.0
        %4389 = vmatpush2.xpose.msra.mxu0 0.0
        %4390 = vmatprep.subr.mxu0 0.0
        %4391 = vmatpush2.xpose.msra.mxu0 0.0
        %4392 = vmatprep.subr.mxu0 0.0
        %4393 = vmatpush2.xpose.msra.mxu0 0.0
        %4394 = vmatprep.subr.mxu0 0.0
        %4395 = vmatpush2.xpose.msra.mxu0 0.0
        %4396 = vmatprep.subr.mxu0 0.0
        %4397 = vmatpush2.xpose.msra.mxu0 0.0
        %4398 = vmatprep.subr.mxu0 0.0
        %4399 = vmatpush2.xpose.msra.mxu0 0.0
        %4400 = vmatprep.subr.mxu0 0.0
        %4401 = vmatpush2.xpose.msra.mxu0 0.0
        %4402 = vmatprep.subr.mxu0 0.0
        %4403 = vmatpush2.xpose.msra.mxu0 0.0
        %4404 = vmatprep.subr.mxu0 0.0
        %4405 = vmatpush2.xpose.msra.mxu0 0.0
        %4406 = vmatprep.subr.mxu0 0.0
        %4407 = vmatpush2.xpose.msra.mxu0 0.0
        %4408 = vmatprep.subr.mxu0 0.0
        %4409 = vmatpush2.xpose.msra.mxu0 0.0
        %4410 = vmatprep.subr.mxu0 0.0
        %4411 = vmatpush2.xpose.msra.mxu0 0.0
        %4412 = vmatprep.subr.mxu0 0.0
        %4413 = vmatpush2.xpose.msra.mxu0 0.0
        %4414 = vmatprep.mubr.f32.mxu0 0.0
        %4415 = vmatmul.mubr.f32.gmra.mxu0 %v4346
        %v4416 = vpop.f32.mrf.mxu0
        %v4417 = vadd.f32 0.0, %v4416
        %v4418 = vpop.f32.mrf.mxu0
        %4419 = vdwg.mxu0
        %v4420 = vmul.f32 %v4339, 0.35355338
        %v4421 = vmul.f32 %v4417, 0.35355338
        %v4422 = vsel %vm1577, %v4420, -inf
        %4423 = vmax.xlane.f32.xlu0 %v4422
        %v4424 = vpop.xlane.xlu0 %4423
        %v4425 = vsel %vm1577, %v4421, -inf
        %4426 = vmax.xlane.f32.xlu0 %v4425
        %v4427 = vpop.xlane.xlu0 %4426
        %v4428 = vsub.f32 %v4420, %v4424
        %v4429 = vsub.f32 %v4421, %v4427
        %v4430 = vmul.f32 %v4428, 1.442695
        %v4431 = vpow.pop %v4430
        %v4432 = vmul.f32 %v4429, 1.442695
        %v4433 = vpow.pop %v4432
        %v4434 = vsel %vm1577, %v4431, 0.0
        %4435 = vadd.xlane.f32.xlu0 %v4434
        %v4436 = vpop.xlane.xlu0 %4435
        %v4437 = vsel %vm1577, %v4433, 0.0
        %4438 = vadd.xlane.f32.xlu0 %v4437
        %v4439 = vpop.xlane.xlu0 %4438
        %v4440 = vrcp.pop %v4436
        %v4441 = vrcp.pop %v4439
        %v4442 = vmul.f32 %v4431, %v4440
        %v4443 = vmul.f32 %v4433, %v4441
        %4444 = vrot.lane.b32.xlu0 %v3259, 72
        %v4445 = vpop.permute.xlu0 %4444
        %v4448 = vsel %vm1577, %v4442, 0
        %4450 = vmatprep.subr.mxu0 0.0
        %4451 = vmatpush1.msra.mxu0 0.0
        %4452 = vmatprep.subr.mxu0 0.0
        %4453 = vmatpush1.msra.mxu0 0.0
        %4454 = vmatprep.subr.mxu0 0.0
        %4455 = vmatpush1.msra.mxu0 0.0
        %4456 = vmatprep.subr.mxu0 0.0
        %4457 = vmatpush1.msra.mxu0 0.0
        %4458 = vmatprep.subr.mxu0 0.0
        %4459 = vmatpush1.msra.mxu0 0.0
        %4460 = vmatprep.subr.mxu0 0.0
        %4461 = vmatpush1.msra.mxu0 0.0
        %4462 = vmatprep.subr.mxu0 0.0
        %4463 = vmatpush1.msra.mxu0 0.0
        %4464 = vmatprep.subr.mxu0 0.0
        %4465 = vmatpush1.msra.mxu0 0.0
        %4466 = vmatprep.subr.mxu0 0.0
        %4467 = vmatpush1.msra.mxu0 0.0
        %4468 = vmatprep.subr.mxu0 0.0
        %4469 = vmatpush1.msra.mxu0 0.0
        %4470 = vmatprep.subr.mxu0 0.0
        %4471 = vmatpush1.msra.mxu0 0.0
        %4472 = vmatprep.subr.mxu0 0.0
        %4473 = vmatpush1.msra.mxu0 0.0
        %4474 = vmatprep.subr.mxu0 0.0
        %4475 = vmatpush1.msra.mxu0 0.0
        %4476 = vmatprep.subr.mxu0 0.0
        %4477 = vmatpush1.msra.mxu0 0.0
        %4478 = vmatprep.subr.mxu0 0.0
        %4479 = vmatpush1.msra.mxu0 0.0
        %4480 = vmatprep.subr.mxu0 0.0
        %4481 = vmatpush1.msra.mxu0 %v4445
        %4482 = vmatprep.subr.mxu0 0.0
        %4483 = vmatpush2.msra.mxu0 0.0
        %4484 = vmatprep.subr.mxu0 0.0
        %4485 = vmatpush2.msra.mxu0 0.0
        %4486 = vmatprep.subr.mxu0 0.0
        %4487 = vmatpush2.msra.mxu0 0.0
        %4488 = vmatprep.subr.mxu0 0.0
        %4489 = vmatpush2.msra.mxu0 0.0
        %4490 = vmatprep.subr.mxu0 0.0
        %4491 = vmatpush2.msra.mxu0 0.0
        %4492 = vmatprep.subr.mxu0 0.0
        %4493 = vmatpush2.msra.mxu0 0.0
        %4494 = vmatprep.subr.mxu0 0.0
        %4495 = vmatpush2.msra.mxu0 0.0
        %4496 = vmatprep.subr.mxu0 0.0
        %4497 = vmatpush2.msra.mxu0 0.0
        %4498 = vmatprep.subr.mxu0 0.0
        %4499 = vmatpush2.msra.mxu0 0.0
        %4500 = vmatprep.subr.mxu0 0.0
        %4501 = vmatpush2.msra.mxu0 0.0
        %4502 = vmatprep.subr.mxu0 0.0
        %4503 = vmatpush2.msra.mxu0 0.0
        %4504 = vmatprep.subr.mxu0 0.0
        %4505 = vmatpush2.msra.mxu0 0.0
        %4506 = vmatprep.subr.mxu0 0.0
        %4507 = vmatpush2.msra.mxu0 0.0
        %4508 = vmatprep.subr.mxu0 0.0
        %4509 = vmatpush2.msra.mxu0 0.0
        %4510 = vmatprep.subr.mxu0 0.0
        %4511 = vmatpush2.msra.mxu0 0.0
        %4512 = vmatprep.subr.mxu0 0.0
        %4513 = vmatpush2.msra.mxu0 0.0
        %4514 = vmatprep.mubr.f32.mxu0 0.0
        %4515 = vmatmul.mubr.f32.gmra.mxu0 %v4448
        %v4516 = vpop.f32.mrf.mxu0
        %v4517 = vadd.f32 0.0, %v4516
        %v4518 = vpop.f32.mrf.mxu0
        %4519 = vdwg.mxu0
        %4520 = vrot.lane.b32.xlu0 %v3264, 72
        %v4521 = vpop.permute.xlu0 %4520
        %v4524 = vsel %vm1577, %v4443, 0
        %4526 = vmatprep.subr.mxu0 0.0
        %4527 = vmatpush1.msra.mxu0 0.0
        %4528 = vmatprep.subr.mxu0 0.0
        %4529 = vmatpush1.msra.mxu0 0.0
        %4530 = vmatprep.subr.mxu0 0.0
        %4531 = vmatpush1.msra.mxu0 0.0
        %4532 = vmatprep.subr.mxu0 0.0
        %4533 = vmatpush1.msra.mxu0 0.0
        %4534 = vmatprep.subr.mxu0 0.0
        %4535 = vmatpush1.msra.mxu0 0.0
        %4536 = vmatprep.subr.mxu0 0.0
        %4537 = vmatpush1.msra.mxu0 0.0
        %4538 = vmatprep.subr.mxu0 0.0
        %4539 = vmatpush1.msra.mxu0 0.0
        %4540 = vmatprep.subr.mxu0 0.0
        %4541 = vmatpush1.msra.mxu0 0.0
        %4542 = vmatprep.subr.mxu0 0.0
        %4543 = vmatpush1.msra.mxu0 0.0
        %4544 = vmatprep.subr.mxu0 0.0
        %4545 = vmatpush1.msra.mxu0 0.0
        %4546 = vmatprep.subr.mxu0 0.0
        %4547 = vmatpush1.msra.mxu0 0.0
        %4548 = vmatprep.subr.mxu0 0.0
        %4549 = vmatpush1.msra.mxu0 0.0
        %4550 = vmatprep.subr.mxu0 0.0
        %4551 = vmatpush1.msra.mxu0 0.0
        %4552 = vmatprep.subr.mxu0 0.0
        %4553 = vmatpush1.msra.mxu0 0.0
        %4554 = vmatprep.subr.mxu0 0.0
        %4555 = vmatpush1.msra.mxu0 0.0
        %4556 = vmatprep.subr.mxu0 0.0
        %4557 = vmatpush1.msra.mxu0 %v4521
        %4558 = vmatprep.subr.mxu0 0.0
        %4559 = vmatpush2.msra.mxu0 0.0
        %4560 = vmatprep.subr.mxu0 0.0
        %4561 = vmatpush2.msra.mxu0 0.0
        %4562 = vmatprep.subr.mxu0 0.0
        %4563 = vmatpush2.msra.mxu0 0.0
        %4564 = vmatprep.subr.mxu0 0.0
        %4565 = vmatpush2.msra.mxu0 0.0
        %4566 = vmatprep.subr.mxu0 0.0
        %4567 = vmatpush2.msra.mxu0 0.0
        %4568 = vmatprep.subr.mxu0 0.0
        %4569 = vmatpush2.msra.mxu0 0.0
        %4570 = vmatprep.subr.mxu0 0.0
        %4571 = vmatpush2.msra.mxu0 0.0
        %4572 = vmatprep.subr.mxu0 0.0
        %4573 = vmatpush2.msra.mxu0 0.0
        %4574 = vmatprep.subr.mxu0 0.0
        %4575 = vmatpush2.msra.mxu0 0.0
        %4576 = vmatprep.subr.mxu0 0.0
        %4577 = vmatpush2.msra.mxu0 0.0
        %4578 = vmatprep.subr.mxu0 0.0
        %4579 = vmatpush2.msra.mxu0 0.0
        %4580 = vmatprep.subr.mxu0 0.0
        %4581 = vmatpush2.msra.mxu0 0.0
        %4582 = vmatprep.subr.mxu0 0.0
        %4583 = vmatpush2.msra.mxu0 0.0
        %4584 = vmatprep.subr.mxu0 0.0
        %4585 = vmatpush2.msra.mxu0 0.0
        %4586 = vmatprep.subr.mxu0 0.0
        %4587 = vmatpush2.msra.mxu0 0.0
        %4588 = vmatprep.subr.mxu0 0.0
        %4589 = vmatpush2.msra.mxu0 0.0
        %4590 = vmatprep.mubr.f32.mxu0 0.0
        %4591 = vmatmul.mubr.f32.gmra.mxu0 %v4524
        %v4592 = vpop.f32.mrf.mxu0
        %v4593 = vadd.f32 0.0, %v4592
        %v4594 = vpop.f32.mrf.mxu0
        %4595 = vdwg.mxu0
        %4598 = vrot.lane.b32.xlu0 %v3853, 8
        %v4599 = vpop.permute.xlu0 %4598
        %4600 = vrot.lane.b32.xlu0 %v3929, 8
        %v4601 = vpop.permute.xlu0 %4600
        %4606 = vrot.lane.b32.xlu0 %v4185, 16
        %v4607 = vpop.permute.xlu0 %4606
        %4608 = vrot.lane.b32.xlu0 %v4261, 16
        %v4609 = vpop.permute.xlu0 %4608
        %4614 = vrot.lane.b32.xlu0 %v4517, 24
        %v4615 = vpop.permute.xlu0 %4614
        %4616 = vrot.lane.b32.xlu0 %v4593, 24
        %v4617 = vpop.permute.xlu0 %4616
        %v4620 = vsel %vm1577, %v3521, %v4599
        %v4621 = vsel %vm1577, %v3597, %v4601
        %v4622 = vsel %vm2935, %v4620, %v4607
        %v4623 = vsel %vm2935, %v4621, %v4609
        %v4624 = vsel %vm2938, %v4622, %v4615
        %v4625 = vsel %vm2938, %v4623, %v4617
        %v4627 = vlaneseq
        %v4628 = vshrl.u32 %v4627, 7
        %v4629 = vsub.s32 0, %v4628
        %v4630 = vrot.slane %v3271, %v4629
        %v4633 = vsel %vm1487, %v4624, 0
        %v4636 = vsel %vm1487, %v4625, 0
        %4638 = vmatprep.subr.mxu0 0.0
        %4639 = vmatpush1.msra.mxu0 0.0
        %4640 = vmatprep.subr.mxu0 0.0
        %4641 = vmatpush1.msra.mxu0 0.0
        %4642 = vmatprep.subr.mxu0 0.0
        %4643 = vmatpush1.msra.mxu0 0.0
        %4644 = vmatprep.subr.mxu0 0.0
        %4645 = vmatpush1.msra.mxu0 0.0
        %4646 = vmatprep.subr.mxu0 0.0
        %4647 = vmatpush1.msra.mxu0 0.0
        %4648 = vmatprep.subr.mxu0 0.0
        %4649 = vmatpush1.msra.mxu0 0.0
        %4650 = vmatprep.subr.mxu0 0.0
        %4651 = vmatpush1.msra.mxu0 0.0
        %4652 = vmatprep.subr.mxu0 0.0
        %4653 = vmatpush1.msra.mxu0 0.0
        %4654 = vmatprep.subr.mxu0 0.0
        %4655 = vmatpush1.msra.mxu0 0.0
        %4656 = vmatprep.subr.mxu0 0.0
        %4657 = vmatpush1.msra.mxu0 0.0
        %4658 = vmatprep.subr.mxu0 0.0
        %4659 = vmatpush1.msra.mxu0 0.0
        %4660 = vmatprep.subr.mxu0 0.0
        %4661 = vmatpush1.msra.mxu0 0.0
        %4662 = vmatprep.subr.mxu0 0.0
        %4663 = vmatpush1.msra.mxu0 %v3270
        %4664 = vmatprep.subr.mxu0 0.0
        %4665 = vmatpush1.msra.mxu0 %v3269
        %4666 = vmatprep.subr.mxu0 0.0
        %4667 = vmatpush1.msra.mxu0 %v3268
        %4668 = vmatprep.subr.mxu0 0.0
        %4669 = vmatpush1.msra.mxu0 %v3267
        %4670 = vmatprep.subr.mxu0 0.0
        %4671 = vmatpush2.msra.mxu0 0.0
        %4672 = vmatprep.subr.mxu0 0.0
        %4673 = vmatpush2.msra.mxu0 0.0
        %4674 = vmatprep.subr.mxu0 0.0
        %4675 = vmatpush2.msra.mxu0 0.0
        %4676 = vmatprep.subr.mxu0 0.0
        %4677 = vmatpush2.msra.mxu0 0.0
        %4678 = vmatprep.subr.mxu0 0.0
        %4679 = vmatpush2.msra.mxu0 0.0
        %4680 = vmatprep.subr.mxu0 0.0
        %4681 = vmatpush2.msra.mxu0 0.0
        %4682 = vmatprep.subr.mxu0 0.0
        %4683 = vmatpush2.msra.mxu0 0.0
        %4684 = vmatprep.subr.mxu0 0.0
        %4685 = vmatpush2.msra.mxu0 0.0
        %4686 = vmatprep.subr.mxu0 0.0
        %4687 = vmatpush2.msra.mxu0 0.0
        %4688 = vmatprep.subr.mxu0 0.0
        %4689 = vmatpush2.msra.mxu0 0.0
        %4690 = vmatprep.subr.mxu0 0.0
        %4691 = vmatpush2.msra.mxu0 0.0
        %4692 = vmatprep.subr.mxu0 0.0
        %4693 = vmatpush2.msra.mxu0 0.0
        %4694 = vmatprep.subr.mxu0 0.0
        %4695 = vmatpush2.msra.mxu0 0.0
        %4696 = vmatprep.subr.mxu0 0.0
        %4697 = vmatpush2.msra.mxu0 0.0
        %4698 = vmatprep.subr.mxu0 0.0
        %4699 = vmatpush2.msra.mxu0 0.0
        %4700 = vmatprep.subr.mxu0 0.0
        %4701 = vmatpush2.msra.mxu0 0.0
        %4702 = vmatprep.mubr.f32.mxu0 0.0
        %4703 = vmatmul.mubr.f32.gmra.mxu0 %v4633
        %v4704 = vpop.f32.mrf.mxu0
        %v4705 = vadd.f32 %v4630, %v4704
        %v4706 = vpop.f32.mrf.mxu0
        %4707 = vmatprep.mubr.f32.mxu0 0.0
        %4708 = vmatmul.mubr.f32.gmra.mxu0 %v4636
        %v4709 = vpop.f32.mrf.mxu0
        %v4710 = vadd.f32 %v4630, %v4709
        %v4711 = vpop.f32.mrf.mxu0
        %4712 = vdwg.mxu0
        %v4713 = vadd.f32 %v3073, %v4705
        %v4714 = vadd.f32 %v3074, %v4710
        %v4715 = vld [vmem:[%s1303] sm:$0x1]
        %v4716 = vld [vmem:[%s1310] sm:$0x1]
        %v4717 = vsel %vm1487, %v4713, 0.0
        %4718 = vadd.xlane.f32.xlu0 %v4717
        %v4719 = vpop.xlane.xlu0 %4718
        %v4720 = vsel %vm1487, %v4714, 0.0
        %4721 = vadd.xlane.f32.xlu0 %v4720
        %v4722 = vpop.xlane.xlu0 %4721
        %v4723 = vmul.f32 %v4719, %v3038
        %v4724 = vmul.f32 %v4722, %v3038
        %v4725 = vsub.f32 %v4713, %v4723
        %v4726 = vsub.f32 %v4714, %v4724
        %v4727 = vmul.f32 %v4725, %v4725
        %v4728 = vmul.f32 %v4726, %v4726
        %v4729 = vsel %vm1487, %v4727, 0.0
        %4730 = vadd.xlane.f32.xlu0 %v4729
        %v4731 = vpop.xlane.xlu0 %4730
        %v4732 = vsel %vm1487, %v4728, 0.0
        %4733 = vadd.xlane.f32.xlu0 %v4732
        %v4734 = vpop.xlane.xlu0 %4733
        %v4735 = vmul.f32 %v4731, %v3038
        %v4736 = vmul.f32 %v4734, %v3038
        %v4737 = vadd.f32 %v4735, 1e-05
        %v4738 = vadd.f32 %v4736, 1e-05
        %v4739 = vrsqrt.pop %v4737
        %v4740 = vrsqrt.pop %v4738
        %v4741 = vmul.f32 %v4725, %v4739
        %v4742 = vmul.f32 %v4726, %v4740
        %v4744 = vlaneseq
        %v4745 = vshrl.u32 %v4744, 7
        %v4746 = vsub.s32 0, %v4745
        %v4747 = vrot.slane %v4715, %v4746
        %v4749 = vmul.f32 %v4741, %v4747
        %v4750 = vmul.f32 %v4742, %v4747
        %v4752 = vlaneseq
        %v4753 = vshrl.u32 %v4752, 7
        %v4754 = vsub.s32 0, %v4753
        %v4755 = vrot.slane %v4716, %v4754
        %v4757 = vadd.f32 %v4749, %v4755
        %v4758 = vadd.f32 %v4750, %v4755
        %v4759 = vld [vmem:[%s1319] sm:$0xff]
        %v4760 = vld [vmem:[%s1319 + $0x8] sm:$0xff]
        %v4761 = vld [vmem:[%s1319 + $0x10] sm:$0xff]
        %v4762 = vld [vmem:[%s1319 + $0x18] sm:$0xff]
        %v4763 = vld [vmem:[%s1326] sm:$0x1]
        %v4765 = vlaneseq
        %v4766 = vshrl.u32 %v4765, 7
        %v4767 = vsub.s32 0, %v4766
        %v4768 = vrot.slane %v4763, %v4767
        %v4771 = vsel %vm1487, %v4757, 0
        %v4774 = vsel %vm1487, %v4758, 0
        %4776 = vmatprep.subr.mxu0 0.0
        %4777 = vmatpush1.msra.mxu0 0.0
        %4778 = vmatprep.subr.mxu0 0.0
        %4779 = vmatpush1.msra.mxu0 0.0
        %4780 = vmatprep.subr.mxu0 0.0
        %4781 = vmatpush1.msra.mxu0 0.0
        %4782 = vmatprep.subr.mxu0 0.0
        %4783 = vmatpush1.msra.mxu0 0.0
        %4784 = vmatprep.subr.mxu0 0.0
        %4785 = vmatpush1.msra.mxu0 0.0
        %4786 = vmatprep.subr.mxu0 0.0
        %4787 = vmatpush1.msra.mxu0 0.0
        %4788 = vmatprep.subr.mxu0 0.0
        %4789 = vmatpush1.msra.mxu0 0.0
        %4790 = vmatprep.subr.mxu0 0.0
        %4791 = vmatpush1.msra.mxu0 0.0
        %4792 = vmatprep.subr.mxu0 0.0
        %4793 = vmatpush1.msra.mxu0 0.0
        %4794 = vmatprep.subr.mxu0 0.0
        %4795 = vmatpush1.msra.mxu0 0.0
        %4796 = vmatprep.subr.mxu0 0.0
        %4797 = vmatpush1.msra.mxu0 0.0
        %4798 = vmatprep.subr.mxu0 0.0
        %4799 = vmatpush1.msra.mxu0 0.0
        %4800 = vmatprep.subr.mxu0 0.0
        %4801 = vmatpush1.msra.mxu0 %v4762
        %4802 = vmatprep.subr.mxu0 0.0
        %4803 = vmatpush1.msra.mxu0 %v4761
        %4804 = vmatprep.subr.mxu0 0.0
        %4805 = vmatpush1.msra.mxu0 %v4760
        %4806 = vmatprep.subr.mxu0 0.0
        %4807 = vmatpush1.msra.mxu0 %v4759
        %4808 = vmatprep.subr.mxu0 0.0
        %4809 = vmatpush2.msra.mxu0 0.0
        %4810 = vmatprep.subr.mxu0 0.0
        %4811 = vmatpush2.msra.mxu0 0.0
        %4812 = vmatprep.subr.mxu0 0.0
        %4813 = vmatpush2.msra.mxu0 0.0
        %4814 = vmatprep.subr.mxu0 0.0
        %4815 = vmatpush2.msra.mxu0 0.0
        %4816 = vmatprep.subr.mxu0 0.0
        %4817 = vmatpush2.msra.mxu0 0.0
        %4818 = vmatprep.subr.mxu0 0.0
        %4819 = vmatpush2.msra.mxu0 0.0
        %4820 = vmatprep.subr.mxu0 0.0
        %4821 = vmatpush2.msra.mxu0 0.0
        %4822 = vmatprep.subr.mxu0 0.0
        %4823 = vmatpush2.msra.mxu0 0.0
        %4824 = vmatprep.subr.mxu0 0.0
        %4825 = vmatpush2.msra.mxu0 0.0
        %4826 = vmatprep.subr.mxu0 0.0
        %4827 = vmatpush2.msra.mxu0 0.0
        %4828 = vmatprep.subr.mxu0 0.0
        %4829 = vmatpush2.msra.mxu0 0.0
        %4830 = vmatprep.subr.mxu0 0.0
        %4831 = vmatpush2.msra.mxu0 0.0
        %4832 = vmatprep.subr.mxu0 0.0
        %4833 = vmatpush2.msra.mxu0 0.0
        %4834 = vmatprep.subr.mxu0 0.0
        %4835 = vmatpush2.msra.mxu0 0.0
        %4836 = vmatprep.subr.mxu0 0.0
        %4837 = vmatpush2.msra.mxu0 0.0
        %4838 = vmatprep.subr.mxu0 0.0
        %4839 = vmatpush2.msra.mxu0 0.0
        %4840 = vmatprep.mubr.f32.mxu0 0.0
        %4841 = vmatmul.mubr.f32.gmra.mxu0 %v4771
        %v4842 = vpop.f32.mrf.mxu0
        %v4843 = vadd.f32 %v4768, %v4842
        %v4844 = vpop.f32.mrf.mxu0
        %4845 = vmatprep.mubr.f32.mxu0 0.0
        %4846 = vmatmul.mubr.f32.gmra.mxu0 %v4774
        %v4847 = vpop.f32.mrf.mxu0
        %v4848 = vadd.f32 %v4768, %v4847
        %v4849 = vpop.f32.mrf.mxu0
        %4850 = vdwg.mxu0
        %v4851 = vmax.f32 %v4843, 0.0
        %v4852 = vmax.f32 %v4848, 0.0
        %v4853 = vld [vmem:[%s1335] sm:$0xff]
        %v4854 = vld [vmem:[%s1335 + $0x8] sm:$0xff]
        %v4855 = vld [vmem:[%s1335 + $0x10] sm:$0xff]
        %v4856 = vld [vmem:[%s1335 + $0x18] sm:$0xff]
        %v4857 = vld [vmem:[%s1335 + $0x20] sm:$0xff]
        %v4858 = vld [vmem:[%s1335 + $0x28] sm:$0xff]
        %v4859 = vld [vmem:[%s1335 + $0x30] sm:$0xff]
        %v4860 = vld [vmem:[%s1335 + $0x38] sm:$0xff]
        %v4861 = vld [vmem:[%s1342] sm:$0x1]
        %v4863 = vlaneseq
        %v4864 = vshrl.u32 %v4863, 7
        %v4865 = vsub.s32 0, %v4864
        %v4866 = vrot.slane %v4861, %v4865
        %vm4868 = vcmask 523264
        %v4870 = vsel %vm4868, %v4851, 0
        %v4873 = vsel %vm4868, %v4852, 0
        %4875 = vmatprep.subr.mxu0 0.0
        %4876 = vmatpush1.msra.mxu0 0.0
        %4877 = vmatprep.subr.mxu0 0.0
        %4878 = vmatpush1.msra.mxu0 0.0
        %4879 = vmatprep.subr.mxu0 0.0
        %4880 = vmatpush1.msra.mxu0 0.0
        %4881 = vmatprep.subr.mxu0 0.0
        %4882 = vmatpush1.msra.mxu0 0.0
        %4883 = vmatprep.subr.mxu0 0.0
        %4884 = vmatpush1.msra.mxu0 0.0
        %4885 = vmatprep.subr.mxu0 0.0
        %4886 = vmatpush1.msra.mxu0 0.0
        %4887 = vmatprep.subr.mxu0 0.0
        %4888 = vmatpush1.msra.mxu0 0.0
        %4889 = vmatprep.subr.mxu0 0.0
        %4890 = vmatpush1.msra.mxu0 0.0
        %4891 = vmatprep.subr.mxu0 0.0
        %4892 = vmatpush1.msra.mxu0 %v4860
        %4893 = vmatprep.subr.mxu0 0.0
        %4894 = vmatpush1.msra.mxu0 %v4859
        %4895 = vmatprep.subr.mxu0 0.0
        %4896 = vmatpush1.msra.mxu0 %v4858
        %4897 = vmatprep.subr.mxu0 0.0
        %4898 = vmatpush1.msra.mxu0 %v4857
        %4899 = vmatprep.subr.mxu0 0.0
        %4900 = vmatpush1.msra.mxu0 %v4856
        %4901 = vmatprep.subr.mxu0 0.0
        %4902 = vmatpush1.msra.mxu0 %v4855
        %4903 = vmatprep.subr.mxu0 0.0
        %4904 = vmatpush1.msra.mxu0 %v4854
        %4905 = vmatprep.subr.mxu0 0.0
        %4906 = vmatpush1.msra.mxu0 %v4853
        %4907 = vmatprep.subr.mxu0 0.0
        %4908 = vmatpush2.msra.mxu0 0.0
        %4909 = vmatprep.subr.mxu0 0.0
        %4910 = vmatpush2.msra.mxu0 0.0
        %4911 = vmatprep.subr.mxu0 0.0
        %4912 = vmatpush2.msra.mxu0 0.0
        %4913 = vmatprep.subr.mxu0 0.0
        %4914 = vmatpush2.msra.mxu0 0.0
        %4915 = vmatprep.subr.mxu0 0.0
        %4916 = vmatpush2.msra.mxu0 0.0
        %4917 = vmatprep.subr.mxu0 0.0
        %4918 = vmatpush2.msra.mxu0 0.0
        %4919 = vmatprep.subr.mxu0 0.0
        %4920 = vmatpush2.msra.mxu0 0.0
        %4921 = vmatprep.subr.mxu0 0.0
        %4922 = vmatpush2.msra.mxu0 0.0
        %4923 = vmatprep.subr.mxu0 0.0
        %4924 = vmatpush2.msra.mxu0 0.0
        %4925 = vmatprep.subr.mxu0 0.0
        %4926 = vmatpush2.msra.mxu0 0.0
        %4927 = vmatprep.subr.mxu0 0.0
        %4928 = vmatpush2.msra.mxu0 0.0
        %4929 = vmatprep.subr.mxu0 0.0
        %4930 = vmatpush2.msra.mxu0 0.0
        %4931 = vmatprep.subr.mxu0 0.0
        %4932 = vmatpush2.msra.mxu0 0.0
        %4933 = vmatprep.subr.mxu0 0.0
        %4934 = vmatpush2.msra.mxu0 0.0
        %4935 = vmatprep.subr.mxu0 0.0
        %4936 = vmatpush2.msra.mxu0 0.0
        %4937 = vmatprep.subr.mxu0 0.0
        %4938 = vmatpush2.msra.mxu0 0.0
        %4939 = vmatprep.mubr.f32.mxu0 0.0
        %4940 = vmatmul.mubr.f32.gmra.mxu0 %v4870
        %v4941 = vpop.f32.mrf.mxu0
        %v4942 = vadd.f32 %v4866, %v4941
        %v4943 = vpop.f32.mrf.mxu0
        %4944 = vmatprep.mubr.f32.mxu0 0.0
        %4945 = vmatmul.mubr.f32.gmra.mxu0 %v4873
        %v4946 = vpop.f32.mrf.mxu0
        %v4947 = vadd.f32 %v4866, %v4946
        %v4948 = vpop.f32.mrf.mxu0
        %4949 = vdwg.mxu0
        %v4950 = vadd.f32 %v4757, %v4942
        %v4951 = vadd.f32 %v4758, %v4947
        %v4952 = vld [vmem:[%s1349] sm:$0x1]
        %v4953 = vld [vmem:[%s1356] sm:$0x1]
        %v4954 = vsel %vm1487, %v4950, 0.0
        %4955 = vadd.xlane.f32.xlu0 %v4954
        %v4956 = vpop.xlane.xlu0 %4955
        %v4957 = vsel %vm1487, %v4951, 0.0
        %4958 = vadd.xlane.f32.xlu0 %v4957
        %v4959 = vpop.xlane.xlu0 %4958
        %v4960 = vmul.f32 %v4956, %v3038
        %v4961 = vmul.f32 %v4959, %v3038
        %v4962 = vsub.f32 %v4950, %v4960
        %v4963 = vsub.f32 %v4951, %v4961
        %v4964 = vmul.f32 %v4962, %v4962
        %v4965 = vmul.f32 %v4963, %v4963
        %v4966 = vsel %vm1487, %v4964, 0.0
        %4967 = vadd.xlane.f32.xlu0 %v4966
        %v4968 = vpop.xlane.xlu0 %4967
        %v4969 = vsel %vm1487, %v4965, 0.0
        %4970 = vadd.xlane.f32.xlu0 %v4969
        %v4971 = vpop.xlane.xlu0 %4970
        %v4972 = vmul.f32 %v4968, %v3038
        %v4973 = vmul.f32 %v4971, %v3038
        %v4974 = vadd.f32 %v4972, 1e-05
        %v4975 = vadd.f32 %v4973, 1e-05
        %v4976 = vrsqrt.pop %v4974
        %v4977 = vrsqrt.pop %v4975
        %v4978 = vmul.f32 %v4962, %v4976
        %v4979 = vmul.f32 %v4963, %v4977
        %v4981 = vlaneseq
        %v4982 = vshrl.u32 %v4981, 7
        %v4983 = vsub.s32 0, %v4982
        %v4984 = vrot.slane %v4952, %v4983
        %v4986 = vmul.f32 %v4978, %v4984
        %v4987 = vmul.f32 %v4979, %v4984
        %v4989 = vlaneseq
        %v4990 = vshrl.u32 %v4989, 7
        %v4991 = vsub.s32 0, %v4990
        %v4992 = vrot.slane %v4953, %v4991
        %v4994 = vadd.f32 %v4986, %v4992
        %v4995 = vadd.f32 %v4987, %v4992
        %4996 = vst.msk [vmem:[#allocation2] sm:$0xff] %vm1487, %v4994
        %4997 = vst.msk [vmem:[#allocation2 + $0x8] sm:$0xff] %vm1487, %v4995
        %p4998 = scmp.eq.s32.totalorder %s43, 1
        // Predicated region
        $region133: #{smtp_forward.3} parent=123 // pred_check
          %p4999 = pneg %p4998
        $region134: #{smtp_forward.3} parent=123 // pred_check_branch
          %5001 = sbr.rel (%p4999) target = $region136
        $region135: #{smtp_forward.3} parent=123 // pred_region
          %v5002 = vld [vmem:[%s1361] sm:$0xff]
          %v5003 = vld [vmem:[%s1361 + $0x8] sm:$0xff]
          %v5004 = vld [vmem:[%s1361 + $0x10] sm:$0xff]
          %v5005 = vld [vmem:[%s1361 + $0x18] sm:$0xff]
          %v5006 = vld [vmem:[%s1364] sm:$0x1]
          %v5008 = vlaneseq
          %v5009 = vshrl.u32 %v5008, 7
          %v5010 = vsub.s32 0, %v5009
          %v5011 = vrot.slane %v5006, %v5010
          %v5014 = vsel %vm1487, %v4994, 0
          %v5017 = vsel %vm1487, %v4995, 0
          %5019 = vmatprep.subr.mxu0 0.0
          %5020 = vmatpush1.msra.mxu0 0.0
          %5021 = vmatprep.subr.mxu0 0.0
          %5022 = vmatpush1.msra.mxu0 0.0
          %5023 = vmatprep.subr.mxu0 0.0
          %5024 = vmatpush1.msra.mxu0 0.0
          %5025 = vmatprep.subr.mxu0 0.0
          %5026 = vmatpush1.msra.mxu0 0.0
          %5027 = vmatprep.subr.mxu0 0.0
          %5028 = vmatpush1.msra.mxu0 0.0
          %5029 = vmatprep.subr.mxu0 0.0
          %5030 = vmatpush1.msra.mxu0 0.0
          %5031 = vmatprep.subr.mxu0 0.0
          %5032 = vmatpush1.msra.mxu0 0.0
          %5033 = vmatprep.subr.mxu0 0.0
          %5034 = vmatpush1.msra.mxu0 0.0
          %5035 = vmatprep.subr.mxu0 0.0
          %5036 = vmatpush1.msra.mxu0 0.0
          %5037 = vmatprep.subr.mxu0 0.0
          %5038 = vmatpush1.msra.mxu0 0.0
          %5039 = vmatprep.subr.mxu0 0.0
          %5040 = vmatpush1.msra.mxu0 0.0
          %5041 = vmatprep.subr.mxu0 0.0
          %5042 = vmatpush1.msra.mxu0 0.0
          %5043 = vmatprep.subr.mxu0 0.0
          %5044 = vmatpush1.msra.mxu0 %v5005
          %5045 = vmatprep.subr.mxu0 0.0
          %5046 = vmatpush1.msra.mxu0 %v5004
          %5047 = vmatprep.subr.mxu0 0.0
          %5048 = vmatpush1.msra.mxu0 %v5003
          %5049 = vmatprep.subr.mxu0 0.0
          %5050 = vmatpush1.msra.mxu0 %v5002
          %5051 = vmatprep.subr.mxu0 0.0
          %5052 = vmatpush2.msra.mxu0 0.0
          %5053 = vmatprep.subr.mxu0 0.0
          %5054 = vmatpush2.msra.mxu0 0.0
          %5055 = vmatprep.subr.mxu0 0.0
          %5056 = vmatpush2.msra.mxu0 0.0
          %5057 = vmatprep.subr.mxu0 0.0
          %5058 = vmatpush2.msra.mxu0 0.0
          %5059 = vmatprep.subr.mxu0 0.0
          %5060 = vmatpush2.msra.mxu0 0.0
          %5061 = vmatprep.subr.mxu0 0.0
          %5062 = vmatpush2.msra.mxu0 0.0
          %5063 = vmatprep.subr.mxu0 0.0
          %5064 = vmatpush2.msra.mxu0 0.0
          %5065 = vmatprep.subr.mxu0 0.0
          %5066 = vmatpush2.msra.mxu0 0.0
          %5067 = vmatprep.subr.mxu0 0.0
          %5068 = vmatpush2.msra.mxu0 0.0
          %5069 = vmatprep.subr.mxu0 0.0
          %5070 = vmatpush2.msra.mxu0 0.0
          %5071 = vmatprep.subr.mxu0 0.0
          %5072 = vmatpush2.msra.mxu0 0.0
          %5073 = vmatprep.subr.mxu0 0.0
          %5074 = vmatpush2.msra.mxu0 0.0
          %5075 = vmatprep.subr.mxu0 0.0
          %5076 = vmatpush2.msra.mxu0 0.0
          %5077 = vmatprep.subr.mxu0 0.0
          %5078 = vmatpush2.msra.mxu0 0.0
          %5079 = vmatprep.subr.mxu0 0.0
          %5080 = vmatpush2.msra.mxu0 0.0
          %5081 = vmatprep.subr.mxu0 0.0
          %5082 = vmatpush2.msra.mxu0 0.0
          %5083 = vmatprep.mubr.f32.mxu0 0.0
          %5084 = vmatmul.mubr.f32.gmra.mxu0 %v5014
          %v5085 = vpop.f32.mrf.mxu0
          %v5086 = vadd.f32 %v5011, %v5085
          %v5087 = vpop.f32.mrf.mxu0
          %5088 = vmatprep.mubr.f32.mxu0 0.0
          %5089 = vmatmul.mubr.f32.gmra.mxu0 %v5017
          %v5090 = vpop.f32.mrf.mxu0
          %v5091 = vadd.f32 %v5011, %v5090
          %v5092 = vpop.f32.mrf.mxu0
          %5093 = vdwg.mxu0
          %vm5094 = vcmask 15360
          %5095 = vst.msk [vmem:[%s1218] sm:$0xff] %vm5094, %v5086
          %5096 = vst.msk [vmem:[%s1218 + $0x8] sm:$0xff] %vm5094, %v5091
        $region136: #{smtp_forward.3} parent=123 // pred_fallthru
          _
        %s5097 = sand.u32 %s740, 1
        %s5098 = sand.u32 %s740, 1
        %s5099 = smul.addr %s5098, 16
        %s5100 = scalar_lea.vmem [#allocation5], %s5099
        // Predicated region
        $region137: #{smtp_forward.3} parent=123 // pred_check
          %p5101 = pneg %p750
        $region138: #{smtp_forward.3} parent=123 // pred_check_branch
          %5103 = sbr.rel (%p5101) target = $region140
        $region139: #{smtp_forward.3} parent=123 // pred_region
          %s5104 = smul.addr %s42, 8
          %s5105 = scalar_lea.vmem %s26, %s5104
          // Predicated region
          $region141: #{smtp_forward.3} parent=139 // pred_check
            _
          $region142: #{smtp_forward.3} parent=139 // pred_check_branch
            %5107 = sbr.rel (0) target = $region144
          $region143: #{smtp_forward.3} parent=139 // pred_region
            // Predicated region
            $region145: #{smtp_forward.3} parent=143 // pred_check
              _
            $region146: #{smtp_forward.3} parent=143 // pred_check_branch
              %5109 = sbr.rel (0) target = $region148
            $region147: #{smtp_forward.3} parent=143 // pred_region
              // Predicated region
              $region160: #{smtp_forward.3} parent=147 // pred_check
                _
              $region161: #{smtp_forward.3} parent=147 // pred_check_branch
                %5127 = sbr.rel (0) target = $region163
              $region162: #{smtp_forward.3} parent=147 // pred_region
                loop: start=0, step=1, limit=1
                $region164: #{smtp_forward.3} parent=162 // loop_pre_header
                  _
                $region165: #{smtp_forward.3} parent=162 // loop_header
                  %s5129 = sphi 0, %s5133
                  %p5130 = scmp.ge.s32.totalorder %s5129, 1
                  %s5134 = sphi %s5100, %s5100
                  %s5135 = sphi %s5105, %s5105
                $region166: #{smtp_forward.3} parent=162 // loop_header_branch
                  %5132 = sbr.rel (%p5130) target = $region170
                $region167: #{smtp_forward.3} parent=162 // loop_body
                  %v5136 = vld [vmem:[%s5134] sm:$0xff]
                  %5137 = vst [vmem:[%s5135] sm:$0xff] %v5136
                  %v5138 = vld [vmem:[%s5134 + $0x8] sm:$0xff]
                  %5139 = vst [vmem:[%s5135 + $0x18] sm:$0xff] %v5138
                $region168: #{smtp_forward.3} parent=162 // loop_footer
                  %s5133 = sadd.s32 1, %s5129
                $region169: #{smtp_forward.3} parent=162 // loop_footer_branch
                  %5128 = sbr.rel target = $region165
                $region170: #{smtp_forward.3} parent=162 // loop_exit
                  _
              $region163: #{smtp_forward.3} parent=147 // pred_fallthru
                _
              // Predicated region
              $region171: #{smtp_forward.3} parent=147 // pred_check
                _
              $region172: #{smtp_forward.3} parent=147 // pred_check_branch
                %5141 = sbr.rel target = $region174
              $region173: #{smtp_forward.3} parent=147 // pred_region
                _
              $region174: #{smtp_forward.3} parent=147 // pred_fallthru
                _
            $region148: #{smtp_forward.3} parent=143 // pred_fallthru
              _
            // Predicated region
            $region149: #{smtp_forward.3} parent=143 // pred_check
              _
            $region150: #{smtp_forward.3} parent=143 // pred_check_branch
              %5111 = sbr.rel target = $region152
            $region151: #{smtp_forward.3} parent=143 // pred_region
              %s5113 = ssub.s32 256, 1
              loop: start=0, step=1, limit=1
              $region153: #{smtp_forward.3} parent=151 // loop_pre_header
                _
              $region154: #{smtp_forward.3} parent=151 // loop_header
                %s5115 = sphi 0, %s5119
                %p5116 = scmp.ge.s32.totalorder %s5115, 1
                %s5120 = sphi %s5100, %s5100
                %s5121 = sphi %s5105, %s5105
              $region155: #{smtp_forward.3} parent=151 // loop_header_branch
                %5118 = sbr.rel (%p5116) target = $region159
              $region156: #{smtp_forward.3} parent=151 // loop_body
                %v5122 = vld [vmem:[%s5120] sm:%s5113]
                %5123 = vst [vmem:[%s5121] sm:%s5113] %v5122
                %v5124 = vld [vmem:[%s5120 + $0x8] sm:%s5113]
                %5125 = vst [vmem:[%s5121 + $0x18] sm:%s5113] %v5124
              $region157: #{smtp_forward.3} parent=151 // loop_footer
                %s5119 = sadd.s32 1, %s5115
              $region158: #{smtp_forward.3} parent=151 // loop_footer_branch
                %5114 = sbr.rel target = $region154
              $region159: #{smtp_forward.3} parent=151 // loop_exit
                _
            $region152: #{smtp_forward.3} parent=143 // pred_fallthru
              _
          $region144: #{smtp_forward.3} parent=139 // pred_fallthru
            _
          %5142 = vnop
        $region140: #{smtp_forward.3} parent=123 // pred_fallthru
          _
      $region124: #{smtp_forward.3} parent=5 // pred_fallthru
        _
      %p5143 = scmp.le.s32.totalorder 2, %s33
      // Predicated region
      $region175: #{smtp_forward.3} parent=5 // pred_check
        %p5144 = pneg %p5143
      $region176: #{smtp_forward.3} parent=5 // pred_check_branch
        %5146 = sbr.rel (%p5144) target = $region178
      $region177: #{smtp_forward.3} parent=5 // pred_region
        %s5147 = ssub.s32 %s33, 2
        // Predicated region
        $region179: #{smtp_forward.3} parent=177 // pred_check
          %p5148 = pneg %p756
        $region180: #{smtp_forward.3} parent=177 // pred_check_branch
          %5150 = sbr.rel (%p5148) target = $region182
        $region181: #{smtp_forward.3} parent=177 // pred_region
          %s5151 = sand.u32 %s741, 1
          %s5152 = sand.u32 %s741, 1
          %s5153 = smul.addr %s5152, 16
          %s5154 = scalar_lea.vmem [#allocation5], %s5153
        $region182: #{smtp_forward.3} parent=177 // pred_fallthru
          _
      $region178: #{smtp_forward.3} parent=5 // pred_fallthru
        _
    $region6: #{smtp_forward.3} parent=1 // loop_footer
      %s37 = sadd.s32 1, %s33
    $region7: #{smtp_forward.3} parent=1 // loop_footer_branch
      %32 = sbr.rel target = $region3
    $region8: #{smtp_forward.3} parent=1 // loop_exit
      _
    %5155 = vsyncpa [#allocation4], 1
    %s5156 = scalar_lea.sflag [#allocation4], 1
    %5157 = vsyncpa %s5156, 1

</llo_original>
